<compile_context>
chip_gen: v5e
topology: v5e:2x2
jax: 0.10.0
libtpu: 0.0.40
codegen_flags: <defaults>
</compile_context>

<pallas_src>
import functools
import math

import jax
import jax.numpy as jnp
from jax.experimental import pallas as pl
from jax.experimental.pallas import tpu as pltpu

INPUT_SIZE = 3
HIDDEN = 64
NHEAD = 2
HEAD_DIM = HIDDEN // NHEAD
NUM_LAYERS = 2
FFN = 2048          # PyTorch TransformerEncoderLayer default dim_feedforward
FFN_CHUNK = 256     # inner-dim chunk for the bf16 FFN matmuls
EPS = 1e-5          # PyTorch LayerNorm default eps


def _layernorm(x, w, b):
    mu = jnp.mean(x, axis=-1, keepdims=True)
    xc = x - mu
    var = jnp.mean(xc * xc, axis=-1, keepdims=True)
    return xc * jax.lax.rsqrt(var + EPS) * w + b


def _compiler_params():
    # 32 MiB is comfortable at these sizes and is also safe on v7x (64 MiB
    # physical).  Raise toward 64-96 MiB on v5e/v6e only if S/TS grow.
    return pltpu.CompilerParams(
        dimension_semantics=("parallel",),
        vmem_limit_bytes=32 * 1024 * 1024,
    )


def _resident(shape):
    """BlockSpec for data that stays VMEM-resident across the whole grid.

    Constant index_map (DMA'd once) + single buffering: the second pipeline
    buffer would be pure waste for a revisited block.
    """
    zeros = (0,) * len(shape)
    return pl.BlockSpec(shape, lambda i, zeros=zeros: zeros,
                        pipeline_mode=pl.Buffered(1))


def _row_tile(S):
    """Pick a query row-tile size.

    Prefer tiles that (a) divide S and (b) give a grid of >= 2 steps so the
    "parallel" axis can shard across v7x's two TensorCores.
    """
    for ts in (256, 128, 64, 32, 16, 8):
        if S % ts == 0 and S // ts >= 2:
            return ts
    for ts in (128, 64, 32, 16, 8):
        if S % ts == 0:
            return ts
    # TODO(synk): pad ragged S to a multiple of 8 (with key masking) instead
    # of falling back to one full-array block.
    return S


# ---------------------------------------------------------------------------
# Fused encoder-layer kernel: QKV projection + attention + LN1 + FFN + LN2
# (+ final Linear(64,1) on the last layer).  Gridded over query row tiles.
# ---------------------------------------------------------------------------
def layer_kernel(final, ts, x_ref,
                 wq_ref, bq_ref, wk_ref, bk_ref, wv_ref, bv_ref,
                 wo_ref, bo_ref, ln1w_ref, ln1b_ref,
                 w1_ref, b1_ref, w2_ref, b2_ref, ln2w_ref, ln2b_ref,
                 *rest):
    f32 = jnp.float32
    bf16 = jnp.bfloat16
    if final:
        wout_ref, bout_ref, o_ref = rest
    else:
        (o_ref,) = rest

    row0 = pl.multiple_of(pl.program_id(0) * ts, ts)
    x_full = x_ref[...]                    # (S, H): source of K/V
    x_tile = x_ref[pl.ds(row0, ts), :]     # (TS, H): queries + residual

    # --- multi-head self-attention; head concat folded into the output
    #     projection by accumulating per-head partial products. ---
    acc = jnp.zeros((ts, HIDDEN), f32)
    for h in range(NHEAD):
        # Softmax scale is pre-folded into wq/bq.
        qh = jnp.dot(x_tile, wq_ref[h], preferred_element_type=f32) + bq_ref[h]
        kh = jnp.dot(x_full, wk_ref[h], preferred_element_type=f32) + bk_ref[h]
        vh = jnp.dot(x_full, wv_ref[h], preferred_element_type=f32) + bv_ref[h]
        # scores: (TS, HD) x (S, HD), contracting the head dim -> (TS, S)
        s = jax.lax.dot_general(qh, kh, (((1,), (1,)), ((), ())),
                                preferred_element_type=f32)
        s = s - jnp.max(s, axis=-1, keepdims=True)
        p = jnp.exp(s)
        # EUP reciprocal (free slot) instead of a VPU divide.
        p = p * pl.reciprocal(jnp.sum(p, axis=-1, keepdims=True), approx=True)
        # Keep p@V in f32 (safe on v5e; bf16 p is a v6e/v7x-only micro-opt).
        hh = jnp.dot(p, vh, preferred_element_type=f32)            # (TS, HD)
        acc = acc + jnp.dot(hh, wo_ref[h], preferred_element_type=f32)

    x1 = _layernorm(x_tile + acc + bo_ref[...], ln1w_ref[...], ln1b_ref[...])

    # --- FFN: bf16 MXU matmuls with f32 accumulation, chunked over the 2048
    #     hidden dim so the live intermediate stays (TS, 256). ---
    x1_bf = x1.astype(bf16)
    ff = jnp.zeros((ts, HIDDEN), f32)
    for c in range(FFN // FFN_CHUNK):
        lo, hi = c * FFN_CHUNK, (c + 1) * FFN_CHUNK
        h1 = jnp.dot(x1_bf, w1_ref[:, lo:hi], preferred_element_type=f32)
        h1 = jnp.maximum(h1 + b1_ref[:, lo:hi], 0.0)
        ff = ff + jnp.dot(h1.astype(bf16), w2_ref[lo:hi, :],
                          preferred_element_type=f32)

    x2 = _layernorm(x1 + ff + b2_ref[...], ln2w_ref[...], ln2b_ref[...])

    if final:
        # Linear(64, 1) as multiply + lane reduction -> dense (TS, 1) column.
        o_ref[...] = (jnp.sum(x2 * wout_ref[...], axis=-1, keepdims=True)
                      + bout_ref[...])
    else:
        o_ref[...] = x2


# ---------------------------------------------------------------------------
# Wrapper: one encoder layer = one pallas_call.
# ---------------------------------------------------------------------------
def encoder_layer(x, lp, *, final, wout=None, bout=None):
    S = x.shape[0]
    TS = _row_tile(S)
    grid = (S // TS,)

    in_specs = [
        _resident((S, HIDDEN)),                 # x: full sequence, resident
        _resident((NHEAD, HIDDEN, HEAD_DIM)),   # wq (scale folded in)
        _resident((NHEAD, 1, HEAD_DIM)),        # bq (scale folded in)
        _resident((NHEAD, HIDDEN, HEAD_DIM)),   # wk
        _resident((NHEAD, 1, HEAD_DIM)),        # bk
        _resident((NHEAD, HIDDEN, HEAD_DIM)),   # wv
        _resident((NHEAD, 1, HEAD_DIM)),        # bv
        _resident((NHEAD, HEAD_DIM, HIDDEN)),   # wo (head-major)
        _resident((1, HIDDEN)),                 # bo
        _resident((1, HIDDEN)), _resident((1, HIDDEN)),     # ln1 w, b
        _resident((HIDDEN, FFN)), _resident((1, FFN)),      # w1 (bf16), b1
        _resident((FFN, HIDDEN)), _resident((1, HIDDEN)),   # w2 (bf16), b2
        _resident((1, HIDDEN)), _resident((1, HIDDEN)),     # ln2 w, b
    ]
    inputs = [x, lp["wq"], lp["bq"], lp["wk"], lp["bk"], lp["wv"], lp["bv"],
              lp["wo"], lp["bo"], lp["ln1w"], lp["ln1b"],
              lp["w1"], lp["b1"], lp["w2"], lp["b2"], lp["ln2w"], lp["ln2b"]]

    if final:
        in_specs += [_resident((1, HIDDEN)), _resident((1, 1))]
        inputs += [wout, bout]
        out_spec = pl.BlockSpec((TS, 1), lambda i: (i, 0))
        out_shape = jax.ShapeDtypeStruct((S, 1), jnp.float32)
    else:
        out_spec = pl.BlockSpec((TS, HIDDEN), lambda i: (i, 0))
        out_shape = jax.ShapeDtypeStruct((S, HIDDEN), jnp.float32)

    return pl.pallas_call(
        functools.partial(layer_kernel, final, TS),
        grid=grid,
        in_specs=in_specs,
        out_specs=out_spec,
        out_shape=out_shape,
        compiler_params=_compiler_params(),
    )(*inputs)


def prepare_layer(p, l):
    """Head-major weight layout; softmax scale folded into wq/bq; bf16 FFN."""
    scale = 1.0 / math.sqrt(HEAD_DIM)

    def head_cols(w):   # (H, H) -> (NHEAD, H, HEAD_DIM): per-head output cols
        return w.reshape(HIDDEN, NHEAD, HEAD_DIM).transpose(1, 0, 2)

    def head_bias(b):   # (1, H) -> (NHEAD, 1, HEAD_DIM)
        return b.reshape(NHEAD, 1, HEAD_DIM)

    return {
        "wq": head_cols(p["wq"][l] * scale), "bq": head_bias(p["bq"][l] * scale),
        "wk": head_cols(p["wk"][l]), "bk": head_bias(p["bk"][l]),
        "wv": head_cols(p["wv"][l]), "bv": head_bias(p["bv"][l]),
        "wo": p["wo"][l].reshape(NHEAD, HEAD_DIM, HIDDEN), "bo": p["bo"][l],
        "ln1w": p["ln1w"][l], "ln1b": p["ln1b"][l],
        "w1": p["w1"][l].astype(jnp.bfloat16), "b1": p["b1"][l],
        "w2": p["w2"][l].astype(jnp.bfloat16), "b2": p["b2"][l],
        "ln2w": p["ln2w"][l], "ln2b": p["ln2b"][l],
    }


def transformer_forward(src, p):
    """src: (S, INPUT_SIZE) float32 -> (S,) float32 (matches x.squeeze())."""
    # Tiny (S,3)@(3,64) input projection stays in XLA (full f32 precision).
    x = jnp.dot(src.astype(jnp.float32), p["w_in"],
                precision=jax.lax.Precision.HIGHEST) + p["b_in"]
    wout = p["w_out"].reshape(1, HIDDEN)
    bout = p["b_out"].reshape(1, 1)
    for l in range(NUM_LAYERS):
        final = (l == NUM_LAYERS - 1)
        x = encoder_layer(x, prepare_layer(p, l), final=final,
                          wout=wout if final else None,
                          bout=bout if final else None)
    return x[:, 0]


# ---------------------------------------------------------------------------
# Synthetic parameters + pure-JAX references (PyTorch eval-mode semantics).
# ---------------------------------------------------------------------------
def init_params(key):
    def nrm(k, shape, scale=0.1):
        return scale * jax.random.normal(k, shape, jnp.float32)

    keys = iter(jax.random.split(key, 32))
    L = NUM_LAYERS
    return {
        "w_in": nrm(next(keys), (INPUT_SIZE, HIDDEN)),
        "b_in": nrm(next(keys), (1, HIDDEN)),
        "wq": nrm(next(keys), (L, HIDDEN, HIDDEN)),
        "wk": nrm(next(keys), (L, HIDDEN, HIDDEN)),
        "wv": nrm(next(keys), (L, HIDDEN, HIDDEN)),
        "wo": nrm(next(keys), (L, HIDDEN, HIDDEN)),
        "bq": nrm(next(keys), (L, 1, HIDDEN)),
        "bk": nrm(next(keys), (L, 1, HIDDEN)),
        "bv": nrm(next(keys), (L, 1, HIDDEN)),
        "bo": nrm(next(keys), (L, 1, HIDDEN)),
        "ln1w": jnp.ones((L, 1, HIDDEN), jnp.float32),
        "ln1b": jnp.zeros((L, 1, HIDDEN), jnp.float32),
        "ln2w": jnp.ones((L, 1, HIDDEN), jnp.float32),
        "ln2b": jnp.zeros((L, 1, HIDDEN), jnp.float32),
        "w1": nrm(next(keys), (L, HIDDEN, FFN), 0.05),
        "b1": nrm(next(keys), (L, 1, FFN), 0.05),
        "w2": nrm(next(keys), (L, FFN, HIDDEN), 0.05),
        "b2": nrm(next(keys), (L, 1, HIDDEN), 0.05),
        "w_out": nrm(next(keys), (HIDDEN,)),
        "b_out": nrm(next(keys), ()),
    }


def reference_forward(src, p, ffn_dtype=jnp.float32):
    """Pure-JAX reference; ffn_dtype=bfloat16 mirrors the kernel's FFN cast."""
    with jax.default_matmul_precision("float32"):
        x = src @ p["w_in"] + p["b_in"]
        scale = 1.0 / math.sqrt(HEAD_DIM)
        for l in range(NUM_LAYERS):
            q = x @ p["wq"][l] + p["bq"][l]
            k = x @ p["wk"][l] + p["bk"][l]
            v = x @ p["wv"][l] + p["bv"][l]
            heads = []
            for h in range(NHEAD):
                sl = slice(h * HEAD_DIM, (h + 1) * HEAD_DIM)
                s = (q[:, sl] @ k[:, sl].T) * scale
                pr = jax.nn.softmax(s, axis=-1)
                heads.append(pr @ v[:, sl])
            attn = jnp.concatenate(heads, axis=-1) @ p["wo"][l] + p["bo"][l]
            x = _layernorm(x + attn, p["ln1w"][l], p["ln1b"][l])
            w1 = p["w1"][l].astype(ffn_dtype)
            w2 = p["w2"][l].astype(ffn_dtype)
            h1 = jnp.dot(x.astype(ffn_dtype), w1,
                         preferred_element_type=jnp.float32) + p["b1"][l]
            h1 = jnp.maximum(h1, 0.0)
            ff = jnp.dot(h1.astype(ffn_dtype), w2,
                         preferred_element_type=jnp.float32) + p["b2"][l]
            x = _layernorm(x + ff, p["ln2w"][l], p["ln2b"][l])
        return x @ p["w_out"] + p["b_out"]


if __name__ == "__main__":
    key = jax.random.PRNGKey(0)
    pkey, xkey = jax.random.split(key)
    params = init_params(pkey)

    S = 256  # small, but exercises the "parallel" sequence grid (2 tiles of 128)
    src = jax.random.normal(xkey, (S, INPUT_SIZE), jnp.float32)

    out = jax.block_until_ready(transformer_forward(src, params))
    ref_bf16 = reference_forward(src, params, ffn_dtype=jnp.bfloat16)
    ref_f32 = reference_forward(src, params, ffn_dtype=jnp.float32)

    if out.shape != (S,):
        raise AssertionError(f"bad output shape {out.shape}")
    # Tight check vs a precision-matched (bf16-FFN) reference: isolates real
    # bugs from the deliberate bf16 / approx-reciprocal approximations.
    if not jnp.allclose(out, ref_bf16, atol=5e-3, rtol=5e-3):
        err = jnp.max(jnp.abs(out - ref_bf16))
        raise AssertionError(f"mismatch vs bf16-matched reference: {err}")
    # Loose sanity check vs the exact f32 reference: documents the bf16-FFN
    # error budget (structural bugs would be orders of magnitude larger).
    if not jnp.allclose(out, ref_f32, atol=3e-2, rtol=3e-2):
        err = jnp.max(jnp.abs(out - ref_f32))
        raise AssertionError(f"mismatch vs f32 reference: {err}")
    print("KERNEL_OK")
</pallas_src>

<mosaic_0001>
module attributes {stable_mosaic.version = 11 : i64} {
  func.func @layer_kernel(%arg0: i32, %arg1: memref<256x64xf32, #tpu.memory_space<vmem>>, %arg2: memref<2x64x32xf32, #tpu.memory_space<vmem>>, %arg3: memref<2x1x32xf32, #tpu.memory_space<vmem>>, %arg4: memref<2x64x32xf32, #tpu.memory_space<vmem>>, %arg5: memref<2x1x32xf32, #tpu.memory_space<vmem>>, %arg6: memref<2x64x32xf32, #tpu.memory_space<vmem>>, %arg7: memref<2x1x32xf32, #tpu.memory_space<vmem>>, %arg8: memref<2x32x64xf32, #tpu.memory_space<vmem>>, %arg9: memref<1x64xf32, #tpu.memory_space<vmem>>, %arg10: memref<1x64xf32, #tpu.memory_space<vmem>>, %arg11: memref<1x64xf32, #tpu.memory_space<vmem>>, %arg12: memref<64x2048xbf16, #tpu.memory_space<vmem>>, %arg13: memref<1x2048xf32, #tpu.memory_space<vmem>>, %arg14: memref<2048x64xbf16, #tpu.memory_space<vmem>>, %arg15: memref<1x64xf32, #tpu.memory_space<vmem>>, %arg16: memref<1x64xf32, #tpu.memory_space<vmem>>, %arg17: memref<1x64xf32, #tpu.memory_space<vmem>>, %arg18: memref<128x64xf32, #tpu.memory_space<vmem>>) attributes {dimension_semantics = [#tpu.dimension_semantics<parallel>], iteration_bounds = array<i64: 2>, scalar_prefetch = 0 : i64, scratch_operands = 0 : i64, tpu.core_type = #tpu.core_type<tc>, window_params = [{pipeline_mode = #tpu.pipeline_mode<synchronous>, transform_indices = @transform_0, window_bounds = array<i64: 256, 64>}, {pipeline_mode = #tpu.pipeline_mode<synchronous>, transform_indices = @transform_1, window_bounds = array<i64: 2, 64, 32>}, {pipeline_mode = #tpu.pipeline_mode<synchronous>, transform_indices = @transform_2, window_bounds = array<i64: 2, 1, 32>}, {pipeline_mode = #tpu.pipeline_mode<synchronous>, transform_indices = @transform_3, window_bounds = array<i64: 2, 64, 32>}, {pipeline_mode = #tpu.pipeline_mode<synchronous>, transform_indices = @transform_4, window_bounds = array<i64: 2, 1, 32>}, {pipeline_mode = #tpu.pipeline_mode<synchronous>, transform_indices = @transform_5, window_bounds = array<i64: 2, 64, 32>}, {pipeline_mode = #tpu.pipeline_mode<synchronous>, transform_indices = @transform_6, window_bounds = array<i64: 2, 1, 32>}, {pipeline_mode = #tpu.pipeline_mode<synchronous>, transform_indices = @transform_7, window_bounds = array<i64: 2, 32, 64>}, {pipeline_mode = #tpu.pipeline_mode<synchronous>, transform_indices = @transform_8, window_bounds = array<i64: 1, 64>}, {pipeline_mode = #tpu.pipeline_mode<synchronous>, transform_indices = @transform_9, window_bounds = array<i64: 1, 64>}, {pipeline_mode = #tpu.pipeline_mode<synchronous>, transform_indices = @transform_10, window_bounds = array<i64: 1, 64>}, {pipeline_mode = #tpu.pipeline_mode<synchronous>, transform_indices = @transform_11, window_bounds = array<i64: 64, 2048>}, {pipeline_mode = #tpu.pipeline_mode<synchronous>, transform_indices = @transform_12, window_bounds = array<i64: 1, 2048>}, {pipeline_mode = #tpu.pipeline_mode<synchronous>, transform_indices = @transform_13, window_bounds = array<i64: 2048, 64>}, {pipeline_mode = #tpu.pipeline_mode<synchronous>, transform_indices = @transform_14, window_bounds = array<i64: 1, 64>}, {pipeline_mode = #tpu.pipeline_mode<synchronous>, transform_indices = @transform_15, window_bounds = array<i64: 1, 64>}, {pipeline_mode = #tpu.pipeline_mode<synchronous>, transform_indices = @transform_16, window_bounds = array<i64: 1, 64>}, {transform_indices = @transform_17, window_bounds = array<i64: 128, 64>}]} {
    %c128_i32 = arith.constant 128 : i32
    %0 = arith.muli %arg0, %c128_i32 : i32
    %1 = tpu.assume_multiple %0, 128 : i32
    %c0 = arith.constant 0 : index
    %c0_0 = arith.constant 0 : index
    %2 = vector.load %arg1[%c0, %c0_0] : memref<256x64xf32, #tpu.memory_space<vmem>>, vector<256x64xf32>
    %3 = arith.index_cast %1 : i32 to index
    %c0_1 = arith.constant 0 : index
    %4 = vector.load %arg1[%3, %c0_1] : memref<256x64xf32, #tpu.memory_space<vmem>>, vector<128x64xf32>
    %cst = arith.constant 0.000000e+00 : f32
    %5 = vector.broadcast %cst : f32 to vector<128x64xf32>
    %c0_2 = arith.constant 0 : index
    %c0_3 = arith.constant 0 : index
    %c0_4 = arith.constant 0 : index
    %6 = vector.load %arg2[%c0_2, %c0_3, %c0_4] : memref<2x64x32xf32, #tpu.memory_space<vmem>>, vector<1x64x32xf32>
    %7 = vector.shape_cast %6 : vector<1x64x32xf32> to vector<64x32xf32>
    %cst_5 = arith.constant dense<0.000000e+00> : vector<128x32xf32>
    %8 = tpu.matmul %4, %7, %cst_5 {dimension_numbers = #tpu.dot_dimension_numbers<[1], [0], [0], [1], [0, 0, 1, 1], [], []>} : vector<128x64xf32>, vector<64x32xf32>, vector<128x32xf32> -> vector<128x32xf32>
    %c0_6 = arith.constant 0 : index
    %c0_7 = arith.constant 0 : index
    %c0_8 = arith.constant 0 : index
    %9 = vector.load %arg3[%c0_6, %c0_7, %c0_8] : memref<2x1x32xf32, #tpu.memory_space<vmem>>, vector<1x1x32xf32>
    %10 = vector.shape_cast %9 : vector<1x1x32xf32> to vector<1x32xf32>
    %11 = vector.broadcast %10 : vector<1x32xf32> to vector<128x32xf32>
    %12 = arith.addf %8, %11 : vector<128x32xf32>
    %c0_9 = arith.constant 0 : index
    %c0_10 = arith.constant 0 : index
    %c0_11 = arith.constant 0 : index
    %13 = vector.load %arg4[%c0_9, %c0_10, %c0_11] : memref<2x64x32xf32, #tpu.memory_space<vmem>>, vector<1x64x32xf32>
    %14 = vector.shape_cast %13 : vector<1x64x32xf32> to vector<64x32xf32>
    %cst_12 = arith.constant dense<0.000000e+00> : vector<256x32xf32>
    %15 = tpu.matmul %2, %14, %cst_12 {dimension_numbers = #tpu.dot_dimension_numbers<[1], [0], [0], [1], [0, 0, 1, 1], [], []>} : vector<256x64xf32>, vector<64x32xf32>, vector<256x32xf32> -> vector<256x32xf32>
    %c0_13 = arith.constant 0 : index
    %c0_14 = arith.constant 0 : index
    %c0_15 = arith.constant 0 : index
    %16 = vector.load %arg5[%c0_13, %c0_14, %c0_15] : memref<2x1x32xf32, #tpu.memory_space<vmem>>, vector<1x1x32xf32>
    %17 = vector.shape_cast %16 : vector<1x1x32xf32> to vector<1x32xf32>
    %18 = vector.broadcast %17 : vector<1x32xf32> to vector<256x32xf32>
    %19 = arith.addf %15, %18 : vector<256x32xf32>
    %c0_16 = arith.constant 0 : index
    %c0_17 = arith.constant 0 : index
    %c0_18 = arith.constant 0 : index
    %20 = vector.load %arg6[%c0_16, %c0_17, %c0_18] : memref<2x64x32xf32, #tpu.memory_space<vmem>>, vector<1x64x32xf32>
    %21 = vector.shape_cast %20 : vector<1x64x32xf32> to vector<64x32xf32>
    %cst_19 = arith.constant dense<0.000000e+00> : vector<256x32xf32>
    %22 = tpu.matmul %2, %21, %cst_19 {dimension_numbers = #tpu.dot_dimension_numbers<[1], [0], [0], [1], [0, 0, 1, 1], [], []>} : vector<256x64xf32>, vector<64x32xf32>, vector<256x32xf32> -> vector<256x32xf32>
    %c0_20 = arith.constant 0 : index
    %c0_21 = arith.constant 0 : index
    %c0_22 = arith.constant 0 : index
    %23 = vector.load %arg7[%c0_20, %c0_21, %c0_22] : memref<2x1x32xf32, #tpu.memory_space<vmem>>, vector<1x1x32xf32>
    %24 = vector.shape_cast %23 : vector<1x1x32xf32> to vector<1x32xf32>
    %25 = vector.broadcast %24 : vector<1x32xf32> to vector<256x32xf32>
    %26 = arith.addf %22, %25 : vector<256x32xf32>
    %cst_23 = arith.constant dense<0.000000e+00> : vector<128x256xf32>
    %27 = tpu.matmul %12, %19, %cst_23 {dimension_numbers = #tpu.dot_dimension_numbers<[1], [1], [0], [0], [0, 0, 1, 0], [], []>} : vector<128x32xf32>, vector<256x32xf32>, vector<128x256xf32> -> vector<128x256xf32>
    %cst_24 = arith.constant dense<0xFF800000> : vector<128xf32>
    %28 = vector.multi_reduction <maximumf>, %27, %cst_24 [1] : vector<128x256xf32> to vector<128xf32>
    %29 = vector.shape_cast %28 : vector<128xf32> to vector<128x1xf32>
    %30 = vector.broadcast %29 : vector<128x1xf32> to vector<128x256xf32>
    %31 = arith.subf %27, %30 : vector<128x256xf32>
    %32 = math.exp %31 : vector<128x256xf32>
    %cst_25 = arith.constant dense<0.000000e+00> : vector<128xf32>
    %33 = vector.multi_reduction <add>, %32, %cst_25 [1] : vector<128x256xf32> to vector<128xf32>
    %34 = vector.shape_cast %33 : vector<128xf32> to vector<128x1xf32>
    %35 = tpu.reciprocal %34 {approx = true} : vector<128x1xf32> -> vector<128x1xf32>
    %36 = vector.broadcast %35 : vector<128x1xf32> to vector<128x256xf32>
    %37 = arith.mulf %32, %36 : vector<128x256xf32>
    %cst_26 = arith.constant dense<0.000000e+00> : vector<128x32xf32>
    %38 = tpu.matmul %37, %26, %cst_26 {dimension_numbers = #tpu.dot_dimension_numbers<[1], [0], [0], [1], [0, 0, 1, 1], [], []>} : vector<128x256xf32>, vector<256x32xf32>, vector<128x32xf32> -> vector<128x32xf32>
    %c0_27 = arith.constant 0 : index
    %c0_28 = arith.constant 0 : index
    %c0_29 = arith.constant 0 : index
    %39 = vector.load %arg8[%c0_27, %c0_28, %c0_29] : memref<2x32x64xf32, #tpu.memory_space<vmem>>, vector<1x32x64xf32>
    %40 = vector.shape_cast %39 : vector<1x32x64xf32> to vector<32x64xf32>
    %cst_30 = arith.constant dense<0.000000e+00> : vector<128x64xf32>
    %41 = tpu.matmul %38, %40, %cst_30 {dimension_numbers = #tpu.dot_dimension_numbers<[1], [0], [0], [1], [0, 0, 1, 1], [], []>} : vector<128x32xf32>, vector<32x64xf32>, vector<128x64xf32> -> vector<128x64xf32>
    %42 = arith.addf %5, %41 : vector<128x64xf32>
    %c1 = arith.constant 1 : index
    %c0_31 = arith.constant 0 : index
    %c0_32 = arith.constant 0 : index
    %43 = vector.load %arg2[%c1, %c0_31, %c0_32] : memref<2x64x32xf32, #tpu.memory_space<vmem>>, vector<1x64x32xf32>
    %44 = vector.shape_cast %43 : vector<1x64x32xf32> to vector<64x32xf32>
    %cst_33 = arith.constant dense<0.000000e+00> : vector<128x32xf32>
    %45 = tpu.matmul %4, %44, %cst_33 {dimension_numbers = #tpu.dot_dimension_numbers<[1], [0], [0], [1], [0, 0, 1, 1], [], []>} : vector<128x64xf32>, vector<64x32xf32>, vector<128x32xf32> -> vector<128x32xf32>
    %c1_34 = arith.constant 1 : index
    %c0_35 = arith.constant 0 : index
    %c0_36 = arith.constant 0 : index
    %46 = vector.load %arg3[%c1_34, %c0_35, %c0_36] : memref<2x1x32xf32, #tpu.memory_space<vmem>>, vector<1x1x32xf32>
    %47 = vector.shape_cast %46 : vector<1x1x32xf32> to vector<1x32xf32>
    %48 = vector.broadcast %47 : vector<1x32xf32> to vector<128x32xf32>
    %49 = arith.addf %45, %48 : vector<128x32xf32>
    %c1_37 = arith.constant 1 : index
    %c0_38 = arith.constant 0 : index
    %c0_39 = arith.constant 0 : index
    %50 = vector.load %arg4[%c1_37, %c0_38, %c0_39] : memref<2x64x32xf32, #tpu.memory_space<vmem>>, vector<1x64x32xf32>
    %51 = vector.shape_cast %50 : vector<1x64x32xf32> to vector<64x32xf32>
    %cst_40 = arith.constant dense<0.000000e+00> : vector<256x32xf32>
    %52 = tpu.matmul %2, %51, %cst_40 {dimension_numbers = #tpu.dot_dimension_numbers<[1], [0], [0], [1], [0, 0, 1, 1], [], []>} : vector<256x64xf32>, vector<64x32xf32>, vector<256x32xf32> -> vector<256x32xf32>
    %c1_41 = arith.constant 1 : index
    %c0_42 = arith.constant 0 : index
    %c0_43 = arith.constant 0 : index
    %53 = vector.load %arg5[%c1_41, %c0_42, %c0_43] : memref<2x1x32xf32, #tpu.memory_space<vmem>>, vector<1x1x32xf32>
    %54 = vector.shape_cast %53 : vector<1x1x32xf32> to vector<1x32xf32>
    %55 = vector.broadcast %54 : vector<1x32xf32> to vector<256x32xf32>
    %56 = arith.addf %52, %55 : vector<256x32xf32>
    %c1_44 = arith.constant 1 : index
    %c0_45 = arith.constant 0 : index
    %c0_46 = arith.constant 0 : index
    %57 = vector.load %arg6[%c1_44, %c0_45, %c0_46] : memref<2x64x32xf32, #tpu.memory_space<vmem>>, vector<1x64x32xf32>
    %58 = vector.shape_cast %57 : vector<1x64x32xf32> to vector<64x32xf32>
    %cst_47 = arith.constant dense<0.000000e+00> : vector<256x32xf32>
    %59 = tpu.matmul %2, %58, %cst_47 {dimension_numbers = #tpu.dot_dimension_numbers<[1], [0], [0], [1], [0, 0, 1, 1], [], []>} : vector<256x64xf32>, vector<64x32xf32>, vector<256x32xf32> -> vector<256x32xf32>
    %c1_48 = arith.constant 1 : index
    %c0_49 = arith.constant 0 : index
    %c0_50 = arith.constant 0 : index
    %60 = vector.load %arg7[%c1_48, %c0_49, %c0_50] : memref<2x1x32xf32, #tpu.memory_space<vmem>>, vector<1x1x32xf32>
    %61 = vector.shape_cast %60 : vector<1x1x32xf32> to vector<1x32xf32>
    %62 = vector.broadcast %61 : vector<1x32xf32> to vector<256x32xf32>
    %63 = arith.addf %59, %62 : vector<256x32xf32>
    %cst_51 = arith.constant dense<0.000000e+00> : vector<128x256xf32>
    %64 = tpu.matmul %49, %56, %cst_51 {dimension_numbers = #tpu.dot_dimension_numbers<[1], [1], [0], [0], [0, 0, 1, 0], [], []>} : vector<128x32xf32>, vector<256x32xf32>, vector<128x256xf32> -> vector<128x256xf32>
    %cst_52 = arith.constant dense<0xFF800000> : vector<128xf32>
    %65 = vector.multi_reduction <maximumf>, %64, %cst_52 [1] : vector<128x256xf32> to vector<128xf32>
    %66 = vector.shape_cast %65 : vector<128xf32> to vector<128x1xf32>
    %67 = vector.broadcast %66 : vector<128x1xf32> to vector<128x256xf32>
    %68 = arith.subf %64, %67 : vector<128x256xf32>
    %69 = math.exp %68 : vector<128x256xf32>
    %cst_53 = arith.constant dense<0.000000e+00> : vector<128xf32>
    %70 = vector.multi_reduction <add>, %69, %cst_53 [1] : vector<128x256xf32> to vector<128xf32>
    %71 = vector.shape_cast %70 : vector<128xf32> to vector<128x1xf32>
    %72 = tpu.reciprocal %71 {approx = true} : vector<128x1xf32> -> vector<128x1xf32>
    %73 = vector.broadcast %72 : vector<128x1xf32> to vector<128x256xf32>
    %74 = arith.mulf %69, %73 : vector<128x256xf32>
    %cst_54 = arith.constant dense<0.000000e+00> : vector<128x32xf32>
    %75 = tpu.matmul %74, %63, %cst_54 {dimension_numbers = #tpu.dot_dimension_numbers<[1], [0], [0], [1], [0, 0, 1, 1], [], []>} : vector<128x256xf32>, vector<256x32xf32>, vector<128x32xf32> -> vector<128x32xf32>
    %c1_55 = arith.constant 1 : index
    %c0_56 = arith.constant 0 : index
    %c0_57 = arith.constant 0 : index
    %76 = vector.load %arg8[%c1_55, %c0_56, %c0_57] : memref<2x32x64xf32, #tpu.memory_space<vmem>>, vector<1x32x64xf32>
    %77 = vector.shape_cast %76 : vector<1x32x64xf32> to vector<32x64xf32>
    %cst_58 = arith.constant dense<0.000000e+00> : vector<128x64xf32>
    %78 = tpu.matmul %75, %77, %cst_58 {dimension_numbers = #tpu.dot_dimension_numbers<[1], [0], [0], [1], [0, 0, 1, 1], [], []>} : vector<128x32xf32>, vector<32x64xf32>, vector<128x64xf32> -> vector<128x64xf32>
    %79 = arith.addf %42, %78 : vector<128x64xf32>
    %80 = arith.addf %4, %79 : vector<128x64xf32>
    %c0_59 = arith.constant 0 : index
    %c0_60 = arith.constant 0 : index
    %81 = vector.load %arg9[%c0_59, %c0_60] : memref<1x64xf32, #tpu.memory_space<vmem>>, vector<1x64xf32>
    %82 = vector.broadcast %81 : vector<1x64xf32> to vector<128x64xf32>
    %83 = arith.addf %80, %82 : vector<128x64xf32>
    %c0_61 = arith.constant 0 : index
    %c0_62 = arith.constant 0 : index
    %84 = vector.load %arg10[%c0_61, %c0_62] : memref<1x64xf32, #tpu.memory_space<vmem>>, vector<1x64xf32>
    %c0_63 = arith.constant 0 : index
    %c0_64 = arith.constant 0 : index
    %85 = vector.load %arg11[%c0_63, %c0_64] : memref<1x64xf32, #tpu.memory_space<vmem>>, vector<1x64xf32>
    %cst_65 = arith.constant dense<0.000000e+00> : vector<128xf32>
    %86 = vector.multi_reduction <add>, %83, %cst_65 [1] : vector<128x64xf32> to vector<128xf32>
    %87 = vector.shape_cast %86 : vector<128xf32> to vector<128x1xf32>
    %cst_66 = arith.constant 6.400000e+01 : f32
    %88 = vector.broadcast %cst_66 : f32 to vector<128x1xf32>
    %89 = arith.divf %87, %88 : vector<128x1xf32>
    %90 = vector.broadcast %89 : vector<128x1xf32> to vector<128x64xf32>
    %91 = arith.subf %83, %90 : vector<128x64xf32>
    %92 = arith.mulf %91, %91 : vector<128x64xf32>
    %cst_67 = arith.constant dense<0.000000e+00> : vector<128xf32>
    %93 = vector.multi_reduction <add>, %92, %cst_67 [1] : vector<128x64xf32> to vector<128xf32>
    %94 = vector.shape_cast %93 : vector<128xf32> to vector<128x1xf32>
    %cst_68 = arith.constant 6.400000e+01 : f32
    %95 = vector.broadcast %cst_68 : f32 to vector<128x1xf32>
    %96 = arith.divf %94, %95 : vector<128x1xf32>
    %cst_69 = arith.constant 9.99999974E-6 : f32
    %97 = vector.broadcast %cst_69 : f32 to vector<128x1xf32>
    %98 = arith.addf %96, %97 : vector<128x1xf32>
    %99 = math.rsqrt %98 : vector<128x1xf32>
    %100 = vector.broadcast %99 : vector<128x1xf32> to vector<128x64xf32>
    %101 = arith.mulf %91, %100 : vector<128x64xf32>
    %102 = vector.broadcast %84 : vector<1x64xf32> to vector<128x64xf32>
    %103 = arith.mulf %101, %102 : vector<128x64xf32>
    %104 = vector.broadcast %85 : vector<1x64xf32> to vector<128x64xf32>
    %105 = arith.addf %103, %104 : vector<128x64xf32>
    %106 = arith.truncf %105 : vector<128x64xf32> to vector<128x64xbf16>
    %cst_70 = arith.constant 0.000000e+00 : f32
    %107 = vector.broadcast %cst_70 : f32 to vector<128x64xf32>
    %c0_71 = arith.constant 0 : index
    %c0_72 = arith.constant 0 : index
    %108 = vector.load %arg12[%c0_71, %c0_72] : memref<64x2048xbf16, #tpu.memory_space<vmem>>, vector<64x256xbf16>
    %cst_73 = arith.constant dense<0.000000e+00> : vector<128x256xf32>
    %109 = tpu.matmul %106, %108, %cst_73 {dimension_numbers = #tpu.dot_dimension_numbers<[1], [0], [0], [1], [0, 0, 1, 1], [], []>} : vector<128x64xbf16>, vector<64x256xbf16>, vector<128x256xf32> -> vector<128x256xf32>
    %c0_74 = arith.constant 0 : index
    %c0_75 = arith.constant 0 : index
    %110 = vector.load %arg13[%c0_74, %c0_75] : memref<1x2048xf32, #tpu.memory_space<vmem>>, vector<1x256xf32>
    %111 = vector.broadcast %110 : vector<1x256xf32> to vector<128x256xf32>
    %112 = arith.addf %109, %111 : vector<128x256xf32>
    %cst_76 = arith.constant 0.000000e+00 : f32
    %113 = vector.broadcast %cst_76 : f32 to vector<128x256xf32>
    %114 = arith.maximumf %112, %113 : vector<128x256xf32>
    %115 = arith.truncf %114 : vector<128x256xf32> to vector<128x256xbf16>
    %c0_77 = arith.constant 0 : index
    %c0_78 = arith.constant 0 : index
    %116 = vector.load %arg14[%c0_77, %c0_78] : memref<2048x64xbf16, #tpu.memory_space<vmem>>, vector<256x64xbf16>
    %cst_79 = arith.constant dense<0.000000e+00> : vector<128x64xf32>
    %117 = tpu.matmul %115, %116, %cst_79 {dimension_numbers = #tpu.dot_dimension_numbers<[1], [0], [0], [1], [0, 0, 1, 1], [], []>} : vector<128x256xbf16>, vector<256x64xbf16>, vector<128x64xf32> -> vector<128x64xf32>
    %118 = arith.addf %107, %117 : vector<128x64xf32>
    %c0_80 = arith.constant 0 : index
    %c256 = arith.constant 256 : index
    %119 = vector.load %arg12[%c0_80, %c256] : memref<64x2048xbf16, #tpu.memory_space<vmem>>, vector<64x256xbf16>
    %cst_81 = arith.constant dense<0.000000e+00> : vector<128x256xf32>
    %120 = tpu.matmul %106, %119, %cst_81 {dimension_numbers = #tpu.dot_dimension_numbers<[1], [0], [0], [1], [0, 0, 1, 1], [], []>} : vector<128x64xbf16>, vector<64x256xbf16>, vector<128x256xf32> -> vector<128x256xf32>
    %c0_82 = arith.constant 0 : index
    %c256_83 = arith.constant 256 : index
    %121 = vector.load %arg13[%c0_82, %c256_83] : memref<1x2048xf32, #tpu.memory_space<vmem>>, vector<1x256xf32>
    %122 = vector.broadcast %121 : vector<1x256xf32> to vector<128x256xf32>
    %123 = arith.addf %120, %122 : vector<128x256xf32>
    %cst_84 = arith.constant 0.000000e+00 : f32
    %124 = vector.broadcast %cst_84 : f32 to vector<128x256xf32>
    %125 = arith.maximumf %123, %124 : vector<128x256xf32>
    %126 = arith.truncf %125 : vector<128x256xf32> to vector<128x256xbf16>
    %c256_85 = arith.constant 256 : index
    %c0_86 = arith.constant 0 : index
    %127 = vector.load %arg14[%c256_85, %c0_86] : memref<2048x64xbf16, #tpu.memory_space<vmem>>, vector<256x64xbf16>
    %cst_87 = arith.constant dense<0.000000e+00> : vector<128x64xf32>
    %128 = tpu.matmul %126, %127, %cst_87 {dimension_numbers = #tpu.dot_dimension_numbers<[1], [0], [0], [1], [0, 0, 1, 1], [], []>} : vector<128x256xbf16>, vector<256x64xbf16>, vector<128x64xf32> -> vector<128x64xf32>
    %129 = arith.addf %118, %128 : vector<128x64xf32>
    %c0_88 = arith.constant 0 : index
    %c512 = arith.constant 512 : index
    %130 = vector.load %arg12[%c0_88, %c512] : memref<64x2048xbf16, #tpu.memory_space<vmem>>, vector<64x256xbf16>
    %cst_89 = arith.constant dense<0.000000e+00> : vector<128x256xf32>
    %131 = tpu.matmul %106, %130, %cst_89 {dimension_numbers = #tpu.dot_dimension_numbers<[1], [0], [0], [1], [0, 0, 1, 1], [], []>} : vector<128x64xbf16>, vector<64x256xbf16>, vector<128x256xf32> -> vector<128x256xf32>
    %c0_90 = arith.constant 0 : index
    %c512_91 = arith.constant 512 : index
    %132 = vector.load %arg13[%c0_90, %c512_91] : memref<1x2048xf32, #tpu.memory_space<vmem>>, vector<1x256xf32>
    %133 = vector.broadcast %132 : vector<1x256xf32> to vector<128x256xf32>
    %134 = arith.addf %131, %133 : vector<128x256xf32>
    %cst_92 = arith.constant 0.000000e+00 : f32
    %135 = vector.broadcast %cst_92 : f32 to vector<128x256xf32>
    %136 = arith.maximumf %134, %135 : vector<128x256xf32>
    %137 = arith.truncf %136 : vector<128x256xf32> to vector<128x256xbf16>
    %c512_93 = arith.constant 512 : index
    %c0_94 = arith.constant 0 : index
    %138 = vector.load %arg14[%c512_93, %c0_94] : memref<2048x64xbf16, #tpu.memory_space<vmem>>, vector<256x64xbf16>
    %cst_95 = arith.constant dense<0.000000e+00> : vector<128x64xf32>
    %139 = tpu.matmul %137, %138, %cst_95 {dimension_numbers = #tpu.dot_dimension_numbers<[1], [0], [0], [1], [0, 0, 1, 1], [], []>} : vector<128x256xbf16>, vector<256x64xbf16>, vector<128x64xf32> -> vector<128x64xf32>
    %140 = arith.addf %129, %139 : vector<128x64xf32>
    %c0_96 = arith.constant 0 : index
    %c768 = arith.constant 768 : index
    %141 = vector.load %arg12[%c0_96, %c768] : memref<64x2048xbf16, #tpu.memory_space<vmem>>, vector<64x256xbf16>
    %cst_97 = arith.constant dense<0.000000e+00> : vector<128x256xf32>
    %142 = tpu.matmul %106, %141, %cst_97 {dimension_numbers = #tpu.dot_dimension_numbers<[1], [0], [0], [1], [0, 0, 1, 1], [], []>} : vector<128x64xbf16>, vector<64x256xbf16>, vector<128x256xf32> -> vector<128x256xf32>
    %c0_98 = arith.constant 0 : index
    %c768_99 = arith.constant 768 : index
    %143 = vector.load %arg13[%c0_98, %c768_99] : memref<1x2048xf32, #tpu.memory_space<vmem>>, vector<1x256xf32>
    %144 = vector.broadcast %143 : vector<1x256xf32> to vector<128x256xf32>
    %145 = arith.addf %142, %144 : vector<128x256xf32>
    %cst_100 = arith.constant 0.000000e+00 : f32
    %146 = vector.broadcast %cst_100 : f32 to vector<128x256xf32>
    %147 = arith.maximumf %145, %146 : vector<128x256xf32>
    %148 = arith.truncf %147 : vector<128x256xf32> to vector<128x256xbf16>
    %c768_101 = arith.constant 768 : index
    %c0_102 = arith.constant 0 : index
    %149 = vector.load %arg14[%c768_101, %c0_102] : memref<2048x64xbf16, #tpu.memory_space<vmem>>, vector<256x64xbf16>
    %cst_103 = arith.constant dense<0.000000e+00> : vector<128x64xf32>
    %150 = tpu.matmul %148, %149, %cst_103 {dimension_numbers = #tpu.dot_dimension_numbers<[1], [0], [0], [1], [0, 0, 1, 1], [], []>} : vector<128x256xbf16>, vector<256x64xbf16>, vector<128x64xf32> -> vector<128x64xf32>
    %151 = arith.addf %140, %150 : vector<128x64xf32>
    %c0_104 = arith.constant 0 : index
    %c1024 = arith.constant 1024 : index
    %152 = vector.load %arg12[%c0_104, %c1024] : memref<64x2048xbf16, #tpu.memory_space<vmem>>, vector<64x256xbf16>
    %cst_105 = arith.constant dense<0.000000e+00> : vector<128x256xf32>
    %153 = tpu.matmul %106, %152, %cst_105 {dimension_numbers = #tpu.dot_dimension_numbers<[1], [0], [0], [1], [0, 0, 1, 1], [], []>} : vector<128x64xbf16>, vector<64x256xbf16>, vector<128x256xf32> -> vector<128x256xf32>
    %c0_106 = arith.constant 0 : index
    %c1024_107 = arith.constant 1024 : index
    %154 = vector.load %arg13[%c0_106, %c1024_107] : memref<1x2048xf32, #tpu.memory_space<vmem>>, vector<1x256xf32>
    %155 = vector.broadcast %154 : vector<1x256xf32> to vector<128x256xf32>
    %156 = arith.addf %153, %155 : vector<128x256xf32>
    %cst_108 = arith.constant 0.000000e+00 : f32
    %157 = vector.broadcast %cst_108 : f32 to vector<128x256xf32>
    %158 = arith.maximumf %156, %157 : vector<128x256xf32>
    %159 = arith.truncf %158 : vector<128x256xf32> to vector<128x256xbf16>
    %c1024_109 = arith.constant 1024 : index
    %c0_110 = arith.constant 0 : index
    %160 = vector.load %arg14[%c1024_109, %c0_110] : memref<2048x64xbf16, #tpu.memory_space<vmem>>, vector<256x64xbf16>
    %cst_111 = arith.constant dense<0.000000e+00> : vector<128x64xf32>
    %161 = tpu.matmul %159, %160, %cst_111 {dimension_numbers = #tpu.dot_dimension_numbers<[1], [0], [0], [1], [0, 0, 1, 1], [], []>} : vector<128x256xbf16>, vector<256x64xbf16>, vector<128x64xf32> -> vector<128x64xf32>
    %162 = arith.addf %151, %161 : vector<128x64xf32>
    %c0_112 = arith.constant 0 : index
    %c1280 = arith.constant 1280 : index
    %163 = vector.load %arg12[%c0_112, %c1280] : memref<64x2048xbf16, #tpu.memory_space<vmem>>, vector<64x256xbf16>
    %cst_113 = arith.constant dense<0.000000e+00> : vector<128x256xf32>
    %164 = tpu.matmul %106, %163, %cst_113 {dimension_numbers = #tpu.dot_dimension_numbers<[1], [0], [0], [1], [0, 0, 1, 1], [], []>} : vector<128x64xbf16>, vector<64x256xbf16>, vector<128x256xf32> -> vector<128x256xf32>
    %c0_114 = arith.constant 0 : index
    %c1280_115 = arith.constant 1280 : index
    %165 = vector.load %arg13[%c0_114, %c1280_115] : memref<1x2048xf32, #tpu.memory_space<vmem>>, vector<1x256xf32>
    %166 = vector.broadcast %165 : vector<1x256xf32> to vector<128x256xf32>
    %167 = arith.addf %164, %166 : vector<128x256xf32>
    %cst_116 = arith.constant 0.000000e+00 : f32
    %168 = vector.broadcast %cst_116 : f32 to vector<128x256xf32>
    %169 = arith.maximumf %167, %168 : vector<128x256xf32>
    %170 = arith.truncf %169 : vector<128x256xf32> to vector<128x256xbf16>
    %c1280_117 = arith.constant 1280 : index
    %c0_118 = arith.constant 0 : index
    %171 = vector.load %arg14[%c1280_117, %c0_118] : memref<2048x64xbf16, #tpu.memory_space<vmem>>, vector<256x64xbf16>
    %cst_119 = arith.constant dense<0.000000e+00> : vector<128x64xf32>
    %172 = tpu.matmul %170, %171, %cst_119 {dimension_numbers = #tpu.dot_dimension_numbers<[1], [0], [0], [1], [0, 0, 1, 1], [], []>} : vector<128x256xbf16>, vector<256x64xbf16>, vector<128x64xf32> -> vector<128x64xf32>
    %173 = arith.addf %162, %172 : vector<128x64xf32>
    %c0_120 = arith.constant 0 : index
    %c1536 = arith.constant 1536 : index
    %174 = vector.load %arg12[%c0_120, %c1536] : memref<64x2048xbf16, #tpu.memory_space<vmem>>, vector<64x256xbf16>
    %cst_121 = arith.constant dense<0.000000e+00> : vector<128x256xf32>
    %175 = tpu.matmul %106, %174, %cst_121 {dimension_numbers = #tpu.dot_dimension_numbers<[1], [0], [0], [1], [0, 0, 1, 1], [], []>} : vector<128x64xbf16>, vector<64x256xbf16>, vector<128x256xf32> -> vector<128x256xf32>
    %c0_122 = arith.constant 0 : index
    %c1536_123 = arith.constant 1536 : index
    %176 = vector.load %arg13[%c0_122, %c1536_123] : memref<1x2048xf32, #tpu.memory_space<vmem>>, vector<1x256xf32>
    %177 = vector.broadcast %176 : vector<1x256xf32> to vector<128x256xf32>
    %178 = arith.addf %175, %177 : vector<128x256xf32>
    %cst_124 = arith.constant 0.000000e+00 : f32
    %179 = vector.broadcast %cst_124 : f32 to vector<128x256xf32>
    %180 = arith.maximumf %178, %179 : vector<128x256xf32>
    %181 = arith.truncf %180 : vector<128x256xf32> to vector<128x256xbf16>
    %c1536_125 = arith.constant 1536 : index
    %c0_126 = arith.constant 0 : index
    %182 = vector.load %arg14[%c1536_125, %c0_126] : memref<2048x64xbf16, #tpu.memory_space<vmem>>, vector<256x64xbf16>
    %cst_127 = arith.constant dense<0.000000e+00> : vector<128x64xf32>
    %183 = tpu.matmul %181, %182, %cst_127 {dimension_numbers = #tpu.dot_dimension_numbers<[1], [0], [0], [1], [0, 0, 1, 1], [], []>} : vector<128x256xbf16>, vector<256x64xbf16>, vector<128x64xf32> -> vector<128x64xf32>
    %184 = arith.addf %173, %183 : vector<128x64xf32>
    %c0_128 = arith.constant 0 : index
    %c1792 = arith.constant 1792 : index
    %185 = vector.load %arg12[%c0_128, %c1792] : memref<64x2048xbf16, #tpu.memory_space<vmem>>, vector<64x256xbf16>
    %cst_129 = arith.constant dense<0.000000e+00> : vector<128x256xf32>
    %186 = tpu.matmul %106, %185, %cst_129 {dimension_numbers = #tpu.dot_dimension_numbers<[1], [0], [0], [1], [0, 0, 1, 1], [], []>} : vector<128x64xbf16>, vector<64x256xbf16>, vector<128x256xf32> -> vector<128x256xf32>
    %c0_130 = arith.constant 0 : index
    %c1792_131 = arith.constant 1792 : index
    %187 = vector.load %arg13[%c0_130, %c1792_131] : memref<1x2048xf32, #tpu.memory_space<vmem>>, vector<1x256xf32>
    %188 = vector.broadcast %187 : vector<1x256xf32> to vector<128x256xf32>
    %189 = arith.addf %186, %188 : vector<128x256xf32>
    %cst_132 = arith.constant 0.000000e+00 : f32
    %190 = vector.broadcast %cst_132 : f32 to vector<128x256xf32>
    %191 = arith.maximumf %189, %190 : vector<128x256xf32>
    %192 = arith.truncf %191 : vector<128x256xf32> to vector<128x256xbf16>
    %c1792_133 = arith.constant 1792 : index
    %c0_134 = arith.constant 0 : index
    %193 = vector.load %arg14[%c1792_133, %c0_134] : memref<2048x64xbf16, #tpu.memory_space<vmem>>, vector<256x64xbf16>
    %cst_135 = arith.constant dense<0.000000e+00> : vector<128x64xf32>
    %194 = tpu.matmul %192, %193, %cst_135 {dimension_numbers = #tpu.dot_dimension_numbers<[1], [0], [0], [1], [0, 0, 1, 1], [], []>} : vector<128x256xbf16>, vector<256x64xbf16>, vector<128x64xf32> -> vector<128x64xf32>
    %195 = arith.addf %184, %194 : vector<128x64xf32>
    %196 = arith.addf %105, %195 : vector<128x64xf32>
    %c0_136 = arith.constant 0 : index
    %c0_137 = arith.constant 0 : index
    %197 = vector.load %arg15[%c0_136, %c0_137] : memref<1x64xf32, #tpu.memory_space<vmem>>, vector<1x64xf32>
    %198 = vector.broadcast %197 : vector<1x64xf32> to vector<128x64xf32>
    %199 = arith.addf %196, %198 : vector<128x64xf32>
    %c0_138 = arith.constant 0 : index
    %c0_139 = arith.constant 0 : index
    %200 = vector.load %arg16[%c0_138, %c0_139] : memref<1x64xf32, #tpu.memory_space<vmem>>, vector<1x64xf32>
    %c0_140 = arith.constant 0 : index
    %c0_141 = arith.constant 0 : index
    %201 = vector.load %arg17[%c0_140, %c0_141] : memref<1x64xf32, #tpu.memory_space<vmem>>, vector<1x64xf32>
    %cst_142 = arith.constant dense<0.000000e+00> : vector<128xf32>
    %202 = vector.multi_reduction <add>, %199, %cst_142 [1] : vector<128x64xf32> to vector<128xf32>
    %203 = vector.shape_cast %202 : vector<128xf32> to vector<128x1xf32>
    %cst_143 = arith.constant 6.400000e+01 : f32
    %204 = vector.broadcast %cst_143 : f32 to vector<128x1xf32>
    %205 = arith.divf %203, %204 : vector<128x1xf32>
    %206 = vector.broadcast %205 : vector<128x1xf32> to vector<128x64xf32>
    %207 = arith.subf %199, %206 : vector<128x64xf32>
    %208 = arith.mulf %207, %207 : vector<128x64xf32>
    %cst_144 = arith.constant dense<0.000000e+00> : vector<128xf32>
    %209 = vector.multi_reduction <add>, %208, %cst_144 [1] : vector<128x64xf32> to vector<128xf32>
    %210 = vector.shape_cast %209 : vector<128xf32> to vector<128x1xf32>
    %cst_145 = arith.constant 6.400000e+01 : f32
    %211 = vector.broadcast %cst_145 : f32 to vector<128x1xf32>
    %212 = arith.divf %210, %211 : vector<128x1xf32>
    %cst_146 = arith.constant 9.99999974E-6 : f32
    %213 = vector.broadcast %cst_146 : f32 to vector<128x1xf32>
    %214 = arith.addf %212, %213 : vector<128x1xf32>
    %215 = math.rsqrt %214 : vector<128x1xf32>
    %216 = vector.broadcast %215 : vector<128x1xf32> to vector<128x64xf32>
    %217 = arith.mulf %207, %216 : vector<128x64xf32>
    %218 = vector.broadcast %200 : vector<1x64xf32> to vector<128x64xf32>
    %219 = arith.mulf %217, %218 : vector<128x64xf32>
    %220 = vector.broadcast %201 : vector<1x64xf32> to vector<128x64xf32>
    %221 = arith.addf %219, %220 : vector<128x64xf32>
    %c0_147 = arith.constant 0 : index
    %c0_148 = arith.constant 0 : index
    %222 = vector.load %arg18[%c0_147, %c0_148] : memref<128x64xf32, #tpu.memory_space<vmem>>, vector<128x64xf32>
    tpu.vector_store %arg18[%c0_147, %c0_148], %221 {strides = array<i32>} : memref<128x64xf32, #tpu.memory_space<vmem>>, vector<128x64xf32>,
    return
  }
  func.func @transform_0(%arg0: i32) -> (i32, i32) {
    %c0_i32 = arith.constant 0 : i32
    %c0_i32_0 = arith.constant 0 : i32
    %c0_i32_1 = arith.constant 0 : i32
    return %c0_i32, %c0_i32_0 : i32, i32
  }
  func.func @transform_1(%arg0: i32) -> (i32, i32, i32) {
    %c0_i32 = arith.constant 0 : i32
    %c0_i32_0 = arith.constant 0 : i32
    %c0_i32_1 = arith.constant 0 : i32
    %c0_i32_2 = arith.constant 0 : i32
    return %c0_i32, %c0_i32_0, %c0_i32_1 : i32, i32, i32
  }
  func.func @transform_2(%arg0: i32) -> (i32, i32, i32) {
    %c0_i32 = arith.constant 0 : i32
    %c0_i32_0 = arith.constant 0 : i32
    %c0_i32_1 = arith.constant 0 : i32
    %c0_i32_2 = arith.constant 0 : i32
    return %c0_i32, %c0_i32_0, %c0_i32_1 : i32, i32, i32
  }
  func.func @transform_3(%arg0: i32) -> (i32, i32, i32) {
    %c0_i32 = arith.constant 0 : i32
    %c0_i32_0 = arith.constant 0 : i32
    %c0_i32_1 = arith.constant 0 : i32
    %c0_i32_2 = arith.constant 0 : i32
    return %c0_i32, %c0_i32_0, %c0_i32_1 : i32, i32, i32
  }
  func.func @transform_4(%arg0: i32) -> (i32, i32, i32) {
    %c0_i32 = arith.constant 0 : i32
    %c0_i32_0 = arith.constant 0 : i32
    %c0_i32_1 = arith.constant 0 : i32
    %c0_i32_2 = arith.constant 0 : i32
    return %c0_i32, %c0_i32_0, %c0_i32_1 : i32, i32, i32
  }
  func.func @transform_5(%arg0: i32) -> (i32, i32, i32) {
    %c0_i32 = arith.constant 0 : i32
    %c0_i32_0 = arith.constant 0 : i32
    %c0_i32_1 = arith.constant 0 : i32
    %c0_i32_2 = arith.constant 0 : i32
    return %c0_i32, %c0_i32_0, %c0_i32_1 : i32, i32, i32
  }
  func.func @transform_6(%arg0: i32) -> (i32, i32, i32) {
    %c0_i32 = arith.constant 0 : i32
    %c0_i32_0 = arith.constant 0 : i32
    %c0_i32_1 = arith.constant 0 : i32
    %c0_i32_2 = arith.constant 0 : i32
    return %c0_i32, %c0_i32_0, %c0_i32_1 : i32, i32, i32
  }
  func.func @transform_7(%arg0: i32) -> (i32, i32, i32) {
    %c0_i32 = arith.constant 0 : i32
    %c0_i32_0 = arith.constant 0 : i32
    %c0_i32_1 = arith.constant 0 : i32
    %c0_i32_2 = arith.constant 0 : i32
    return %c0_i32, %c0_i32_0, %c0_i32_1 : i32, i32, i32
  }
  func.func @transform_8(%arg0: i32) -> (i32, i32) {
    %c0_i32 = arith.constant 0 : i32
    %c0_i32_0 = arith.constant 0 : i32
    %c0_i32_1 = arith.constant 0 : i32
    return %c0_i32, %c0_i32_0 : i32, i32
  }
  func.func @transform_9(%arg0: i32) -> (i32, i32) {
    %c0_i32 = arith.constant 0 : i32
    %c0_i32_0 = arith.constant 0 : i32
    %c0_i32_1 = arith.constant 0 : i32
    return %c0_i32, %c0_i32_0 : i32, i32
  }
  func.func @transform_10(%arg0: i32) -> (i32, i32) {
    %c0_i32 = arith.constant 0 : i32
    %c0_i32_0 = arith.constant 0 : i32
    %c0_i32_1 = arith.constant 0 : i32
    return %c0_i32, %c0_i32_0 : i32, i32
  }
  func.func @transform_11(%arg0: i32) -> (i32, i32) {
    %c0_i32 = arith.constant 0 : i32
    %c0_i32_0 = arith.constant 0 : i32
    %c0_i32_1 = arith.constant 0 : i32
    return %c0_i32, %c0_i32_0 : i32, i32
  }
  func.func @transform_12(%arg0: i32) -> (i32, i32) {
    %c0_i32 = arith.constant 0 : i32
    %c0_i32_0 = arith.constant 0 : i32
    %c0_i32_1 = arith.constant 0 : i32
    return %c0_i32, %c0_i32_0 : i32, i32
  }
  func.func @transform_13(%arg0: i32) -> (i32, i32) {
    %c0_i32 = arith.constant 0 : i32
    %c0_i32_0 = arith.constant 0 : i32
    %c0_i32_1 = arith.constant 0 : i32
    return %c0_i32, %c0_i32_0 : i32, i32
  }
  func.func @transform_14(%arg0: i32) -> (i32, i32) {
    %c0_i32 = arith.constant 0 : i32
    %c0_i32_0 = arith.constant 0 : i32
    %c0_i32_1 = arith.constant 0 : i32
    return %c0_i32, %c0_i32_0 : i32, i32
  }
  func.func @transform_15(%arg0: i32) -> (i32, i32) {
    %c0_i32 = arith.constant 0 : i32
    %c0_i32_0 = arith.constant 0 : i32
    %c0_i32_1 = arith.constant 0 : i32
    return %c0_i32, %c0_i32_0 : i32, i32
  }
  func.func @transform_16(%arg0: i32) -> (i32, i32) {
    %c0_i32 = arith.constant 0 : i32
    %c0_i32_0 = arith.constant 0 : i32
    %c0_i32_1 = arith.constant 0 : i32
    return %c0_i32, %c0_i32_0 : i32, i32
  }
  func.func @transform_17(%arg0: i32) -> (i32, i32) {
    %c0_i32 = arith.constant 0 : i32
    %c0_i32_0 = arith.constant 0 : i32
    return %arg0, %c0_i32 : i32, i32
  }
}

</mosaic_0001>

<llo_original>
// kernel: tpu_custom_call.1
$region0: #{tpu_custom_call.1}
  #allocation0 [shape = 'u32[]', space=smem, size = 0x4, offset = 0x4, fixed_abs, tag = 'smem constant byte address 0x4 - core index']
  #allocation1 [shape = 'u32[72,128]{1,0:T(1,128)}', space=vmem, size = 0x9000, scoped, tag = 'internal scratch']
  %s0 = inlined_call_operand.vmem [shape: f32[256,64], index: 0, kind: input, shape index: {}]
  %s1 = inlined_call_operand.vmem [shape: f32[2,64,32], index: 1, kind: input, shape index: {}]
  %s2 = inlined_call_operand.vmem [shape: f32[2,1,32], index: 2, kind: input, shape index: {}]
  %s3 = inlined_call_operand.vmem [shape: f32[2,64,32], index: 3, kind: input, shape index: {}]
  %s4 = inlined_call_operand.vmem [shape: f32[2,1,32], index: 4, kind: input, shape index: {}]
  %s5 = inlined_call_operand.vmem [shape: f32[2,64,32], index: 5, kind: input, shape index: {}]
  %s6 = inlined_call_operand.vmem [shape: f32[2,1,32], index: 6, kind: input, shape index: {}]
  %s7 = inlined_call_operand.vmem [shape: f32[2,32,64], index: 7, kind: input, shape index: {}]
  %s8 = inlined_call_operand.vmem [shape: f32[1,64], index: 8, kind: input, shape index: {}]
  %s9 = inlined_call_operand.vmem [shape: f32[1,64], index: 9, kind: input, shape index: {}]
  %s10 = inlined_call_operand.vmem [shape: f32[1,64], index: 10, kind: input, shape index: {}]
  %s11 = inlined_call_operand.vmem [shape: bf16[64,2048], index: 11, kind: input, shape index: {}]
  %s12 = inlined_call_operand.vmem [shape: f32[1,2048], index: 12, kind: input, shape index: {}]
  %s13 = inlined_call_operand.vmem [shape: bf16[2048,64], index: 13, kind: input, shape index: {}]
  %s14 = inlined_call_operand.vmem [shape: f32[1,64], index: 14, kind: input, shape index: {}]
  %s15 = inlined_call_operand.vmem [shape: f32[1,64], index: 15, kind: input, shape index: {}]
  %s16 = inlined_call_operand.vmem [shape: f32[1,64], index: 16, kind: input, shape index: {}]
  %s17 = inlined_call_operand.vmem [shape: f32[256,64], index: 17, kind: output, shape index: {}]
  %s18 = sld [smem:[#allocation0]]
  $region101: #{tpu_custom_call.1} parent=0
    _
  %s20 = ssub.s32 1, %s18
  %s21 = scalar_select 0, %s20, %s18
  loop: start=0, step=1, limit=4
  $region2: #{tpu_custom_call.1} parent=0 // loop_pre_header
    _
  $region3: #{tpu_custom_call.1} parent=0 // loop_header
    %s23 = sphi 0, %s27
    %p24 = scmp.ge.s32.totalorder %s23, 4
    %s31 = sphi 0, %s31
    %s33 = sphi 0, %s31
    %s34 = sphi 0, %s33
    %s48 = sphi 0, %s34
    %s52 = sphi 0, %s52
    %s54 = sphi 0, %s52
    %s55 = sphi 0, %s54
    %s69 = sphi 0, %s55
    %s73 = sphi 0, %s73
    %s75 = sphi 0, %s73
    %s76 = sphi 0, %s75
    %s90 = sphi 0, %s76
    %s94 = sphi 0, %s94
    %s96 = sphi 0, %s94
    %s97 = sphi 0, %s96
    %s111 = sphi 0, %s97
    %s115 = sphi 0, %s115
    %s117 = sphi 0, %s115
    %s118 = sphi 0, %s117
    %s132 = sphi 0, %s118
    %s136 = sphi 0, %s136
    %s138 = sphi 0, %s136
    %s139 = sphi 0, %s138
    %s153 = sphi 0, %s139
    %s157 = sphi 0, %s157
    %s159 = sphi 0, %s157
    %s160 = sphi 0, %s159
    %s174 = sphi 0, %s160
    %s178 = sphi 0, %s178
    %s180 = sphi 0, %s178
    %s181 = sphi 0, %s180
    %s195 = sphi 0, %s181
    %s199 = sphi 0, %s199
    %s201 = sphi 0, %s199
    %s202 = sphi 0, %s201
    %s216 = sphi 0, %s202
    %s220 = sphi 0, %s220
    %s222 = sphi 0, %s220
    %s223 = sphi 0, %s222
    %s237 = sphi 0, %s223
    %s241 = sphi 0, %s241
    %s243 = sphi 0, %s241
    %s244 = sphi 0, %s243
    %s258 = sphi 0, %s244
    %s262 = sphi 0, %s262
    %s264 = sphi 0, %s262
    %s265 = sphi 0, %s264
    %s279 = sphi 0, %s265
    %s283 = sphi 0, %s283
    %s285 = sphi 0, %s283
    %s286 = sphi 0, %s285
    %s300 = sphi 0, %s286
    %s304 = sphi 0, %s304
    %s306 = sphi 0, %s304
    %s307 = sphi 0, %s306
    %s321 = sphi 0, %s307
    %s325 = sphi 0, %s325
    %s327 = sphi 0, %s325
    %s328 = sphi 0, %s327
    %s342 = sphi 0, %s328
    %s346 = sphi 0, %s346
    %s348 = sphi 0, %s346
    %s349 = sphi 0, %s348
    %s363 = sphi 0, %s349
    %s367 = sphi 0, %s367
    %s369 = sphi 0, %s367
    %s370 = sphi 0, %s369
    %s384 = sphi 0, %s370
    %s390 = sphi 0, %s392
    %s393 = sphi 0, %s390
    %s394 = sphi 0, %s393
    %s410 = sphi 0, %s394
  $region4: #{tpu_custom_call.1} parent=0 // loop_header_branch
    %26 = sbr.rel (%p24) target = $region8
  $region5: #{tpu_custom_call.1} parent=0 // loop_body
    %s28 = ssub.s32 %s23, 1
    %s29 = ssub.s32 %s23, 2
    %s30 = sadd.s32 %s23, 1
    %s32 = sadd.s32 %s31, 1
    %p35 = scmp.eq.s32.totalorder %s23, 1
    %p36 = scmp.ne.s32.totalorder %s31, %s33
    %p37 = scmp.eq.s32.totalorder %s23, 0
    %p38 = por %p36, %p37
    %p39 = scmp.ne.s32.totalorder %s31, %s33
    %p40 = scmp.eq.s32.totalorder %s28, 1
    %p41 = por %p39, %p40
    %p42 = scmp.ne.s32.totalorder %s33, %s34
    %p43 = scmp.eq.s32.totalorder %s28, 0
    %p44 = por %p42, %p43
    %p45 = scmp.ne.s32.totalorder %s33, %s34
    %p46 = scmp.eq.s32.totalorder %s29, 1
    %p47 = por %p45, %p46
    %p49 = scmp.ne.s32.totalorder %s34, %s48
    %p50 = scmp.eq.s32.totalorder %s29, 0
    %p51 = por %p49, %p50
    %s53 = sadd.s32 %s52, 1
    %p56 = scmp.eq.s32.totalorder %s23, 1
    %p57 = scmp.ne.s32.totalorder %s52, %s54
    %p58 = scmp.eq.s32.totalorder %s23, 0
    %p59 = por %p57, %p58
    %p60 = scmp.ne.s32.totalorder %s52, %s54
    %p61 = scmp.eq.s32.totalorder %s28, 1
    %p62 = por %p60, %p61
    %p63 = scmp.ne.s32.totalorder %s54, %s55
    %p64 = scmp.eq.s32.totalorder %s28, 0
    %p65 = por %p63, %p64
    %p66 = scmp.ne.s32.totalorder %s54, %s55
    %p67 = scmp.eq.s32.totalorder %s29, 1
    %p68 = por %p66, %p67
    %p70 = scmp.ne.s32.totalorder %s55, %s69
    %p71 = scmp.eq.s32.totalorder %s29, 0
    %p72 = por %p70, %p71
    %s74 = sadd.s32 %s73, 1
    %p77 = scmp.eq.s32.totalorder %s23, 1
    %p78 = scmp.ne.s32.totalorder %s73, %s75
    %p79 = scmp.eq.s32.totalorder %s23, 0
    %p80 = por %p78, %p79
    %p81 = scmp.ne.s32.totalorder %s73, %s75
    %p82 = scmp.eq.s32.totalorder %s28, 1
    %p83 = por %p81, %p82
    %p84 = scmp.ne.s32.totalorder %s75, %s76
    %p85 = scmp.eq.s32.totalorder %s28, 0
    %p86 = por %p84, %p85
    %p87 = scmp.ne.s32.totalorder %s75, %s76
    %p88 = scmp.eq.s32.totalorder %s29, 1
    %p89 = por %p87, %p88
    %p91 = scmp.ne.s32.totalorder %s76, %s90
    %p92 = scmp.eq.s32.totalorder %s29, 0
    %p93 = por %p91, %p92
    %s95 = sadd.s32 %s94, 1
    %p98 = scmp.eq.s32.totalorder %s23, 1
    %p99 = scmp.ne.s32.totalorder %s94, %s96
    %p100 = scmp.eq.s32.totalorder %s23, 0
    %p101 = por %p99, %p100
    %p102 = scmp.ne.s32.totalorder %s94, %s96
    %p103 = scmp.eq.s32.totalorder %s28, 1
    %p104 = por %p102, %p103
    %p105 = scmp.ne.s32.totalorder %s96, %s97
    %p106 = scmp.eq.s32.totalorder %s28, 0
    %p107 = por %p105, %p106
    %p108 = scmp.ne.s32.totalorder %s96, %s97
    %p109 = scmp.eq.s32.totalorder %s29, 1
    %p110 = por %p108, %p109
    %p112 = scmp.ne.s32.totalorder %s97, %s111
    %p113 = scmp.eq.s32.totalorder %s29, 0
    %p114 = por %p112, %p113
    %s116 = sadd.s32 %s115, 1
    %p119 = scmp.eq.s32.totalorder %s23, 1
    %p120 = scmp.ne.s32.totalorder %s115, %s117
    %p121 = scmp.eq.s32.totalorder %s23, 0
    %p122 = por %p120, %p121
    %p123 = scmp.ne.s32.totalorder %s115, %s117
    %p124 = scmp.eq.s32.totalorder %s28, 1
    %p125 = por %p123, %p124
    %p126 = scmp.ne.s32.totalorder %s117, %s118
    %p127 = scmp.eq.s32.totalorder %s28, 0
    %p128 = por %p126, %p127
    %p129 = scmp.ne.s32.totalorder %s117, %s118
    %p130 = scmp.eq.s32.totalorder %s29, 1
    %p131 = por %p129, %p130
    %p133 = scmp.ne.s32.totalorder %s118, %s132
    %p134 = scmp.eq.s32.totalorder %s29, 0
    %p135 = por %p133, %p134
    %s137 = sadd.s32 %s136, 1
    %p140 = scmp.eq.s32.totalorder %s23, 1
    %p141 = scmp.ne.s32.totalorder %s136, %s138
    %p142 = scmp.eq.s32.totalorder %s23, 0
    %p143 = por %p141, %p142
    %p144 = scmp.ne.s32.totalorder %s136, %s138
    %p145 = scmp.eq.s32.totalorder %s28, 1
    %p146 = por %p144, %p145
    %p147 = scmp.ne.s32.totalorder %s138, %s139
    %p148 = scmp.eq.s32.totalorder %s28, 0
    %p149 = por %p147, %p148
    %p150 = scmp.ne.s32.totalorder %s138, %s139
    %p151 = scmp.eq.s32.totalorder %s29, 1
    %p152 = por %p150, %p151
    %p154 = scmp.ne.s32.totalorder %s139, %s153
    %p155 = scmp.eq.s32.totalorder %s29, 0
    %p156 = por %p154, %p155
    %s158 = sadd.s32 %s157, 1
    %p161 = scmp.eq.s32.totalorder %s23, 1
    %p162 = scmp.ne.s32.totalorder %s157, %s159
    %p163 = scmp.eq.s32.totalorder %s23, 0
    %p164 = por %p162, %p163
    %p165 = scmp.ne.s32.totalorder %s157, %s159
    %p166 = scmp.eq.s32.totalorder %s28, 1
    %p167 = por %p165, %p166
    %p168 = scmp.ne.s32.totalorder %s159, %s160
    %p169 = scmp.eq.s32.totalorder %s28, 0
    %p170 = por %p168, %p169
    %p171 = scmp.ne.s32.totalorder %s159, %s160
    %p172 = scmp.eq.s32.totalorder %s29, 1
    %p173 = por %p171, %p172
    %p175 = scmp.ne.s32.totalorder %s160, %s174
    %p176 = scmp.eq.s32.totalorder %s29, 0
    %p177 = por %p175, %p176
    %s179 = sadd.s32 %s178, 1
    %p182 = scmp.eq.s32.totalorder %s23, 1
    %p183 = scmp.ne.s32.totalorder %s178, %s180
    %p184 = scmp.eq.s32.totalorder %s23, 0
    %p185 = por %p183, %p184
    %p186 = scmp.ne.s32.totalorder %s178, %s180
    %p187 = scmp.eq.s32.totalorder %s28, 1
    %p188 = por %p186, %p187
    %p189 = scmp.ne.s32.totalorder %s180, %s181
    %p190 = scmp.eq.s32.totalorder %s28, 0
    %p191 = por %p189, %p190
    %p192 = scmp.ne.s32.totalorder %s180, %s181
    %p193 = scmp.eq.s32.totalorder %s29, 1
    %p194 = por %p192, %p193
    %p196 = scmp.ne.s32.totalorder %s181, %s195
    %p197 = scmp.eq.s32.totalorder %s29, 0
    %p198 = por %p196, %p197
    %s200 = sadd.s32 %s199, 1
    %p203 = scmp.eq.s32.totalorder %s23, 1
    %p204 = scmp.ne.s32.totalorder %s199, %s201
    %p205 = scmp.eq.s32.totalorder %s23, 0
    %p206 = por %p204, %p205
    %p207 = scmp.ne.s32.totalorder %s199, %s201
    %p208 = scmp.eq.s32.totalorder %s28, 1
    %p209 = por %p207, %p208
    %p210 = scmp.ne.s32.totalorder %s201, %s202
    %p211 = scmp.eq.s32.totalorder %s28, 0
    %p212 = por %p210, %p211
    %p213 = scmp.ne.s32.totalorder %s201, %s202
    %p214 = scmp.eq.s32.totalorder %s29, 1
    %p215 = por %p213, %p214
    %p217 = scmp.ne.s32.totalorder %s202, %s216
    %p218 = scmp.eq.s32.totalorder %s29, 0
    %p219 = por %p217, %p218
    %s221 = sadd.s32 %s220, 1
    %p224 = scmp.eq.s32.totalorder %s23, 1
    %p225 = scmp.ne.s32.totalorder %s220, %s222
    %p226 = scmp.eq.s32.totalorder %s23, 0
    %p227 = por %p225, %p226
    %p228 = scmp.ne.s32.totalorder %s220, %s222
    %p229 = scmp.eq.s32.totalorder %s28, 1
    %p230 = por %p228, %p229
    %p231 = scmp.ne.s32.totalorder %s222, %s223
    %p232 = scmp.eq.s32.totalorder %s28, 0
    %p233 = por %p231, %p232
    %p234 = scmp.ne.s32.totalorder %s222, %s223
    %p235 = scmp.eq.s32.totalorder %s29, 1
    %p236 = por %p234, %p235
    %p238 = scmp.ne.s32.totalorder %s223, %s237
    %p239 = scmp.eq.s32.totalorder %s29, 0
    %p240 = por %p238, %p239
    %s242 = sadd.s32 %s241, 1
    %p245 = scmp.eq.s32.totalorder %s23, 1
    %p246 = scmp.ne.s32.totalorder %s241, %s243
    %p247 = scmp.eq.s32.totalorder %s23, 0
    %p248 = por %p246, %p247
    %p249 = scmp.ne.s32.totalorder %s241, %s243
    %p250 = scmp.eq.s32.totalorder %s28, 1
    %p251 = por %p249, %p250
    %p252 = scmp.ne.s32.totalorder %s243, %s244
    %p253 = scmp.eq.s32.totalorder %s28, 0
    %p254 = por %p252, %p253
    %p255 = scmp.ne.s32.totalorder %s243, %s244
    %p256 = scmp.eq.s32.totalorder %s29, 1
    %p257 = por %p255, %p256
    %p259 = scmp.ne.s32.totalorder %s244, %s258
    %p260 = scmp.eq.s32.totalorder %s29, 0
    %p261 = por %p259, %p260
    %s263 = sadd.s32 %s262, 1
    %p266 = scmp.eq.s32.totalorder %s23, 1
    %p267 = scmp.ne.s32.totalorder %s262, %s264
    %p268 = scmp.eq.s32.totalorder %s23, 0
    %p269 = por %p267, %p268
    %p270 = scmp.ne.s32.totalorder %s262, %s264
    %p271 = scmp.eq.s32.totalorder %s28, 1
    %p272 = por %p270, %p271
    %p273 = scmp.ne.s32.totalorder %s264, %s265
    %p274 = scmp.eq.s32.totalorder %s28, 0
    %p275 = por %p273, %p274
    %p276 = scmp.ne.s32.totalorder %s264, %s265
    %p277 = scmp.eq.s32.totalorder %s29, 1
    %p278 = por %p276, %p277
    %p280 = scmp.ne.s32.totalorder %s265, %s279
    %p281 = scmp.eq.s32.totalorder %s29, 0
    %p282 = por %p280, %p281
    %s284 = sadd.s32 %s283, 1
    %p287 = scmp.eq.s32.totalorder %s23, 1
    %p288 = scmp.ne.s32.totalorder %s283, %s285
    %p289 = scmp.eq.s32.totalorder %s23, 0
    %p290 = por %p288, %p289
    %p291 = scmp.ne.s32.totalorder %s283, %s285
    %p292 = scmp.eq.s32.totalorder %s28, 1
    %p293 = por %p291, %p292
    %p294 = scmp.ne.s32.totalorder %s285, %s286
    %p295 = scmp.eq.s32.totalorder %s28, 0
    %p296 = por %p294, %p295
    %p297 = scmp.ne.s32.totalorder %s285, %s286
    %p298 = scmp.eq.s32.totalorder %s29, 1
    %p299 = por %p297, %p298
    %p301 = scmp.ne.s32.totalorder %s286, %s300
    %p302 = scmp.eq.s32.totalorder %s29, 0
    %p303 = por %p301, %p302
    %s305 = sadd.s32 %s304, 1
    %p308 = scmp.eq.s32.totalorder %s23, 1
    %p309 = scmp.ne.s32.totalorder %s304, %s306
    %p310 = scmp.eq.s32.totalorder %s23, 0
    %p311 = por %p309, %p310
    %p312 = scmp.ne.s32.totalorder %s304, %s306
    %p313 = scmp.eq.s32.totalorder %s28, 1
    %p314 = por %p312, %p313
    %p315 = scmp.ne.s32.totalorder %s306, %s307
    %p316 = scmp.eq.s32.totalorder %s28, 0
    %p317 = por %p315, %p316
    %p318 = scmp.ne.s32.totalorder %s306, %s307
    %p319 = scmp.eq.s32.totalorder %s29, 1
    %p320 = por %p318, %p319
    %p322 = scmp.ne.s32.totalorder %s307, %s321
    %p323 = scmp.eq.s32.totalorder %s29, 0
    %p324 = por %p322, %p323
    %s326 = sadd.s32 %s325, 1
    %p329 = scmp.eq.s32.totalorder %s23, 1
    %p330 = scmp.ne.s32.totalorder %s325, %s327
    %p331 = scmp.eq.s32.totalorder %s23, 0
    %p332 = por %p330, %p331
    %p333 = scmp.ne.s32.totalorder %s325, %s327
    %p334 = scmp.eq.s32.totalorder %s28, 1
    %p335 = por %p333, %p334
    %p336 = scmp.ne.s32.totalorder %s327, %s328
    %p337 = scmp.eq.s32.totalorder %s28, 0
    %p338 = por %p336, %p337
    %p339 = scmp.ne.s32.totalorder %s327, %s328
    %p340 = scmp.eq.s32.totalorder %s29, 1
    %p341 = por %p339, %p340
    %p343 = scmp.ne.s32.totalorder %s328, %s342
    %p344 = scmp.eq.s32.totalorder %s29, 0
    %p345 = por %p343, %p344
    %s347 = sadd.s32 %s346, 1
    %p350 = scmp.eq.s32.totalorder %s23, 1
    %p351 = scmp.ne.s32.totalorder %s346, %s348
    %p352 = scmp.eq.s32.totalorder %s23, 0
    %p353 = por %p351, %p352
    %p354 = scmp.ne.s32.totalorder %s346, %s348
    %p355 = scmp.eq.s32.totalorder %s28, 1
    %p356 = por %p354, %p355
    %p357 = scmp.ne.s32.totalorder %s348, %s349
    %p358 = scmp.eq.s32.totalorder %s28, 0
    %p359 = por %p357, %p358
    %p360 = scmp.ne.s32.totalorder %s348, %s349
    %p361 = scmp.eq.s32.totalorder %s29, 1
    %p362 = por %p360, %p361
    %p364 = scmp.ne.s32.totalorder %s349, %s363
    %p365 = scmp.eq.s32.totalorder %s29, 0
    %p366 = por %p364, %p365
    %s368 = sadd.s32 %s367, 1
    %p371 = scmp.eq.s32.totalorder %s23, 1
    %p372 = scmp.ne.s32.totalorder %s367, %s369
    %p373 = scmp.eq.s32.totalorder %s23, 0
    %p374 = por %p372, %p373
    %p375 = scmp.ne.s32.totalorder %s367, %s369
    %p376 = scmp.eq.s32.totalorder %s28, 1
    %p377 = por %p375, %p376
    %p378 = scmp.ne.s32.totalorder %s369, %s370
    %p379 = scmp.eq.s32.totalorder %s28, 0
    %p380 = por %p378, %p379
    %p381 = scmp.ne.s32.totalorder %s369, %s370
    %p382 = scmp.eq.s32.totalorder %s29, 1
    %p383 = por %p381, %p382
    %p385 = scmp.ne.s32.totalorder %s370, %s384
    %p386 = scmp.eq.s32.totalorder %s29, 0
    %p387 = por %p385, %p386
    %s388 = ssub.s32 %s23, %s30
    %p389 = scmp.eq.s32.totalorder %s388, 0
    %s391 = sadd.s32 %s390, 1
    %s392 = scalar_select %p389, %s390, %s391
    %p395 = pneg %p389
    %p396 = scmp.eq.s32.totalorder %s23, 1
    %p397 = por %p395, %p396
    %p398 = scmp.ne.s32.totalorder %s390, %s393
    %p399 = scmp.eq.s32.totalorder %s23, 0
    %p400 = por %p398, %p399
    %p401 = scmp.ne.s32.totalorder %s390, %s393
    %p402 = scmp.eq.s32.totalorder %s28, 1
    %p403 = por %p401, %p402
    %p404 = scmp.ne.s32.totalorder %s393, %s394
    %p405 = scmp.eq.s32.totalorder %s28, 0
    %p406 = por %p404, %p405
    %p407 = scmp.ne.s32.totalorder %s393, %s394
    %p408 = scmp.eq.s32.totalorder %s29, 1
    %p409 = por %p407, %p408
    %p411 = scmp.ne.s32.totalorder %s394, %s410
    %p412 = scmp.eq.s32.totalorder %s29, 0
    %p413 = por %p411, %p412
    %p414 = scmp.le.s32.totalorder 1, %s23
    %p415 = scmp.lt.s32.totalorder %s23, 3
    %p416 = pnand %p414, %p415
    %p417 = pneg %p416
    // Predicated region
    $region9: #{tpu_custom_call.1} parent=5 // pred_check
      _
    $region10: #{tpu_custom_call.1} parent=5 // pred_check_branch
      %419 = sbr.rel (%p416) target = $region12
    $region11: #{tpu_custom_call.1} parent=5 // pred_region
      %s420 = ssub.s32 %s23, 1
      // Predicated region
      $region13: #{tpu_custom_call.1} parent=11 // pred_check
        %p421 = pneg %p44
      $region14: #{tpu_custom_call.1} parent=11 // pred_check_branch
        %423 = sbr.rel (%p421) target = $region16
      $region15: #{tpu_custom_call.1} parent=11 // pred_region
        _
      $region16: #{tpu_custom_call.1} parent=11 // pred_fallthru
        _
      // Predicated region
      $region17: #{tpu_custom_call.1} parent=11 // pred_check
        %p424 = pneg %p65
      $region18: #{tpu_custom_call.1} parent=11 // pred_check_branch
        %426 = sbr.rel (%p424) target = $region20
      $region19: #{tpu_custom_call.1} parent=11 // pred_region
        _
      $region20: #{tpu_custom_call.1} parent=11 // pred_fallthru
        _
      // Predicated region
      $region21: #{tpu_custom_call.1} parent=11 // pred_check
        %p427 = pneg %p86
      $region22: #{tpu_custom_call.1} parent=11 // pred_check_branch
        %429 = sbr.rel (%p427) target = $region24
      $region23: #{tpu_custom_call.1} parent=11 // pred_region
        _
      $region24: #{tpu_custom_call.1} parent=11 // pred_fallthru
        _
      // Predicated region
      $region25: #{tpu_custom_call.1} parent=11 // pred_check
        %p430 = pneg %p107
      $region26: #{tpu_custom_call.1} parent=11 // pred_check_branch
        %432 = sbr.rel (%p430) target = $region28
      $region27: #{tpu_custom_call.1} parent=11 // pred_region
        _
      $region28: #{tpu_custom_call.1} parent=11 // pred_fallthru
        _
      // Predicated region
      $region29: #{tpu_custom_call.1} parent=11 // pred_check
        %p433 = pneg %p128
      $region30: #{tpu_custom_call.1} parent=11 // pred_check_branch
        %435 = sbr.rel (%p433) target = $region32
      $region31: #{tpu_custom_call.1} parent=11 // pred_region
        _
      $region32: #{tpu_custom_call.1} parent=11 // pred_fallthru
        _
      // Predicated region
      $region33: #{tpu_custom_call.1} parent=11 // pred_check
        %p436 = pneg %p149
      $region34: #{tpu_custom_call.1} parent=11 // pred_check_branch
        %438 = sbr.rel (%p436) target = $region36
      $region35: #{tpu_custom_call.1} parent=11 // pred_region
        _
      $region36: #{tpu_custom_call.1} parent=11 // pred_fallthru
        _
      // Predicated region
      $region37: #{tpu_custom_call.1} parent=11 // pred_check
        %p439 = pneg %p170
      $region38: #{tpu_custom_call.1} parent=11 // pred_check_branch
        %441 = sbr.rel (%p439) target = $region40
      $region39: #{tpu_custom_call.1} parent=11 // pred_region
        _
      $region40: #{tpu_custom_call.1} parent=11 // pred_fallthru
        _
      // Predicated region
      $region41: #{tpu_custom_call.1} parent=11 // pred_check
        %p442 = pneg %p191
      $region42: #{tpu_custom_call.1} parent=11 // pred_check_branch
        %444 = sbr.rel (%p442) target = $region44
      $region43: #{tpu_custom_call.1} parent=11 // pred_region
        _
      $region44: #{tpu_custom_call.1} parent=11 // pred_fallthru
        _
      // Predicated region
      $region45: #{tpu_custom_call.1} parent=11 // pred_check
        %p445 = pneg %p212
      $region46: #{tpu_custom_call.1} parent=11 // pred_check_branch
        %447 = sbr.rel (%p445) target = $region48
      $region47: #{tpu_custom_call.1} parent=11 // pred_region
        _
      $region48: #{tpu_custom_call.1} parent=11 // pred_fallthru
        _
      // Predicated region
      $region49: #{tpu_custom_call.1} parent=11 // pred_check
        %p448 = pneg %p233
      $region50: #{tpu_custom_call.1} parent=11 // pred_check_branch
        %450 = sbr.rel (%p448) target = $region52
      $region51: #{tpu_custom_call.1} parent=11 // pred_region
        _
      $region52: #{tpu_custom_call.1} parent=11 // pred_fallthru
        _
      // Predicated region
      $region53: #{tpu_custom_call.1} parent=11 // pred_check
        %p451 = pneg %p254
      $region54: #{tpu_custom_call.1} parent=11 // pred_check_branch
        %453 = sbr.rel (%p451) target = $region56
      $region55: #{tpu_custom_call.1} parent=11 // pred_region
        _
      $region56: #{tpu_custom_call.1} parent=11 // pred_fallthru
        _
      // Predicated region
      $region57: #{tpu_custom_call.1} parent=11 // pred_check
        %p454 = pneg %p275
      $region58: #{tpu_custom_call.1} parent=11 // pred_check_branch
        %456 = sbr.rel (%p454) target = $region60
      $region59: #{tpu_custom_call.1} parent=11 // pred_region
        _
      $region60: #{tpu_custom_call.1} parent=11 // pred_fallthru
        _
      // Predicated region
      $region61: #{tpu_custom_call.1} parent=11 // pred_check
        %p457 = pneg %p296
      $region62: #{tpu_custom_call.1} parent=11 // pred_check_branch
        %459 = sbr.rel (%p457) target = $region64
      $region63: #{tpu_custom_call.1} parent=11 // pred_region
        _
      $region64: #{tpu_custom_call.1} parent=11 // pred_fallthru
        _
      // Predicated region
      $region65: #{tpu_custom_call.1} parent=11 // pred_check
        %p460 = pneg %p317
      $region66: #{tpu_custom_call.1} parent=11 // pred_check_branch
        %462 = sbr.rel (%p460) target = $region68
      $region67: #{tpu_custom_call.1} parent=11 // pred_region
        _
      $region68: #{tpu_custom_call.1} parent=11 // pred_fallthru
        _
      // Predicated region
      $region69: #{tpu_custom_call.1} parent=11 // pred_check
        %p463 = pneg %p338
      $region70: #{tpu_custom_call.1} parent=11 // pred_check_branch
        %465 = sbr.rel (%p463) target = $region72
      $region71: #{tpu_custom_call.1} parent=11 // pred_region
        _
      $region72: #{tpu_custom_call.1} parent=11 // pred_fallthru
        _
      // Predicated region
      $region73: #{tpu_custom_call.1} parent=11 // pred_check
        %p466 = pneg %p359
      $region74: #{tpu_custom_call.1} parent=11 // pred_check_branch
        %468 = sbr.rel (%p466) target = $region76
      $region75: #{tpu_custom_call.1} parent=11 // pred_region
        _
      $region76: #{tpu_custom_call.1} parent=11 // pred_fallthru
        _
      // Predicated region
      $region77: #{tpu_custom_call.1} parent=11 // pred_check
        %p469 = pneg %p380
      $region78: #{tpu_custom_call.1} parent=11 // pred_check_branch
        %471 = sbr.rel (%p469) target = $region80
      $region79: #{tpu_custom_call.1} parent=11 // pred_region
        _
      $region80: #{tpu_custom_call.1} parent=11 // pred_fallthru
        _
    $region12: #{tpu_custom_call.1} parent=5 // pred_fallthru
      _
    %p472 = scmp.lt.s32.totalorder %s23, 2
    // Predicated region
    $region81: #{tpu_custom_call.1} parent=5 // pred_check
      %p473 = pneg %p472
    $region82: #{tpu_custom_call.1} parent=5 // pred_check_branch
      %475 = sbr.rel (%p473) target = $region84
    $region83: #{tpu_custom_call.1} parent=5 // pred_region
      _
    $region84: #{tpu_custom_call.1} parent=5 // pred_fallthru
      _
    %p476 = scmp.le.s32.totalorder 1, %s23
    %p477 = scmp.lt.s32.totalorder %s23, 3
    %p478 = pnand %p476, %p477
    %p479 = pneg %p478
    // Predicated region
    $region85: #{tpu_custom_call.1} parent=5 // pred_check
      _
    $region86: #{tpu_custom_call.1} parent=5 // pred_check_branch
      %481 = sbr.rel (%p478) target = $region88
    $region87: #{tpu_custom_call.1} parent=5 // pred_region
      %s482 = ssub.s32 %s23, 1
      %p483 = pneg %p44
      %p484 = pneg %p41
      %p485 = pneg %p65
      %p486 = pneg %p62
      %p487 = pneg %p86
      %p488 = pneg %p83
      %p489 = pneg %p107
      %p490 = pneg %p104
      %p491 = pneg %p128
      %p492 = pneg %p125
      %p493 = pneg %p149
      %p494 = pneg %p146
      %p495 = pneg %p170
      %p496 = pneg %p167
      %p497 = pneg %p191
      %p498 = pneg %p188
      %p499 = pneg %p212
      %p500 = pneg %p209
      %p501 = pneg %p233
      %p502 = pneg %p230
      %p503 = pneg %p254
      %p504 = pneg %p251
      %p505 = pneg %p275
      %p506 = pneg %p272
      %p507 = pneg %p296
      %p508 = pneg %p293
      %p509 = pneg %p317
      %p510 = pneg %p314
      %p511 = pneg %p338
      %p512 = pneg %p335
      %p513 = pneg %p359
      %p514 = pneg %p356
      %p515 = pneg %p380
      %p516 = pneg %p377
      %p517 = pneg %p406
      %p518 = pneg %p403
      %s519 = smul.u32 16, %s28
      %p520 = scmp.lt.s32.totalorder %s519, 31
      %s521 = scalar_select %p520, %s519, 31
      %s522 = smul.addr %s521, 8
      %s523 = scalar_lea.vmem %s17, %s522
      %s524 = smul.u32 16, %s28
      %p525 = scmp.lt.s32.totalorder %s524, 31
      %s526 = scalar_select %p525, %s524, 31
      %s527 = smul.addr %s526, 8
      %s528 = scalar_lea.vmem %s17, %s527
      %s529 = smul.u32 16, %s28
      %s531 = smul.u32 %s28, 128
      %v532 = vld [vmem:[%s0] sm:$0xff]
      %v533 = vld [vmem:[%s0 + $0x8] sm:$0xff]
      %v534 = vld [vmem:[%s0 + $0x10] sm:$0xff]
      %v535 = vld [vmem:[%s0 + $0x18] sm:$0xff]
      %v536 = vld [vmem:[%s0 + $0x20] sm:$0xff]
      %v537 = vld [vmem:[%s0 + $0x28] sm:$0xff]
      %v538 = vld [vmem:[%s0 + $0x30] sm:$0xff]
      %v539 = vld [vmem:[%s0 + $0x38] sm:$0xff]
      %v540 = vld [vmem:[%s0 + $0x40] sm:$0xff]
      %v541 = vld [vmem:[%s0 + $0x48] sm:$0xff]
      %v542 = vld [vmem:[%s0 + $0x50] sm:$0xff]
      %v543 = vld [vmem:[%s0 + $0x58] sm:$0xff]
      %v544 = vld [vmem:[%s0 + $0x60] sm:$0xff]
      %v545 = vld [vmem:[%s0 + $0x68] sm:$0xff]
      %v546 = vld [vmem:[%s0 + $0x70] sm:$0xff]
      %v547 = vld [vmem:[%s0 + $0x78] sm:$0xff]
      %v548 = vld [vmem:[%s0 + $0x80] sm:$0xff]
      %v549 = vld [vmem:[%s0 + $0x88] sm:$0xff]
      %v550 = vld [vmem:[%s0 + $0x90] sm:$0xff]
      %v551 = vld [vmem:[%s0 + $0x98] sm:$0xff]
      %v552 = vld [vmem:[%s0 + $0xa0] sm:$0xff]
      %v553 = vld [vmem:[%s0 + $0xa8] sm:$0xff]
      %v554 = vld [vmem:[%s0 + $0xb0] sm:$0xff]
      %v555 = vld [vmem:[%s0 + $0xb8] sm:$0xff]
      %v556 = vld [vmem:[%s0 + $0xc0] sm:$0xff]
      %v557 = vld [vmem:[%s0 + $0xc8] sm:$0xff]
      %v558 = vld [vmem:[%s0 + $0xd0] sm:$0xff]
      %v559 = vld [vmem:[%s0 + $0xd8] sm:$0xff]
      %v560 = vld [vmem:[%s0 + $0xe0] sm:$0xff]
      %v561 = vld [vmem:[%s0 + $0xe8] sm:$0xff]
      %v562 = vld [vmem:[%s0 + $0xf0] sm:$0xff]
      %v563 = vld [vmem:[%s0 + $0xf8] sm:$0xff]
      %s564 = scalar_lea.vmem %s0, %s531
      %v565 = vld [vmem:[%s564] sm:$0xff]
      %v566 = vld [vmem:[%s564 + $0x8] sm:$0xff]
      %v567 = vld [vmem:[%s564 + $0x10] sm:$0xff]
      %v568 = vld [vmem:[%s564 + $0x18] sm:$0xff]
      %v569 = vld [vmem:[%s564 + $0x20] sm:$0xff]
      %v570 = vld [vmem:[%s564 + $0x28] sm:$0xff]
      %v571 = vld [vmem:[%s564 + $0x30] sm:$0xff]
      %v572 = vld [vmem:[%s564 + $0x38] sm:$0xff]
      %v573 = vld [vmem:[%s564 + $0x40] sm:$0xff]
      %v574 = vld [vmem:[%s564 + $0x48] sm:$0xff]
      %v575 = vld [vmem:[%s564 + $0x50] sm:$0xff]
      %v576 = vld [vmem:[%s564 + $0x58] sm:$0xff]
      %v577 = vld [vmem:[%s564 + $0x60] sm:$0xff]
      %v578 = vld [vmem:[%s564 + $0x68] sm:$0xff]
      %v579 = vld [vmem:[%s564 + $0x70] sm:$0xff]
      %v580 = vld [vmem:[%s564 + $0x78] sm:$0xff]
      %v581 = vld [vmem:[%s1] sm:$0xff]
      %v582 = vld [vmem:[%s1 + $0x8] sm:$0xff]
      %v583 = vld [vmem:[%s1 + $0x10] sm:$0xff]
      %v584 = vld [vmem:[%s1 + $0x18] sm:$0xff]
      %v585 = vld [vmem:[%s1 + $0x20] sm:$0xff]
      %v586 = vld [vmem:[%s1 + $0x28] sm:$0xff]
      %v587 = vld [vmem:[%s1 + $0x30] sm:$0xff]
      %v588 = vld [vmem:[%s1 + $0x38] sm:$0xff]
      %v589 = vld [vmem:[%s2] sm:$0x1]
      %v591 = vperm.slane %v589, 0
      %vm593 = vcmask 523264
      %v595 = vsel %vm593, %v565, 0
      %v598 = vsel %vm593, %v566, 0
      %v601 = vsel %vm593, %v567, 0
      %v604 = vsel %vm593, %v568, 0
      %v607 = vsel %vm593, %v569, 0
      %v610 = vsel %vm593, %v570, 0
      %v613 = vsel %vm593, %v571, 0
      %v616 = vsel %vm593, %v572, 0
      %v619 = vsel %vm593, %v573, 0
      %v622 = vsel %vm593, %v574, 0
      %v625 = vsel %vm593, %v575, 0
      %v628 = vsel %vm593, %v576, 0
      %v631 = vsel %vm593, %v577, 0
      %v634 = vsel %vm593, %v578, 0
      %v637 = vsel %vm593, %v579, 0
      %v640 = vsel %vm593, %v580, 0
      %642 = vmatpush.msra.mxu0 0.0
      %643 = vmatpush.msra.mxu0 0.0
      %644 = vmatpush.msra.mxu0 0.0
      %645 = vmatpush.msra.mxu0 0.0
      %646 = vmatpush.msra.mxu0 0.0
      %647 = vmatpush.msra.mxu0 0.0
      %648 = vmatpush.msra.mxu0 0.0
      %649 = vmatpush.msra.mxu0 0.0
      %650 = vmatpush.msra.mxu0 %v588
      %651 = vmatpush.msra.mxu0 %v587
      %652 = vmatpush.msra.mxu0 %v586
      %653 = vmatpush.msra.mxu0 %v585
      %654 = vmatpush.msra.mxu0 %v584
      %655 = vmatpush.msra.mxu0 %v583
      %656 = vmatpush.msra.mxu0 %v582
      %657 = vmatpush.msra.mxu0 %v581
      %658 = vmatmul.f32.gmra.mxu0 %v595
      %v659 = vpop.f32.mrf.mxu0
      %v660 = vadd.f32 %v591, %v659
      %661 = vmatmul.f32.gmra.mxu0 %v598
      %v662 = vpop.f32.mrf.mxu0
      %v663 = vadd.f32 %v591, %v662
      %664 = vmatmul.f32.gmra.mxu0 %v601
      %v665 = vpop.f32.mrf.mxu0
      %v666 = vadd.f32 %v591, %v665
      %667 = vmatmul.f32.gmra.mxu0 %v604
      %v668 = vpop.f32.mrf.mxu0
      %v669 = vadd.f32 %v591, %v668
      %670 = vmatmul.f32.gmra.mxu0 %v607
      %v671 = vpop.f32.mrf.mxu0
      %v672 = vadd.f32 %v591, %v671
      %673 = vmatmul.f32.gmra.mxu0 %v610
      %v674 = vpop.f32.mrf.mxu0
      %v675 = vadd.f32 %v591, %v674
      %676 = vmatmul.f32.gmra.mxu0 %v613
      %v677 = vpop.f32.mrf.mxu0
      %v678 = vadd.f32 %v591, %v677
      %679 = vmatmul.f32.gmra.mxu0 %v616
      %v680 = vpop.f32.mrf.mxu0
      %v681 = vadd.f32 %v591, %v680
      %682 = vmatmul.f32.gmra.mxu0 %v619
      %v683 = vpop.f32.mrf.mxu0
      %v684 = vadd.f32 %v591, %v683
      %685 = vmatmul.f32.gmra.mxu0 %v622
      %v686 = vpop.f32.mrf.mxu0
      %v687 = vadd.f32 %v591, %v686
      %688 = vmatmul.f32.gmra.mxu0 %v625
      %v689 = vpop.f32.mrf.mxu0
      %v690 = vadd.f32 %v591, %v689
      %691 = vmatmul.f32.gmra.mxu0 %v628
      %v692 = vpop.f32.mrf.mxu0
      %v693 = vadd.f32 %v591, %v692
      %694 = vmatmul.f32.gmra.mxu0 %v631
      %v695 = vpop.f32.mrf.mxu0
      %v696 = vadd.f32 %v591, %v695
      %697 = vmatmul.f32.gmra.mxu0 %v634
      %v698 = vpop.f32.mrf.mxu0
      %v699 = vadd.f32 %v591, %v698
      %700 = vmatmul.f32.gmra.mxu0 %v637
      %v701 = vpop.f32.mrf.mxu0
      %v702 = vadd.f32 %v591, %v701
      %703 = vmatmul.f32.gmra.mxu0 %v640
      %v704 = vpop.f32.mrf.mxu0
      %v705 = vadd.f32 %v591, %v704
      %706 = vdwg.mxu0
      %v707 = vld [vmem:[%s3] sm:$0xff]
      %v708 = vld [vmem:[%s3 + $0x8] sm:$0xff]
      %v709 = vld [vmem:[%s3 + $0x10] sm:$0xff]
      %v710 = vld [vmem:[%s3 + $0x18] sm:$0xff]
      %v711 = vld [vmem:[%s3 + $0x20] sm:$0xff]
      %v712 = vld [vmem:[%s3 + $0x28] sm:$0xff]
      %v713 = vld [vmem:[%s3 + $0x30] sm:$0xff]
      %v714 = vld [vmem:[%s3 + $0x38] sm:$0xff]
      %v715 = vld [vmem:[%s4] sm:$0x1]
      %v717 = vperm.slane %v715, 0
      %v720 = vsel %vm593, %v532, 0
      %v723 = vsel %vm593, %v533, 0
      %v726 = vsel %vm593, %v534, 0
      %v729 = vsel %vm593, %v535, 0
      %v732 = vsel %vm593, %v536, 0
      %v735 = vsel %vm593, %v537, 0
      %v738 = vsel %vm593, %v538, 0
      %v741 = vsel %vm593, %v539, 0
      %v744 = vsel %vm593, %v540, 0
      %v747 = vsel %vm593, %v541, 0
      %v750 = vsel %vm593, %v542, 0
      %v753 = vsel %vm593, %v543, 0
      %v756 = vsel %vm593, %v544, 0
      %v759 = vsel %vm593, %v545, 0
      %v762 = vsel %vm593, %v546, 0
      %v765 = vsel %vm593, %v547, 0
      %v768 = vsel %vm593, %v548, 0
      %v771 = vsel %vm593, %v549, 0
      %v774 = vsel %vm593, %v550, 0
      %v777 = vsel %vm593, %v551, 0
      %v780 = vsel %vm593, %v552, 0
      %v783 = vsel %vm593, %v553, 0
      %v786 = vsel %vm593, %v554, 0
      %v789 = vsel %vm593, %v555, 0
      %v792 = vsel %vm593, %v556, 0
      %v795 = vsel %vm593, %v557, 0
      %v798 = vsel %vm593, %v558, 0
      %v801 = vsel %vm593, %v559, 0
      %v804 = vsel %vm593, %v560, 0
      %v807 = vsel %vm593, %v561, 0
      %v810 = vsel %vm593, %v562, 0
      %v813 = vsel %vm593, %v563, 0
      %815 = vmatpush.msra.mxu0 0.0
      %816 = vmatpush.msra.mxu0 0.0
      %817 = vmatpush.msra.mxu0 0.0
      %818 = vmatpush.msra.mxu0 0.0
      %819 = vmatpush.msra.mxu0 0.0
      %820 = vmatpush.msra.mxu0 0.0
      %821 = vmatpush.msra.mxu0 0.0
      %822 = vmatpush.msra.mxu0 0.0
      %823 = vmatpush.msra.mxu0 %v714
      %824 = vmatpush.msra.mxu0 %v713
      %825 = vmatpush.msra.mxu0 %v712
      %826 = vmatpush.msra.mxu0 %v711
      %827 = vmatpush.msra.mxu0 %v710
      %828 = vmatpush.msra.mxu0 %v709
      %829 = vmatpush.msra.mxu0 %v708
      %830 = vmatpush.msra.mxu0 %v707
      %831 = vmatmul.f32.gmra.mxu0 %v720
      %v832 = vpop.f32.mrf.mxu0
      %v833 = vadd.f32 %v717, %v832
      %834 = vmatmul.f32.gmra.mxu0 %v723
      %v835 = vpop.f32.mrf.mxu0
      %v836 = vadd.f32 %v717, %v835
      %837 = vmatmul.f32.gmra.mxu0 %v726
      %v838 = vpop.f32.mrf.mxu0
      %v839 = vadd.f32 %v717, %v838
      %840 = vmatmul.f32.gmra.mxu0 %v729
      %v841 = vpop.f32.mrf.mxu0
      %v842 = vadd.f32 %v717, %v841
      %843 = vmatmul.f32.gmra.mxu0 %v732
      %v844 = vpop.f32.mrf.mxu0
      %v845 = vadd.f32 %v717, %v844
      %846 = vmatmul.f32.gmra.mxu0 %v735
      %v847 = vpop.f32.mrf.mxu0
      %v848 = vadd.f32 %v717, %v847
      %849 = vmatmul.f32.gmra.mxu0 %v738
      %v850 = vpop.f32.mrf.mxu0
      %v851 = vadd.f32 %v717, %v850
      %852 = vmatmul.f32.gmra.mxu0 %v741
      %v853 = vpop.f32.mrf.mxu0
      %v854 = vadd.f32 %v717, %v853
      %855 = vmatmul.f32.gmra.mxu0 %v744
      %v856 = vpop.f32.mrf.mxu0
      %v857 = vadd.f32 %v717, %v856
      %858 = vmatmul.f32.gmra.mxu0 %v747
      %v859 = vpop.f32.mrf.mxu0
      %v860 = vadd.f32 %v717, %v859
      %861 = vmatmul.f32.gmra.mxu0 %v750
      %v862 = vpop.f32.mrf.mxu0
      %v863 = vadd.f32 %v717, %v862
      %864 = vmatmul.f32.gmra.mxu0 %v753
      %v865 = vpop.f32.mrf.mxu0
      %v866 = vadd.f32 %v717, %v865
      %867 = vmatmul.f32.gmra.mxu0 %v756
      %v868 = vpop.f32.mrf.mxu0
      %v869 = vadd.f32 %v717, %v868
      %870 = vmatmul.f32.gmra.mxu0 %v759
      %v871 = vpop.f32.mrf.mxu0
      %v872 = vadd.f32 %v717, %v871
      %873 = vmatmul.f32.gmra.mxu0 %v762
      %v874 = vpop.f32.mrf.mxu0
      %v875 = vadd.f32 %v717, %v874
      %876 = vmatmul.f32.gmra.mxu0 %v765
      %v877 = vpop.f32.mrf.mxu0
      %v878 = vadd.f32 %v717, %v877
      %879 = vmatmul.f32.gmra.mxu0 %v768
      %v880 = vpop.f32.mrf.mxu0
      %v881 = vadd.f32 %v717, %v880
      %882 = vmatmul.f32.gmra.mxu0 %v771
      %v883 = vpop.f32.mrf.mxu0
      %v884 = vadd.f32 %v717, %v883
      %885 = vmatmul.f32.gmra.mxu0 %v774
      %v886 = vpop.f32.mrf.mxu0
      %v887 = vadd.f32 %v717, %v886
      %888 = vmatmul.f32.gmra.mxu0 %v777
      %v889 = vpop.f32.mrf.mxu0
      %v890 = vadd.f32 %v717, %v889
      %891 = vmatmul.f32.gmra.mxu0 %v780
      %v892 = vpop.f32.mrf.mxu0
      %v893 = vadd.f32 %v717, %v892
      %894 = vmatmul.f32.gmra.mxu0 %v783
      %v895 = vpop.f32.mrf.mxu0
      %v896 = vadd.f32 %v717, %v895
      %897 = vmatmul.f32.gmra.mxu0 %v786
      %v898 = vpop.f32.mrf.mxu0
      %v899 = vadd.f32 %v717, %v898
      %900 = vmatmul.f32.gmra.mxu0 %v789
      %v901 = vpop.f32.mrf.mxu0
      %v902 = vadd.f32 %v717, %v901
      %903 = vmatmul.f32.gmra.mxu0 %v792
      %v904 = vpop.f32.mrf.mxu0
      %v905 = vadd.f32 %v717, %v904
      %906 = vmatmul.f32.gmra.mxu0 %v795
      %v907 = vpop.f32.mrf.mxu0
      %v908 = vadd.f32 %v717, %v907
      %909 = vmatmul.f32.gmra.mxu0 %v798
      %v910 = vpop.f32.mrf.mxu0
      %v911 = vadd.f32 %v717, %v910
      %912 = vmatmul.f32.gmra.mxu0 %v801
      %v913 = vpop.f32.mrf.mxu0
      %v914 = vadd.f32 %v717, %v913
      %915 = vmatmul.f32.gmra.mxu0 %v804
      %v916 = vpop.f32.mrf.mxu0
      %v917 = vadd.f32 %v717, %v916
      %918 = vmatmul.f32.gmra.mxu0 %v807
      %v919 = vpop.f32.mrf.mxu0
      %v920 = vadd.f32 %v717, %v919
      %921 = vmatmul.f32.gmra.mxu0 %v810
      %v922 = vpop.f32.mrf.mxu0
      %v923 = vadd.f32 %v717, %v922
      %924 = vmatmul.f32.gmra.mxu0 %v813
      %v925 = vpop.f32.mrf.mxu0
      %v926 = vadd.f32 %v717, %v925
      %927 = vdwg.mxu0
      %v928 = vld [vmem:[%s5] sm:$0xff]
      %v929 = vld [vmem:[%s5 + $0x8] sm:$0xff]
      %v930 = vld [vmem:[%s5 + $0x10] sm:$0xff]
      %v931 = vld [vmem:[%s5 + $0x18] sm:$0xff]
      %v932 = vld [vmem:[%s5 + $0x20] sm:$0xff]
      %v933 = vld [vmem:[%s5 + $0x28] sm:$0xff]
      %v934 = vld [vmem:[%s5 + $0x30] sm:$0xff]
      %v935 = vld [vmem:[%s5 + $0x38] sm:$0xff]
      %v936 = vld [vmem:[%s6] sm:$0x1]
      %v938 = vperm.slane %v936, 0
      %940 = vmatpush.msra.mxu0 0.0
      %941 = vmatpush.msra.mxu0 0.0
      %942 = vmatpush.msra.mxu0 0.0
      %943 = vmatpush.msra.mxu0 0.0
      %944 = vmatpush.msra.mxu0 0.0
      %945 = vmatpush.msra.mxu0 0.0
      %946 = vmatpush.msra.mxu0 0.0
      %947 = vmatpush.msra.mxu0 0.0
      %948 = vmatpush.msra.mxu0 %v935
      %949 = vmatpush.msra.mxu0 %v934
      %950 = vmatpush.msra.mxu0 %v933
      %951 = vmatpush.msra.mxu0 %v932
      %952 = vmatpush.msra.mxu0 %v931
      %953 = vmatpush.msra.mxu0 %v930
      %954 = vmatpush.msra.mxu0 %v929
      %955 = vmatpush.msra.mxu0 %v928
      %956 = vmatmul.f32.gmra.mxu0 %v720
      %v957 = vpop.f32.mrf.mxu0
      %v958 = vadd.f32 %v938, %v957
      %959 = vmatmul.f32.gmra.mxu0 %v723
      %v960 = vpop.f32.mrf.mxu0
      %v961 = vadd.f32 %v938, %v960
      %962 = vmatmul.f32.gmra.mxu0 %v726
      %v963 = vpop.f32.mrf.mxu0
      %v964 = vadd.f32 %v938, %v963
      %965 = vmatmul.f32.gmra.mxu0 %v729
      %v966 = vpop.f32.mrf.mxu0
      %v967 = vadd.f32 %v938, %v966
      %968 = vmatmul.f32.gmra.mxu0 %v732
      %v969 = vpop.f32.mrf.mxu0
      %v970 = vadd.f32 %v938, %v969
      %971 = vmatmul.f32.gmra.mxu0 %v735
      %v972 = vpop.f32.mrf.mxu0
      %v973 = vadd.f32 %v938, %v972
      %974 = vmatmul.f32.gmra.mxu0 %v738
      %v975 = vpop.f32.mrf.mxu0
      %v976 = vadd.f32 %v938, %v975
      %977 = vmatmul.f32.gmra.mxu0 %v741
      %v978 = vpop.f32.mrf.mxu0
      %v979 = vadd.f32 %v938, %v978
      %980 = vmatmul.f32.gmra.mxu0 %v744
      %v981 = vpop.f32.mrf.mxu0
      %v982 = vadd.f32 %v938, %v981
      %983 = vmatmul.f32.gmra.mxu0 %v747
      %v984 = vpop.f32.mrf.mxu0
      %v985 = vadd.f32 %v938, %v984
      %986 = vmatmul.f32.gmra.mxu0 %v750
      %v987 = vpop.f32.mrf.mxu0
      %v988 = vadd.f32 %v938, %v987
      %989 = vmatmul.f32.gmra.mxu0 %v753
      %v990 = vpop.f32.mrf.mxu0
      %v991 = vadd.f32 %v938, %v990
      %992 = vmatmul.f32.gmra.mxu0 %v756
      %v993 = vpop.f32.mrf.mxu0
      %v994 = vadd.f32 %v938, %v993
      %995 = vmatmul.f32.gmra.mxu0 %v759
      %v996 = vpop.f32.mrf.mxu0
      %v997 = vadd.f32 %v938, %v996
      %998 = vmatmul.f32.gmra.mxu0 %v762
      %v999 = vpop.f32.mrf.mxu0
      %v1000 = vadd.f32 %v938, %v999
      %1001 = vmatmul.f32.gmra.mxu0 %v765
      %v1002 = vpop.f32.mrf.mxu0
      %v1003 = vadd.f32 %v938, %v1002
      %1004 = vmatmul.f32.gmra.mxu0 %v768
      %v1005 = vpop.f32.mrf.mxu0
      %v1006 = vadd.f32 %v938, %v1005
      %1007 = vmatmul.f32.gmra.mxu0 %v771
      %v1008 = vpop.f32.mrf.mxu0
      %v1009 = vadd.f32 %v938, %v1008
      %1010 = vmatmul.f32.gmra.mxu0 %v774
      %v1011 = vpop.f32.mrf.mxu0
      %v1012 = vadd.f32 %v938, %v1011
      %1013 = vmatmul.f32.gmra.mxu0 %v777
      %v1014 = vpop.f32.mrf.mxu0
      %v1015 = vadd.f32 %v938, %v1014
      %1016 = vmatmul.f32.gmra.mxu0 %v780
      %v1017 = vpop.f32.mrf.mxu0
      %v1018 = vadd.f32 %v938, %v1017
      %1019 = vmatmul.f32.gmra.mxu0 %v783
      %v1020 = vpop.f32.mrf.mxu0
      %v1021 = vadd.f32 %v938, %v1020
      %1022 = vmatmul.f32.gmra.mxu0 %v786
      %v1023 = vpop.f32.mrf.mxu0
      %v1024 = vadd.f32 %v938, %v1023
      %1025 = vmatmul.f32.gmra.mxu0 %v789
      %v1026 = vpop.f32.mrf.mxu0
      %v1027 = vadd.f32 %v938, %v1026
      %1028 = vmatmul.f32.gmra.mxu0 %v792
      %v1029 = vpop.f32.mrf.mxu0
      %v1030 = vadd.f32 %v938, %v1029
      %1031 = vmatmul.f32.gmra.mxu0 %v795
      %v1032 = vpop.f32.mrf.mxu0
      %v1033 = vadd.f32 %v938, %v1032
      %1034 = vmatmul.f32.gmra.mxu0 %v798
      %v1035 = vpop.f32.mrf.mxu0
      %v1036 = vadd.f32 %v938, %v1035
      %1037 = vmatmul.f32.gmra.mxu0 %v801
      %v1038 = vpop.f32.mrf.mxu0
      %v1039 = vadd.f32 %v938, %v1038
      %1040 = vmatmul.f32.gmra.mxu0 %v804
      %v1041 = vpop.f32.mrf.mxu0
      %v1042 = vadd.f32 %v938, %v1041
      %1043 = vmatmul.f32.gmra.mxu0 %v807
      %v1044 = vpop.f32.mrf.mxu0
      %v1045 = vadd.f32 %v938, %v1044
      %1046 = vmatmul.f32.gmra.mxu0 %v810
      %v1047 = vpop.f32.mrf.mxu0
      %v1048 = vadd.f32 %v938, %v1047
      %1049 = vmatmul.f32.gmra.mxu0 %v813
      %v1050 = vpop.f32.mrf.mxu0
      %v1051 = vadd.f32 %v938, %v1050
      %1052 = vdwg.mxu0
      %vm1053 = vcmask 261120
      %v1055 = vsel %vm1053, %v660, 0
      %v1058 = vsel %vm1053, %v663, 0
      %v1061 = vsel %vm1053, %v666, 0
      %v1064 = vsel %vm1053, %v669, 0
      %v1067 = vsel %vm1053, %v672, 0
      %v1070 = vsel %vm1053, %v675, 0
      %v1073 = vsel %vm1053, %v678, 0
      %v1076 = vsel %vm1053, %v681, 0
      %v1079 = vsel %vm1053, %v684, 0
      %v1082 = vsel %vm1053, %v687, 0
      %v1085 = vsel %vm1053, %v690, 0
      %v1088 = vsel %vm1053, %v693, 0
      %v1091 = vsel %vm1053, %v696, 0
      %v1094 = vsel %vm1053, %v699, 0
      %v1097 = vsel %vm1053, %v702, 0
      %v1100 = vsel %vm1053, %v705, 0
      %v1103 = vsel %vm1053, %v833, 0
      %v1106 = vsel %vm1053, %v836, 0
      %v1109 = vsel %vm1053, %v839, 0
      %v1112 = vsel %vm1053, %v842, 0
      %v1115 = vsel %vm1053, %v845, 0
      %v1118 = vsel %vm1053, %v848, 0
      %v1121 = vsel %vm1053, %v851, 0
      %v1124 = vsel %vm1053, %v854, 0
      %v1127 = vsel %vm1053, %v857, 0
      %v1130 = vsel %vm1053, %v860, 0
      %v1133 = vsel %vm1053, %v863, 0
      %v1136 = vsel %vm1053, %v866, 0
      %v1139 = vsel %vm1053, %v869, 0
      %v1142 = vsel %vm1053, %v872, 0
      %v1145 = vsel %vm1053, %v875, 0
      %v1148 = vsel %vm1053, %v878, 0
      %v1151 = vsel %vm1053, %v881, 0
      %v1154 = vsel %vm1053, %v884, 0
      %v1157 = vsel %vm1053, %v887, 0
      %v1160 = vsel %vm1053, %v890, 0
      %v1163 = vsel %vm1053, %v893, 0
      %v1166 = vsel %vm1053, %v896, 0
      %v1169 = vsel %vm1053, %v899, 0
      %v1172 = vsel %vm1053, %v902, 0
      %v1175 = vsel %vm1053, %v905, 0
      %v1178 = vsel %vm1053, %v908, 0
      %v1181 = vsel %vm1053, %v911, 0
      %v1184 = vsel %vm1053, %v914, 0
      %v1187 = vsel %vm1053, %v917, 0
      %v1190 = vsel %vm1053, %v920, 0
      %v1193 = vsel %vm1053, %v923, 0
      %v1196 = vsel %vm1053, %v926, 0
      %1198 = vmatpush.xpose.msra.mxu0 %v1148
      %1199 = vmatpush.xpose.msra.mxu0 %v1145
      %1200 = vmatpush.xpose.msra.mxu0 %v1142
      %1201 = vmatpush.xpose.msra.mxu0 %v1139
      %1202 = vmatpush.xpose.msra.mxu0 %v1136
      %1203 = vmatpush.xpose.msra.mxu0 %v1133
      %1204 = vmatpush.xpose.msra.mxu0 %v1130
      %1205 = vmatpush.xpose.msra.mxu0 %v1127
      %1206 = vmatpush.xpose.msra.mxu0 %v1124
      %1207 = vmatpush.xpose.msra.mxu0 %v1121
      %1208 = vmatpush.xpose.msra.mxu0 %v1118
      %1209 = vmatpush.xpose.msra.mxu0 %v1115
      %1210 = vmatpush.xpose.msra.mxu0 %v1112
      %1211 = vmatpush.xpose.msra.mxu0 %v1109
      %1212 = vmatpush.xpose.msra.mxu0 %v1106
      %1213 = vmatpush.xpose.msra.mxu0 %v1103
      %1214 = vmatmul.f32.gmra.mxu0 %v1055
      %v1215 = vpop.f32.mrf.mxu0
      %v1216 = vadd.f32 0.0, %v1215
      %1217 = vmatmul.f32.gmra.mxu0 %v1058
      %v1218 = vpop.f32.mrf.mxu0
      %v1219 = vadd.f32 0.0, %v1218
      %1220 = vmatmul.f32.gmra.mxu0 %v1061
      %v1221 = vpop.f32.mrf.mxu0
      %v1222 = vadd.f32 0.0, %v1221
      %1223 = vmatmul.f32.gmra.mxu0 %v1064
      %v1224 = vpop.f32.mrf.mxu0
      %v1225 = vadd.f32 0.0, %v1224
      %1226 = vmatmul.f32.gmra.mxu0 %v1067
      %v1227 = vpop.f32.mrf.mxu0
      %v1228 = vadd.f32 0.0, %v1227
      %1229 = vmatmul.f32.gmra.mxu0 %v1070
      %v1230 = vpop.f32.mrf.mxu0
      %v1231 = vadd.f32 0.0, %v1230
      %1232 = vmatmul.f32.gmra.mxu0 %v1073
      %v1233 = vpop.f32.mrf.mxu0
      %v1234 = vadd.f32 0.0, %v1233
      %1235 = vmatmul.f32.gmra.mxu0 %v1076
      %v1236 = vpop.f32.mrf.mxu0
      %v1237 = vadd.f32 0.0, %v1236
      %1238 = vmatmul.f32.gmra.mxu0 %v1079
      %v1239 = vpop.f32.mrf.mxu0
      %v1240 = vadd.f32 0.0, %v1239
      %1241 = vmatmul.f32.gmra.mxu0 %v1082
      %v1242 = vpop.f32.mrf.mxu0
      %v1243 = vadd.f32 0.0, %v1242
      %1244 = vmatmul.f32.gmra.mxu0 %v1085
      %v1245 = vpop.f32.mrf.mxu0
      %v1246 = vadd.f32 0.0, %v1245
      %1247 = vmatmul.f32.gmra.mxu0 %v1088
      %v1248 = vpop.f32.mrf.mxu0
      %v1249 = vadd.f32 0.0, %v1248
      %1250 = vmatmul.f32.gmra.mxu0 %v1091
      %v1251 = vpop.f32.mrf.mxu0
      %v1252 = vadd.f32 0.0, %v1251
      %1253 = vmatmul.f32.gmra.mxu0 %v1094
      %v1254 = vpop.f32.mrf.mxu0
      %v1255 = vadd.f32 0.0, %v1254
      %1256 = vmatmul.f32.gmra.mxu0 %v1097
      %v1257 = vpop.f32.mrf.mxu0
      %v1258 = vadd.f32 0.0, %v1257
      %1259 = vmatmul.f32.gmra.mxu0 %v1100
      %v1260 = vpop.f32.mrf.mxu0
      %v1261 = vadd.f32 0.0, %v1260
      %1262 = vdwg.mxu0
      %1263 = vmatpush.xpose.msra.mxu0 %v1196
      %1264 = vmatpush.xpose.msra.mxu0 %v1193
      %1265 = vmatpush.xpose.msra.mxu0 %v1190
      %1266 = vmatpush.xpose.msra.mxu0 %v1187
      %1267 = vmatpush.xpose.msra.mxu0 %v1184
      %1268 = vmatpush.xpose.msra.mxu0 %v1181
      %1269 = vmatpush.xpose.msra.mxu0 %v1178
      %1270 = vmatpush.xpose.msra.mxu0 %v1175
      %1271 = vmatpush.xpose.msra.mxu0 %v1172
      %1272 = vmatpush.xpose.msra.mxu0 %v1169
      %1273 = vmatpush.xpose.msra.mxu0 %v1166
      %1274 = vmatpush.xpose.msra.mxu0 %v1163
      %1275 = vmatpush.xpose.msra.mxu0 %v1160
      %1276 = vmatpush.xpose.msra.mxu0 %v1157
      %1277 = vmatpush.xpose.msra.mxu0 %v1154
      %1278 = vmatpush.xpose.msra.mxu0 %v1151
      %1279 = vmatmul.f32.gmra.mxu0 %v1055
      %v1280 = vpop.f32.mrf.mxu0
      %v1281 = vadd.f32 0.0, %v1280
      %1282 = vmatmul.f32.gmra.mxu0 %v1058
      %v1283 = vpop.f32.mrf.mxu0
      %v1284 = vadd.f32 0.0, %v1283
      %1285 = vmatmul.f32.gmra.mxu0 %v1061
      %v1286 = vpop.f32.mrf.mxu0
      %v1287 = vadd.f32 0.0, %v1286
      %1288 = vmatmul.f32.gmra.mxu0 %v1064
      %v1289 = vpop.f32.mrf.mxu0
      %v1290 = vadd.f32 0.0, %v1289
      %1291 = vmatmul.f32.gmra.mxu0 %v1067
      %v1292 = vpop.f32.mrf.mxu0
      %v1293 = vadd.f32 0.0, %v1292
      %1294 = vmatmul.f32.gmra.mxu0 %v1070
      %v1295 = vpop.f32.mrf.mxu0
      %v1296 = vadd.f32 0.0, %v1295
      %1297 = vmatmul.f32.gmra.mxu0 %v1073
      %v1298 = vpop.f32.mrf.mxu0
      %v1299 = vadd.f32 0.0, %v1298
      %1300 = vmatmul.f32.gmra.mxu0 %v1076
      %v1301 = vpop.f32.mrf.mxu0
      %v1302 = vadd.f32 0.0, %v1301
      %1303 = vmatmul.f32.gmra.mxu0 %v1079
      %v1304 = vpop.f32.mrf.mxu0
      %v1305 = vadd.f32 0.0, %v1304
      %1306 = vmatmul.f32.gmra.mxu0 %v1082
      %v1307 = vpop.f32.mrf.mxu0
      %v1308 = vadd.f32 0.0, %v1307
      %1309 = vmatmul.f32.gmra.mxu0 %v1085
      %v1310 = vpop.f32.mrf.mxu0
      %v1311 = vadd.f32 0.0, %v1310
      %1312 = vmatmul.f32.gmra.mxu0 %v1088
      %v1313 = vpop.f32.mrf.mxu0
      %v1314 = vadd.f32 0.0, %v1313
      %1315 = vmatmul.f32.gmra.mxu0 %v1091
      %v1316 = vpop.f32.mrf.mxu0
      %v1317 = vadd.f32 0.0, %v1316
      %1318 = vmatmul.f32.gmra.mxu0 %v1094
      %v1319 = vpop.f32.mrf.mxu0
      %v1320 = vadd.f32 0.0, %v1319
      %1321 = vmatmul.f32.gmra.mxu0 %v1097
      %v1322 = vpop.f32.mrf.mxu0
      %v1323 = vadd.f32 0.0, %v1322
      %1324 = vmatmul.f32.gmra.mxu0 %v1100
      %v1325 = vpop.f32.mrf.mxu0
      %v1326 = vadd.f32 0.0, %v1325
      %1327 = vdwg.mxu0
      %v1328 = vmax.f32 %v1216, %v1281
      %1329 = vmax.xlane.f32.xlu0 %v1328
      %v1330 = vpop.xlane.xlu0 %1329
      %v1331 = vmax.f32 %v1219, %v1284
      %1332 = vmax.xlane.f32.xlu0 %v1331
      %v1333 = vpop.xlane.xlu0 %1332
      %v1334 = vmax.f32 %v1222, %v1287
      %1335 = vmax.xlane.f32.xlu0 %v1334
      %v1336 = vpop.xlane.xlu0 %1335
      %v1337 = vmax.f32 %v1225, %v1290
      %1338 = vmax.xlane.f32.xlu0 %v1337
      %v1339 = vpop.xlane.xlu0 %1338
      %v1340 = vmax.f32 %v1228, %v1293
      %1341 = vmax.xlane.f32.xlu0 %v1340
      %v1342 = vpop.xlane.xlu0 %1341
      %v1343 = vmax.f32 %v1231, %v1296
      %1344 = vmax.xlane.f32.xlu0 %v1343
      %v1345 = vpop.xlane.xlu0 %1344
      %v1346 = vmax.f32 %v1234, %v1299
      %1347 = vmax.xlane.f32.xlu0 %v1346
      %v1348 = vpop.xlane.xlu0 %1347
      %v1349 = vmax.f32 %v1237, %v1302
      %1350 = vmax.xlane.f32.xlu0 %v1349
      %v1351 = vpop.xlane.xlu0 %1350
      %v1352 = vmax.f32 %v1240, %v1305
      %1353 = vmax.xlane.f32.xlu0 %v1352
      %v1354 = vpop.xlane.xlu0 %1353
      %v1355 = vmax.f32 %v1243, %v1308
      %1356 = vmax.xlane.f32.xlu0 %v1355
      %v1357 = vpop.xlane.xlu0 %1356
      %v1358 = vmax.f32 %v1246, %v1311
      %1359 = vmax.xlane.f32.xlu0 %v1358
      %v1360 = vpop.xlane.xlu0 %1359
      %v1361 = vmax.f32 %v1249, %v1314
      %1362 = vmax.xlane.f32.xlu0 %v1361
      %v1363 = vpop.xlane.xlu0 %1362
      %v1364 = vmax.f32 %v1252, %v1317
      %1365 = vmax.xlane.f32.xlu0 %v1364
      %v1366 = vpop.xlane.xlu0 %1365
      %v1367 = vmax.f32 %v1255, %v1320
      %1368 = vmax.xlane.f32.xlu0 %v1367
      %v1369 = vpop.xlane.xlu0 %1368
      %v1370 = vmax.f32 %v1258, %v1323
      %1371 = vmax.xlane.f32.xlu0 %v1370
      %v1372 = vpop.xlane.xlu0 %1371
      %v1373 = vmax.f32 %v1261, %v1326
      %1374 = vmax.xlane.f32.xlu0 %v1373
      %v1375 = vpop.xlane.xlu0 %1374
      %v1376 = vsub.f32 %v1216, %v1330
      %v1377 = vsub.f32 %v1281, %v1330
      %v1378 = vsub.f32 %v1219, %v1333
      %v1379 = vsub.f32 %v1284, %v1333
      %v1380 = vsub.f32 %v1222, %v1336
      %v1381 = vsub.f32 %v1287, %v1336
      %v1382 = vsub.f32 %v1225, %v1339
      %v1383 = vsub.f32 %v1290, %v1339
      %v1384 = vsub.f32 %v1228, %v1342
      %v1385 = vsub.f32 %v1293, %v1342
      %v1386 = vsub.f32 %v1231, %v1345
      %v1387 = vsub.f32 %v1296, %v1345
      %v1388 = vsub.f32 %v1234, %v1348
      %v1389 = vsub.f32 %v1299, %v1348
      %v1390 = vsub.f32 %v1237, %v1351
      %v1391 = vsub.f32 %v1302, %v1351
      %v1392 = vsub.f32 %v1240, %v1354
      %v1393 = vsub.f32 %v1305, %v1354
      %v1394 = vsub.f32 %v1243, %v1357
      %v1395 = vsub.f32 %v1308, %v1357
      %v1396 = vsub.f32 %v1246, %v1360
      %v1397 = vsub.f32 %v1311, %v1360
      %v1398 = vsub.f32 %v1249, %v1363
      %v1399 = vsub.f32 %v1314, %v1363
      %v1400 = vsub.f32 %v1252, %v1366
      %v1401 = vsub.f32 %v1317, %v1366
      %v1402 = vsub.f32 %v1255, %v1369
      %v1403 = vsub.f32 %v1320, %v1369
      %v1404 = vsub.f32 %v1258, %v1372
      %v1405 = vsub.f32 %v1323, %v1372
      %v1406 = vsub.f32 %v1261, %v1375
      %v1407 = vsub.f32 %v1326, %v1375
      %v1408 = vmul.f32 %v1376, 1.442695
      %v1409 = vpow.pop %v1408
      %v1410 = vmul.f32 %v1377, 1.442695
      %v1411 = vpow.pop %v1410
      %v1412 = vmul.f32 %v1378, 1.442695
      %v1413 = vpow.pop %v1412
      %v1414 = vmul.f32 %v1379, 1.442695
      %v1415 = vpow.pop %v1414
      %v1416 = vmul.f32 %v1380, 1.442695
      %v1417 = vpow.pop %v1416
      %v1418 = vmul.f32 %v1381, 1.442695
      %v1419 = vpow.pop %v1418
      %v1420 = vmul.f32 %v1382, 1.442695
      %v1421 = vpow.pop %v1420
      %v1422 = vmul.f32 %v1383, 1.442695
      %v1423 = vpow.pop %v1422
      %v1424 = vmul.f32 %v1384, 1.442695
      %v1425 = vpow.pop %v1424
      %v1426 = vmul.f32 %v1385, 1.442695
      %v1427 = vpow.pop %v1426
      %v1428 = vmul.f32 %v1386, 1.442695
      %v1429 = vpow.pop %v1428
      %v1430 = vmul.f32 %v1387, 1.442695
      %v1431 = vpow.pop %v1430
      %v1432 = vmul.f32 %v1388, 1.442695
      %v1433 = vpow.pop %v1432
      %v1434 = vmul.f32 %v1389, 1.442695
      %v1435 = vpow.pop %v1434
      %v1436 = vmul.f32 %v1390, 1.442695
      %v1437 = vpow.pop %v1436
      %v1438 = vmul.f32 %v1391, 1.442695
      %v1439 = vpow.pop %v1438
      %v1440 = vmul.f32 %v1392, 1.442695
      %v1441 = vpow.pop %v1440
      %v1442 = vmul.f32 %v1393, 1.442695
      %v1443 = vpow.pop %v1442
      %v1444 = vmul.f32 %v1394, 1.442695
      %v1445 = vpow.pop %v1444
      %v1446 = vmul.f32 %v1395, 1.442695
      %v1447 = vpow.pop %v1446
      %v1448 = vmul.f32 %v1396, 1.442695
      %v1449 = vpow.pop %v1448
      %v1450 = vmul.f32 %v1397, 1.442695
      %v1451 = vpow.pop %v1450
      %v1452 = vmul.f32 %v1398, 1.442695
      %v1453 = vpow.pop %v1452
      %v1454 = vmul.f32 %v1399, 1.442695
      %v1455 = vpow.pop %v1454
      %v1456 = vmul.f32 %v1400, 1.442695
      %v1457 = vpow.pop %v1456
      %v1458 = vmul.f32 %v1401, 1.442695
      %v1459 = vpow.pop %v1458
      %v1460 = vmul.f32 %v1402, 1.442695
      %v1461 = vpow.pop %v1460
      %v1462 = vmul.f32 %v1403, 1.442695
      %v1463 = vpow.pop %v1462
      %v1464 = vmul.f32 %v1404, 1.442695
      %v1465 = vpow.pop %v1464
      %v1466 = vmul.f32 %v1405, 1.442695
      %v1467 = vpow.pop %v1466
      %v1468 = vmul.f32 %v1406, 1.442695
      %v1469 = vpow.pop %v1468
      %v1470 = vmul.f32 %v1407, 1.442695
      %v1471 = vpow.pop %v1470
      %v1472 = vadd.f32 %v1409, %v1411
      %1473 = vadd.xlane.f32.xlu0 %v1472
      %v1474 = vpop.xlane.xlu0 %1473
      %v1475 = vadd.f32 %v1413, %v1415
      %1476 = vadd.xlane.f32.xlu0 %v1475
      %v1477 = vpop.xlane.xlu0 %1476
      %v1478 = vadd.f32 %v1417, %v1419
      %1479 = vadd.xlane.f32.xlu0 %v1478
      %v1480 = vpop.xlane.xlu0 %1479
      %v1481 = vadd.f32 %v1421, %v1423
      %1482 = vadd.xlane.f32.xlu0 %v1481
      %v1483 = vpop.xlane.xlu0 %1482
      %v1484 = vadd.f32 %v1425, %v1427
      %1485 = vadd.xlane.f32.xlu0 %v1484
      %v1486 = vpop.xlane.xlu0 %1485
      %v1487 = vadd.f32 %v1429, %v1431
      %1488 = vadd.xlane.f32.xlu0 %v1487
      %v1489 = vpop.xlane.xlu0 %1488
      %v1490 = vadd.f32 %v1433, %v1435
      %1491 = vadd.xlane.f32.xlu0 %v1490
      %v1492 = vpop.xlane.xlu0 %1491
      %v1493 = vadd.f32 %v1437, %v1439
      %1494 = vadd.xlane.f32.xlu0 %v1493
      %v1495 = vpop.xlane.xlu0 %1494
      %v1496 = vadd.f32 %v1441, %v1443
      %1497 = vadd.xlane.f32.xlu0 %v1496
      %v1498 = vpop.xlane.xlu0 %1497
      %v1499 = vadd.f32 %v1445, %v1447
      %1500 = vadd.xlane.f32.xlu0 %v1499
      %v1501 = vpop.xlane.xlu0 %1500
      %v1502 = vadd.f32 %v1449, %v1451
      %1503 = vadd.xlane.f32.xlu0 %v1502
      %v1504 = vpop.xlane.xlu0 %1503
      %v1505 = vadd.f32 %v1453, %v1455
      %1506 = vadd.xlane.f32.xlu0 %v1505
      %v1507 = vpop.xlane.xlu0 %1506
      %v1508 = vadd.f32 %v1457, %v1459
      %1509 = vadd.xlane.f32.xlu0 %v1508
      %v1510 = vpop.xlane.xlu0 %1509
      %v1511 = vadd.f32 %v1461, %v1463
      %1512 = vadd.xlane.f32.xlu0 %v1511
      %v1513 = vpop.xlane.xlu0 %1512
      %v1514 = vadd.f32 %v1465, %v1467
      %1515 = vadd.xlane.f32.xlu0 %v1514
      %v1516 = vpop.xlane.xlu0 %1515
      %v1517 = vadd.f32 %v1469, %v1471
      %1518 = vadd.xlane.f32.xlu0 %v1517
      %v1519 = vpop.xlane.xlu0 %1518
      %v1520 = vrcp.pop %v1474
      %v1521 = vrcp.pop %v1477
      %v1522 = vrcp.pop %v1480
      %v1523 = vrcp.pop %v1483
      %v1524 = vrcp.pop %v1486
      %v1525 = vrcp.pop %v1489
      %v1526 = vrcp.pop %v1492
      %v1527 = vrcp.pop %v1495
      %v1528 = vrcp.pop %v1498
      %v1529 = vrcp.pop %v1501
      %v1530 = vrcp.pop %v1504
      %v1531 = vrcp.pop %v1507
      %v1532 = vrcp.pop %v1510
      %v1533 = vrcp.pop %v1513
      %v1534 = vrcp.pop %v1516
      %v1535 = vrcp.pop %v1519
      %v1536 = vmul.f32 %v1409, %v1520
      %v1537 = vmul.f32 %v1411, %v1520
      %v1538 = vmul.f32 %v1413, %v1521
      %v1539 = vmul.f32 %v1415, %v1521
      %v1540 = vmul.f32 %v1417, %v1522
      %v1541 = vmul.f32 %v1419, %v1522
      %v1542 = vmul.f32 %v1421, %v1523
      %v1543 = vmul.f32 %v1423, %v1523
      %v1544 = vmul.f32 %v1425, %v1524
      %v1545 = vmul.f32 %v1427, %v1524
      %v1546 = vmul.f32 %v1429, %v1525
      %v1547 = vmul.f32 %v1431, %v1525
      %v1548 = vmul.f32 %v1433, %v1526
      %v1549 = vmul.f32 %v1435, %v1526
      %v1550 = vmul.f32 %v1437, %v1527
      %v1551 = vmul.f32 %v1439, %v1527
      %v1552 = vmul.f32 %v1441, %v1528
      %v1553 = vmul.f32 %v1443, %v1528
      %v1554 = vmul.f32 %v1445, %v1529
      %v1555 = vmul.f32 %v1447, %v1529
      %v1556 = vmul.f32 %v1449, %v1530
      %v1557 = vmul.f32 %v1451, %v1530
      %v1558 = vmul.f32 %v1453, %v1531
      %v1559 = vmul.f32 %v1455, %v1531
      %v1560 = vmul.f32 %v1457, %v1532
      %v1561 = vmul.f32 %v1459, %v1532
      %v1562 = vmul.f32 %v1461, %v1533
      %v1563 = vmul.f32 %v1463, %v1533
      %v1564 = vmul.f32 %v1465, %v1534
      %v1565 = vmul.f32 %v1467, %v1534
      %v1566 = vmul.f32 %v1469, %v1535
      %v1567 = vmul.f32 %v1471, %v1535
      %1568 = vmatpush.msra.mxu0 %v1003
      %1569 = vmatpush.msra.mxu0 %v1000
      %1570 = vmatpush.msra.mxu0 %v997
      %1571 = vmatpush.msra.mxu0 %v994
      %1572 = vmatpush.msra.mxu0 %v991
      %1573 = vmatpush.msra.mxu0 %v988
      %1574 = vmatpush.msra.mxu0 %v985
      %1575 = vmatpush.msra.mxu0 %v982
      %1576 = vmatpush.msra.mxu0 %v979
      %1577 = vmatpush.msra.mxu0 %v976
      %1578 = vmatpush.msra.mxu0 %v973
      %1579 = vmatpush.msra.mxu0 %v970
      %1580 = vmatpush.msra.mxu0 %v967
      %1581 = vmatpush.msra.mxu0 %v964
      %1582 = vmatpush.msra.mxu0 %v961
      %1583 = vmatpush.msra.mxu0 %v958
      %1584 = vmatmul.f32.gmra.mxu0 %v1536
      %v1585 = vpop.f32.mrf.mxu0
      %v1586 = vadd.f32 0.0, %v1585
      %1587 = vmatmul.f32.gmra.mxu0 %v1538
      %v1588 = vpop.f32.mrf.mxu0
      %v1589 = vadd.f32 0.0, %v1588
      %1590 = vmatmul.f32.gmra.mxu0 %v1540
      %v1591 = vpop.f32.mrf.mxu0
      %v1592 = vadd.f32 0.0, %v1591
      %1593 = vmatmul.f32.gmra.mxu0 %v1542
      %v1594 = vpop.f32.mrf.mxu0
      %v1595 = vadd.f32 0.0, %v1594
      %1596 = vmatmul.f32.gmra.mxu0 %v1544
      %v1597 = vpop.f32.mrf.mxu0
      %v1598 = vadd.f32 0.0, %v1597
      %1599 = vmatmul.f32.gmra.mxu0 %v1546
      %v1600 = vpop.f32.mrf.mxu0
      %v1601 = vadd.f32 0.0, %v1600
      %1602 = vmatmul.f32.gmra.mxu0 %v1548
      %v1603 = vpop.f32.mrf.mxu0
      %v1604 = vadd.f32 0.0, %v1603
      %1605 = vmatmul.f32.gmra.mxu0 %v1550
      %v1606 = vpop.f32.mrf.mxu0
      %v1607 = vadd.f32 0.0, %v1606
      %1608 = vmatmul.f32.gmra.mxu0 %v1552
      %v1609 = vpop.f32.mrf.mxu0
      %v1610 = vadd.f32 0.0, %v1609
      %1611 = vmatmul.f32.gmra.mxu0 %v1554
      %v1612 = vpop.f32.mrf.mxu0
      %v1613 = vadd.f32 0.0, %v1612
      %1614 = vmatmul.f32.gmra.mxu0 %v1556
      %v1615 = vpop.f32.mrf.mxu0
      %v1616 = vadd.f32 0.0, %v1615
      %1617 = vmatmul.f32.gmra.mxu0 %v1558
      %v1618 = vpop.f32.mrf.mxu0
      %v1619 = vadd.f32 0.0, %v1618
      %1620 = vmatmul.f32.gmra.mxu0 %v1560
      %v1621 = vpop.f32.mrf.mxu0
      %v1622 = vadd.f32 0.0, %v1621
      %1623 = vmatmul.f32.gmra.mxu0 %v1562
      %v1624 = vpop.f32.mrf.mxu0
      %v1625 = vadd.f32 0.0, %v1624
      %1626 = vmatmul.f32.gmra.mxu0 %v1564
      %v1627 = vpop.f32.mrf.mxu0
      %v1628 = vadd.f32 0.0, %v1627
      %1629 = vmatmul.f32.gmra.mxu0 %v1566
      %v1630 = vpop.f32.mrf.mxu0
      %v1631 = vadd.f32 0.0, %v1630
      %1632 = vdwg.mxu0
      %1633 = vmatpush.msra.mxu0 %v1051
      %1634 = vmatpush.msra.mxu0 %v1048
      %1635 = vmatpush.msra.mxu0 %v1045
      %1636 = vmatpush.msra.mxu0 %v1042
      %1637 = vmatpush.msra.mxu0 %v1039
      %1638 = vmatpush.msra.mxu0 %v1036
      %1639 = vmatpush.msra.mxu0 %v1033
      %1640 = vmatpush.msra.mxu0 %v1030
      %1641 = vmatpush.msra.mxu0 %v1027
      %1642 = vmatpush.msra.mxu0 %v1024
      %1643 = vmatpush.msra.mxu0 %v1021
      %1644 = vmatpush.msra.mxu0 %v1018
      %1645 = vmatpush.msra.mxu0 %v1015
      %1646 = vmatpush.msra.mxu0 %v1012
      %1647 = vmatpush.msra.mxu0 %v1009
      %1648 = vmatpush.msra.mxu0 %v1006
      %1649 = vmatmul.f32.gmra.mxu0 %v1537
      %v1650 = vpop.f32.mrf.mxu0
      %v1651 = vadd.f32 %v1586, %v1650
      %1652 = vmatmul.f32.gmra.mxu0 %v1539
      %v1653 = vpop.f32.mrf.mxu0
      %v1654 = vadd.f32 %v1589, %v1653
      %1655 = vmatmul.f32.gmra.mxu0 %v1541
      %v1656 = vpop.f32.mrf.mxu0
      %v1657 = vadd.f32 %v1592, %v1656
      %1658 = vmatmul.f32.gmra.mxu0 %v1543
      %v1659 = vpop.f32.mrf.mxu0
      %v1660 = vadd.f32 %v1595, %v1659
      %1661 = vmatmul.f32.gmra.mxu0 %v1545
      %v1662 = vpop.f32.mrf.mxu0
      %v1663 = vadd.f32 %v1598, %v1662
      %1664 = vmatmul.f32.gmra.mxu0 %v1547
      %v1665 = vpop.f32.mrf.mxu0
      %v1666 = vadd.f32 %v1601, %v1665
      %1667 = vmatmul.f32.gmra.mxu0 %v1549
      %v1668 = vpop.f32.mrf.mxu0
      %v1669 = vadd.f32 %v1604, %v1668
      %1670 = vmatmul.f32.gmra.mxu0 %v1551
      %v1671 = vpop.f32.mrf.mxu0
      %v1672 = vadd.f32 %v1607, %v1671
      %1673 = vmatmul.f32.gmra.mxu0 %v1553
      %v1674 = vpop.f32.mrf.mxu0
      %v1675 = vadd.f32 %v1610, %v1674
      %1676 = vmatmul.f32.gmra.mxu0 %v1555
      %v1677 = vpop.f32.mrf.mxu0
      %v1678 = vadd.f32 %v1613, %v1677
      %1679 = vmatmul.f32.gmra.mxu0 %v1557
      %v1680 = vpop.f32.mrf.mxu0
      %v1681 = vadd.f32 %v1616, %v1680
      %1682 = vmatmul.f32.gmra.mxu0 %v1559
      %v1683 = vpop.f32.mrf.mxu0
      %v1684 = vadd.f32 %v1619, %v1683
      %1685 = vmatmul.f32.gmra.mxu0 %v1561
      %v1686 = vpop.f32.mrf.mxu0
      %v1687 = vadd.f32 %v1622, %v1686
      %1688 = vmatmul.f32.gmra.mxu0 %v1563
      %v1689 = vpop.f32.mrf.mxu0
      %v1690 = vadd.f32 %v1625, %v1689
      %1691 = vmatmul.f32.gmra.mxu0 %v1565
      %v1692 = vpop.f32.mrf.mxu0
      %v1693 = vadd.f32 %v1628, %v1692
      %1694 = vmatmul.f32.gmra.mxu0 %v1567
      %v1695 = vpop.f32.mrf.mxu0
      %v1696 = vadd.f32 %v1631, %v1695
      %1697 = vdwg.mxu0
      %v1698 = vld [vmem:[%s7] sm:$0xff]
      %v1699 = vld [vmem:[%s7 + $0x8] sm:$0xff]
      %v1700 = vld [vmem:[%s7 + $0x10] sm:$0xff]
      %v1701 = vld [vmem:[%s7 + $0x18] sm:$0xff]
      %s1702 = scalar_lea.vmem %s1, 64
      %v1703 = vld [vmem:[%s1702] sm:$0xff]
      %v1704 = vld [vmem:[%s1702 + $0x8] sm:$0xff]
      %v1705 = vld [vmem:[%s1702 + $0x10] sm:$0xff]
      %v1706 = vld [vmem:[%s1702 + $0x18] sm:$0xff]
      %v1707 = vld [vmem:[%s1702 + $0x20] sm:$0xff]
      %v1708 = vld [vmem:[%s1702 + $0x28] sm:$0xff]
      %v1709 = vld [vmem:[%s1702 + $0x30] sm:$0xff]
      %v1710 = vld [vmem:[%s1702 + $0x38] sm:$0xff]
      %s1711 = scalar_lea.vmem %s2, 1
      %v1712 = vld [vmem:[%s1711] sm:$0x1]
      %v1714 = vperm.slane %v1712, 0
      %1716 = vmatpush.msra.mxu0 0.0
      %1717 = vmatpush.msra.mxu0 0.0
      %1718 = vmatpush.msra.mxu0 0.0
      %1719 = vmatpush.msra.mxu0 0.0
      %1720 = vmatpush.msra.mxu0 0.0
      %1721 = vmatpush.msra.mxu0 0.0
      %1722 = vmatpush.msra.mxu0 0.0
      %1723 = vmatpush.msra.mxu0 0.0
      %1724 = vmatpush.msra.mxu0 %v1710
      %1725 = vmatpush.msra.mxu0 %v1709
      %1726 = vmatpush.msra.mxu0 %v1708
      %1727 = vmatpush.msra.mxu0 %v1707
      %1728 = vmatpush.msra.mxu0 %v1706
      %1729 = vmatpush.msra.mxu0 %v1705
      %1730 = vmatpush.msra.mxu0 %v1704
      %1731 = vmatpush.msra.mxu0 %v1703
      %1732 = vmatmul.f32.gmra.mxu0 %v595
      %v1733 = vpop.f32.mrf.mxu0
      %v1734 = vadd.f32 %v1714, %v1733
      %1735 = vmatmul.f32.gmra.mxu0 %v598
      %v1736 = vpop.f32.mrf.mxu0
      %v1737 = vadd.f32 %v1714, %v1736
      %1738 = vmatmul.f32.gmra.mxu0 %v601
      %v1739 = vpop.f32.mrf.mxu0
      %v1740 = vadd.f32 %v1714, %v1739
      %1741 = vmatmul.f32.gmra.mxu0 %v604
      %v1742 = vpop.f32.mrf.mxu0
      %v1743 = vadd.f32 %v1714, %v1742
      %1744 = vmatmul.f32.gmra.mxu0 %v607
      %v1745 = vpop.f32.mrf.mxu0
      %v1746 = vadd.f32 %v1714, %v1745
      %1747 = vmatmul.f32.gmra.mxu0 %v610
      %v1748 = vpop.f32.mrf.mxu0
      %v1749 = vadd.f32 %v1714, %v1748
      %1750 = vmatmul.f32.gmra.mxu0 %v613
      %v1751 = vpop.f32.mrf.mxu0
      %v1752 = vadd.f32 %v1714, %v1751
      %1753 = vmatmul.f32.gmra.mxu0 %v616
      %v1754 = vpop.f32.mrf.mxu0
      %v1755 = vadd.f32 %v1714, %v1754
      %1756 = vmatmul.f32.gmra.mxu0 %v619
      %v1757 = vpop.f32.mrf.mxu0
      %v1758 = vadd.f32 %v1714, %v1757
      %1759 = vmatmul.f32.gmra.mxu0 %v622
      %v1760 = vpop.f32.mrf.mxu0
      %v1761 = vadd.f32 %v1714, %v1760
      %1762 = vmatmul.f32.gmra.mxu0 %v625
      %v1763 = vpop.f32.mrf.mxu0
      %v1764 = vadd.f32 %v1714, %v1763
      %1765 = vmatmul.f32.gmra.mxu0 %v628
      %v1766 = vpop.f32.mrf.mxu0
      %v1767 = vadd.f32 %v1714, %v1766
      %1768 = vmatmul.f32.gmra.mxu0 %v631
      %v1769 = vpop.f32.mrf.mxu0
      %v1770 = vadd.f32 %v1714, %v1769
      %1771 = vmatmul.f32.gmra.mxu0 %v634
      %v1772 = vpop.f32.mrf.mxu0
      %v1773 = vadd.f32 %v1714, %v1772
      %1774 = vmatmul.f32.gmra.mxu0 %v637
      %v1775 = vpop.f32.mrf.mxu0
      %v1776 = vadd.f32 %v1714, %v1775
      %1777 = vmatmul.f32.gmra.mxu0 %v640
      %v1778 = vpop.f32.mrf.mxu0
      %v1779 = vadd.f32 %v1714, %v1778
      %1780 = vdwg.mxu0
      %s1781 = scalar_lea.vmem %s3, 64
      %v1782 = vld [vmem:[%s1781] sm:$0xff]
      %v1783 = vld [vmem:[%s1781 + $0x8] sm:$0xff]
      %v1784 = vld [vmem:[%s1781 + $0x10] sm:$0xff]
      %v1785 = vld [vmem:[%s1781 + $0x18] sm:$0xff]
      %v1786 = vld [vmem:[%s1781 + $0x20] sm:$0xff]
      %v1787 = vld [vmem:[%s1781 + $0x28] sm:$0xff]
      %v1788 = vld [vmem:[%s1781 + $0x30] sm:$0xff]
      %v1789 = vld [vmem:[%s1781 + $0x38] sm:$0xff]
      %s1790 = scalar_lea.vmem %s4, 1
      %v1791 = vld [vmem:[%s1790] sm:$0x1]
      %v1793 = vperm.slane %v1791, 0
      %1795 = vmatpush.msra.mxu0 0.0
      %1796 = vmatpush.msra.mxu0 0.0
      %1797 = vmatpush.msra.mxu0 0.0
      %1798 = vmatpush.msra.mxu0 0.0
      %1799 = vmatpush.msra.mxu0 0.0
      %1800 = vmatpush.msra.mxu0 0.0
      %1801 = vmatpush.msra.mxu0 0.0
      %1802 = vmatpush.msra.mxu0 0.0
      %1803 = vmatpush.msra.mxu0 %v1789
      %1804 = vmatpush.msra.mxu0 %v1788
      %1805 = vmatpush.msra.mxu0 %v1787
      %1806 = vmatpush.msra.mxu0 %v1786
      %1807 = vmatpush.msra.mxu0 %v1785
      %1808 = vmatpush.msra.mxu0 %v1784
      %1809 = vmatpush.msra.mxu0 %v1783
      %1810 = vmatpush.msra.mxu0 %v1782
      %1811 = vmatmul.f32.gmra.mxu0 %v720
      %v1812 = vpop.f32.mrf.mxu0
      %v1813 = vadd.f32 %v1793, %v1812
      %1814 = vmatmul.f32.gmra.mxu0 %v723
      %v1815 = vpop.f32.mrf.mxu0
      %v1816 = vadd.f32 %v1793, %v1815
      %1817 = vmatmul.f32.gmra.mxu0 %v726
      %v1818 = vpop.f32.mrf.mxu0
      %v1819 = vadd.f32 %v1793, %v1818
      %1820 = vmatmul.f32.gmra.mxu0 %v729
      %v1821 = vpop.f32.mrf.mxu0
      %v1822 = vadd.f32 %v1793, %v1821
      %1823 = vmatmul.f32.gmra.mxu0 %v732
      %v1824 = vpop.f32.mrf.mxu0
      %v1825 = vadd.f32 %v1793, %v1824
      %1826 = vmatmul.f32.gmra.mxu0 %v735
      %v1827 = vpop.f32.mrf.mxu0
      %v1828 = vadd.f32 %v1793, %v1827
      %1829 = vmatmul.f32.gmra.mxu0 %v738
      %v1830 = vpop.f32.mrf.mxu0
      %v1831 = vadd.f32 %v1793, %v1830
      %1832 = vmatmul.f32.gmra.mxu0 %v741
      %v1833 = vpop.f32.mrf.mxu0
      %v1834 = vadd.f32 %v1793, %v1833
      %1835 = vmatmul.f32.gmra.mxu0 %v744
      %v1836 = vpop.f32.mrf.mxu0
      %v1837 = vadd.f32 %v1793, %v1836
      %1838 = vmatmul.f32.gmra.mxu0 %v747
      %v1839 = vpop.f32.mrf.mxu0
      %v1840 = vadd.f32 %v1793, %v1839
      %1841 = vmatmul.f32.gmra.mxu0 %v750
      %v1842 = vpop.f32.mrf.mxu0
      %v1843 = vadd.f32 %v1793, %v1842
      %1844 = vmatmul.f32.gmra.mxu0 %v753
      %v1845 = vpop.f32.mrf.mxu0
      %v1846 = vadd.f32 %v1793, %v1845
      %1847 = vmatmul.f32.gmra.mxu0 %v756
      %v1848 = vpop.f32.mrf.mxu0
      %v1849 = vadd.f32 %v1793, %v1848
      %1850 = vmatmul.f32.gmra.mxu0 %v759
      %v1851 = vpop.f32.mrf.mxu0
      %v1852 = vadd.f32 %v1793, %v1851
      %1853 = vmatmul.f32.gmra.mxu0 %v762
      %v1854 = vpop.f32.mrf.mxu0
      %v1855 = vadd.f32 %v1793, %v1854
      %1856 = vmatmul.f32.gmra.mxu0 %v765
      %v1857 = vpop.f32.mrf.mxu0
      %v1858 = vadd.f32 %v1793, %v1857
      %1859 = vmatmul.f32.gmra.mxu0 %v768
      %v1860 = vpop.f32.mrf.mxu0
      %v1861 = vadd.f32 %v1793, %v1860
      %1862 = vmatmul.f32.gmra.mxu0 %v771
      %v1863 = vpop.f32.mrf.mxu0
      %v1864 = vadd.f32 %v1793, %v1863
      %1865 = vmatmul.f32.gmra.mxu0 %v774
      %v1866 = vpop.f32.mrf.mxu0
      %v1867 = vadd.f32 %v1793, %v1866
      %1868 = vmatmul.f32.gmra.mxu0 %v777
      %v1869 = vpop.f32.mrf.mxu0
      %v1870 = vadd.f32 %v1793, %v1869
      %1871 = vmatmul.f32.gmra.mxu0 %v780
      %v1872 = vpop.f32.mrf.mxu0
      %v1873 = vadd.f32 %v1793, %v1872
      %1874 = vmatmul.f32.gmra.mxu0 %v783
      %v1875 = vpop.f32.mrf.mxu0
      %v1876 = vadd.f32 %v1793, %v1875
      %1877 = vmatmul.f32.gmra.mxu0 %v786
      %v1878 = vpop.f32.mrf.mxu0
      %v1879 = vadd.f32 %v1793, %v1878
      %1880 = vmatmul.f32.gmra.mxu0 %v789
      %v1881 = vpop.f32.mrf.mxu0
      %v1882 = vadd.f32 %v1793, %v1881
      %1883 = vmatmul.f32.gmra.mxu0 %v792
      %v1884 = vpop.f32.mrf.mxu0
      %v1885 = vadd.f32 %v1793, %v1884
      %1886 = vmatmul.f32.gmra.mxu0 %v795
      %v1887 = vpop.f32.mrf.mxu0
      %v1888 = vadd.f32 %v1793, %v1887
      %1889 = vmatmul.f32.gmra.mxu0 %v798
      %v1890 = vpop.f32.mrf.mxu0
      %v1891 = vadd.f32 %v1793, %v1890
      %1892 = vmatmul.f32.gmra.mxu0 %v801
      %v1893 = vpop.f32.mrf.mxu0
      %v1894 = vadd.f32 %v1793, %v1893
      %1895 = vmatmul.f32.gmra.mxu0 %v804
      %v1896 = vpop.f32.mrf.mxu0
      %v1897 = vadd.f32 %v1793, %v1896
      %1898 = vmatmul.f32.gmra.mxu0 %v807
      %v1899 = vpop.f32.mrf.mxu0
      %v1900 = vadd.f32 %v1793, %v1899
      %1901 = vmatmul.f32.gmra.mxu0 %v810
      %v1902 = vpop.f32.mrf.mxu0
      %v1903 = vadd.f32 %v1793, %v1902
      %1904 = vmatmul.f32.gmra.mxu0 %v813
      %v1905 = vpop.f32.mrf.mxu0
      %v1906 = vadd.f32 %v1793, %v1905
      %1907 = vdwg.mxu0
      %s1908 = scalar_lea.vmem %s5, 64
      %v1909 = vld [vmem:[%s1908] sm:$0xff]
      %v1910 = vld [vmem:[%s1908 + $0x8] sm:$0xff]
      %v1911 = vld [vmem:[%s1908 + $0x10] sm:$0xff]
      %v1912 = vld [vmem:[%s1908 + $0x18] sm:$0xff]
      %v1913 = vld [vmem:[%s1908 + $0x20] sm:$0xff]
      %v1914 = vld [vmem:[%s1908 + $0x28] sm:$0xff]
      %v1915 = vld [vmem:[%s1908 + $0x30] sm:$0xff]
      %v1916 = vld [vmem:[%s1908 + $0x38] sm:$0xff]
      %s1917 = scalar_lea.vmem %s6, 1
      %v1918 = vld [vmem:[%s1917] sm:$0x1]
      %v1920 = vperm.slane %v1918, 0
      %1922 = vmatpush.msra.mxu0 0.0
      %1923 = vmatpush.msra.mxu0 0.0
      %1924 = vmatpush.msra.mxu0 0.0
      %1925 = vmatpush.msra.mxu0 0.0
      %1926 = vmatpush.msra.mxu0 0.0
      %1927 = vmatpush.msra.mxu0 0.0
      %1928 = vmatpush.msra.mxu0 0.0
      %1929 = vmatpush.msra.mxu0 0.0
      %1930 = vmatpush.msra.mxu0 %v1916
      %1931 = vmatpush.msra.mxu0 %v1915
      %1932 = vmatpush.msra.mxu0 %v1914
      %1933 = vmatpush.msra.mxu0 %v1913
      %1934 = vmatpush.msra.mxu0 %v1912
      %1935 = vmatpush.msra.mxu0 %v1911
      %1936 = vmatpush.msra.mxu0 %v1910
      %1937 = vmatpush.msra.mxu0 %v1909
      %1938 = vmatmul.f32.gmra.mxu0 %v720
      %v1939 = vpop.f32.mrf.mxu0
      %v1940 = vadd.f32 %v1920, %v1939
      %1941 = vmatmul.f32.gmra.mxu0 %v723
      %v1942 = vpop.f32.mrf.mxu0
      %v1943 = vadd.f32 %v1920, %v1942
      %1944 = vmatmul.f32.gmra.mxu0 %v726
      %v1945 = vpop.f32.mrf.mxu0
      %v1946 = vadd.f32 %v1920, %v1945
      %1947 = vmatmul.f32.gmra.mxu0 %v729
      %v1948 = vpop.f32.mrf.mxu0
      %v1949 = vadd.f32 %v1920, %v1948
      %1950 = vmatmul.f32.gmra.mxu0 %v732
      %v1951 = vpop.f32.mrf.mxu0
      %v1952 = vadd.f32 %v1920, %v1951
      %1953 = vmatmul.f32.gmra.mxu0 %v735
      %v1954 = vpop.f32.mrf.mxu0
      %v1955 = vadd.f32 %v1920, %v1954
      %1956 = vmatmul.f32.gmra.mxu0 %v738
      %v1957 = vpop.f32.mrf.mxu0
      %v1958 = vadd.f32 %v1920, %v1957
      %1959 = vmatmul.f32.gmra.mxu0 %v741
      %v1960 = vpop.f32.mrf.mxu0
      %v1961 = vadd.f32 %v1920, %v1960
      %1962 = vmatmul.f32.gmra.mxu0 %v744
      %v1963 = vpop.f32.mrf.mxu0
      %v1964 = vadd.f32 %v1920, %v1963
      %1965 = vmatmul.f32.gmra.mxu0 %v747
      %v1966 = vpop.f32.mrf.mxu0
      %v1967 = vadd.f32 %v1920, %v1966
      %1968 = vmatmul.f32.gmra.mxu0 %v750
      %v1969 = vpop.f32.mrf.mxu0
      %v1970 = vadd.f32 %v1920, %v1969
      %1971 = vmatmul.f32.gmra.mxu0 %v753
      %v1972 = vpop.f32.mrf.mxu0
      %v1973 = vadd.f32 %v1920, %v1972
      %1974 = vmatmul.f32.gmra.mxu0 %v756
      %v1975 = vpop.f32.mrf.mxu0
      %v1976 = vadd.f32 %v1920, %v1975
      %1977 = vmatmul.f32.gmra.mxu0 %v759
      %v1978 = vpop.f32.mrf.mxu0
      %v1979 = vadd.f32 %v1920, %v1978
      %1980 = vmatmul.f32.gmra.mxu0 %v762
      %v1981 = vpop.f32.mrf.mxu0
      %v1982 = vadd.f32 %v1920, %v1981
      %1983 = vmatmul.f32.gmra.mxu0 %v765
      %v1984 = vpop.f32.mrf.mxu0
      %v1985 = vadd.f32 %v1920, %v1984
      %1986 = vmatmul.f32.gmra.mxu0 %v768
      %v1987 = vpop.f32.mrf.mxu0
      %v1988 = vadd.f32 %v1920, %v1987
      %1989 = vmatmul.f32.gmra.mxu0 %v771
      %v1990 = vpop.f32.mrf.mxu0
      %v1991 = vadd.f32 %v1920, %v1990
      %1992 = vmatmul.f32.gmra.mxu0 %v774
      %v1993 = vpop.f32.mrf.mxu0
      %v1994 = vadd.f32 %v1920, %v1993
      %1995 = vmatmul.f32.gmra.mxu0 %v777
      %v1996 = vpop.f32.mrf.mxu0
      %v1997 = vadd.f32 %v1920, %v1996
      %1998 = vmatmul.f32.gmra.mxu0 %v780
      %v1999 = vpop.f32.mrf.mxu0
      %v2000 = vadd.f32 %v1920, %v1999
      %2001 = vmatmul.f32.gmra.mxu0 %v783
      %v2002 = vpop.f32.mrf.mxu0
      %v2003 = vadd.f32 %v1920, %v2002
      %2004 = vmatmul.f32.gmra.mxu0 %v786
      %v2005 = vpop.f32.mrf.mxu0
      %v2006 = vadd.f32 %v1920, %v2005
      %2007 = vmatmul.f32.gmra.mxu0 %v789
      %v2008 = vpop.f32.mrf.mxu0
      %v2009 = vadd.f32 %v1920, %v2008
      %2010 = vmatmul.f32.gmra.mxu0 %v792
      %v2011 = vpop.f32.mrf.mxu0
      %v2012 = vadd.f32 %v1920, %v2011
      %2013 = vmatmul.f32.gmra.mxu0 %v795
      %v2014 = vpop.f32.mrf.mxu0
      %v2015 = vadd.f32 %v1920, %v2014
      %2016 = vmatmul.f32.gmra.mxu0 %v798
      %v2017 = vpop.f32.mrf.mxu0
      %v2018 = vadd.f32 %v1920, %v2017
      %2019 = vmatmul.f32.gmra.mxu0 %v801
      %v2020 = vpop.f32.mrf.mxu0
      %v2021 = vadd.f32 %v1920, %v2020
      %2022 = vmatmul.f32.gmra.mxu0 %v804
      %v2023 = vpop.f32.mrf.mxu0
      %v2024 = vadd.f32 %v1920, %v2023
      %2025 = vmatmul.f32.gmra.mxu0 %v807
      %v2026 = vpop.f32.mrf.mxu0
      %v2027 = vadd.f32 %v1920, %v2026
      %2028 = vmatmul.f32.gmra.mxu0 %v810
      %v2029 = vpop.f32.mrf.mxu0
      %v2030 = vadd.f32 %v1920, %v2029
      %2031 = vmatmul.f32.gmra.mxu0 %v813
      %v2032 = vpop.f32.mrf.mxu0
      %v2033 = vadd.f32 %v1920, %v2032
      %2034 = vdwg.mxu0
      %v2036 = vsel %vm1053, %v1734, 0
      %v2039 = vsel %vm1053, %v1737, 0
      %v2042 = vsel %vm1053, %v1740, 0
      %v2045 = vsel %vm1053, %v1743, 0
      %v2048 = vsel %vm1053, %v1746, 0
      %v2051 = vsel %vm1053, %v1749, 0
      %v2054 = vsel %vm1053, %v1752, 0
      %v2057 = vsel %vm1053, %v1755, 0
      %v2060 = vsel %vm1053, %v1758, 0
      %v2063 = vsel %vm1053, %v1761, 0
      %v2066 = vsel %vm1053, %v1764, 0
      %v2069 = vsel %vm1053, %v1767, 0
      %v2072 = vsel %vm1053, %v1770, 0
      %v2075 = vsel %vm1053, %v1773, 0
      %v2078 = vsel %vm1053, %v1776, 0
      %v2081 = vsel %vm1053, %v1779, 0
      %v2084 = vsel %vm1053, %v1813, 0
      %v2087 = vsel %vm1053, %v1816, 0
      %v2090 = vsel %vm1053, %v1819, 0
      %v2093 = vsel %vm1053, %v1822, 0
      %v2096 = vsel %vm1053, %v1825, 0
      %v2099 = vsel %vm1053, %v1828, 0
      %v2102 = vsel %vm1053, %v1831, 0
      %v2105 = vsel %vm1053, %v1834, 0
      %v2108 = vsel %vm1053, %v1837, 0
      %v2111 = vsel %vm1053, %v1840, 0
      %v2114 = vsel %vm1053, %v1843, 0
      %v2117 = vsel %vm1053, %v1846, 0
      %v2120 = vsel %vm1053, %v1849, 0
      %v2123 = vsel %vm1053, %v1852, 0
      %v2126 = vsel %vm1053, %v1855, 0
      %v2129 = vsel %vm1053, %v1858, 0
      %v2132 = vsel %vm1053, %v1861, 0
      %v2135 = vsel %vm1053, %v1864, 0
      %v2138 = vsel %vm1053, %v1867, 0
      %v2141 = vsel %vm1053, %v1870, 0
      %v2144 = vsel %vm1053, %v1873, 0
      %v2147 = vsel %vm1053, %v1876, 0
      %v2150 = vsel %vm1053, %v1879, 0
      %v2153 = vsel %vm1053, %v1882, 0
      %v2156 = vsel %vm1053, %v1885, 0
      %v2159 = vsel %vm1053, %v1888, 0
      %v2162 = vsel %vm1053, %v1891, 0
      %v2165 = vsel %vm1053, %v1894, 0
      %v2168 = vsel %vm1053, %v1897, 0
      %v2171 = vsel %vm1053, %v1900, 0
      %v2174 = vsel %vm1053, %v1903, 0
      %v2177 = vsel %vm1053, %v1906, 0
      %2179 = vmatpush.xpose.msra.mxu0 %v2129
      %2180 = vmatpush.xpose.msra.mxu0 %v2126
      %2181 = vmatpush.xpose.msra.mxu0 %v2123
      %2182 = vmatpush.xpose.msra.mxu0 %v2120
      %2183 = vmatpush.xpose.msra.mxu0 %v2117
      %2184 = vmatpush.xpose.msra.mxu0 %v2114
      %2185 = vmatpush.xpose.msra.mxu0 %v2111
      %2186 = vmatpush.xpose.msra.mxu0 %v2108
      %2187 = vmatpush.xpose.msra.mxu0 %v2105
      %2188 = vmatpush.xpose.msra.mxu0 %v2102
      %2189 = vmatpush.xpose.msra.mxu0 %v2099
      %2190 = vmatpush.xpose.msra.mxu0 %v2096
      %2191 = vmatpush.xpose.msra.mxu0 %v2093
      %2192 = vmatpush.xpose.msra.mxu0 %v2090
      %2193 = vmatpush.xpose.msra.mxu0 %v2087
      %2194 = vmatpush.xpose.msra.mxu0 %v2084
      %2195 = vmatmul.f32.gmra.mxu0 %v2036
      %v2196 = vpop.f32.mrf.mxu0
      %v2197 = vadd.f32 0.0, %v2196
      %2198 = vmatmul.f32.gmra.mxu0 %v2039
      %v2199 = vpop.f32.mrf.mxu0
      %v2200 = vadd.f32 0.0, %v2199
      %2201 = vmatmul.f32.gmra.mxu0 %v2042
      %v2202 = vpop.f32.mrf.mxu0
      %v2203 = vadd.f32 0.0, %v2202
      %2204 = vmatmul.f32.gmra.mxu0 %v2045
      %v2205 = vpop.f32.mrf.mxu0
      %v2206 = vadd.f32 0.0, %v2205
      %2207 = vmatmul.f32.gmra.mxu0 %v2048
      %v2208 = vpop.f32.mrf.mxu0
      %v2209 = vadd.f32 0.0, %v2208
      %2210 = vmatmul.f32.gmra.mxu0 %v2051
      %v2211 = vpop.f32.mrf.mxu0
      %v2212 = vadd.f32 0.0, %v2211
      %2213 = vmatmul.f32.gmra.mxu0 %v2054
      %v2214 = vpop.f32.mrf.mxu0
      %v2215 = vadd.f32 0.0, %v2214
      %2216 = vmatmul.f32.gmra.mxu0 %v2057
      %v2217 = vpop.f32.mrf.mxu0
      %v2218 = vadd.f32 0.0, %v2217
      %2219 = vmatmul.f32.gmra.mxu0 %v2060
      %v2220 = vpop.f32.mrf.mxu0
      %v2221 = vadd.f32 0.0, %v2220
      %2222 = vmatmul.f32.gmra.mxu0 %v2063
      %v2223 = vpop.f32.mrf.mxu0
      %v2224 = vadd.f32 0.0, %v2223
      %2225 = vmatmul.f32.gmra.mxu0 %v2066
      %v2226 = vpop.f32.mrf.mxu0
      %v2227 = vadd.f32 0.0, %v2226
      %2228 = vmatmul.f32.gmra.mxu0 %v2069
      %v2229 = vpop.f32.mrf.mxu0
      %v2230 = vadd.f32 0.0, %v2229
      %2231 = vmatmul.f32.gmra.mxu0 %v2072
      %v2232 = vpop.f32.mrf.mxu0
      %v2233 = vadd.f32 0.0, %v2232
      %2234 = vmatmul.f32.gmra.mxu0 %v2075
      %v2235 = vpop.f32.mrf.mxu0
      %v2236 = vadd.f32 0.0, %v2235
      %2237 = vmatmul.f32.gmra.mxu0 %v2078
      %v2238 = vpop.f32.mrf.mxu0
      %v2239 = vadd.f32 0.0, %v2238
      %2240 = vmatmul.f32.gmra.mxu0 %v2081
      %v2241 = vpop.f32.mrf.mxu0
      %v2242 = vadd.f32 0.0, %v2241
      %2243 = vdwg.mxu0
      %2244 = vmatpush.xpose.msra.mxu0 %v2177
      %2245 = vmatpush.xpose.msra.mxu0 %v2174
      %2246 = vmatpush.xpose.msra.mxu0 %v2171
      %2247 = vmatpush.xpose.msra.mxu0 %v2168
      %2248 = vmatpush.xpose.msra.mxu0 %v2165
      %2249 = vmatpush.xpose.msra.mxu0 %v2162
      %2250 = vmatpush.xpose.msra.mxu0 %v2159
      %2251 = vmatpush.xpose.msra.mxu0 %v2156
      %2252 = vmatpush.xpose.msra.mxu0 %v2153
      %2253 = vmatpush.xpose.msra.mxu0 %v2150
      %2254 = vmatpush.xpose.msra.mxu0 %v2147
      %2255 = vmatpush.xpose.msra.mxu0 %v2144
      %2256 = vmatpush.xpose.msra.mxu0 %v2141
      %2257 = vmatpush.xpose.msra.mxu0 %v2138
      %2258 = vmatpush.xpose.msra.mxu0 %v2135
      %2259 = vmatpush.xpose.msra.mxu0 %v2132
      %2260 = vmatmul.f32.gmra.mxu0 %v2036
      %v2261 = vpop.f32.mrf.mxu0
      %v2262 = vadd.f32 0.0, %v2261
      %2263 = vmatmul.f32.gmra.mxu0 %v2039
      %v2264 = vpop.f32.mrf.mxu0
      %v2265 = vadd.f32 0.0, %v2264
      %2266 = vmatmul.f32.gmra.mxu0 %v2042
      %v2267 = vpop.f32.mrf.mxu0
      %v2268 = vadd.f32 0.0, %v2267
      %2269 = vmatmul.f32.gmra.mxu0 %v2045
      %v2270 = vpop.f32.mrf.mxu0
      %v2271 = vadd.f32 0.0, %v2270
      %2272 = vmatmul.f32.gmra.mxu0 %v2048
      %v2273 = vpop.f32.mrf.mxu0
      %v2274 = vadd.f32 0.0, %v2273
      %2275 = vmatmul.f32.gmra.mxu0 %v2051
      %v2276 = vpop.f32.mrf.mxu0
      %v2277 = vadd.f32 0.0, %v2276
      %2278 = vmatmul.f32.gmra.mxu0 %v2054
      %v2279 = vpop.f32.mrf.mxu0
      %v2280 = vadd.f32 0.0, %v2279
      %2281 = vmatmul.f32.gmra.mxu0 %v2057
      %v2282 = vpop.f32.mrf.mxu0
      %v2283 = vadd.f32 0.0, %v2282
      %2284 = vmatmul.f32.gmra.mxu0 %v2060
      %v2285 = vpop.f32.mrf.mxu0
      %v2286 = vadd.f32 0.0, %v2285
      %2287 = vmatmul.f32.gmra.mxu0 %v2063
      %v2288 = vpop.f32.mrf.mxu0
      %v2289 = vadd.f32 0.0, %v2288
      %2290 = vmatmul.f32.gmra.mxu0 %v2066
      %v2291 = vpop.f32.mrf.mxu0
      %v2292 = vadd.f32 0.0, %v2291
      %2293 = vmatmul.f32.gmra.mxu0 %v2069
      %v2294 = vpop.f32.mrf.mxu0
      %v2295 = vadd.f32 0.0, %v2294
      %2296 = vmatmul.f32.gmra.mxu0 %v2072
      %v2297 = vpop.f32.mrf.mxu0
      %v2298 = vadd.f32 0.0, %v2297
      %2299 = vmatmul.f32.gmra.mxu0 %v2075
      %v2300 = vpop.f32.mrf.mxu0
      %v2301 = vadd.f32 0.0, %v2300
      %2302 = vmatmul.f32.gmra.mxu0 %v2078
      %v2303 = vpop.f32.mrf.mxu0
      %v2304 = vadd.f32 0.0, %v2303
      %2305 = vmatmul.f32.gmra.mxu0 %v2081
      %v2306 = vpop.f32.mrf.mxu0
      %v2307 = vadd.f32 0.0, %v2306
      %2308 = vdwg.mxu0
      %v2309 = vmax.f32 %v2197, %v2262
      %2310 = vmax.xlane.f32.xlu0 %v2309
      %v2311 = vpop.xlane.xlu0 %2310
      %v2312 = vmax.f32 %v2200, %v2265
      %2313 = vmax.xlane.f32.xlu0 %v2312
      %v2314 = vpop.xlane.xlu0 %2313
      %v2315 = vmax.f32 %v2203, %v2268
      %2316 = vmax.xlane.f32.xlu0 %v2315
      %v2317 = vpop.xlane.xlu0 %2316
      %v2318 = vmax.f32 %v2206, %v2271
      %2319 = vmax.xlane.f32.xlu0 %v2318
      %v2320 = vpop.xlane.xlu0 %2319
      %v2321 = vmax.f32 %v2209, %v2274
      %2322 = vmax.xlane.f32.xlu0 %v2321
      %v2323 = vpop.xlane.xlu0 %2322
      %v2324 = vmax.f32 %v2212, %v2277
      %2325 = vmax.xlane.f32.xlu0 %v2324
      %v2326 = vpop.xlane.xlu0 %2325
      %v2327 = vmax.f32 %v2215, %v2280
      %2328 = vmax.xlane.f32.xlu0 %v2327
      %v2329 = vpop.xlane.xlu0 %2328
      %v2330 = vmax.f32 %v2218, %v2283
      %2331 = vmax.xlane.f32.xlu0 %v2330
      %v2332 = vpop.xlane.xlu0 %2331
      %v2333 = vmax.f32 %v2221, %v2286
      %2334 = vmax.xlane.f32.xlu0 %v2333
      %v2335 = vpop.xlane.xlu0 %2334
      %v2336 = vmax.f32 %v2224, %v2289
      %2337 = vmax.xlane.f32.xlu0 %v2336
      %v2338 = vpop.xlane.xlu0 %2337
      %v2339 = vmax.f32 %v2227, %v2292
      %2340 = vmax.xlane.f32.xlu0 %v2339
      %v2341 = vpop.xlane.xlu0 %2340
      %v2342 = vmax.f32 %v2230, %v2295
      %2343 = vmax.xlane.f32.xlu0 %v2342
      %v2344 = vpop.xlane.xlu0 %2343
      %v2345 = vmax.f32 %v2233, %v2298
      %2346 = vmax.xlane.f32.xlu0 %v2345
      %v2347 = vpop.xlane.xlu0 %2346
      %v2348 = vmax.f32 %v2236, %v2301
      %2349 = vmax.xlane.f32.xlu0 %v2348
      %v2350 = vpop.xlane.xlu0 %2349
      %v2351 = vmax.f32 %v2239, %v2304
      %2352 = vmax.xlane.f32.xlu0 %v2351
      %v2353 = vpop.xlane.xlu0 %2352
      %v2354 = vmax.f32 %v2242, %v2307
      %2355 = vmax.xlane.f32.xlu0 %v2354
      %v2356 = vpop.xlane.xlu0 %2355
      %v2357 = vsub.f32 %v2197, %v2311
      %v2358 = vsub.f32 %v2262, %v2311
      %v2359 = vsub.f32 %v2200, %v2314
      %v2360 = vsub.f32 %v2265, %v2314
      %v2361 = vsub.f32 %v2203, %v2317
      %v2362 = vsub.f32 %v2268, %v2317
      %v2363 = vsub.f32 %v2206, %v2320
      %v2364 = vsub.f32 %v2271, %v2320
      %v2365 = vsub.f32 %v2209, %v2323
      %v2366 = vsub.f32 %v2274, %v2323
      %v2367 = vsub.f32 %v2212, %v2326
      %v2368 = vsub.f32 %v2277, %v2326
      %v2369 = vsub.f32 %v2215, %v2329
      %v2370 = vsub.f32 %v2280, %v2329
      %v2371 = vsub.f32 %v2218, %v2332
      %v2372 = vsub.f32 %v2283, %v2332
      %v2373 = vsub.f32 %v2221, %v2335
      %v2374 = vsub.f32 %v2286, %v2335
      %v2375 = vsub.f32 %v2224, %v2338
      %v2376 = vsub.f32 %v2289, %v2338
      %v2377 = vsub.f32 %v2227, %v2341
      %v2378 = vsub.f32 %v2292, %v2341
      %v2379 = vsub.f32 %v2230, %v2344
      %v2380 = vsub.f32 %v2295, %v2344
      %v2381 = vsub.f32 %v2233, %v2347
      %v2382 = vsub.f32 %v2298, %v2347
      %v2383 = vsub.f32 %v2236, %v2350
      %v2384 = vsub.f32 %v2301, %v2350
      %v2385 = vsub.f32 %v2239, %v2353
      %v2386 = vsub.f32 %v2304, %v2353
      %v2387 = vsub.f32 %v2242, %v2356
      %v2388 = vsub.f32 %v2307, %v2356
      %v2389 = vmul.f32 %v2357, 1.442695
      %v2390 = vpow.pop %v2389
      %v2391 = vmul.f32 %v2358, 1.442695
      %v2392 = vpow.pop %v2391
      %v2393 = vmul.f32 %v2359, 1.442695
      %v2394 = vpow.pop %v2393
      %v2395 = vmul.f32 %v2360, 1.442695
      %v2396 = vpow.pop %v2395
      %v2397 = vmul.f32 %v2361, 1.442695
      %v2398 = vpow.pop %v2397
      %v2399 = vmul.f32 %v2362, 1.442695
      %v2400 = vpow.pop %v2399
      %v2401 = vmul.f32 %v2363, 1.442695
      %v2402 = vpow.pop %v2401
      %v2403 = vmul.f32 %v2364, 1.442695
      %v2404 = vpow.pop %v2403
      %v2405 = vmul.f32 %v2365, 1.442695
      %v2406 = vpow.pop %v2405
      %v2407 = vmul.f32 %v2366, 1.442695
      %v2408 = vpow.pop %v2407
      %v2409 = vmul.f32 %v2367, 1.442695
      %v2410 = vpow.pop %v2409
      %v2411 = vmul.f32 %v2368, 1.442695
      %v2412 = vpow.pop %v2411
      %v2413 = vmul.f32 %v2369, 1.442695
      %v2414 = vpow.pop %v2413
      %v2415 = vmul.f32 %v2370, 1.442695
      %v2416 = vpow.pop %v2415
      %v2417 = vmul.f32 %v2371, 1.442695
      %v2418 = vpow.pop %v2417
      %v2419 = vmul.f32 %v2372, 1.442695
      %v2420 = vpow.pop %v2419
      %v2421 = vmul.f32 %v2373, 1.442695
      %v2422 = vpow.pop %v2421
      %v2423 = vmul.f32 %v2374, 1.442695
      %v2424 = vpow.pop %v2423
      %v2425 = vmul.f32 %v2375, 1.442695
      %v2426 = vpow.pop %v2425
      %v2427 = vmul.f32 %v2376, 1.442695
      %v2428 = vpow.pop %v2427
      %v2429 = vmul.f32 %v2377, 1.442695
      %v2430 = vpow.pop %v2429
      %v2431 = vmul.f32 %v2378, 1.442695
      %v2432 = vpow.pop %v2431
      %v2433 = vmul.f32 %v2379, 1.442695
      %v2434 = vpow.pop %v2433
      %v2435 = vmul.f32 %v2380, 1.442695
      %v2436 = vpow.pop %v2435
      %v2437 = vmul.f32 %v2381, 1.442695
      %v2438 = vpow.pop %v2437
      %v2439 = vmul.f32 %v2382, 1.442695
      %v2440 = vpow.pop %v2439
      %v2441 = vmul.f32 %v2383, 1.442695
      %v2442 = vpow.pop %v2441
      %v2443 = vmul.f32 %v2384, 1.442695
      %v2444 = vpow.pop %v2443
      %v2445 = vmul.f32 %v2385, 1.442695
      %v2446 = vpow.pop %v2445
      %v2447 = vmul.f32 %v2386, 1.442695
      %v2448 = vpow.pop %v2447
      %v2449 = vmul.f32 %v2387, 1.442695
      %v2450 = vpow.pop %v2449
      %v2451 = vmul.f32 %v2388, 1.442695
      %v2452 = vpow.pop %v2451
      %v2453 = vadd.f32 %v2390, %v2392
      %2454 = vadd.xlane.f32.xlu0 %v2453
      %v2455 = vpop.xlane.xlu0 %2454
      %v2456 = vadd.f32 %v2394, %v2396
      %2457 = vadd.xlane.f32.xlu0 %v2456
      %v2458 = vpop.xlane.xlu0 %2457
      %v2459 = vadd.f32 %v2398, %v2400
      %2460 = vadd.xlane.f32.xlu0 %v2459
      %v2461 = vpop.xlane.xlu0 %2460
      %v2462 = vadd.f32 %v2402, %v2404
      %2463 = vadd.xlane.f32.xlu0 %v2462
      %v2464 = vpop.xlane.xlu0 %2463
      %v2465 = vadd.f32 %v2406, %v2408
      %2466 = vadd.xlane.f32.xlu0 %v2465
      %v2467 = vpop.xlane.xlu0 %2466
      %v2468 = vadd.f32 %v2410, %v2412
      %2469 = vadd.xlane.f32.xlu0 %v2468
      %v2470 = vpop.xlane.xlu0 %2469
      %v2471 = vadd.f32 %v2414, %v2416
      %2472 = vadd.xlane.f32.xlu0 %v2471
      %v2473 = vpop.xlane.xlu0 %2472
      %v2474 = vadd.f32 %v2418, %v2420
      %2475 = vadd.xlane.f32.xlu0 %v2474
      %v2476 = vpop.xlane.xlu0 %2475
      %v2477 = vadd.f32 %v2422, %v2424
      %2478 = vadd.xlane.f32.xlu0 %v2477
      %v2479 = vpop.xlane.xlu0 %2478
      %v2480 = vadd.f32 %v2426, %v2428
      %2481 = vadd.xlane.f32.xlu0 %v2480
      %v2482 = vpop.xlane.xlu0 %2481
      %v2483 = vadd.f32 %v2430, %v2432
      %2484 = vadd.xlane.f32.xlu0 %v2483
      %v2485 = vpop.xlane.xlu0 %2484
      %v2486 = vadd.f32 %v2434, %v2436
      %2487 = vadd.xlane.f32.xlu0 %v2486
      %v2488 = vpop.xlane.xlu0 %2487
      %v2489 = vadd.f32 %v2438, %v2440
      %2490 = vadd.xlane.f32.xlu0 %v2489
      %v2491 = vpop.xlane.xlu0 %2490
      %v2492 = vadd.f32 %v2442, %v2444
      %2493 = vadd.xlane.f32.xlu0 %v2492
      %v2494 = vpop.xlane.xlu0 %2493
      %v2495 = vadd.f32 %v2446, %v2448
      %2496 = vadd.xlane.f32.xlu0 %v2495
      %v2497 = vpop.xlane.xlu0 %2496
      %v2498 = vadd.f32 %v2450, %v2452
      %2499 = vadd.xlane.f32.xlu0 %v2498
      %v2500 = vpop.xlane.xlu0 %2499
      %v2501 = vrcp.pop %v2455
      %v2502 = vrcp.pop %v2458
      %v2503 = vrcp.pop %v2461
      %v2504 = vrcp.pop %v2464
      %v2505 = vrcp.pop %v2467
      %v2506 = vrcp.pop %v2470
      %v2507 = vrcp.pop %v2473
      %v2508 = vrcp.pop %v2476
      %v2509 = vrcp.pop %v2479
      %v2510 = vrcp.pop %v2482
      %v2511 = vrcp.pop %v2485
      %v2512 = vrcp.pop %v2488
      %v2513 = vrcp.pop %v2491
      %v2514 = vrcp.pop %v2494
      %v2515 = vrcp.pop %v2497
      %v2516 = vrcp.pop %v2500
      %v2517 = vmul.f32 %v2390, %v2501
      %v2518 = vmul.f32 %v2392, %v2501
      %v2519 = vmul.f32 %v2394, %v2502
      %v2520 = vmul.f32 %v2396, %v2502
      %v2521 = vmul.f32 %v2398, %v2503
      %v2522 = vmul.f32 %v2400, %v2503
      %v2523 = vmul.f32 %v2402, %v2504
      %v2524 = vmul.f32 %v2404, %v2504
      %v2525 = vmul.f32 %v2406, %v2505
      %v2526 = vmul.f32 %v2408, %v2505
      %v2527 = vmul.f32 %v2410, %v2506
      %v2528 = vmul.f32 %v2412, %v2506
      %v2529 = vmul.f32 %v2414, %v2507
      %v2530 = vmul.f32 %v2416, %v2507
      %v2531 = vmul.f32 %v2418, %v2508
      %v2532 = vmul.f32 %v2420, %v2508
      %v2533 = vmul.f32 %v2422, %v2509
      %v2534 = vmul.f32 %v2424, %v2509
      %v2535 = vmul.f32 %v2426, %v2510
      %v2536 = vmul.f32 %v2428, %v2510
      %v2537 = vmul.f32 %v2430, %v2511
      %v2538 = vmul.f32 %v2432, %v2511
      %v2539 = vmul.f32 %v2434, %v2512
      %v2540 = vmul.f32 %v2436, %v2512
      %v2541 = vmul.f32 %v2438, %v2513
      %v2542 = vmul.f32 %v2440, %v2513
      %v2543 = vmul.f32 %v2442, %v2514
      %v2544 = vmul.f32 %v2444, %v2514
      %v2545 = vmul.f32 %v2446, %v2515
      %v2546 = vmul.f32 %v2448, %v2515
      %v2547 = vmul.f32 %v2450, %v2516
      %v2548 = vmul.f32 %v2452, %v2516
      %2549 = vmatpush.msra.mxu0 %v1985
      %2550 = vmatpush.msra.mxu0 %v1982
      %2551 = vmatpush.msra.mxu0 %v1979
      %2552 = vmatpush.msra.mxu0 %v1976
      %2553 = vmatpush.msra.mxu0 %v1973
      %2554 = vmatpush.msra.mxu0 %v1970
      %2555 = vmatpush.msra.mxu0 %v1967
      %2556 = vmatpush.msra.mxu0 %v1964
      %2557 = vmatpush.msra.mxu0 %v1961
      %2558 = vmatpush.msra.mxu0 %v1958
      %2559 = vmatpush.msra.mxu0 %v1955
      %2560 = vmatpush.msra.mxu0 %v1952
      %2561 = vmatpush.msra.mxu0 %v1949
      %2562 = vmatpush.msra.mxu0 %v1946
      %2563 = vmatpush.msra.mxu0 %v1943
      %2564 = vmatpush.msra.mxu0 %v1940
      %2565 = vmatmul.f32.gmra.mxu0 %v2517
      %v2566 = vpop.f32.mrf.mxu0
      %v2567 = vadd.f32 0.0, %v2566
      %2568 = vmatmul.f32.gmra.mxu0 %v2519
      %v2569 = vpop.f32.mrf.mxu0
      %v2570 = vadd.f32 0.0, %v2569
      %2571 = vmatmul.f32.gmra.mxu0 %v2521
      %v2572 = vpop.f32.mrf.mxu0
      %v2573 = vadd.f32 0.0, %v2572
      %2574 = vmatmul.f32.gmra.mxu0 %v2523
      %v2575 = vpop.f32.mrf.mxu0
      %v2576 = vadd.f32 0.0, %v2575
      %2577 = vmatmul.f32.gmra.mxu0 %v2525
      %v2578 = vpop.f32.mrf.mxu0
      %v2579 = vadd.f32 0.0, %v2578
      %2580 = vmatmul.f32.gmra.mxu0 %v2527
      %v2581 = vpop.f32.mrf.mxu0
      %v2582 = vadd.f32 0.0, %v2581
      %2583 = vmatmul.f32.gmra.mxu0 %v2529
      %v2584 = vpop.f32.mrf.mxu0
      %v2585 = vadd.f32 0.0, %v2584
      %2586 = vmatmul.f32.gmra.mxu0 %v2531
      %v2587 = vpop.f32.mrf.mxu0
      %v2588 = vadd.f32 0.0, %v2587
      %2589 = vmatmul.f32.gmra.mxu0 %v2533
      %v2590 = vpop.f32.mrf.mxu0
      %v2591 = vadd.f32 0.0, %v2590
      %2592 = vmatmul.f32.gmra.mxu0 %v2535
      %v2593 = vpop.f32.mrf.mxu0
      %v2594 = vadd.f32 0.0, %v2593
      %2595 = vmatmul.f32.gmra.mxu0 %v2537
      %v2596 = vpop.f32.mrf.mxu0
      %v2597 = vadd.f32 0.0, %v2596
      %2598 = vmatmul.f32.gmra.mxu0 %v2539
      %v2599 = vpop.f32.mrf.mxu0
      %v2600 = vadd.f32 0.0, %v2599
      %2601 = vmatmul.f32.gmra.mxu0 %v2541
      %v2602 = vpop.f32.mrf.mxu0
      %v2603 = vadd.f32 0.0, %v2602
      %2604 = vmatmul.f32.gmra.mxu0 %v2543
      %v2605 = vpop.f32.mrf.mxu0
      %v2606 = vadd.f32 0.0, %v2605
      %2607 = vmatmul.f32.gmra.mxu0 %v2545
      %v2608 = vpop.f32.mrf.mxu0
      %v2609 = vadd.f32 0.0, %v2608
      %2610 = vmatmul.f32.gmra.mxu0 %v2547
      %v2611 = vpop.f32.mrf.mxu0
      %v2612 = vadd.f32 0.0, %v2611
      %2613 = vdwg.mxu0
      %2614 = vmatpush.msra.mxu0 %v2033
      %2615 = vmatpush.msra.mxu0 %v2030
      %2616 = vmatpush.msra.mxu0 %v2027
      %2617 = vmatpush.msra.mxu0 %v2024
      %2618 = vmatpush.msra.mxu0 %v2021
      %2619 = vmatpush.msra.mxu0 %v2018
      %2620 = vmatpush.msra.mxu0 %v2015
      %2621 = vmatpush.msra.mxu0 %v2012
      %2622 = vmatpush.msra.mxu0 %v2009
      %2623 = vmatpush.msra.mxu0 %v2006
      %2624 = vmatpush.msra.mxu0 %v2003
      %2625 = vmatpush.msra.mxu0 %v2000
      %2626 = vmatpush.msra.mxu0 %v1997
      %2627 = vmatpush.msra.mxu0 %v1994
      %2628 = vmatpush.msra.mxu0 %v1991
      %2629 = vmatpush.msra.mxu0 %v1988
      %2630 = vmatmul.f32.gmra.mxu0 %v2518
      %v2631 = vpop.f32.mrf.mxu0
      %v2632 = vadd.f32 %v2567, %v2631
      %2633 = vmatmul.f32.gmra.mxu0 %v2520
      %v2634 = vpop.f32.mrf.mxu0
      %v2635 = vadd.f32 %v2570, %v2634
      %2636 = vmatmul.f32.gmra.mxu0 %v2522
      %v2637 = vpop.f32.mrf.mxu0
      %v2638 = vadd.f32 %v2573, %v2637
      %2639 = vmatmul.f32.gmra.mxu0 %v2524
      %v2640 = vpop.f32.mrf.mxu0
      %v2641 = vadd.f32 %v2576, %v2640
      %2642 = vmatmul.f32.gmra.mxu0 %v2526
      %v2643 = vpop.f32.mrf.mxu0
      %v2644 = vadd.f32 %v2579, %v2643
      %2645 = vmatmul.f32.gmra.mxu0 %v2528
      %v2646 = vpop.f32.mrf.mxu0
      %v2647 = vadd.f32 %v2582, %v2646
      %2648 = vmatmul.f32.gmra.mxu0 %v2530
      %v2649 = vpop.f32.mrf.mxu0
      %v2650 = vadd.f32 %v2585, %v2649
      %2651 = vmatmul.f32.gmra.mxu0 %v2532
      %v2652 = vpop.f32.mrf.mxu0
      %v2653 = vadd.f32 %v2588, %v2652
      %2654 = vmatmul.f32.gmra.mxu0 %v2534
      %v2655 = vpop.f32.mrf.mxu0
      %v2656 = vadd.f32 %v2591, %v2655
      %2657 = vmatmul.f32.gmra.mxu0 %v2536
      %v2658 = vpop.f32.mrf.mxu0
      %v2659 = vadd.f32 %v2594, %v2658
      %2660 = vmatmul.f32.gmra.mxu0 %v2538
      %v2661 = vpop.f32.mrf.mxu0
      %v2662 = vadd.f32 %v2597, %v2661
      %2663 = vmatmul.f32.gmra.mxu0 %v2540
      %v2664 = vpop.f32.mrf.mxu0
      %v2665 = vadd.f32 %v2600, %v2664
      %2666 = vmatmul.f32.gmra.mxu0 %v2542
      %v2667 = vpop.f32.mrf.mxu0
      %v2668 = vadd.f32 %v2603, %v2667
      %2669 = vmatmul.f32.gmra.mxu0 %v2544
      %v2670 = vpop.f32.mrf.mxu0
      %v2671 = vadd.f32 %v2606, %v2670
      %2672 = vmatmul.f32.gmra.mxu0 %v2546
      %v2673 = vpop.f32.mrf.mxu0
      %v2674 = vadd.f32 %v2609, %v2673
      %2675 = vmatmul.f32.gmra.mxu0 %v2548
      %v2676 = vpop.f32.mrf.mxu0
      %v2677 = vadd.f32 %v2612, %v2676
      %2678 = vdwg.mxu0
      %s2679 = scalar_lea.vmem %s7, 32
      %v2680 = vld [vmem:[%s2679] sm:$0xff]
      %v2681 = vld [vmem:[%s2679 + $0x8] sm:$0xff]
      %v2682 = vld [vmem:[%s2679 + $0x10] sm:$0xff]
      %v2683 = vld [vmem:[%s2679 + $0x18] sm:$0xff]
      %v2685 = vsel %vm1053, %v2632, 0
      %v2688 = vsel %vm1053, %v2635, 0
      %v2691 = vsel %vm1053, %v2638, 0
      %v2694 = vsel %vm1053, %v2641, 0
      %v2697 = vsel %vm1053, %v2644, 0
      %v2700 = vsel %vm1053, %v2647, 0
      %v2703 = vsel %vm1053, %v2650, 0
      %v2706 = vsel %vm1053, %v2653, 0
      %v2709 = vsel %vm1053, %v2656, 0
      %v2712 = vsel %vm1053, %v2659, 0
      %v2715 = vsel %vm1053, %v2662, 0
      %v2718 = vsel %vm1053, %v2665, 0
      %v2721 = vsel %vm1053, %v2668, 0
      %v2724 = vsel %vm1053, %v2671, 0
      %v2727 = vsel %vm1053, %v2674, 0
      %v2730 = vsel %vm1053, %v2677, 0
      %2732 = vmatpush.msra.mxu0 0.0
      %2733 = vmatpush.msra.mxu0 0.0
      %2734 = vmatpush.msra.mxu0 0.0
      %2735 = vmatpush.msra.mxu0 0.0
      %2736 = vmatpush.msra.mxu0 0.0
      %2737 = vmatpush.msra.mxu0 0.0
      %2738 = vmatpush.msra.mxu0 0.0
      %2739 = vmatpush.msra.mxu0 0.0
      %2740 = vmatpush.msra.mxu0 0.0
      %2741 = vmatpush.msra.mxu0 0.0
      %2742 = vmatpush.msra.mxu0 0.0
      %2743 = vmatpush.msra.mxu0 0.0
      %2744 = vmatpush.msra.mxu0 %v2683
      %2745 = vmatpush.msra.mxu0 %v2682
      %2746 = vmatpush.msra.mxu0 %v2681
      %2747 = vmatpush.msra.mxu0 %v2680
      %2748 = vmatmul.f32.gmra.mxu0 %v2685
      %v2749 = vpop.f32.mrf.mxu0
      %v2750 = vadd.f32 0.0, %v2749
      %2751 = vmatmul.f32.gmra.mxu0 %v2688
      %v2752 = vpop.f32.mrf.mxu0
      %v2753 = vadd.f32 0.0, %v2752
      %2754 = vmatmul.f32.gmra.mxu0 %v2691
      %v2755 = vpop.f32.mrf.mxu0
      %v2756 = vadd.f32 0.0, %v2755
      %2757 = vmatmul.f32.gmra.mxu0 %v2694
      %v2758 = vpop.f32.mrf.mxu0
      %v2759 = vadd.f32 0.0, %v2758
      %2760 = vmatmul.f32.gmra.mxu0 %v2697
      %v2761 = vpop.f32.mrf.mxu0
      %v2762 = vadd.f32 0.0, %v2761
      %2763 = vmatmul.f32.gmra.mxu0 %v2700
      %v2764 = vpop.f32.mrf.mxu0
      %v2765 = vadd.f32 0.0, %v2764
      %2766 = vmatmul.f32.gmra.mxu0 %v2703
      %v2767 = vpop.f32.mrf.mxu0
      %v2768 = vadd.f32 0.0, %v2767
      %2769 = vmatmul.f32.gmra.mxu0 %v2706
      %v2770 = vpop.f32.mrf.mxu0
      %v2771 = vadd.f32 0.0, %v2770
      %2772 = vmatmul.f32.gmra.mxu0 %v2709
      %v2773 = vpop.f32.mrf.mxu0
      %v2774 = vadd.f32 0.0, %v2773
      %2775 = vmatmul.f32.gmra.mxu0 %v2712
      %v2776 = vpop.f32.mrf.mxu0
      %v2777 = vadd.f32 0.0, %v2776
      %2778 = vmatmul.f32.gmra.mxu0 %v2715
      %v2779 = vpop.f32.mrf.mxu0
      %v2780 = vadd.f32 0.0, %v2779
      %2781 = vmatmul.f32.gmra.mxu0 %v2718
      %v2782 = vpop.f32.mrf.mxu0
      %v2783 = vadd.f32 0.0, %v2782
      %2784 = vmatmul.f32.gmra.mxu0 %v2721
      %v2785 = vpop.f32.mrf.mxu0
      %v2786 = vadd.f32 0.0, %v2785
      %2787 = vmatmul.f32.gmra.mxu0 %v2724
      %v2788 = vpop.f32.mrf.mxu0
      %v2789 = vadd.f32 0.0, %v2788
      %2790 = vmatmul.f32.gmra.mxu0 %v2727
      %v2791 = vpop.f32.mrf.mxu0
      %v2792 = vadd.f32 0.0, %v2791
      %2793 = vmatmul.f32.gmra.mxu0 %v2730
      %v2794 = vpop.f32.mrf.mxu0
      %v2795 = vadd.f32 0.0, %v2794
      %2796 = vdwg.mxu0
      %v2798 = vsel %vm1053, %v1651, 0
      %v2801 = vsel %vm1053, %v1654, 0
      %v2804 = vsel %vm1053, %v1657, 0
      %v2807 = vsel %vm1053, %v1660, 0
      %v2810 = vsel %vm1053, %v1663, 0
      %v2813 = vsel %vm1053, %v1666, 0
      %v2816 = vsel %vm1053, %v1669, 0
      %v2819 = vsel %vm1053, %v1672, 0
      %v2822 = vsel %vm1053, %v1675, 0
      %v2825 = vsel %vm1053, %v1678, 0
      %v2828 = vsel %vm1053, %v1681, 0
      %v2831 = vsel %vm1053, %v1684, 0
      %v2834 = vsel %vm1053, %v1687, 0
      %v2837 = vsel %vm1053, %v1690, 0
      %v2840 = vsel %vm1053, %v1693, 0
      %v2843 = vsel %vm1053, %v1696, 0
      %2845 = vmatpush.msra.mxu0 0.0
      %2846 = vmatpush.msra.mxu0 0.0
      %2847 = vmatpush.msra.mxu0 0.0
      %2848 = vmatpush.msra.mxu0 0.0
      %2849 = vmatpush.msra.mxu0 0.0
      %2850 = vmatpush.msra.mxu0 0.0
      %2851 = vmatpush.msra.mxu0 0.0
      %2852 = vmatpush.msra.mxu0 0.0
      %2853 = vmatpush.msra.mxu0 0.0
      %2854 = vmatpush.msra.mxu0 0.0
      %2855 = vmatpush.msra.mxu0 0.0
      %2856 = vmatpush.msra.mxu0 0.0
      %2857 = vmatpush.msra.mxu0 %v1701
      %2858 = vmatpush.msra.mxu0 %v1700
      %2859 = vmatpush.msra.mxu0 %v1699
      %2860 = vmatpush.msra.mxu0 %v1698
      %2861 = vmatmul.f32.gmra.mxu0 %v2798
      %v2862 = vpop.f32.mrf.mxu0
      %v2863 = vadd.f32 %v2750, %v2862
      %2864 = vmatmul.f32.gmra.mxu0 %v2801
      %v2865 = vpop.f32.mrf.mxu0
      %v2866 = vadd.f32 %v2753, %v2865
      %2867 = vmatmul.f32.gmra.mxu0 %v2804
      %v2868 = vpop.f32.mrf.mxu0
      %v2869 = vadd.f32 %v2756, %v2868
      %2870 = vmatmul.f32.gmra.mxu0 %v2807
      %v2871 = vpop.f32.mrf.mxu0
      %v2872 = vadd.f32 %v2759, %v2871
      %2873 = vmatmul.f32.gmra.mxu0 %v2810
      %v2874 = vpop.f32.mrf.mxu0
      %v2875 = vadd.f32 %v2762, %v2874
      %2876 = vmatmul.f32.gmra.mxu0 %v2813
      %v2877 = vpop.f32.mrf.mxu0
      %v2878 = vadd.f32 %v2765, %v2877
      %2879 = vmatmul.f32.gmra.mxu0 %v2816
      %v2880 = vpop.f32.mrf.mxu0
      %v2881 = vadd.f32 %v2768, %v2880
      %2882 = vmatmul.f32.gmra.mxu0 %v2819
      %v2883 = vpop.f32.mrf.mxu0
      %v2884 = vadd.f32 %v2771, %v2883
      %2885 = vmatmul.f32.gmra.mxu0 %v2822
      %v2886 = vpop.f32.mrf.mxu0
      %v2887 = vadd.f32 %v2774, %v2886
      %2888 = vmatmul.f32.gmra.mxu0 %v2825
      %v2889 = vpop.f32.mrf.mxu0
      %v2890 = vadd.f32 %v2777, %v2889
      %2891 = vmatmul.f32.gmra.mxu0 %v2828
      %v2892 = vpop.f32.mrf.mxu0
      %v2893 = vadd.f32 %v2780, %v2892
      %2894 = vmatmul.f32.gmra.mxu0 %v2831
      %v2895 = vpop.f32.mrf.mxu0
      %v2896 = vadd.f32 %v2783, %v2895
      %2897 = vmatmul.f32.gmra.mxu0 %v2834
      %v2898 = vpop.f32.mrf.mxu0
      %v2899 = vadd.f32 %v2786, %v2898
      %2900 = vmatmul.f32.gmra.mxu0 %v2837
      %v2901 = vpop.f32.mrf.mxu0
      %v2902 = vadd.f32 %v2789, %v2901
      %2903 = vmatmul.f32.gmra.mxu0 %v2840
      %v2904 = vpop.f32.mrf.mxu0
      %v2905 = vadd.f32 %v2792, %v2904
      %2906 = vmatmul.f32.gmra.mxu0 %v2843
      %v2907 = vpop.f32.mrf.mxu0
      %v2908 = vadd.f32 %v2795, %v2907
      %2909 = vdwg.mxu0
      %v2910 = vadd.f32 %v565, %v2863
      %v2911 = vadd.f32 %v566, %v2866
      %v2912 = vadd.f32 %v567, %v2869
      %v2913 = vadd.f32 %v568, %v2872
      %v2914 = vadd.f32 %v569, %v2875
      %v2915 = vadd.f32 %v570, %v2878
      %v2916 = vadd.f32 %v571, %v2881
      %v2917 = vadd.f32 %v572, %v2884
      %v2918 = vadd.f32 %v573, %v2887
      %v2919 = vadd.f32 %v574, %v2890
      %v2920 = vadd.f32 %v575, %v2893
      %v2921 = vadd.f32 %v576, %v2896
      %v2922 = vadd.f32 %v577, %v2899
      %v2923 = vadd.f32 %v578, %v2902
      %v2924 = vadd.f32 %v579, %v2905
      %v2925 = vadd.f32 %v580, %v2908
      %v2926 = vld [vmem:[%s8] sm:$0x1]
      %v2928 = vperm.slane %v2926, 0
      %v2930 = vadd.f32 %v2910, %v2928
      %v2931 = vadd.f32 %v2911, %v2928
      %v2932 = vadd.f32 %v2912, %v2928
      %v2933 = vadd.f32 %v2913, %v2928
      %v2934 = vadd.f32 %v2914, %v2928
      %v2935 = vadd.f32 %v2915, %v2928
      %v2936 = vadd.f32 %v2916, %v2928
      %v2937 = vadd.f32 %v2917, %v2928
      %v2938 = vadd.f32 %v2918, %v2928
      %v2939 = vadd.f32 %v2919, %v2928
      %v2940 = vadd.f32 %v2920, %v2928
      %v2941 = vadd.f32 %v2921, %v2928
      %v2942 = vadd.f32 %v2922, %v2928
      %v2943 = vadd.f32 %v2923, %v2928
      %v2944 = vadd.f32 %v2924, %v2928
      %v2945 = vadd.f32 %v2925, %v2928
      %v2946 = vld [vmem:[%s9] sm:$0x1]
      %v2947 = vld [vmem:[%s10] sm:$0x1]
      %v2948 = vsel %vm593, %v2930, 0.0
      %2949 = vadd.xlane.f32.xlu0 %v2948
      %v2950 = vpop.xlane.xlu0 %2949
      %v2951 = vsel %vm593, %v2931, 0.0
      %2952 = vadd.xlane.f32.xlu0 %v2951
      %v2953 = vpop.xlane.xlu0 %2952
      %v2954 = vsel %vm593, %v2932, 0.0
      %2955 = vadd.xlane.f32.xlu0 %v2954
      %v2956 = vpop.xlane.xlu0 %2955
      %v2957 = vsel %vm593, %v2933, 0.0
      %2958 = vadd.xlane.f32.xlu0 %v2957
      %v2959 = vpop.xlane.xlu0 %2958
      %v2960 = vsel %vm593, %v2934, 0.0
      %2961 = vadd.xlane.f32.xlu0 %v2960
      %v2962 = vpop.xlane.xlu0 %2961
      %v2963 = vsel %vm593, %v2935, 0.0
      %2964 = vadd.xlane.f32.xlu0 %v2963
      %v2965 = vpop.xlane.xlu0 %2964
      %v2966 = vsel %vm593, %v2936, 0.0
      %2967 = vadd.xlane.f32.xlu0 %v2966
      %v2968 = vpop.xlane.xlu0 %2967
      %v2969 = vsel %vm593, %v2937, 0.0
      %2970 = vadd.xlane.f32.xlu0 %v2969
      %v2971 = vpop.xlane.xlu0 %2970
      %v2972 = vsel %vm593, %v2938, 0.0
      %2973 = vadd.xlane.f32.xlu0 %v2972
      %v2974 = vpop.xlane.xlu0 %2973
      %v2975 = vsel %vm593, %v2939, 0.0
      %2976 = vadd.xlane.f32.xlu0 %v2975
      %v2977 = vpop.xlane.xlu0 %2976
      %v2978 = vsel %vm593, %v2940, 0.0
      %2979 = vadd.xlane.f32.xlu0 %v2978
      %v2980 = vpop.xlane.xlu0 %2979
      %v2981 = vsel %vm593, %v2941, 0.0
      %2982 = vadd.xlane.f32.xlu0 %v2981
      %v2983 = vpop.xlane.xlu0 %2982
      %v2984 = vsel %vm593, %v2942, 0.0
      %2985 = vadd.xlane.f32.xlu0 %v2984
      %v2986 = vpop.xlane.xlu0 %2985
      %v2987 = vsel %vm593, %v2943, 0.0
      %2988 = vadd.xlane.f32.xlu0 %v2987
      %v2989 = vpop.xlane.xlu0 %2988
      %v2990 = vsel %vm593, %v2944, 0.0
      %2991 = vadd.xlane.f32.xlu0 %v2990
      %v2992 = vpop.xlane.xlu0 %2991
      %v2993 = vsel %vm593, %v2945, 0.0
      %2994 = vadd.xlane.f32.xlu0 %v2993
      %v2995 = vpop.xlane.xlu0 %2994
      %v2996 = vrcp.pop 64.0
      %v2997 = vmul.f32 64.0, %v2996
      %v2998 = vsub.f32 1.0, %v2997
      %v2999 = vmul.f32 %v2996, %v2998
      %v3000 = vadd.f32 %v2996, %v2999
      %vm3001 = vweird.f32 %v2996
      %v3002 = vsel %vm3001, %v2996, %v3000
      %v3003 = vmul.f32 %v2950, %v3002
      %v3004 = vmul.f32 %v2953, %v3002
      %v3005 = vmul.f32 %v2956, %v3002
      %v3006 = vmul.f32 %v2959, %v3002
      %v3007 = vmul.f32 %v2962, %v3002
      %v3008 = vmul.f32 %v2965, %v3002
      %v3009 = vmul.f32 %v2968, %v3002
      %v3010 = vmul.f32 %v2971, %v3002
      %v3011 = vmul.f32 %v2974, %v3002
      %v3012 = vmul.f32 %v2977, %v3002
      %v3013 = vmul.f32 %v2980, %v3002
      %v3014 = vmul.f32 %v2983, %v3002
      %v3015 = vmul.f32 %v2986, %v3002
      %v3016 = vmul.f32 %v2989, %v3002
      %v3017 = vmul.f32 %v2992, %v3002
      %v3018 = vmul.f32 %v2995, %v3002
      %v3019 = vsub.f32 %v2930, %v3003
      %v3020 = vsub.f32 %v2931, %v3004
      %v3021 = vsub.f32 %v2932, %v3005
      %v3022 = vsub.f32 %v2933, %v3006
      %v3023 = vsub.f32 %v2934, %v3007
      %v3024 = vsub.f32 %v2935, %v3008
      %v3025 = vsub.f32 %v2936, %v3009
      %v3026 = vsub.f32 %v2937, %v3010
      %v3027 = vsub.f32 %v2938, %v3011
      %v3028 = vsub.f32 %v2939, %v3012
      %v3029 = vsub.f32 %v2940, %v3013
      %v3030 = vsub.f32 %v2941, %v3014
      %v3031 = vsub.f32 %v2942, %v3015
      %v3032 = vsub.f32 %v2943, %v3016
      %v3033 = vsub.f32 %v2944, %v3017
      %v3034 = vsub.f32 %v2945, %v3018
      %v3035 = vmul.f32 %v3019, %v3019
      %v3036 = vmul.f32 %v3020, %v3020
      %v3037 = vmul.f32 %v3021, %v3021
      %v3038 = vmul.f32 %v3022, %v3022
      %v3039 = vmul.f32 %v3023, %v3023
      %v3040 = vmul.f32 %v3024, %v3024
      %v3041 = vmul.f32 %v3025, %v3025
      %v3042 = vmul.f32 %v3026, %v3026
      %v3043 = vmul.f32 %v3027, %v3027
      %v3044 = vmul.f32 %v3028, %v3028
      %v3045 = vmul.f32 %v3029, %v3029
      %v3046 = vmul.f32 %v3030, %v3030
      %v3047 = vmul.f32 %v3031, %v3031
      %v3048 = vmul.f32 %v3032, %v3032
      %v3049 = vmul.f32 %v3033, %v3033
      %v3050 = vmul.f32 %v3034, %v3034
      %v3051 = vsel %vm593, %v3035, 0.0
      %3052 = vadd.xlane.f32.xlu0 %v3051
      %v3053 = vpop.xlane.xlu0 %3052
      %v3054 = vsel %vm593, %v3036, 0.0
      %3055 = vadd.xlane.f32.xlu0 %v3054
      %v3056 = vpop.xlane.xlu0 %3055
      %v3057 = vsel %vm593, %v3037, 0.0
      %3058 = vadd.xlane.f32.xlu0 %v3057
      %v3059 = vpop.xlane.xlu0 %3058
      %v3060 = vsel %vm593, %v3038, 0.0
      %3061 = vadd.xlane.f32.xlu0 %v3060
      %v3062 = vpop.xlane.xlu0 %3061
      %v3063 = vsel %vm593, %v3039, 0.0
      %3064 = vadd.xlane.f32.xlu0 %v3063
      %v3065 = vpop.xlane.xlu0 %3064
      %v3066 = vsel %vm593, %v3040, 0.0
      %3067 = vadd.xlane.f32.xlu0 %v3066
      %v3068 = vpop.xlane.xlu0 %3067
      %v3069 = vsel %vm593, %v3041, 0.0
      %3070 = vadd.xlane.f32.xlu0 %v3069
      %v3071 = vpop.xlane.xlu0 %3070
      %v3072 = vsel %vm593, %v3042, 0.0
      %3073 = vadd.xlane.f32.xlu0 %v3072
      %v3074 = vpop.xlane.xlu0 %3073
      %v3075 = vsel %vm593, %v3043, 0.0
      %3076 = vadd.xlane.f32.xlu0 %v3075
      %v3077 = vpop.xlane.xlu0 %3076
      %v3078 = vsel %vm593, %v3044, 0.0
      %3079 = vadd.xlane.f32.xlu0 %v3078
      %v3080 = vpop.xlane.xlu0 %3079
      %v3081 = vsel %vm593, %v3045, 0.0
      %3082 = vadd.xlane.f32.xlu0 %v3081
      %v3083 = vpop.xlane.xlu0 %3082
      %v3084 = vsel %vm593, %v3046, 0.0
      %3085 = vadd.xlane.f32.xlu0 %v3084
      %v3086 = vpop.xlane.xlu0 %3085
      %v3087 = vsel %vm593, %v3047, 0.0
      %3088 = vadd.xlane.f32.xlu0 %v3087
      %v3089 = vpop.xlane.xlu0 %3088
      %v3090 = vsel %vm593, %v3048, 0.0
      %3091 = vadd.xlane.f32.xlu0 %v3090
      %v3092 = vpop.xlane.xlu0 %3091
      %v3093 = vsel %vm593, %v3049, 0.0
      %3094 = vadd.xlane.f32.xlu0 %v3093
      %v3095 = vpop.xlane.xlu0 %3094
      %v3096 = vsel %vm593, %v3050, 0.0
      %3097 = vadd.xlane.f32.xlu0 %v3096
      %v3098 = vpop.xlane.xlu0 %3097
      %v3099 = vmul.f32 %v3053, %v3002
      %v3100 = vmul.f32 %v3056, %v3002
      %v3101 = vmul.f32 %v3059, %v3002
      %v3102 = vmul.f32 %v3062, %v3002
      %v3103 = vmul.f32 %v3065, %v3002
      %v3104 = vmul.f32 %v3068, %v3002
      %v3105 = vmul.f32 %v3071, %v3002
      %v3106 = vmul.f32 %v3074, %v3002
      %v3107 = vmul.f32 %v3077, %v3002
      %v3108 = vmul.f32 %v3080, %v3002
      %v3109 = vmul.f32 %v3083, %v3002
      %v3110 = vmul.f32 %v3086, %v3002
      %v3111 = vmul.f32 %v3089, %v3002
      %v3112 = vmul.f32 %v3092, %v3002
      %v3113 = vmul.f32 %v3095, %v3002
      %v3114 = vmul.f32 %v3098, %v3002
      %v3115 = vadd.f32 %v3099, 1e-05
      %v3116 = vadd.f32 %v3100, 1e-05
      %v3117 = vadd.f32 %v3101, 1e-05
      %v3118 = vadd.f32 %v3102, 1e-05
      %v3119 = vadd.f32 %v3103, 1e-05
      %v3120 = vadd.f32 %v3104, 1e-05
      %v3121 = vadd.f32 %v3105, 1e-05
      %v3122 = vadd.f32 %v3106, 1e-05
      %v3123 = vadd.f32 %v3107, 1e-05
      %v3124 = vadd.f32 %v3108, 1e-05
      %v3125 = vadd.f32 %v3109, 1e-05
      %v3126 = vadd.f32 %v3110, 1e-05
      %v3127 = vadd.f32 %v3111, 1e-05
      %v3128 = vadd.f32 %v3112, 1e-05
      %v3129 = vadd.f32 %v3113, 1e-05
      %v3130 = vadd.f32 %v3114, 1e-05
      %v3131 = vrsqrt.pop %v3115
      %v3132 = vmul.f32 %v3131, %v3115
      %v3133 = vmul.f32 %v3132, %v3131
      %v3134 = vmul.f32 0.5, %v3133
      %v3135 = vsub.f32 1.5, %v3134
      %v3136 = vmul.f32 %v3131, %v3135
      %vm3137 = vweird.f32 %v3115
      %vm3138 = vweird.f32 %v3131
      %vm3139 = vmor %vm3137, %vm3138
      %v3140 = vsel %vm3139, %v3131, %v3136
      %v3141 = vrsqrt.pop %v3116
      %v3142 = vmul.f32 %v3141, %v3116
      %v3143 = vmul.f32 %v3142, %v3141
      %v3144 = vmul.f32 0.5, %v3143
      %v3145 = vsub.f32 1.5, %v3144
      %v3146 = vmul.f32 %v3141, %v3145
      %vm3147 = vweird.f32 %v3116
      %vm3148 = vweird.f32 %v3141
      %vm3149 = vmor %vm3147, %vm3148
      %v3150 = vsel %vm3149, %v3141, %v3146
      %v3151 = vrsqrt.pop %v3117
      %v3152 = vmul.f32 %v3151, %v3117
      %v3153 = vmul.f32 %v3152, %v3151
      %v3154 = vmul.f32 0.5, %v3153
      %v3155 = vsub.f32 1.5, %v3154
      %v3156 = vmul.f32 %v3151, %v3155
      %vm3157 = vweird.f32 %v3117
      %vm3158 = vweird.f32 %v3151
      %vm3159 = vmor %vm3157, %vm3158
      %v3160 = vsel %vm3159, %v3151, %v3156
      %v3161 = vrsqrt.pop %v3118
      %v3162 = vmul.f32 %v3161, %v3118
      %v3163 = vmul.f32 %v3162, %v3161
      %v3164 = vmul.f32 0.5, %v3163
      %v3165 = vsub.f32 1.5, %v3164
      %v3166 = vmul.f32 %v3161, %v3165
      %vm3167 = vweird.f32 %v3118
      %vm3168 = vweird.f32 %v3161
      %vm3169 = vmor %vm3167, %vm3168
      %v3170 = vsel %vm3169, %v3161, %v3166
      %v3171 = vrsqrt.pop %v3119
      %v3172 = vmul.f32 %v3171, %v3119
      %v3173 = vmul.f32 %v3172, %v3171
      %v3174 = vmul.f32 0.5, %v3173
      %v3175 = vsub.f32 1.5, %v3174
      %v3176 = vmul.f32 %v3171, %v3175
      %vm3177 = vweird.f32 %v3119
      %vm3178 = vweird.f32 %v3171
      %vm3179 = vmor %vm3177, %vm3178
      %v3180 = vsel %vm3179, %v3171, %v3176
      %v3181 = vrsqrt.pop %v3120
      %v3182 = vmul.f32 %v3181, %v3120
      %v3183 = vmul.f32 %v3182, %v3181
      %v3184 = vmul.f32 0.5, %v3183
      %v3185 = vsub.f32 1.5, %v3184
      %v3186 = vmul.f32 %v3181, %v3185
      %vm3187 = vweird.f32 %v3120
      %vm3188 = vweird.f32 %v3181
      %vm3189 = vmor %vm3187, %vm3188
      %v3190 = vsel %vm3189, %v3181, %v3186
      %v3191 = vrsqrt.pop %v3121
      %v3192 = vmul.f32 %v3191, %v3121
      %v3193 = vmul.f32 %v3192, %v3191
      %v3194 = vmul.f32 0.5, %v3193
      %v3195 = vsub.f32 1.5, %v3194
      %v3196 = vmul.f32 %v3191, %v3195
      %vm3197 = vweird.f32 %v3121
      %vm3198 = vweird.f32 %v3191
      %vm3199 = vmor %vm3197, %vm3198
      %v3200 = vsel %vm3199, %v3191, %v3196
      %v3201 = vrsqrt.pop %v3122
      %v3202 = vmul.f32 %v3201, %v3122
      %v3203 = vmul.f32 %v3202, %v3201
      %v3204 = vmul.f32 0.5, %v3203
      %v3205 = vsub.f32 1.5, %v3204
      %v3206 = vmul.f32 %v3201, %v3205
      %vm3207 = vweird.f32 %v3122
      %vm3208 = vweird.f32 %v3201
      %vm3209 = vmor %vm3207, %vm3208
      %v3210 = vsel %vm3209, %v3201, %v3206
      %v3211 = vrsqrt.pop %v3123
      %v3212 = vmul.f32 %v3211, %v3123
      %v3213 = vmul.f32 %v3212, %v3211
      %v3214 = vmul.f32 0.5, %v3213
      %v3215 = vsub.f32 1.5, %v3214
      %v3216 = vmul.f32 %v3211, %v3215
      %vm3217 = vweird.f32 %v3123
      %vm3218 = vweird.f32 %v3211
      %vm3219 = vmor %vm3217, %vm3218
      %v3220 = vsel %vm3219, %v3211, %v3216
      %v3221 = vrsqrt.pop %v3124
      %v3222 = vmul.f32 %v3221, %v3124
      %v3223 = vmul.f32 %v3222, %v3221
      %v3224 = vmul.f32 0.5, %v3223
      %v3225 = vsub.f32 1.5, %v3224
      %v3226 = vmul.f32 %v3221, %v3225
      %vm3227 = vweird.f32 %v3124
      %vm3228 = vweird.f32 %v3221
      %vm3229 = vmor %vm3227, %vm3228
      %v3230 = vsel %vm3229, %v3221, %v3226
      %v3231 = vrsqrt.pop %v3125
      %v3232 = vmul.f32 %v3231, %v3125
      %v3233 = vmul.f32 %v3232, %v3231
      %v3234 = vmul.f32 0.5, %v3233
      %v3235 = vsub.f32 1.5, %v3234
      %v3236 = vmul.f32 %v3231, %v3235
      %vm3237 = vweird.f32 %v3125
      %vm3238 = vweird.f32 %v3231
      %vm3239 = vmor %vm3237, %vm3238
      %v3240 = vsel %vm3239, %v3231, %v3236
      %v3241 = vrsqrt.pop %v3126
      %v3242 = vmul.f32 %v3241, %v3126
      %v3243 = vmul.f32 %v3242, %v3241
      %v3244 = vmul.f32 0.5, %v3243
      %v3245 = vsub.f32 1.5, %v3244
      %v3246 = vmul.f32 %v3241, %v3245
      %vm3247 = vweird.f32 %v3126
      %vm3248 = vweird.f32 %v3241
      %vm3249 = vmor %vm3247, %vm3248
      %v3250 = vsel %vm3249, %v3241, %v3246
      %v3251 = vrsqrt.pop %v3127
      %v3252 = vmul.f32 %v3251, %v3127
      %v3253 = vmul.f32 %v3252, %v3251
      %v3254 = vmul.f32 0.5, %v3253
      %v3255 = vsub.f32 1.5, %v3254
      %v3256 = vmul.f32 %v3251, %v3255
      %vm3257 = vweird.f32 %v3127
      %vm3258 = vweird.f32 %v3251
      %vm3259 = vmor %vm3257, %vm3258
      %v3260 = vsel %vm3259, %v3251, %v3256
      %v3261 = vrsqrt.pop %v3128
      %v3262 = vmul.f32 %v3261, %v3128
      %v3263 = vmul.f32 %v3262, %v3261
      %v3264 = vmul.f32 0.5, %v3263
      %v3265 = vsub.f32 1.5, %v3264
      %v3266 = vmul.f32 %v3261, %v3265
      %vm3267 = vweird.f32 %v3128
      %vm3268 = vweird.f32 %v3261
      %vm3269 = vmor %vm3267, %vm3268
      %v3270 = vsel %vm3269, %v3261, %v3266
      %v3271 = vrsqrt.pop %v3129
      %v3272 = vmul.f32 %v3271, %v3129
      %v3273 = vmul.f32 %v3272, %v3271
      %v3274 = vmul.f32 0.5, %v3273
      %v3275 = vsub.f32 1.5, %v3274
      %v3276 = vmul.f32 %v3271, %v3275
      %vm3277 = vweird.f32 %v3129
      %vm3278 = vweird.f32 %v3271
      %vm3279 = vmor %vm3277, %vm3278
      %v3280 = vsel %vm3279, %v3271, %v3276
      %v3281 = vrsqrt.pop %v3130
      %v3282 = vmul.f32 %v3281, %v3130
      %v3283 = vmul.f32 %v3282, %v3281
      %v3284 = vmul.f32 0.5, %v3283
      %v3285 = vsub.f32 1.5, %v3284
      %v3286 = vmul.f32 %v3281, %v3285
      %vm3287 = vweird.f32 %v3130
      %vm3288 = vweird.f32 %v3281
      %vm3289 = vmor %vm3287, %vm3288
      %v3290 = vsel %vm3289, %v3281, %v3286
      %v3291 = vmul.f32 %v3019, %v3140
      %v3292 = vmul.f32 %v3020, %v3150
      %v3293 = vmul.f32 %v3021, %v3160
      %v3294 = vmul.f32 %v3022, %v3170
      %v3295 = vmul.f32 %v3023, %v3180
      %v3296 = vmul.f32 %v3024, %v3190
      %v3297 = vmul.f32 %v3025, %v3200
      %v3298 = vmul.f32 %v3026, %v3210
      %v3299 = vmul.f32 %v3027, %v3220
      %v3300 = vmul.f32 %v3028, %v3230
      %v3301 = vmul.f32 %v3029, %v3240
      %v3302 = vmul.f32 %v3030, %v3250
      %v3303 = vmul.f32 %v3031, %v3260
      %v3304 = vmul.f32 %v3032, %v3270
      %v3305 = vmul.f32 %v3033, %v3280
      %v3306 = vmul.f32 %v3034, %v3290
      %v3308 = vperm.slane %v2946, 0
      %v3310 = vmul.f32 %v3291, %v3308
      %v3311 = vmul.f32 %v3292, %v3308
      %v3312 = vmul.f32 %v3293, %v3308
      %v3313 = vmul.f32 %v3294, %v3308
      %v3314 = vmul.f32 %v3295, %v3308
      %v3315 = vmul.f32 %v3296, %v3308
      %v3316 = vmul.f32 %v3297, %v3308
      %v3317 = vmul.f32 %v3298, %v3308
      %v3318 = vmul.f32 %v3299, %v3308
      %v3319 = vmul.f32 %v3300, %v3308
      %v3320 = vmul.f32 %v3301, %v3308
      %v3321 = vmul.f32 %v3302, %v3308
      %v3322 = vmul.f32 %v3303, %v3308
      %v3323 = vmul.f32 %v3304, %v3308
      %v3324 = vmul.f32 %v3305, %v3308
      %v3325 = vmul.f32 %v3306, %v3308
      %v3327 = vperm.slane %v2947, 0
      %v3329 = vadd.f32 %v3310, %v3327
      %v3330 = vadd.f32 %v3311, %v3327
      %v3331 = vadd.f32 %v3312, %v3327
      %v3332 = vadd.f32 %v3313, %v3327
      %v3333 = vadd.f32 %v3314, %v3327
      %v3334 = vadd.f32 %v3315, %v3327
      %v3335 = vadd.f32 %v3316, %v3327
      %v3336 = vadd.f32 %v3317, %v3327
      %v3337 = vadd.f32 %v3318, %v3327
      %v3338 = vadd.f32 %v3319, %v3327
      %v3339 = vadd.f32 %v3320, %v3327
      %v3340 = vadd.f32 %v3321, %v3327
      %v3341 = vadd.f32 %v3322, %v3327
      %v3342 = vadd.f32 %v3323, %v3327
      %v3343 = vadd.f32 %v3324, %v3327
      %v3344 = vadd.f32 %v3325, %v3327
      %v3345 = vpack.c.bf16 %v3330, %v3329
      %v3346 = vpack.c.bf16 %v3332, %v3331
      %v3347 = vpack.c.bf16 %v3334, %v3333
      %v3348 = vpack.c.bf16 %v3336, %v3335
      %v3349 = vpack.c.bf16 %v3338, %v3337
      %v3350 = vpack.c.bf16 %v3340, %v3339
      %v3351 = vpack.c.bf16 %v3342, %v3341
      %v3352 = vpack.c.bf16 %v3344, %v3343
      %v3353 = vld [vmem:[%s11] sm:$0xff]
      %v3354 = vld [vmem:[%s11 + $0x40] sm:$0xff]
      %v3355 = vld [vmem:[%s11 + $0x80] sm:$0xff]
      %v3356 = vld [vmem:[%s11 + $0xc0] sm:$0xff]
      %v3357 = vld [vmem:[%s11 + $0x100] sm:$0xff]
      %v3358 = vld [vmem:[%s11 + $0x140] sm:$0xff]
      %v3359 = vld [vmem:[%s11 + $0x180] sm:$0xff]
      %v3360 = vld [vmem:[%s11 + $0x1c0] sm:$0xff]
      %v3361 = vld [vmem:[%s12] sm:$0x3]
      %v3363 = vperm.slane %v3361, 0
      %v3364 = vperm.slane %v3361, 1
      %v3375 = vunpack.c.l.b16 %v3353
      %v3376 = vunpack.c.h.b16 %v3353
      %v3377 = vunpack.c.l.b16 %v3354
      %v3378 = vunpack.c.h.b16 %v3354
      %v3379 = vunpack.c.l.b16 %v3355
      %v3380 = vunpack.c.h.b16 %v3355
      %v3381 = vunpack.c.l.b16 %v3356
      %v3382 = vunpack.c.h.b16 %v3356
      %v3383 = vunpack.c.l.b16 %v3357
      %v3384 = vunpack.c.h.b16 %v3357
      %v3385 = vunpack.c.l.b16 %v3358
      %v3386 = vunpack.c.h.b16 %v3358
      %v3387 = vunpack.c.l.b16 %v3359
      %v3388 = vunpack.c.h.b16 %v3359
      %v3389 = vunpack.c.l.b16 %v3360
      %v3390 = vunpack.c.h.b16 %v3360
      %v3391 = vpack.c.b16 %v3377, %v3375
      %v3392 = vpack.c.b16 %v3378, %v3376
      %v3393 = vpack.c.b16 %v3381, %v3379
      %v3394 = vpack.c.b16 %v3382, %v3380
      %v3395 = vpack.c.b16 %v3385, %v3383
      %v3396 = vpack.c.b16 %v3386, %v3384
      %v3397 = vpack.c.b16 %v3389, %v3387
      %v3398 = vpack.c.b16 %v3390, %v3388
      %v3408 = vsel %vm593, %v3345, 0
      %v3411 = vsel %vm593, %v3346, 0
      %v3414 = vsel %vm593, %v3347, 0
      %v3417 = vsel %vm593, %v3348, 0
      %v3420 = vsel %vm593, %v3349, 0
      %v3423 = vsel %vm593, %v3350, 0
      %v3426 = vsel %vm593, %v3351, 0
      %v3429 = vsel %vm593, %v3352, 0
      %3431 = vmatpush.bf16.msra.mxu0 0
      %3432 = vmatpush.bf16.msra.mxu0 0
      %3433 = vmatpush.bf16.msra.mxu0 0
      %3434 = vmatpush.bf16.msra.mxu0 0
      %3435 = vmatpush.bf16.msra.mxu0 %v3397
      %3436 = vmatpush.bf16.msra.mxu0 %v3395
      %3437 = vmatpush.bf16.msra.mxu0 %v3393
      %3438 = vmatpush.bf16.msra.mxu0 %v3391
      %3439 = vmatmul.bf16.gmra.mxu0 %v3408
      %v3440 = vpop.f32.mrf.mxu0
      %v3441 = vadd.f32 %v3363, %v3440
      %v3442 = vpop.f32.mrf.mxu0
      %v3443 = vadd.f32 %v3363, %v3442
      %3444 = vmatmul.bf16.gmra.mxu0 %v3411
      %v3445 = vpop.f32.mrf.mxu0
      %v3446 = vadd.f32 %v3363, %v3445
      %v3447 = vpop.f32.mrf.mxu0
      %v3448 = vadd.f32 %v3363, %v3447
      %3449 = vmatmul.bf16.gmra.mxu0 %v3414
      %v3450 = vpop.f32.mrf.mxu0
      %v3451 = vadd.f32 %v3363, %v3450
      %v3452 = vpop.f32.mrf.mxu0
      %v3453 = vadd.f32 %v3363, %v3452
      %3454 = vmatmul.bf16.gmra.mxu0 %v3417
      %v3455 = vpop.f32.mrf.mxu0
      %v3456 = vadd.f32 %v3363, %v3455
      %v3457 = vpop.f32.mrf.mxu0
      %v3458 = vadd.f32 %v3363, %v3457
      %3459 = vmatmul.bf16.gmra.mxu0 %v3420
      %v3460 = vpop.f32.mrf.mxu0
      %v3461 = vadd.f32 %v3363, %v3460
      %v3462 = vpop.f32.mrf.mxu0
      %v3463 = vadd.f32 %v3363, %v3462
      %3464 = vmatmul.bf16.gmra.mxu0 %v3423
      %v3465 = vpop.f32.mrf.mxu0
      %v3466 = vadd.f32 %v3363, %v3465
      %v3467 = vpop.f32.mrf.mxu0
      %v3468 = vadd.f32 %v3363, %v3467
      %3469 = vmatmul.bf16.gmra.mxu0 %v3426
      %v3470 = vpop.f32.mrf.mxu0
      %v3471 = vadd.f32 %v3363, %v3470
      %v3472 = vpop.f32.mrf.mxu0
      %v3473 = vadd.f32 %v3363, %v3472
      %3474 = vmatmul.bf16.gmra.mxu0 %v3429
      %v3475 = vpop.f32.mrf.mxu0
      %v3476 = vadd.f32 %v3363, %v3475
      %v3477 = vpop.f32.mrf.mxu0
      %v3478 = vadd.f32 %v3363, %v3477
      %3479 = vdwg.mxu0
      %3480 = vmatpush.bf16.msra.mxu0 0
      %3481 = vmatpush.bf16.msra.mxu0 0
      %3482 = vmatpush.bf16.msra.mxu0 0
      %3483 = vmatpush.bf16.msra.mxu0 0
      %3484 = vmatpush.bf16.msra.mxu0 %v3398
      %3485 = vmatpush.bf16.msra.mxu0 %v3396
      %3486 = vmatpush.bf16.msra.mxu0 %v3394
      %3487 = vmatpush.bf16.msra.mxu0 %v3392
      %3488 = vmatmul.bf16.gmra.mxu0 %v3408
      %v3489 = vpop.f32.mrf.mxu0
      %v3490 = vadd.f32 %v3364, %v3489
      %v3491 = vpop.f32.mrf.mxu0
      %v3492 = vadd.f32 %v3364, %v3491
      %3493 = vmatmul.bf16.gmra.mxu0 %v3411
      %v3494 = vpop.f32.mrf.mxu0
      %v3495 = vadd.f32 %v3364, %v3494
      %v3496 = vpop.f32.mrf.mxu0
      %v3497 = vadd.f32 %v3364, %v3496
      %3498 = vmatmul.bf16.gmra.mxu0 %v3414
      %v3499 = vpop.f32.mrf.mxu0
      %v3500 = vadd.f32 %v3364, %v3499
      %v3501 = vpop.f32.mrf.mxu0
      %v3502 = vadd.f32 %v3364, %v3501
      %3503 = vmatmul.bf16.gmra.mxu0 %v3417
      %v3504 = vpop.f32.mrf.mxu0
      %v3505 = vadd.f32 %v3364, %v3504
      %v3506 = vpop.f32.mrf.mxu0
      %v3507 = vadd.f32 %v3364, %v3506
      %3508 = vmatmul.bf16.gmra.mxu0 %v3420
      %v3509 = vpop.f32.mrf.mxu0
      %v3510 = vadd.f32 %v3364, %v3509
      %v3511 = vpop.f32.mrf.mxu0
      %v3512 = vadd.f32 %v3364, %v3511
      %3513 = vmatmul.bf16.gmra.mxu0 %v3423
      %v3514 = vpop.f32.mrf.mxu0
      %v3515 = vadd.f32 %v3364, %v3514
      %v3516 = vpop.f32.mrf.mxu0
      %v3517 = vadd.f32 %v3364, %v3516
      %3518 = vmatmul.bf16.gmra.mxu0 %v3426
      %v3519 = vpop.f32.mrf.mxu0
      %v3520 = vadd.f32 %v3364, %v3519
      %v3521 = vpop.f32.mrf.mxu0
      %v3522 = vadd.f32 %v3364, %v3521
      %3523 = vmatmul.bf16.gmra.mxu0 %v3429
      %v3524 = vpop.f32.mrf.mxu0
      %v3525 = vadd.f32 %v3364, %v3524
      %v3526 = vpop.f32.mrf.mxu0
      %v3527 = vadd.f32 %v3364, %v3526
      %3528 = vdwg.mxu0
      %v3529 = vmax.f32 %v3441, 0.0
      %v3530 = vmax.f32 %v3490, 0.0
      %v3531 = vmax.f32 %v3443, 0.0
      %v3532 = vmax.f32 %v3492, 0.0
      %v3533 = vmax.f32 %v3446, 0.0
      %v3534 = vmax.f32 %v3495, 0.0
      %v3535 = vmax.f32 %v3448, 0.0
      %v3536 = vmax.f32 %v3497, 0.0
      %v3537 = vmax.f32 %v3451, 0.0
      %v3538 = vmax.f32 %v3500, 0.0
      %v3539 = vmax.f32 %v3453, 0.0
      %v3540 = vmax.f32 %v3502, 0.0
      %v3541 = vmax.f32 %v3456, 0.0
      %v3542 = vmax.f32 %v3505, 0.0
      %v3543 = vmax.f32 %v3458, 0.0
      %v3544 = vmax.f32 %v3507, 0.0
      %v3545 = vmax.f32 %v3461, 0.0
      %v3546 = vmax.f32 %v3510, 0.0
      %v3547 = vmax.f32 %v3463, 0.0
      %v3548 = vmax.f32 %v3512, 0.0
      %v3549 = vmax.f32 %v3466, 0.0
      %v3550 = vmax.f32 %v3515, 0.0
      %v3551 = vmax.f32 %v3468, 0.0
      %v3552 = vmax.f32 %v3517, 0.0
      %v3553 = vmax.f32 %v3471, 0.0
      %v3554 = vmax.f32 %v3520, 0.0
      %v3555 = vmax.f32 %v3473, 0.0
      %v3556 = vmax.f32 %v3522, 0.0
      %v3557 = vmax.f32 %v3476, 0.0
      %v3558 = vmax.f32 %v3525, 0.0
      %v3559 = vmax.f32 %v3478, 0.0
      %v3560 = vmax.f32 %v3527, 0.0
      %v3561 = vpack.c.bf16 %v3531, %v3529
      %v3562 = vpack.c.bf16 %v3532, %v3530
      %v3563 = vpack.c.bf16 %v3535, %v3533
      %v3564 = vpack.c.bf16 %v3536, %v3534
      %v3565 = vpack.c.bf16 %v3539, %v3537
      %v3566 = vpack.c.bf16 %v3540, %v3538
      %v3567 = vpack.c.bf16 %v3543, %v3541
      %v3568 = vpack.c.bf16 %v3544, %v3542
      %v3569 = vpack.c.bf16 %v3547, %v3545
      %v3570 = vpack.c.bf16 %v3548, %v3546
      %v3571 = vpack.c.bf16 %v3551, %v3549
      %v3572 = vpack.c.bf16 %v3552, %v3550
      %v3573 = vpack.c.bf16 %v3555, %v3553
      %v3574 = vpack.c.bf16 %v3556, %v3554
      %v3575 = vpack.c.bf16 %v3559, %v3557
      %v3576 = vpack.c.bf16 %v3560, %v3558
      %v3577 = vld [vmem:[%s13] sm:$0xf]
      %v3578 = vld [vmem:[%s13 + $0x4] sm:$0xf]
      %v3579 = vld [vmem:[%s13 + $0x8] sm:$0xf]
      %v3580 = vld [vmem:[%s13 + $0xc] sm:$0xf]
      %v3581 = vld [vmem:[%s13 + $0x10] sm:$0xf]
      %v3582 = vld [vmem:[%s13 + $0x14] sm:$0xf]
      %v3583 = vld [vmem:[%s13 + $0x18] sm:$0xf]
      %v3584 = vld [vmem:[%s13 + $0x1c] sm:$0xf]
      %v3585 = vld [vmem:[%s13 + $0x20] sm:$0xf]
      %v3586 = vld [vmem:[%s13 + $0x24] sm:$0xf]
      %v3587 = vld [vmem:[%s13 + $0x28] sm:$0xf]
      %v3588 = vld [vmem:[%s13 + $0x2c] sm:$0xf]
      %v3589 = vld [vmem:[%s13 + $0x30] sm:$0xf]
      %v3590 = vld [vmem:[%s13 + $0x34] sm:$0xf]
      %v3591 = vld [vmem:[%s13 + $0x38] sm:$0xf]
      %v3592 = vld [vmem:[%s13 + $0x3c] sm:$0xf]
      %v3593 = vld [vmem:[%s13 + $0x40] sm:$0xf]
      %v3594 = vld [vmem:[%s13 + $0x44] sm:$0xf]
      %v3595 = vld [vmem:[%s13 + $0x48] sm:$0xf]
      %v3596 = vld [vmem:[%s13 + $0x4c] sm:$0xf]
      %v3597 = vld [vmem:[%s13 + $0x50] sm:$0xf]
      %v3598 = vld [vmem:[%s13 + $0x54] sm:$0xf]
      %v3599 = vld [vmem:[%s13 + $0x58] sm:$0xf]
      %v3600 = vld [vmem:[%s13 + $0x5c] sm:$0xf]
      %v3601 = vld [vmem:[%s13 + $0x60] sm:$0xf]
      %v3602 = vld [vmem:[%s13 + $0x64] sm:$0xf]
      %v3603 = vld [vmem:[%s13 + $0x68] sm:$0xf]
      %v3604 = vld [vmem:[%s13 + $0x6c] sm:$0xf]
      %v3605 = vld [vmem:[%s13 + $0x70] sm:$0xf]
      %v3606 = vld [vmem:[%s13 + $0x74] sm:$0xf]
      %v3607 = vld [vmem:[%s13 + $0x78] sm:$0xf]
      %v3608 = vld [vmem:[%s13 + $0x7c] sm:$0xf]
      %v3609 = vld [vmem:[%s11 + $0x8] sm:$0xff]
      %v3610 = vld [vmem:[%s11 + $0x48] sm:$0xff]
      %v3611 = vld [vmem:[%s11 + $0x88] sm:$0xff]
      %v3612 = vld [vmem:[%s11 + $0xc8] sm:$0xff]
      %v3613 = vld [vmem:[%s11 + $0x108] sm:$0xff]
      %v3614 = vld [vmem:[%s11 + $0x148] sm:$0xff]
      %v3615 = vld [vmem:[%s11 + $0x188] sm:$0xff]
      %v3616 = vld [vmem:[%s11 + $0x1c8] sm:$0xff]
      %v3617 = vld [vmem:[%s12 + $0x2] sm:$0x3]
      %v3619 = vperm.slane %v3617, 0
      %v3620 = vperm.slane %v3617, 1
      %v3631 = vunpack.c.l.b16 %v3609
      %v3632 = vunpack.c.h.b16 %v3609
      %v3633 = vunpack.c.l.b16 %v3610
      %v3634 = vunpack.c.h.b16 %v3610
      %v3635 = vunpack.c.l.b16 %v3611
      %v3636 = vunpack.c.h.b16 %v3611
      %v3637 = vunpack.c.l.b16 %v3612
      %v3638 = vunpack.c.h.b16 %v3612
      %v3639 = vunpack.c.l.b16 %v3613
      %v3640 = vunpack.c.h.b16 %v3613
      %v3641 = vunpack.c.l.b16 %v3614
      %v3642 = vunpack.c.h.b16 %v3614
      %v3643 = vunpack.c.l.b16 %v3615
      %v3644 = vunpack.c.h.b16 %v3615
      %v3645 = vunpack.c.l.b16 %v3616
      %v3646 = vunpack.c.h.b16 %v3616
      %v3647 = vpack.c.b16 %v3633, %v3631
      %v3648 = vpack.c.b16 %v3634, %v3632
      %v3649 = vpack.c.b16 %v3637, %v3635
      %v3650 = vpack.c.b16 %v3638, %v3636
      %v3651 = vpack.c.b16 %v3641, %v3639
      %v3652 = vpack.c.b16 %v3642, %v3640
      %v3653 = vpack.c.b16 %v3645, %v3643
      %v3654 = vpack.c.b16 %v3646, %v3644
      %3663 = vmatpush.bf16.msra.mxu0 0
      %3664 = vmatpush.bf16.msra.mxu0 0
      %3665 = vmatpush.bf16.msra.mxu0 0
      %3666 = vmatpush.bf16.msra.mxu0 0
      %3667 = vmatpush.bf16.msra.mxu0 %v3653
      %3668 = vmatpush.bf16.msra.mxu0 %v3651
      %3669 = vmatpush.bf16.msra.mxu0 %v3649
      %3670 = vmatpush.bf16.msra.mxu0 %v3647
      %3671 = vmatmul.bf16.gmra.mxu0 %v3408
      %v3672 = vpop.f32.mrf.mxu0
      %v3673 = vadd.f32 %v3619, %v3672
      %v3674 = vpop.f32.mrf.mxu0
      %v3675 = vadd.f32 %v3619, %v3674
      %3676 = vmatmul.bf16.gmra.mxu0 %v3411
      %v3677 = vpop.f32.mrf.mxu0
      %v3678 = vadd.f32 %v3619, %v3677
      %v3679 = vpop.f32.mrf.mxu0
      %v3680 = vadd.f32 %v3619, %v3679
      %3681 = vmatmul.bf16.gmra.mxu0 %v3414
      %v3682 = vpop.f32.mrf.mxu0
      %v3683 = vadd.f32 %v3619, %v3682
      %v3684 = vpop.f32.mrf.mxu0
      %v3685 = vadd.f32 %v3619, %v3684
      %3686 = vmatmul.bf16.gmra.mxu0 %v3417
      %v3687 = vpop.f32.mrf.mxu0
      %v3688 = vadd.f32 %v3619, %v3687
      %v3689 = vpop.f32.mrf.mxu0
      %v3690 = vadd.f32 %v3619, %v3689
      %3691 = vmatmul.bf16.gmra.mxu0 %v3420
      %v3692 = vpop.f32.mrf.mxu0
      %v3693 = vadd.f32 %v3619, %v3692
      %v3694 = vpop.f32.mrf.mxu0
      %v3695 = vadd.f32 %v3619, %v3694
      %3696 = vmatmul.bf16.gmra.mxu0 %v3423
      %v3697 = vpop.f32.mrf.mxu0
      %v3698 = vadd.f32 %v3619, %v3697
      %v3699 = vpop.f32.mrf.mxu0
      %v3700 = vadd.f32 %v3619, %v3699
      %3701 = vmatmul.bf16.gmra.mxu0 %v3426
      %v3702 = vpop.f32.mrf.mxu0
      %v3703 = vadd.f32 %v3619, %v3702
      %v3704 = vpop.f32.mrf.mxu0
      %v3705 = vadd.f32 %v3619, %v3704
      %3706 = vmatmul.bf16.gmra.mxu0 %v3429
      %v3707 = vpop.f32.mrf.mxu0
      %v3708 = vadd.f32 %v3619, %v3707
      %v3709 = vpop.f32.mrf.mxu0
      %v3710 = vadd.f32 %v3619, %v3709
      %3711 = vdwg.mxu0
      %3712 = vmatpush.bf16.msra.mxu0 0
      %3713 = vmatpush.bf16.msra.mxu0 0
      %3714 = vmatpush.bf16.msra.mxu0 0
      %3715 = vmatpush.bf16.msra.mxu0 0
      %3716 = vmatpush.bf16.msra.mxu0 %v3654
      %3717 = vmatpush.bf16.msra.mxu0 %v3652
      %3718 = vmatpush.bf16.msra.mxu0 %v3650
      %3719 = vmatpush.bf16.msra.mxu0 %v3648
      %3720 = vmatmul.bf16.gmra.mxu0 %v3408
      %v3721 = vpop.f32.mrf.mxu0
      %v3722 = vadd.f32 %v3620, %v3721
      %v3723 = vpop.f32.mrf.mxu0
      %v3724 = vadd.f32 %v3620, %v3723
      %3725 = vmatmul.bf16.gmra.mxu0 %v3411
      %v3726 = vpop.f32.mrf.mxu0
      %v3727 = vadd.f32 %v3620, %v3726
      %v3728 = vpop.f32.mrf.mxu0
      %v3729 = vadd.f32 %v3620, %v3728
      %3730 = vmatmul.bf16.gmra.mxu0 %v3414
      %v3731 = vpop.f32.mrf.mxu0
      %v3732 = vadd.f32 %v3620, %v3731
      %v3733 = vpop.f32.mrf.mxu0
      %v3734 = vadd.f32 %v3620, %v3733
      %3735 = vmatmul.bf16.gmra.mxu0 %v3417
      %v3736 = vpop.f32.mrf.mxu0
      %v3737 = vadd.f32 %v3620, %v3736
      %v3738 = vpop.f32.mrf.mxu0
      %v3739 = vadd.f32 %v3620, %v3738
      %3740 = vmatmul.bf16.gmra.mxu0 %v3420
      %v3741 = vpop.f32.mrf.mxu0
      %v3742 = vadd.f32 %v3620, %v3741
      %v3743 = vpop.f32.mrf.mxu0
      %v3744 = vadd.f32 %v3620, %v3743
      %3745 = vmatmul.bf16.gmra.mxu0 %v3423
      %v3746 = vpop.f32.mrf.mxu0
      %v3747 = vadd.f32 %v3620, %v3746
      %v3748 = vpop.f32.mrf.mxu0
      %v3749 = vadd.f32 %v3620, %v3748
      %3750 = vmatmul.bf16.gmra.mxu0 %v3426
      %v3751 = vpop.f32.mrf.mxu0
      %v3752 = vadd.f32 %v3620, %v3751
      %v3753 = vpop.f32.mrf.mxu0
      %v3754 = vadd.f32 %v3620, %v3753
      %3755 = vmatmul.bf16.gmra.mxu0 %v3429
      %v3756 = vpop.f32.mrf.mxu0
      %v3757 = vadd.f32 %v3620, %v3756
      %v3758 = vpop.f32.mrf.mxu0
      %v3759 = vadd.f32 %v3620, %v3758
      %3760 = vdwg.mxu0
      %v3761 = vmax.f32 %v3673, 0.0
      %v3762 = vmax.f32 %v3722, 0.0
      %v3763 = vmax.f32 %v3675, 0.0
      %v3764 = vmax.f32 %v3724, 0.0
      %v3765 = vmax.f32 %v3678, 0.0
      %v3766 = vmax.f32 %v3727, 0.0
      %v3767 = vmax.f32 %v3680, 0.0
      %v3768 = vmax.f32 %v3729, 0.0
      %v3769 = vmax.f32 %v3683, 0.0
      %v3770 = vmax.f32 %v3732, 0.0
      %v3771 = vmax.f32 %v3685, 0.0
      %v3772 = vmax.f32 %v3734, 0.0
      %v3773 = vmax.f32 %v3688, 0.0
      %v3774 = vmax.f32 %v3737, 0.0
      %v3775 = vmax.f32 %v3690, 0.0
      %v3776 = vmax.f32 %v3739, 0.0
      %v3777 = vmax.f32 %v3693, 0.0
      %v3778 = vmax.f32 %v3742, 0.0
      %v3779 = vmax.f32 %v3695, 0.0
      %v3780 = vmax.f32 %v3744, 0.0
      %v3781 = vmax.f32 %v3698, 0.0
      %v3782 = vmax.f32 %v3747, 0.0
      %v3783 = vmax.f32 %v3700, 0.0
      %v3784 = vmax.f32 %v3749, 0.0
      %v3785 = vmax.f32 %v3703, 0.0
      %v3786 = vmax.f32 %v3752, 0.0
      %v3787 = vmax.f32 %v3705, 0.0
      %v3788 = vmax.f32 %v3754, 0.0
      %v3789 = vmax.f32 %v3708, 0.0
      %v3790 = vmax.f32 %v3757, 0.0
      %v3791 = vmax.f32 %v3710, 0.0
      %v3792 = vmax.f32 %v3759, 0.0
      %v3793 = vpack.c.bf16 %v3763, %v3761
      %v3794 = vpack.c.bf16 %v3764, %v3762
      %v3795 = vpack.c.bf16 %v3767, %v3765
      %v3796 = vpack.c.bf16 %v3768, %v3766
      %v3797 = vpack.c.bf16 %v3771, %v3769
      %v3798 = vpack.c.bf16 %v3772, %v3770
      %v3799 = vpack.c.bf16 %v3775, %v3773
      %v3800 = vpack.c.bf16 %v3776, %v3774
      %v3801 = vpack.c.bf16 %v3779, %v3777
      %v3802 = vpack.c.bf16 %v3780, %v3778
      %v3803 = vpack.c.bf16 %v3783, %v3781
      %v3804 = vpack.c.bf16 %v3784, %v3782
      %v3805 = vpack.c.bf16 %v3787, %v3785
      %v3806 = vpack.c.bf16 %v3788, %v3786
      %v3807 = vpack.c.bf16 %v3791, %v3789
      %v3808 = vpack.c.bf16 %v3792, %v3790
      %v3809 = vld [vmem:[%s13 + $0x80] sm:$0xf]
      %v3810 = vld [vmem:[%s13 + $0x84] sm:$0xf]
      %v3811 = vld [vmem:[%s13 + $0x88] sm:$0xf]
      %v3812 = vld [vmem:[%s13 + $0x8c] sm:$0xf]
      %v3813 = vld [vmem:[%s13 + $0x90] sm:$0xf]
      %v3814 = vld [vmem:[%s13 + $0x94] sm:$0xf]
      %v3815 = vld [vmem:[%s13 + $0x98] sm:$0xf]
      %v3816 = vld [vmem:[%s13 + $0x9c] sm:$0xf]
      %v3817 = vld [vmem:[%s13 + $0xa0] sm:$0xf]
      %v3818 = vld [vmem:[%s13 + $0xa4] sm:$0xf]
      %v3819 = vld [vmem:[%s13 + $0xa8] sm:$0xf]
      %v3820 = vld [vmem:[%s13 + $0xac] sm:$0xf]
      %v3821 = vld [vmem:[%s13 + $0xb0] sm:$0xf]
      %v3822 = vld [vmem:[%s13 + $0xb4] sm:$0xf]
      %v3823 = vld [vmem:[%s13 + $0xb8] sm:$0xf]
      %v3824 = vld [vmem:[%s13 + $0xbc] sm:$0xf]
      %v3825 = vld [vmem:[%s13 + $0xc0] sm:$0xf]
      %v3826 = vld [vmem:[%s13 + $0xc4] sm:$0xf]
      %v3827 = vld [vmem:[%s13 + $0xc8] sm:$0xf]
      %v3828 = vld [vmem:[%s13 + $0xcc] sm:$0xf]
      %v3829 = vld [vmem:[%s13 + $0xd0] sm:$0xf]
      %v3830 = vld [vmem:[%s13 + $0xd4] sm:$0xf]
      %v3831 = vld [vmem:[%s13 + $0xd8] sm:$0xf]
      %v3832 = vld [vmem:[%s13 + $0xdc] sm:$0xf]
      %v3833 = vld [vmem:[%s13 + $0xe0] sm:$0xf]
      %v3834 = vld [vmem:[%s13 + $0xe4] sm:$0xf]
      %v3835 = vld [vmem:[%s13 + $0xe8] sm:$0xf]
      %v3836 = vld [vmem:[%s13 + $0xec] sm:$0xf]
      %v3837 = vld [vmem:[%s13 + $0xf0] sm:$0xf]
      %v3838 = vld [vmem:[%s13 + $0xf4] sm:$0xf]
      %v3839 = vld [vmem:[%s13 + $0xf8] sm:$0xf]
      %v3840 = vld [vmem:[%s13 + $0xfc] sm:$0xf]
      %v3873 = vunpack.c.l.b16 %v3809
      %v3874 = vunpack.c.l.b16 %v3810
      %v3875 = vunpack.c.l.b16 %v3811
      %v3876 = vunpack.c.l.b16 %v3812
      %v3877 = vunpack.c.l.b16 %v3813
      %v3878 = vunpack.c.l.b16 %v3814
      %v3879 = vunpack.c.l.b16 %v3815
      %v3880 = vunpack.c.l.b16 %v3816
      %v3881 = vunpack.c.l.b16 %v3817
      %v3882 = vunpack.c.l.b16 %v3818
      %v3883 = vunpack.c.l.b16 %v3819
      %v3884 = vunpack.c.l.b16 %v3820
      %v3885 = vunpack.c.l.b16 %v3821
      %v3886 = vunpack.c.l.b16 %v3822
      %v3887 = vunpack.c.l.b16 %v3823
      %v3888 = vunpack.c.l.b16 %v3824
      %v3889 = vunpack.c.l.b16 %v3825
      %v3890 = vunpack.c.l.b16 %v3826
      %v3891 = vunpack.c.l.b16 %v3827
      %v3892 = vunpack.c.l.b16 %v3828
      %v3893 = vunpack.c.l.b16 %v3829
      %v3894 = vunpack.c.l.b16 %v3830
      %v3895 = vunpack.c.l.b16 %v3831
      %v3896 = vunpack.c.l.b16 %v3832
      %v3897 = vunpack.c.l.b16 %v3833
      %v3898 = vunpack.c.l.b16 %v3834
      %v3899 = vunpack.c.l.b16 %v3835
      %v3900 = vunpack.c.l.b16 %v3836
      %v3901 = vunpack.c.l.b16 %v3837
      %v3902 = vunpack.c.l.b16 %v3838
      %v3903 = vunpack.c.l.b16 %v3839
      %v3904 = vunpack.c.l.b16 %v3840
      %v3905 = vpack.c.b16 %v3874, %v3873
      %v3906 = vpack.c.b16 %v3876, %v3875
      %v3907 = vpack.c.b16 %v3878, %v3877
      %v3908 = vpack.c.b16 %v3880, %v3879
      %v3909 = vpack.c.b16 %v3882, %v3881
      %v3910 = vpack.c.b16 %v3884, %v3883
      %v3911 = vpack.c.b16 %v3886, %v3885
      %v3912 = vpack.c.b16 %v3888, %v3887
      %v3913 = vpack.c.b16 %v3890, %v3889
      %v3914 = vpack.c.b16 %v3892, %v3891
      %v3915 = vpack.c.b16 %v3894, %v3893
      %v3916 = vpack.c.b16 %v3896, %v3895
      %v3917 = vpack.c.b16 %v3898, %v3897
      %v3918 = vpack.c.b16 %v3900, %v3899
      %v3919 = vpack.c.b16 %v3902, %v3901
      %v3920 = vpack.c.b16 %v3904, %v3903
      %3937 = vmatpush.bf16.msra.mxu0 %v3912
      %3938 = vmatpush.bf16.msra.mxu0 %v3911
      %3939 = vmatpush.bf16.msra.mxu0 %v3910
      %3940 = vmatpush.bf16.msra.mxu0 %v3909
      %3941 = vmatpush.bf16.msra.mxu0 %v3908
      %3942 = vmatpush.bf16.msra.mxu0 %v3907
      %3943 = vmatpush.bf16.msra.mxu0 %v3906
      %3944 = vmatpush.bf16.msra.mxu0 %v3905
      %3945 = vmatmul.bf16.gmra.mxu0 %v3793
      %v3946 = vpop.f32.mrf.mxu0
      %v3947 = vadd.f32 0.0, %v3946
      %v3948 = vpop.f32.mrf.mxu0
      %v3949 = vadd.f32 0.0, %v3948
      %3950 = vmatmul.bf16.gmra.mxu0 %v3795
      %v3951 = vpop.f32.mrf.mxu0
      %v3952 = vadd.f32 0.0, %v3951
      %v3953 = vpop.f32.mrf.mxu0
      %v3954 = vadd.f32 0.0, %v3953
      %3955 = vmatmul.bf16.gmra.mxu0 %v3797
      %v3956 = vpop.f32.mrf.mxu0
      %v3957 = vadd.f32 0.0, %v3956
      %v3958 = vpop.f32.mrf.mxu0
      %v3959 = vadd.f32 0.0, %v3958
      %3960 = vmatmul.bf16.gmra.mxu0 %v3799
      %v3961 = vpop.f32.mrf.mxu0
      %v3962 = vadd.f32 0.0, %v3961
      %v3963 = vpop.f32.mrf.mxu0
      %v3964 = vadd.f32 0.0, %v3963
      %3965 = vmatmul.bf16.gmra.mxu0 %v3801
      %v3966 = vpop.f32.mrf.mxu0
      %v3967 = vadd.f32 0.0, %v3966
      %v3968 = vpop.f32.mrf.mxu0
      %v3969 = vadd.f32 0.0, %v3968
      %3970 = vmatmul.bf16.gmra.mxu0 %v3803
      %v3971 = vpop.f32.mrf.mxu0
      %v3972 = vadd.f32 0.0, %v3971
      %v3973 = vpop.f32.mrf.mxu0
      %v3974 = vadd.f32 0.0, %v3973
      %3975 = vmatmul.bf16.gmra.mxu0 %v3805
      %v3976 = vpop.f32.mrf.mxu0
      %v3977 = vadd.f32 0.0, %v3976
      %v3978 = vpop.f32.mrf.mxu0
      %v3979 = vadd.f32 0.0, %v3978
      %3980 = vmatmul.bf16.gmra.mxu0 %v3807
      %v3981 = vpop.f32.mrf.mxu0
      %v3982 = vadd.f32 0.0, %v3981
      %v3983 = vpop.f32.mrf.mxu0
      %v3984 = vadd.f32 0.0, %v3983
      %3985 = vdwg.mxu0
      %3986 = vmatpush.bf16.msra.mxu0 %v3920
      %3987 = vmatpush.bf16.msra.mxu0 %v3919
      %3988 = vmatpush.bf16.msra.mxu0 %v3918
      %3989 = vmatpush.bf16.msra.mxu0 %v3917
      %3990 = vmatpush.bf16.msra.mxu0 %v3916
      %3991 = vmatpush.bf16.msra.mxu0 %v3915
      %3992 = vmatpush.bf16.msra.mxu0 %v3914
      %3993 = vmatpush.bf16.msra.mxu0 %v3913
      %3994 = vmatmul.bf16.gmra.mxu0 %v3794
      %v3995 = vpop.f32.mrf.mxu0
      %v3996 = vadd.f32 %v3947, %v3995
      %v3997 = vpop.f32.mrf.mxu0
      %v3998 = vadd.f32 %v3949, %v3997
      %3999 = vmatmul.bf16.gmra.mxu0 %v3796
      %v4000 = vpop.f32.mrf.mxu0
      %v4001 = vadd.f32 %v3952, %v4000
      %v4002 = vpop.f32.mrf.mxu0
      %v4003 = vadd.f32 %v3954, %v4002
      %4004 = vmatmul.bf16.gmra.mxu0 %v3798
      %v4005 = vpop.f32.mrf.mxu0
      %v4006 = vadd.f32 %v3957, %v4005
      %v4007 = vpop.f32.mrf.mxu0
      %v4008 = vadd.f32 %v3959, %v4007
      %4009 = vmatmul.bf16.gmra.mxu0 %v3800
      %v4010 = vpop.f32.mrf.mxu0
      %v4011 = vadd.f32 %v3962, %v4010
      %v4012 = vpop.f32.mrf.mxu0
      %v4013 = vadd.f32 %v3964, %v4012
      %4014 = vmatmul.bf16.gmra.mxu0 %v3802
      %v4015 = vpop.f32.mrf.mxu0
      %v4016 = vadd.f32 %v3967, %v4015
      %v4017 = vpop.f32.mrf.mxu0
      %v4018 = vadd.f32 %v3969, %v4017
      %4019 = vmatmul.bf16.gmra.mxu0 %v3804
      %v4020 = vpop.f32.mrf.mxu0
      %v4021 = vadd.f32 %v3972, %v4020
      %v4022 = vpop.f32.mrf.mxu0
      %v4023 = vadd.f32 %v3974, %v4022
      %4024 = vmatmul.bf16.gmra.mxu0 %v3806
      %v4025 = vpop.f32.mrf.mxu0
      %v4026 = vadd.f32 %v3977, %v4025
      %v4027 = vpop.f32.mrf.mxu0
      %v4028 = vadd.f32 %v3979, %v4027
      %4029 = vmatmul.bf16.gmra.mxu0 %v3808
      %v4030 = vpop.f32.mrf.mxu0
      %v4031 = vadd.f32 %v3982, %v4030
      %v4032 = vpop.f32.mrf.mxu0
      %v4033 = vadd.f32 %v3984, %v4032
      %4034 = vdwg.mxu0
      %v4067 = vunpack.c.l.b16 %v3577
      %v4068 = vunpack.c.l.b16 %v3578
      %v4069 = vunpack.c.l.b16 %v3579
      %v4070 = vunpack.c.l.b16 %v3580
      %v4071 = vunpack.c.l.b16 %v3581
      %v4072 = vunpack.c.l.b16 %v3582
      %v4073 = vunpack.c.l.b16 %v3583
      %v4074 = vunpack.c.l.b16 %v3584
      %v4075 = vunpack.c.l.b16 %v3585
      %v4076 = vunpack.c.l.b16 %v3586
      %v4077 = vunpack.c.l.b16 %v3587
      %v4078 = vunpack.c.l.b16 %v3588
      %v4079 = vunpack.c.l.b16 %v3589
      %v4080 = vunpack.c.l.b16 %v3590
      %v4081 = vunpack.c.l.b16 %v3591
      %v4082 = vunpack.c.l.b16 %v3592
      %v4083 = vunpack.c.l.b16 %v3593
      %v4084 = vunpack.c.l.b16 %v3594
      %v4085 = vunpack.c.l.b16 %v3595
      %v4086 = vunpack.c.l.b16 %v3596
      %v4087 = vunpack.c.l.b16 %v3597
      %v4088 = vunpack.c.l.b16 %v3598
      %v4089 = vunpack.c.l.b16 %v3599
      %v4090 = vunpack.c.l.b16 %v3600
      %v4091 = vunpack.c.l.b16 %v3601
      %v4092 = vunpack.c.l.b16 %v3602
      %v4093 = vunpack.c.l.b16 %v3603
      %v4094 = vunpack.c.l.b16 %v3604
      %v4095 = vunpack.c.l.b16 %v3605
      %v4096 = vunpack.c.l.b16 %v3606
      %v4097 = vunpack.c.l.b16 %v3607
      %v4098 = vunpack.c.l.b16 %v3608
      %v4099 = vpack.c.b16 %v4068, %v4067
      %v4100 = vpack.c.b16 %v4070, %v4069
      %v4101 = vpack.c.b16 %v4072, %v4071
      %v4102 = vpack.c.b16 %v4074, %v4073
      %v4103 = vpack.c.b16 %v4076, %v4075
      %v4104 = vpack.c.b16 %v4078, %v4077
      %v4105 = vpack.c.b16 %v4080, %v4079
      %v4106 = vpack.c.b16 %v4082, %v4081
      %v4107 = vpack.c.b16 %v4084, %v4083
      %v4108 = vpack.c.b16 %v4086, %v4085
      %v4109 = vpack.c.b16 %v4088, %v4087
      %v4110 = vpack.c.b16 %v4090, %v4089
      %v4111 = vpack.c.b16 %v4092, %v4091
      %v4112 = vpack.c.b16 %v4094, %v4093
      %v4113 = vpack.c.b16 %v4096, %v4095
      %v4114 = vpack.c.b16 %v4098, %v4097
      %4131 = vmatpush.bf16.msra.mxu0 %v4106
      %4132 = vmatpush.bf16.msra.mxu0 %v4105
      %4133 = vmatpush.bf16.msra.mxu0 %v4104
      %4134 = vmatpush.bf16.msra.mxu0 %v4103
      %4135 = vmatpush.bf16.msra.mxu0 %v4102
      %4136 = vmatpush.bf16.msra.mxu0 %v4101
      %4137 = vmatpush.bf16.msra.mxu0 %v4100
      %4138 = vmatpush.bf16.msra.mxu0 %v4099
      %4139 = vmatmul.bf16.gmra.mxu0 %v3561
      %v4140 = vpop.f32.mrf.mxu0
      %v4141 = vadd.f32 %v3996, %v4140
      %v4142 = vpop.f32.mrf.mxu0
      %v4143 = vadd.f32 %v3998, %v4142
      %4144 = vmatmul.bf16.gmra.mxu0 %v3563
      %v4145 = vpop.f32.mrf.mxu0
      %v4146 = vadd.f32 %v4001, %v4145
      %v4147 = vpop.f32.mrf.mxu0
      %v4148 = vadd.f32 %v4003, %v4147
      %4149 = vmatmul.bf16.gmra.mxu0 %v3565
      %v4150 = vpop.f32.mrf.mxu0
      %v4151 = vadd.f32 %v4006, %v4150
      %v4152 = vpop.f32.mrf.mxu0
      %v4153 = vadd.f32 %v4008, %v4152
      %4154 = vmatmul.bf16.gmra.mxu0 %v3567
      %v4155 = vpop.f32.mrf.mxu0
      %v4156 = vadd.f32 %v4011, %v4155
      %v4157 = vpop.f32.mrf.mxu0
      %v4158 = vadd.f32 %v4013, %v4157
      %4159 = vmatmul.bf16.gmra.mxu0 %v3569
      %v4160 = vpop.f32.mrf.mxu0
      %v4161 = vadd.f32 %v4016, %v4160
      %v4162 = vpop.f32.mrf.mxu0
      %v4163 = vadd.f32 %v4018, %v4162
      %4164 = vmatmul.bf16.gmra.mxu0 %v3571
      %v4165 = vpop.f32.mrf.mxu0
      %v4166 = vadd.f32 %v4021, %v4165
      %v4167 = vpop.f32.mrf.mxu0
      %v4168 = vadd.f32 %v4023, %v4167
      %4169 = vmatmul.bf16.gmra.mxu0 %v3573
      %v4170 = vpop.f32.mrf.mxu0
      %v4171 = vadd.f32 %v4026, %v4170
      %v4172 = vpop.f32.mrf.mxu0
      %v4173 = vadd.f32 %v4028, %v4172
      %4174 = vmatmul.bf16.gmra.mxu0 %v3575
      %v4175 = vpop.f32.mrf.mxu0
      %v4176 = vadd.f32 %v4031, %v4175
      %v4177 = vpop.f32.mrf.mxu0
      %v4178 = vadd.f32 %v4033, %v4177
      %4179 = vdwg.mxu0
      %4180 = vmatpush.bf16.msra.mxu0 %v4114
      %4181 = vmatpush.bf16.msra.mxu0 %v4113
      %4182 = vmatpush.bf16.msra.mxu0 %v4112
      %4183 = vmatpush.bf16.msra.mxu0 %v4111
      %4184 = vmatpush.bf16.msra.mxu0 %v4110
      %4185 = vmatpush.bf16.msra.mxu0 %v4109
      %4186 = vmatpush.bf16.msra.mxu0 %v4108
      %4187 = vmatpush.bf16.msra.mxu0 %v4107
      %4188 = vmatmul.bf16.gmra.mxu0 %v3562
      %v4189 = vpop.f32.mrf.mxu0
      %v4190 = vadd.f32 %v4141, %v4189
      %v4191 = vpop.f32.mrf.mxu0
      %v4192 = vadd.f32 %v4143, %v4191
      %4193 = vmatmul.bf16.gmra.mxu0 %v3564
      %v4194 = vpop.f32.mrf.mxu0
      %v4195 = vadd.f32 %v4146, %v4194
      %v4196 = vpop.f32.mrf.mxu0
      %v4197 = vadd.f32 %v4148, %v4196
      %4198 = vmatmul.bf16.gmra.mxu0 %v3566
      %v4199 = vpop.f32.mrf.mxu0
      %v4200 = vadd.f32 %v4151, %v4199
      %v4201 = vpop.f32.mrf.mxu0
      %v4202 = vadd.f32 %v4153, %v4201
      %4203 = vmatmul.bf16.gmra.mxu0 %v3568
      %v4204 = vpop.f32.mrf.mxu0
      %v4205 = vadd.f32 %v4156, %v4204
      %v4206 = vpop.f32.mrf.mxu0
      %v4207 = vadd.f32 %v4158, %v4206
      %4208 = vmatmul.bf16.gmra.mxu0 %v3570
      %v4209 = vpop.f32.mrf.mxu0
      %v4210 = vadd.f32 %v4161, %v4209
      %v4211 = vpop.f32.mrf.mxu0
      %v4212 = vadd.f32 %v4163, %v4211
      %4213 = vmatmul.bf16.gmra.mxu0 %v3572
      %v4214 = vpop.f32.mrf.mxu0
      %v4215 = vadd.f32 %v4166, %v4214
      %v4216 = vpop.f32.mrf.mxu0
      %v4217 = vadd.f32 %v4168, %v4216
      %4218 = vmatmul.bf16.gmra.mxu0 %v3574
      %v4219 = vpop.f32.mrf.mxu0
      %v4220 = vadd.f32 %v4171, %v4219
      %v4221 = vpop.f32.mrf.mxu0
      %v4222 = vadd.f32 %v4173, %v4221
      %4223 = vmatmul.bf16.gmra.mxu0 %v3576
      %v4224 = vpop.f32.mrf.mxu0
      %v4225 = vadd.f32 %v4176, %v4224
      %v4226 = vpop.f32.mrf.mxu0
      %v4227 = vadd.f32 %v4178, %v4226
      %4228 = vdwg.mxu0
      %v4229 = vld [vmem:[%s11 + $0x10] sm:$0xff]
      %v4230 = vld [vmem:[%s11 + $0x50] sm:$0xff]
      %v4231 = vld [vmem:[%s11 + $0x90] sm:$0xff]
      %v4232 = vld [vmem:[%s11 + $0xd0] sm:$0xff]
      %v4233 = vld [vmem:[%s11 + $0x110] sm:$0xff]
      %v4234 = vld [vmem:[%s11 + $0x150] sm:$0xff]
      %v4235 = vld [vmem:[%s11 + $0x190] sm:$0xff]
      %v4236 = vld [vmem:[%s11 + $0x1d0] sm:$0xff]
      %v4237 = vld [vmem:[%s12 + $0x4] sm:$0x3]
      %v4239 = vperm.slane %v4237, 0
      %v4240 = vperm.slane %v4237, 1
      %v4251 = vunpack.c.l.b16 %v4229
      %v4252 = vunpack.c.h.b16 %v4229
      %v4253 = vunpack.c.l.b16 %v4230
      %v4254 = vunpack.c.h.b16 %v4230
      %v4255 = vunpack.c.l.b16 %v4231
      %v4256 = vunpack.c.h.b16 %v4231
      %v4257 = vunpack.c.l.b16 %v4232
      %v4258 = vunpack.c.h.b16 %v4232
      %v4259 = vunpack.c.l.b16 %v4233
      %v4260 = vunpack.c.h.b16 %v4233
      %v4261 = vunpack.c.l.b16 %v4234
      %v4262 = vunpack.c.h.b16 %v4234
      %v4263 = vunpack.c.l.b16 %v4235
      %v4264 = vunpack.c.h.b16 %v4235
      %v4265 = vunpack.c.l.b16 %v4236
      %v4266 = vunpack.c.h.b16 %v4236
      %v4267 = vpack.c.b16 %v4253, %v4251
      %v4268 = vpack.c.b16 %v4254, %v4252
      %v4269 = vpack.c.b16 %v4257, %v4255
      %v4270 = vpack.c.b16 %v4258, %v4256
      %v4271 = vpack.c.b16 %v4261, %v4259
      %v4272 = vpack.c.b16 %v4262, %v4260
      %v4273 = vpack.c.b16 %v4265, %v4263
      %v4274 = vpack.c.b16 %v4266, %v4264
      %4283 = vmatpush.bf16.msra.mxu0 0
      %4284 = vmatpush.bf16.msra.mxu0 0
      %4285 = vmatpush.bf16.msra.mxu0 0
      %4286 = vmatpush.bf16.msra.mxu0 0
      %4287 = vmatpush.bf16.msra.mxu0 %v4273
      %4288 = vmatpush.bf16.msra.mxu0 %v4271
      %4289 = vmatpush.bf16.msra.mxu0 %v4269
      %4290 = vmatpush.bf16.msra.mxu0 %v4267
      %4291 = vmatmul.bf16.gmra.mxu0 %v3408
      %v4292 = vpop.f32.mrf.mxu0
      %v4293 = vadd.f32 %v4239, %v4292
      %v4294 = vpop.f32.mrf.mxu0
      %v4295 = vadd.f32 %v4239, %v4294
      %4296 = vmatmul.bf16.gmra.mxu0 %v3411
      %v4297 = vpop.f32.mrf.mxu0
      %v4298 = vadd.f32 %v4239, %v4297
      %v4299 = vpop.f32.mrf.mxu0
      %v4300 = vadd.f32 %v4239, %v4299
      %4301 = vmatmul.bf16.gmra.mxu0 %v3414
      %v4302 = vpop.f32.mrf.mxu0
      %v4303 = vadd.f32 %v4239, %v4302
      %v4304 = vpop.f32.mrf.mxu0
      %v4305 = vadd.f32 %v4239, %v4304
      %4306 = vmatmul.bf16.gmra.mxu0 %v3417
      %v4307 = vpop.f32.mrf.mxu0
      %v4308 = vadd.f32 %v4239, %v4307
      %v4309 = vpop.f32.mrf.mxu0
      %v4310 = vadd.f32 %v4239, %v4309
      %4311 = vmatmul.bf16.gmra.mxu0 %v3420
      %v4312 = vpop.f32.mrf.mxu0
      %v4313 = vadd.f32 %v4239, %v4312
      %v4314 = vpop.f32.mrf.mxu0
      %v4315 = vadd.f32 %v4239, %v4314
      %4316 = vmatmul.bf16.gmra.mxu0 %v3423
      %v4317 = vpop.f32.mrf.mxu0
      %v4318 = vadd.f32 %v4239, %v4317
      %v4319 = vpop.f32.mrf.mxu0
      %v4320 = vadd.f32 %v4239, %v4319
      %4321 = vmatmul.bf16.gmra.mxu0 %v3426
      %v4322 = vpop.f32.mrf.mxu0
      %v4323 = vadd.f32 %v4239, %v4322
      %v4324 = vpop.f32.mrf.mxu0
      %v4325 = vadd.f32 %v4239, %v4324
      %4326 = vmatmul.bf16.gmra.mxu0 %v3429
      %v4327 = vpop.f32.mrf.mxu0
      %v4328 = vadd.f32 %v4239, %v4327
      %v4329 = vpop.f32.mrf.mxu0
      %v4330 = vadd.f32 %v4239, %v4329
      %4331 = vdwg.mxu0
      %4332 = vmatpush.bf16.msra.mxu0 0
      %4333 = vmatpush.bf16.msra.mxu0 0
      %4334 = vmatpush.bf16.msra.mxu0 0
      %4335 = vmatpush.bf16.msra.mxu0 0
      %4336 = vmatpush.bf16.msra.mxu0 %v4274
      %4337 = vmatpush.bf16.msra.mxu0 %v4272
      %4338 = vmatpush.bf16.msra.mxu0 %v4270
      %4339 = vmatpush.bf16.msra.mxu0 %v4268
      %4340 = vmatmul.bf16.gmra.mxu0 %v3408
      %v4341 = vpop.f32.mrf.mxu0
      %v4342 = vadd.f32 %v4240, %v4341
      %v4343 = vpop.f32.mrf.mxu0
      %v4344 = vadd.f32 %v4240, %v4343
      %4345 = vmatmul.bf16.gmra.mxu0 %v3411
      %v4346 = vpop.f32.mrf.mxu0
      %v4347 = vadd.f32 %v4240, %v4346
      %v4348 = vpop.f32.mrf.mxu0
      %v4349 = vadd.f32 %v4240, %v4348
      %4350 = vmatmul.bf16.gmra.mxu0 %v3414
      %v4351 = vpop.f32.mrf.mxu0
      %v4352 = vadd.f32 %v4240, %v4351
      %v4353 = vpop.f32.mrf.mxu0
      %v4354 = vadd.f32 %v4240, %v4353
      %4355 = vmatmul.bf16.gmra.mxu0 %v3417
      %v4356 = vpop.f32.mrf.mxu0
      %v4357 = vadd.f32 %v4240, %v4356
      %v4358 = vpop.f32.mrf.mxu0
      %v4359 = vadd.f32 %v4240, %v4358
      %4360 = vmatmul.bf16.gmra.mxu0 %v3420
      %v4361 = vpop.f32.mrf.mxu0
      %v4362 = vadd.f32 %v4240, %v4361
      %v4363 = vpop.f32.mrf.mxu0
      %v4364 = vadd.f32 %v4240, %v4363
      %4365 = vmatmul.bf16.gmra.mxu0 %v3423
      %v4366 = vpop.f32.mrf.mxu0
      %v4367 = vadd.f32 %v4240, %v4366
      %v4368 = vpop.f32.mrf.mxu0
      %v4369 = vadd.f32 %v4240, %v4368
      %4370 = vmatmul.bf16.gmra.mxu0 %v3426
      %v4371 = vpop.f32.mrf.mxu0
      %v4372 = vadd.f32 %v4240, %v4371
      %v4373 = vpop.f32.mrf.mxu0
      %v4374 = vadd.f32 %v4240, %v4373
      %4375 = vmatmul.bf16.gmra.mxu0 %v3429
      %v4376 = vpop.f32.mrf.mxu0
      %v4377 = vadd.f32 %v4240, %v4376
      %v4378 = vpop.f32.mrf.mxu0
      %v4379 = vadd.f32 %v4240, %v4378
      %4380 = vdwg.mxu0
      %v4381 = vmax.f32 %v4293, 0.0
      %v4382 = vmax.f32 %v4342, 0.0
      %v4383 = vmax.f32 %v4295, 0.0
      %v4384 = vmax.f32 %v4344, 0.0
      %v4385 = vmax.f32 %v4298, 0.0
      %v4386 = vmax.f32 %v4347, 0.0
      %v4387 = vmax.f32 %v4300, 0.0
      %v4388 = vmax.f32 %v4349, 0.0
      %v4389 = vmax.f32 %v4303, 0.0
      %v4390 = vmax.f32 %v4352, 0.0
      %v4391 = vmax.f32 %v4305, 0.0
      %v4392 = vmax.f32 %v4354, 0.0
      %v4393 = vmax.f32 %v4308, 0.0
      %v4394 = vmax.f32 %v4357, 0.0
      %v4395 = vmax.f32 %v4310, 0.0
      %v4396 = vmax.f32 %v4359, 0.0
      %v4397 = vmax.f32 %v4313, 0.0
      %v4398 = vmax.f32 %v4362, 0.0
      %v4399 = vmax.f32 %v4315, 0.0
      %v4400 = vmax.f32 %v4364, 0.0
      %v4401 = vmax.f32 %v4318, 0.0
      %v4402 = vmax.f32 %v4367, 0.0
      %v4403 = vmax.f32 %v4320, 0.0
      %v4404 = vmax.f32 %v4369, 0.0
      %v4405 = vmax.f32 %v4323, 0.0
      %v4406 = vmax.f32 %v4372, 0.0
      %v4407 = vmax.f32 %v4325, 0.0
      %v4408 = vmax.f32 %v4374, 0.0
      %v4409 = vmax.f32 %v4328, 0.0
      %v4410 = vmax.f32 %v4377, 0.0
      %v4411 = vmax.f32 %v4330, 0.0
      %v4412 = vmax.f32 %v4379, 0.0
      %v4413 = vpack.c.bf16 %v4383, %v4381
      %v4414 = vpack.c.bf16 %v4384, %v4382
      %v4415 = vpack.c.bf16 %v4387, %v4385
      %v4416 = vpack.c.bf16 %v4388, %v4386
      %v4417 = vpack.c.bf16 %v4391, %v4389
      %v4418 = vpack.c.bf16 %v4392, %v4390
      %v4419 = vpack.c.bf16 %v4395, %v4393
      %v4420 = vpack.c.bf16 %v4396, %v4394
      %v4421 = vpack.c.bf16 %v4399, %v4397
      %v4422 = vpack.c.bf16 %v4400, %v4398
      %v4423 = vpack.c.bf16 %v4403, %v4401
      %v4424 = vpack.c.bf16 %v4404, %v4402
      %v4425 = vpack.c.bf16 %v4407, %v4405
      %v4426 = vpack.c.bf16 %v4408, %v4406
      %v4427 = vpack.c.bf16 %v4411, %v4409
      %v4428 = vpack.c.bf16 %v4412, %v4410
      %v4429 = vld [vmem:[%s13 + $0x100] sm:$0xf]
      %v4430 = vld [vmem:[%s13 + $0x104] sm:$0xf]
      %v4431 = vld [vmem:[%s13 + $0x108] sm:$0xf]
      %v4432 = vld [vmem:[%s13 + $0x10c] sm:$0xf]
      %v4433 = vld [vmem:[%s13 + $0x110] sm:$0xf]
      %v4434 = vld [vmem:[%s13 + $0x114] sm:$0xf]
      %v4435 = vld [vmem:[%s13 + $0x118] sm:$0xf]
      %v4436 = vld [vmem:[%s13 + $0x11c] sm:$0xf]
      %v4437 = vld [vmem:[%s13 + $0x120] sm:$0xf]
      %v4438 = vld [vmem:[%s13 + $0x124] sm:$0xf]
      %v4439 = vld [vmem:[%s13 + $0x128] sm:$0xf]
      %v4440 = vld [vmem:[%s13 + $0x12c] sm:$0xf]
      %v4441 = vld [vmem:[%s13 + $0x130] sm:$0xf]
      %v4442 = vld [vmem:[%s13 + $0x134] sm:$0xf]
      %v4443 = vld [vmem:[%s13 + $0x138] sm:$0xf]
      %v4444 = vld [vmem:[%s13 + $0x13c] sm:$0xf]
      %v4445 = vld [vmem:[%s13 + $0x140] sm:$0xf]
      %v4446 = vld [vmem:[%s13 + $0x144] sm:$0xf]
      %v4447 = vld [vmem:[%s13 + $0x148] sm:$0xf]
      %v4448 = vld [vmem:[%s13 + $0x14c] sm:$0xf]
      %v4449 = vld [vmem:[%s13 + $0x150] sm:$0xf]
      %v4450 = vld [vmem:[%s13 + $0x154] sm:$0xf]
      %v4451 = vld [vmem:[%s13 + $0x158] sm:$0xf]
      %v4452 = vld [vmem:[%s13 + $0x15c] sm:$0xf]
      %v4453 = vld [vmem:[%s13 + $0x160] sm:$0xf]
      %v4454 = vld [vmem:[%s13 + $0x164] sm:$0xf]
      %v4455 = vld [vmem:[%s13 + $0x168] sm:$0xf]
      %v4456 = vld [vmem:[%s13 + $0x16c] sm:$0xf]
      %v4457 = vld [vmem:[%s13 + $0x170] sm:$0xf]
      %v4458 = vld [vmem:[%s13 + $0x174] sm:$0xf]
      %v4459 = vld [vmem:[%s13 + $0x178] sm:$0xf]
      %v4460 = vld [vmem:[%s13 + $0x17c] sm:$0xf]
      %v4493 = vunpack.c.l.b16 %v4429
      %v4494 = vunpack.c.l.b16 %v4430
      %v4495 = vunpack.c.l.b16 %v4431
      %v4496 = vunpack.c.l.b16 %v4432
      %v4497 = vunpack.c.l.b16 %v4433
      %v4498 = vunpack.c.l.b16 %v4434
      %v4499 = vunpack.c.l.b16 %v4435
      %v4500 = vunpack.c.l.b16 %v4436
      %v4501 = vunpack.c.l.b16 %v4437
      %v4502 = vunpack.c.l.b16 %v4438
      %v4503 = vunpack.c.l.b16 %v4439
      %v4504 = vunpack.c.l.b16 %v4440
      %v4505 = vunpack.c.l.b16 %v4441
      %v4506 = vunpack.c.l.b16 %v4442
      %v4507 = vunpack.c.l.b16 %v4443
      %v4508 = vunpack.c.l.b16 %v4444
      %v4509 = vunpack.c.l.b16 %v4445
      %v4510 = vunpack.c.l.b16 %v4446
      %v4511 = vunpack.c.l.b16 %v4447
      %v4512 = vunpack.c.l.b16 %v4448
      %v4513 = vunpack.c.l.b16 %v4449
      %v4514 = vunpack.c.l.b16 %v4450
      %v4515 = vunpack.c.l.b16 %v4451
      %v4516 = vunpack.c.l.b16 %v4452
      %v4517 = vunpack.c.l.b16 %v4453
      %v4518 = vunpack.c.l.b16 %v4454
      %v4519 = vunpack.c.l.b16 %v4455
      %v4520 = vunpack.c.l.b16 %v4456
      %v4521 = vunpack.c.l.b16 %v4457
      %v4522 = vunpack.c.l.b16 %v4458
      %v4523 = vunpack.c.l.b16 %v4459
      %v4524 = vunpack.c.l.b16 %v4460
      %v4525 = vpack.c.b16 %v4494, %v4493
      %v4526 = vpack.c.b16 %v4496, %v4495
      %v4527 = vpack.c.b16 %v4498, %v4497
      %v4528 = vpack.c.b16 %v4500, %v4499
      %v4529 = vpack.c.b16 %v4502, %v4501
      %v4530 = vpack.c.b16 %v4504, %v4503
      %v4531 = vpack.c.b16 %v4506, %v4505
      %v4532 = vpack.c.b16 %v4508, %v4507
      %v4533 = vpack.c.b16 %v4510, %v4509
      %v4534 = vpack.c.b16 %v4512, %v4511
      %v4535 = vpack.c.b16 %v4514, %v4513
      %v4536 = vpack.c.b16 %v4516, %v4515
      %v4537 = vpack.c.b16 %v4518, %v4517
      %v4538 = vpack.c.b16 %v4520, %v4519
      %v4539 = vpack.c.b16 %v4522, %v4521
      %v4540 = vpack.c.b16 %v4524, %v4523
      %4557 = vmatpush.bf16.msra.mxu0 %v4532
      %4558 = vmatpush.bf16.msra.mxu0 %v4531
      %4559 = vmatpush.bf16.msra.mxu0 %v4530
      %4560 = vmatpush.bf16.msra.mxu0 %v4529
      %4561 = vmatpush.bf16.msra.mxu0 %v4528
      %4562 = vmatpush.bf16.msra.mxu0 %v4527
      %4563 = vmatpush.bf16.msra.mxu0 %v4526
      %4564 = vmatpush.bf16.msra.mxu0 %v4525
      %4565 = vmatmul.bf16.gmra.mxu0 %v4413
      %v4566 = vpop.f32.mrf.mxu0
      %v4567 = vadd.f32 0.0, %v4566
      %v4568 = vpop.f32.mrf.mxu0
      %v4569 = vadd.f32 0.0, %v4568
      %4570 = vmatmul.bf16.gmra.mxu0 %v4415
      %v4571 = vpop.f32.mrf.mxu0
      %v4572 = vadd.f32 0.0, %v4571
      %v4573 = vpop.f32.mrf.mxu0
      %v4574 = vadd.f32 0.0, %v4573
      %4575 = vmatmul.bf16.gmra.mxu0 %v4417
      %v4576 = vpop.f32.mrf.mxu0
      %v4577 = vadd.f32 0.0, %v4576
      %v4578 = vpop.f32.mrf.mxu0
      %v4579 = vadd.f32 0.0, %v4578
      %4580 = vmatmul.bf16.gmra.mxu0 %v4419
      %v4581 = vpop.f32.mrf.mxu0
      %v4582 = vadd.f32 0.0, %v4581
      %v4583 = vpop.f32.mrf.mxu0
      %v4584 = vadd.f32 0.0, %v4583
      %4585 = vmatmul.bf16.gmra.mxu0 %v4421
      %v4586 = vpop.f32.mrf.mxu0
      %v4587 = vadd.f32 0.0, %v4586
      %v4588 = vpop.f32.mrf.mxu0
      %v4589 = vadd.f32 0.0, %v4588
      %4590 = vmatmul.bf16.gmra.mxu0 %v4423
      %v4591 = vpop.f32.mrf.mxu0
      %v4592 = vadd.f32 0.0, %v4591
      %v4593 = vpop.f32.mrf.mxu0
      %v4594 = vadd.f32 0.0, %v4593
      %4595 = vmatmul.bf16.gmra.mxu0 %v4425
      %v4596 = vpop.f32.mrf.mxu0
      %v4597 = vadd.f32 0.0, %v4596
      %v4598 = vpop.f32.mrf.mxu0
      %v4599 = vadd.f32 0.0, %v4598
      %4600 = vmatmul.bf16.gmra.mxu0 %v4427
      %v4601 = vpop.f32.mrf.mxu0
      %v4602 = vadd.f32 0.0, %v4601
      %v4603 = vpop.f32.mrf.mxu0
      %v4604 = vadd.f32 0.0, %v4603
      %4605 = vdwg.mxu0
      %4606 = vmatpush.bf16.msra.mxu0 %v4540
      %4607 = vmatpush.bf16.msra.mxu0 %v4539
      %4608 = vmatpush.bf16.msra.mxu0 %v4538
      %4609 = vmatpush.bf16.msra.mxu0 %v4537
      %4610 = vmatpush.bf16.msra.mxu0 %v4536
      %4611 = vmatpush.bf16.msra.mxu0 %v4535
      %4612 = vmatpush.bf16.msra.mxu0 %v4534
      %4613 = vmatpush.bf16.msra.mxu0 %v4533
      %4614 = vmatmul.bf16.gmra.mxu0 %v4414
      %v4615 = vpop.f32.mrf.mxu0
      %v4616 = vadd.f32 %v4567, %v4615
      %v4617 = vpop.f32.mrf.mxu0
      %v4618 = vadd.f32 %v4569, %v4617
      %4619 = vmatmul.bf16.gmra.mxu0 %v4416
      %v4620 = vpop.f32.mrf.mxu0
      %v4621 = vadd.f32 %v4572, %v4620
      %v4622 = vpop.f32.mrf.mxu0
      %v4623 = vadd.f32 %v4574, %v4622
      %4624 = vmatmul.bf16.gmra.mxu0 %v4418
      %v4625 = vpop.f32.mrf.mxu0
      %v4626 = vadd.f32 %v4577, %v4625
      %v4627 = vpop.f32.mrf.mxu0
      %v4628 = vadd.f32 %v4579, %v4627
      %4629 = vmatmul.bf16.gmra.mxu0 %v4420
      %v4630 = vpop.f32.mrf.mxu0
      %v4631 = vadd.f32 %v4582, %v4630
      %v4632 = vpop.f32.mrf.mxu0
      %v4633 = vadd.f32 %v4584, %v4632
      %4634 = vmatmul.bf16.gmra.mxu0 %v4422
      %v4635 = vpop.f32.mrf.mxu0
      %v4636 = vadd.f32 %v4587, %v4635
      %v4637 = vpop.f32.mrf.mxu0
      %v4638 = vadd.f32 %v4589, %v4637
      %4639 = vmatmul.bf16.gmra.mxu0 %v4424
      %v4640 = vpop.f32.mrf.mxu0
      %v4641 = vadd.f32 %v4592, %v4640
      %v4642 = vpop.f32.mrf.mxu0
      %v4643 = vadd.f32 %v4594, %v4642
      %4644 = vmatmul.bf16.gmra.mxu0 %v4426
      %v4645 = vpop.f32.mrf.mxu0
      %v4646 = vadd.f32 %v4597, %v4645
      %v4647 = vpop.f32.mrf.mxu0
      %v4648 = vadd.f32 %v4599, %v4647
      %4649 = vmatmul.bf16.gmra.mxu0 %v4428
      %v4650 = vpop.f32.mrf.mxu0
      %v4651 = vadd.f32 %v4602, %v4650
      %v4652 = vpop.f32.mrf.mxu0
      %v4653 = vadd.f32 %v4604, %v4652
      %4654 = vdwg.mxu0
      %v4655 = vadd.f32 %v4190, %v4616
      %v4656 = vadd.f32 %v4192, %v4618
      %v4657 = vadd.f32 %v4195, %v4621
      %v4658 = vadd.f32 %v4197, %v4623
      %v4659 = vadd.f32 %v4200, %v4626
      %v4660 = vadd.f32 %v4202, %v4628
      %v4661 = vadd.f32 %v4205, %v4631
      %v4662 = vadd.f32 %v4207, %v4633
      %v4663 = vadd.f32 %v4210, %v4636
      %v4664 = vadd.f32 %v4212, %v4638
      %v4665 = vadd.f32 %v4215, %v4641
      %v4666 = vadd.f32 %v4217, %v4643
      %v4667 = vadd.f32 %v4220, %v4646
      %v4668 = vadd.f32 %v4222, %v4648
      %v4669 = vadd.f32 %v4225, %v4651
      %v4670 = vadd.f32 %v4227, %v4653
      %v4671 = vld [vmem:[%s11 + $0x18] sm:$0xff]
      %v4672 = vld [vmem:[%s11 + $0x58] sm:$0xff]
      %v4673 = vld [vmem:[%s11 + $0x98] sm:$0xff]
      %v4674 = vld [vmem:[%s11 + $0xd8] sm:$0xff]
      %v4675 = vld [vmem:[%s11 + $0x118] sm:$0xff]
      %v4676 = vld [vmem:[%s11 + $0x158] sm:$0xff]
      %v4677 = vld [vmem:[%s11 + $0x198] sm:$0xff]
      %v4678 = vld [vmem:[%s11 + $0x1d8] sm:$0xff]
      %v4679 = vld [vmem:[%s12 + $0x6] sm:$0x3]
      %v4681 = vperm.slane %v4679, 0
      %v4682 = vperm.slane %v4679, 1
      %v4693 = vunpack.c.l.b16 %v4671
      %v4694 = vunpack.c.h.b16 %v4671
      %v4695 = vunpack.c.l.b16 %v4672
      %v4696 = vunpack.c.h.b16 %v4672
      %v4697 = vunpack.c.l.b16 %v4673
      %v4698 = vunpack.c.h.b16 %v4673
      %v4699 = vunpack.c.l.b16 %v4674
      %v4700 = vunpack.c.h.b16 %v4674
      %v4701 = vunpack.c.l.b16 %v4675
      %v4702 = vunpack.c.h.b16 %v4675
      %v4703 = vunpack.c.l.b16 %v4676
      %v4704 = vunpack.c.h.b16 %v4676
      %v4705 = vunpack.c.l.b16 %v4677
      %v4706 = vunpack.c.h.b16 %v4677
      %v4707 = vunpack.c.l.b16 %v4678
      %v4708 = vunpack.c.h.b16 %v4678
      %v4709 = vpack.c.b16 %v4695, %v4693
      %v4710 = vpack.c.b16 %v4696, %v4694
      %v4711 = vpack.c.b16 %v4699, %v4697
      %v4712 = vpack.c.b16 %v4700, %v4698
      %v4713 = vpack.c.b16 %v4703, %v4701
      %v4714 = vpack.c.b16 %v4704, %v4702
      %v4715 = vpack.c.b16 %v4707, %v4705
      %v4716 = vpack.c.b16 %v4708, %v4706
      %4725 = vmatpush.bf16.msra.mxu0 0
      %4726 = vmatpush.bf16.msra.mxu0 0
      %4727 = vmatpush.bf16.msra.mxu0 0
      %4728 = vmatpush.bf16.msra.mxu0 0
      %4729 = vmatpush.bf16.msra.mxu0 %v4715
      %4730 = vmatpush.bf16.msra.mxu0 %v4713
      %4731 = vmatpush.bf16.msra.mxu0 %v4711
      %4732 = vmatpush.bf16.msra.mxu0 %v4709
      %4733 = vmatmul.bf16.gmra.mxu0 %v3408
      %v4734 = vpop.f32.mrf.mxu0
      %v4735 = vadd.f32 %v4681, %v4734
      %v4736 = vpop.f32.mrf.mxu0
      %v4737 = vadd.f32 %v4681, %v4736
      %4738 = vmatmul.bf16.gmra.mxu0 %v3411
      %v4739 = vpop.f32.mrf.mxu0
      %v4740 = vadd.f32 %v4681, %v4739
      %v4741 = vpop.f32.mrf.mxu0
      %v4742 = vadd.f32 %v4681, %v4741
      %4743 = vmatmul.bf16.gmra.mxu0 %v3414
      %v4744 = vpop.f32.mrf.mxu0
      %v4745 = vadd.f32 %v4681, %v4744
      %v4746 = vpop.f32.mrf.mxu0
      %v4747 = vadd.f32 %v4681, %v4746
      %4748 = vmatmul.bf16.gmra.mxu0 %v3417
      %v4749 = vpop.f32.mrf.mxu0
      %v4750 = vadd.f32 %v4681, %v4749
      %v4751 = vpop.f32.mrf.mxu0
      %v4752 = vadd.f32 %v4681, %v4751
      %4753 = vmatmul.bf16.gmra.mxu0 %v3420
      %v4754 = vpop.f32.mrf.mxu0
      %v4755 = vadd.f32 %v4681, %v4754
      %v4756 = vpop.f32.mrf.mxu0
      %v4757 = vadd.f32 %v4681, %v4756
      %4758 = vmatmul.bf16.gmra.mxu0 %v3423
      %v4759 = vpop.f32.mrf.mxu0
      %v4760 = vadd.f32 %v4681, %v4759
      %v4761 = vpop.f32.mrf.mxu0
      %v4762 = vadd.f32 %v4681, %v4761
      %4763 = vmatmul.bf16.gmra.mxu0 %v3426
      %v4764 = vpop.f32.mrf.mxu0
      %v4765 = vadd.f32 %v4681, %v4764
      %v4766 = vpop.f32.mrf.mxu0
      %v4767 = vadd.f32 %v4681, %v4766
      %4768 = vmatmul.bf16.gmra.mxu0 %v3429
      %v4769 = vpop.f32.mrf.mxu0
      %v4770 = vadd.f32 %v4681, %v4769
      %v4771 = vpop.f32.mrf.mxu0
      %v4772 = vadd.f32 %v4681, %v4771
      %4773 = vdwg.mxu0
      %4774 = vmatpush.bf16.msra.mxu0 0
      %4775 = vmatpush.bf16.msra.mxu0 0
      %4776 = vmatpush.bf16.msra.mxu0 0
      %4777 = vmatpush.bf16.msra.mxu0 0
      %4778 = vmatpush.bf16.msra.mxu0 %v4716
      %4779 = vmatpush.bf16.msra.mxu0 %v4714
      %4780 = vmatpush.bf16.msra.mxu0 %v4712
      %4781 = vmatpush.bf16.msra.mxu0 %v4710
      %4782 = vmatmul.bf16.gmra.mxu0 %v3408
      %v4783 = vpop.f32.mrf.mxu0
      %v4784 = vadd.f32 %v4682, %v4783
      %v4785 = vpop.f32.mrf.mxu0
      %v4786 = vadd.f32 %v4682, %v4785
      %4787 = vmatmul.bf16.gmra.mxu0 %v3411
      %v4788 = vpop.f32.mrf.mxu0
      %v4789 = vadd.f32 %v4682, %v4788
      %v4790 = vpop.f32.mrf.mxu0
      %v4791 = vadd.f32 %v4682, %v4790
      %4792 = vmatmul.bf16.gmra.mxu0 %v3414
      %v4793 = vpop.f32.mrf.mxu0
      %v4794 = vadd.f32 %v4682, %v4793
      %v4795 = vpop.f32.mrf.mxu0
      %v4796 = vadd.f32 %v4682, %v4795
      %4797 = vmatmul.bf16.gmra.mxu0 %v3417
      %v4798 = vpop.f32.mrf.mxu0
      %v4799 = vadd.f32 %v4682, %v4798
      %v4800 = vpop.f32.mrf.mxu0
      %v4801 = vadd.f32 %v4682, %v4800
      %4802 = vmatmul.bf16.gmra.mxu0 %v3420
      %v4803 = vpop.f32.mrf.mxu0
      %v4804 = vadd.f32 %v4682, %v4803
      %v4805 = vpop.f32.mrf.mxu0
      %v4806 = vadd.f32 %v4682, %v4805
      %4807 = vmatmul.bf16.gmra.mxu0 %v3423
      %v4808 = vpop.f32.mrf.mxu0
      %v4809 = vadd.f32 %v4682, %v4808
      %v4810 = vpop.f32.mrf.mxu0
      %v4811 = vadd.f32 %v4682, %v4810
      %4812 = vmatmul.bf16.gmra.mxu0 %v3426
      %v4813 = vpop.f32.mrf.mxu0
      %v4814 = vadd.f32 %v4682, %v4813
      %v4815 = vpop.f32.mrf.mxu0
      %v4816 = vadd.f32 %v4682, %v4815
      %4817 = vmatmul.bf16.gmra.mxu0 %v3429
      %v4818 = vpop.f32.mrf.mxu0
      %v4819 = vadd.f32 %v4682, %v4818
      %v4820 = vpop.f32.mrf.mxu0
      %v4821 = vadd.f32 %v4682, %v4820
      %4822 = vdwg.mxu0
      %v4823 = vmax.f32 %v4735, 0.0
      %v4824 = vmax.f32 %v4784, 0.0
      %v4825 = vmax.f32 %v4737, 0.0
      %v4826 = vmax.f32 %v4786, 0.0
      %v4827 = vmax.f32 %v4740, 0.0
      %v4828 = vmax.f32 %v4789, 0.0
      %v4829 = vmax.f32 %v4742, 0.0
      %v4830 = vmax.f32 %v4791, 0.0
      %v4831 = vmax.f32 %v4745, 0.0
      %v4832 = vmax.f32 %v4794, 0.0
      %v4833 = vmax.f32 %v4747, 0.0
      %v4834 = vmax.f32 %v4796, 0.0
      %v4835 = vmax.f32 %v4750, 0.0
      %v4836 = vmax.f32 %v4799, 0.0
      %v4837 = vmax.f32 %v4752, 0.0
      %v4838 = vmax.f32 %v4801, 0.0
      %v4839 = vmax.f32 %v4755, 0.0
      %v4840 = vmax.f32 %v4804, 0.0
      %v4841 = vmax.f32 %v4757, 0.0
      %v4842 = vmax.f32 %v4806, 0.0
      %v4843 = vmax.f32 %v4760, 0.0
      %v4844 = vmax.f32 %v4809, 0.0
      %v4845 = vmax.f32 %v4762, 0.0
      %v4846 = vmax.f32 %v4811, 0.0
      %v4847 = vmax.f32 %v4765, 0.0
      %v4848 = vmax.f32 %v4814, 0.0
      %v4849 = vmax.f32 %v4767, 0.0
      %v4850 = vmax.f32 %v4816, 0.0
      %v4851 = vmax.f32 %v4770, 0.0
      %v4852 = vmax.f32 %v4819, 0.0
      %v4853 = vmax.f32 %v4772, 0.0
      %v4854 = vmax.f32 %v4821, 0.0
      %v4855 = vpack.c.bf16 %v4825, %v4823
      %v4856 = vpack.c.bf16 %v4826, %v4824
      %v4857 = vpack.c.bf16 %v4829, %v4827
      %v4858 = vpack.c.bf16 %v4830, %v4828
      %v4859 = vpack.c.bf16 %v4833, %v4831
      %v4860 = vpack.c.bf16 %v4834, %v4832
      %v4861 = vpack.c.bf16 %v4837, %v4835
      %v4862 = vpack.c.bf16 %v4838, %v4836
      %v4863 = vpack.c.bf16 %v4841, %v4839
      %v4864 = vpack.c.bf16 %v4842, %v4840
      %v4865 = vpack.c.bf16 %v4845, %v4843
      %v4866 = vpack.c.bf16 %v4846, %v4844
      %v4867 = vpack.c.bf16 %v4849, %v4847
      %v4868 = vpack.c.bf16 %v4850, %v4848
      %v4869 = vpack.c.bf16 %v4853, %v4851
      %v4870 = vpack.c.bf16 %v4854, %v4852
      %v4871 = vld [vmem:[%s13 + $0x180] sm:$0xf]
      %v4872 = vld [vmem:[%s13 + $0x184] sm:$0xf]
      %v4873 = vld [vmem:[%s13 + $0x188] sm:$0xf]
      %v4874 = vld [vmem:[%s13 + $0x18c] sm:$0xf]
      %v4875 = vld [vmem:[%s13 + $0x190] sm:$0xf]
      %v4876 = vld [vmem:[%s13 + $0x194] sm:$0xf]
      %v4877 = vld [vmem:[%s13 + $0x198] sm:$0xf]
      %v4878 = vld [vmem:[%s13 + $0x19c] sm:$0xf]
      %v4879 = vld [vmem:[%s13 + $0x1a0] sm:$0xf]
      %v4880 = vld [vmem:[%s13 + $0x1a4] sm:$0xf]
      %v4881 = vld [vmem:[%s13 + $0x1a8] sm:$0xf]
      %v4882 = vld [vmem:[%s13 + $0x1ac] sm:$0xf]
      %v4883 = vld [vmem:[%s13 + $0x1b0] sm:$0xf]
      %v4884 = vld [vmem:[%s13 + $0x1b4] sm:$0xf]
      %v4885 = vld [vmem:[%s13 + $0x1b8] sm:$0xf]
      %v4886 = vld [vmem:[%s13 + $0x1bc] sm:$0xf]
      %v4887 = vld [vmem:[%s13 + $0x1c0] sm:$0xf]
      %v4888 = vld [vmem:[%s13 + $0x1c4] sm:$0xf]
      %v4889 = vld [vmem:[%s13 + $0x1c8] sm:$0xf]
      %v4890 = vld [vmem:[%s13 + $0x1cc] sm:$0xf]
      %v4891 = vld [vmem:[%s13 + $0x1d0] sm:$0xf]
      %v4892 = vld [vmem:[%s13 + $0x1d4] sm:$0xf]
      %v4893 = vld [vmem:[%s13 + $0x1d8] sm:$0xf]
      %v4894 = vld [vmem:[%s13 + $0x1dc] sm:$0xf]
      %v4895 = vld [vmem:[%s13 + $0x1e0] sm:$0xf]
      %v4896 = vld [vmem:[%s13 + $0x1e4] sm:$0xf]
      %v4897 = vld [vmem:[%s13 + $0x1e8] sm:$0xf]
      %v4898 = vld [vmem:[%s13 + $0x1ec] sm:$0xf]
      %v4899 = vld [vmem:[%s13 + $0x1f0] sm:$0xf]
      %v4900 = vld [vmem:[%s13 + $0x1f4] sm:$0xf]
      %v4901 = vld [vmem:[%s13 + $0x1f8] sm:$0xf]
      %v4902 = vld [vmem:[%s13 + $0x1fc] sm:$0xf]
      %v4935 = vunpack.c.l.b16 %v4871
      %v4936 = vunpack.c.l.b16 %v4872
      %v4937 = vunpack.c.l.b16 %v4873
      %v4938 = vunpack.c.l.b16 %v4874
      %v4939 = vunpack.c.l.b16 %v4875
      %v4940 = vunpack.c.l.b16 %v4876
      %v4941 = vunpack.c.l.b16 %v4877
      %v4942 = vunpack.c.l.b16 %v4878
      %v4943 = vunpack.c.l.b16 %v4879
      %v4944 = vunpack.c.l.b16 %v4880
      %v4945 = vunpack.c.l.b16 %v4881
      %v4946 = vunpack.c.l.b16 %v4882
      %v4947 = vunpack.c.l.b16 %v4883
      %v4948 = vunpack.c.l.b16 %v4884
      %v4949 = vunpack.c.l.b16 %v4885
      %v4950 = vunpack.c.l.b16 %v4886
      %v4951 = vunpack.c.l.b16 %v4887
      %v4952 = vunpack.c.l.b16 %v4888
      %v4953 = vunpack.c.l.b16 %v4889
      %v4954 = vunpack.c.l.b16 %v4890
      %v4955 = vunpack.c.l.b16 %v4891
      %v4956 = vunpack.c.l.b16 %v4892
      %v4957 = vunpack.c.l.b16 %v4893
      %v4958 = vunpack.c.l.b16 %v4894
      %v4959 = vunpack.c.l.b16 %v4895
      %v4960 = vunpack.c.l.b16 %v4896
      %v4961 = vunpack.c.l.b16 %v4897
      %v4962 = vunpack.c.l.b16 %v4898
      %v4963 = vunpack.c.l.b16 %v4899
      %v4964 = vunpack.c.l.b16 %v4900
      %v4965 = vunpack.c.l.b16 %v4901
      %v4966 = vunpack.c.l.b16 %v4902
      %v4967 = vpack.c.b16 %v4936, %v4935
      %v4968 = vpack.c.b16 %v4938, %v4937
      %v4969 = vpack.c.b16 %v4940, %v4939
      %v4970 = vpack.c.b16 %v4942, %v4941
      %v4971 = vpack.c.b16 %v4944, %v4943
      %v4972 = vpack.c.b16 %v4946, %v4945
      %v4973 = vpack.c.b16 %v4948, %v4947
      %v4974 = vpack.c.b16 %v4950, %v4949
      %v4975 = vpack.c.b16 %v4952, %v4951
      %v4976 = vpack.c.b16 %v4954, %v4953
      %v4977 = vpack.c.b16 %v4956, %v4955
      %v4978 = vpack.c.b16 %v4958, %v4957
      %v4979 = vpack.c.b16 %v4960, %v4959
      %v4980 = vpack.c.b16 %v4962, %v4961
      %v4981 = vpack.c.b16 %v4964, %v4963
      %v4982 = vpack.c.b16 %v4966, %v4965
      %4999 = vmatpush.bf16.msra.mxu0 %v4974
      %5000 = vmatpush.bf16.msra.mxu0 %v4973
      %5001 = vmatpush.bf16.msra.mxu0 %v4972
      %5002 = vmatpush.bf16.msra.mxu0 %v4971
      %5003 = vmatpush.bf16.msra.mxu0 %v4970
      %5004 = vmatpush.bf16.msra.mxu0 %v4969
      %5005 = vmatpush.bf16.msra.mxu0 %v4968
      %5006 = vmatpush.bf16.msra.mxu0 %v4967
      %5007 = vmatmul.bf16.gmra.mxu0 %v4855
      %v5008 = vpop.f32.mrf.mxu0
      %v5009 = vadd.f32 0.0, %v5008
      %v5010 = vpop.f32.mrf.mxu0
      %v5011 = vadd.f32 0.0, %v5010
      %5012 = vmatmul.bf16.gmra.mxu0 %v4857
      %v5013 = vpop.f32.mrf.mxu0
      %v5014 = vadd.f32 0.0, %v5013
      %v5015 = vpop.f32.mrf.mxu0
      %v5016 = vadd.f32 0.0, %v5015
      %5017 = vmatmul.bf16.gmra.mxu0 %v4859
      %v5018 = vpop.f32.mrf.mxu0
      %v5019 = vadd.f32 0.0, %v5018
      %v5020 = vpop.f32.mrf.mxu0
      %v5021 = vadd.f32 0.0, %v5020
      %5022 = vmatmul.bf16.gmra.mxu0 %v4861
      %v5023 = vpop.f32.mrf.mxu0
      %v5024 = vadd.f32 0.0, %v5023
      %v5025 = vpop.f32.mrf.mxu0
      %v5026 = vadd.f32 0.0, %v5025
      %5027 = vmatmul.bf16.gmra.mxu0 %v4863
      %v5028 = vpop.f32.mrf.mxu0
      %v5029 = vadd.f32 0.0, %v5028
      %v5030 = vpop.f32.mrf.mxu0
      %v5031 = vadd.f32 0.0, %v5030
      %5032 = vmatmul.bf16.gmra.mxu0 %v4865
      %v5033 = vpop.f32.mrf.mxu0
      %v5034 = vadd.f32 0.0, %v5033
      %v5035 = vpop.f32.mrf.mxu0
      %v5036 = vadd.f32 0.0, %v5035
      %5037 = vmatmul.bf16.gmra.mxu0 %v4867
      %v5038 = vpop.f32.mrf.mxu0
      %v5039 = vadd.f32 0.0, %v5038
      %v5040 = vpop.f32.mrf.mxu0
      %v5041 = vadd.f32 0.0, %v5040
      %5042 = vmatmul.bf16.gmra.mxu0 %v4869
      %v5043 = vpop.f32.mrf.mxu0
      %v5044 = vadd.f32 0.0, %v5043
      %v5045 = vpop.f32.mrf.mxu0
      %v5046 = vadd.f32 0.0, %v5045
      %5047 = vdwg.mxu0
      %5048 = vmatpush.bf16.msra.mxu0 %v4982
      %5049 = vmatpush.bf16.msra.mxu0 %v4981
      %5050 = vmatpush.bf16.msra.mxu0 %v4980
      %5051 = vmatpush.bf16.msra.mxu0 %v4979
      %5052 = vmatpush.bf16.msra.mxu0 %v4978
      %5053 = vmatpush.bf16.msra.mxu0 %v4977
      %5054 = vmatpush.bf16.msra.mxu0 %v4976
      %5055 = vmatpush.bf16.msra.mxu0 %v4975
      %5056 = vmatmul.bf16.gmra.mxu0 %v4856
      %v5057 = vpop.f32.mrf.mxu0
      %v5058 = vadd.f32 %v5009, %v5057
      %v5059 = vpop.f32.mrf.mxu0
      %v5060 = vadd.f32 %v5011, %v5059
      %5061 = vmatmul.bf16.gmra.mxu0 %v4858
      %v5062 = vpop.f32.mrf.mxu0
      %v5063 = vadd.f32 %v5014, %v5062
      %v5064 = vpop.f32.mrf.mxu0
      %v5065 = vadd.f32 %v5016, %v5064
      %5066 = vmatmul.bf16.gmra.mxu0 %v4860
      %v5067 = vpop.f32.mrf.mxu0
      %v5068 = vadd.f32 %v5019, %v5067
      %v5069 = vpop.f32.mrf.mxu0
      %v5070 = vadd.f32 %v5021, %v5069
      %5071 = vmatmul.bf16.gmra.mxu0 %v4862
      %v5072 = vpop.f32.mrf.mxu0
      %v5073 = vadd.f32 %v5024, %v5072
      %v5074 = vpop.f32.mrf.mxu0
      %v5075 = vadd.f32 %v5026, %v5074
      %5076 = vmatmul.bf16.gmra.mxu0 %v4864
      %v5077 = vpop.f32.mrf.mxu0
      %v5078 = vadd.f32 %v5029, %v5077
      %v5079 = vpop.f32.mrf.mxu0
      %v5080 = vadd.f32 %v5031, %v5079
      %5081 = vmatmul.bf16.gmra.mxu0 %v4866
      %v5082 = vpop.f32.mrf.mxu0
      %v5083 = vadd.f32 %v5034, %v5082
      %v5084 = vpop.f32.mrf.mxu0
      %v5085 = vadd.f32 %v5036, %v5084
      %5086 = vmatmul.bf16.gmra.mxu0 %v4868
      %v5087 = vpop.f32.mrf.mxu0
      %v5088 = vadd.f32 %v5039, %v5087
      %v5089 = vpop.f32.mrf.mxu0
      %v5090 = vadd.f32 %v5041, %v5089
      %5091 = vmatmul.bf16.gmra.mxu0 %v4870
      %v5092 = vpop.f32.mrf.mxu0
      %v5093 = vadd.f32 %v5044, %v5092
      %v5094 = vpop.f32.mrf.mxu0
      %v5095 = vadd.f32 %v5046, %v5094
      %5096 = vdwg.mxu0
      %v5097 = vadd.f32 %v4655, %v5058
      %v5098 = vadd.f32 %v4656, %v5060
      %v5099 = vadd.f32 %v4657, %v5063
      %v5100 = vadd.f32 %v4658, %v5065
      %v5101 = vadd.f32 %v4659, %v5068
      %v5102 = vadd.f32 %v4660, %v5070
      %v5103 = vadd.f32 %v4661, %v5073
      %v5104 = vadd.f32 %v4662, %v5075
      %v5105 = vadd.f32 %v4663, %v5078
      %v5106 = vadd.f32 %v4664, %v5080
      %v5107 = vadd.f32 %v4665, %v5083
      %v5108 = vadd.f32 %v4666, %v5085
      %v5109 = vadd.f32 %v4667, %v5088
      %v5110 = vadd.f32 %v4668, %v5090
      %v5111 = vadd.f32 %v4669, %v5093
      %v5112 = vadd.f32 %v4670, %v5095
      %v5113 = vld [vmem:[%s11 + $0x20] sm:$0xff]
      %v5114 = vld [vmem:[%s11 + $0x60] sm:$0xff]
      %v5115 = vld [vmem:[%s11 + $0xa0] sm:$0xff]
      %v5116 = vld [vmem:[%s11 + $0xe0] sm:$0xff]
      %v5117 = vld [vmem:[%s11 + $0x120] sm:$0xff]
      %v5118 = vld [vmem:[%s11 + $0x160] sm:$0xff]
      %v5119 = vld [vmem:[%s11 + $0x1a0] sm:$0xff]
      %v5120 = vld [vmem:[%s11 + $0x1e0] sm:$0xff]
      %v5121 = vld [vmem:[%s12 + $0x8] sm:$0x3]
      %v5123 = vperm.slane %v5121, 0
      %v5124 = vperm.slane %v5121, 1
      %v5135 = vunpack.c.l.b16 %v5113
      %v5136 = vunpack.c.h.b16 %v5113
      %v5137 = vunpack.c.l.b16 %v5114
      %v5138 = vunpack.c.h.b16 %v5114
      %v5139 = vunpack.c.l.b16 %v5115
      %v5140 = vunpack.c.h.b16 %v5115
      %v5141 = vunpack.c.l.b16 %v5116
      %v5142 = vunpack.c.h.b16 %v5116
      %v5143 = vunpack.c.l.b16 %v5117
      %v5144 = vunpack.c.h.b16 %v5117
      %v5145 = vunpack.c.l.b16 %v5118
      %v5146 = vunpack.c.h.b16 %v5118
      %v5147 = vunpack.c.l.b16 %v5119
      %v5148 = vunpack.c.h.b16 %v5119
      %v5149 = vunpack.c.l.b16 %v5120
      %v5150 = vunpack.c.h.b16 %v5120
      %v5151 = vpack.c.b16 %v5137, %v5135
      %v5152 = vpack.c.b16 %v5138, %v5136
      %v5153 = vpack.c.b16 %v5141, %v5139
      %v5154 = vpack.c.b16 %v5142, %v5140
      %v5155 = vpack.c.b16 %v5145, %v5143
      %v5156 = vpack.c.b16 %v5146, %v5144
      %v5157 = vpack.c.b16 %v5149, %v5147
      %v5158 = vpack.c.b16 %v5150, %v5148
      %5167 = vmatpush.bf16.msra.mxu0 0
      %5168 = vmatpush.bf16.msra.mxu0 0
      %5169 = vmatpush.bf16.msra.mxu0 0
      %5170 = vmatpush.bf16.msra.mxu0 0
      %5171 = vmatpush.bf16.msra.mxu0 %v5157
      %5172 = vmatpush.bf16.msra.mxu0 %v5155
      %5173 = vmatpush.bf16.msra.mxu0 %v5153
      %5174 = vmatpush.bf16.msra.mxu0 %v5151
      %5175 = vmatmul.bf16.gmra.mxu0 %v3408
      %v5176 = vpop.f32.mrf.mxu0
      %v5177 = vadd.f32 %v5123, %v5176
      %v5178 = vpop.f32.mrf.mxu0
      %v5179 = vadd.f32 %v5123, %v5178
      %5180 = vmatmul.bf16.gmra.mxu0 %v3411
      %v5181 = vpop.f32.mrf.mxu0
      %v5182 = vadd.f32 %v5123, %v5181
      %v5183 = vpop.f32.mrf.mxu0
      %v5184 = vadd.f32 %v5123, %v5183
      %5185 = vmatmul.bf16.gmra.mxu0 %v3414
      %v5186 = vpop.f32.mrf.mxu0
      %v5187 = vadd.f32 %v5123, %v5186
      %v5188 = vpop.f32.mrf.mxu0
      %v5189 = vadd.f32 %v5123, %v5188
      %5190 = vmatmul.bf16.gmra.mxu0 %v3417
      %v5191 = vpop.f32.mrf.mxu0
      %v5192 = vadd.f32 %v5123, %v5191
      %v5193 = vpop.f32.mrf.mxu0
      %v5194 = vadd.f32 %v5123, %v5193
      %5195 = vmatmul.bf16.gmra.mxu0 %v3420
      %v5196 = vpop.f32.mrf.mxu0
      %v5197 = vadd.f32 %v5123, %v5196
      %v5198 = vpop.f32.mrf.mxu0
      %v5199 = vadd.f32 %v5123, %v5198
      %5200 = vmatmul.bf16.gmra.mxu0 %v3423
      %v5201 = vpop.f32.mrf.mxu0
      %v5202 = vadd.f32 %v5123, %v5201
      %v5203 = vpop.f32.mrf.mxu0
      %v5204 = vadd.f32 %v5123, %v5203
      %5205 = vmatmul.bf16.gmra.mxu0 %v3426
      %v5206 = vpop.f32.mrf.mxu0
      %v5207 = vadd.f32 %v5123, %v5206
      %v5208 = vpop.f32.mrf.mxu0
      %v5209 = vadd.f32 %v5123, %v5208
      %5210 = vmatmul.bf16.gmra.mxu0 %v3429
      %v5211 = vpop.f32.mrf.mxu0
      %v5212 = vadd.f32 %v5123, %v5211
      %v5213 = vpop.f32.mrf.mxu0
      %v5214 = vadd.f32 %v5123, %v5213
      %5215 = vdwg.mxu0
      %5216 = vmatpush.bf16.msra.mxu0 0
      %5217 = vmatpush.bf16.msra.mxu0 0
      %5218 = vmatpush.bf16.msra.mxu0 0
      %5219 = vmatpush.bf16.msra.mxu0 0
      %5220 = vmatpush.bf16.msra.mxu0 %v5158
      %5221 = vmatpush.bf16.msra.mxu0 %v5156
      %5222 = vmatpush.bf16.msra.mxu0 %v5154
      %5223 = vmatpush.bf16.msra.mxu0 %v5152
      %5224 = vmatmul.bf16.gmra.mxu0 %v3408
      %v5225 = vpop.f32.mrf.mxu0
      %v5226 = vadd.f32 %v5124, %v5225
      %v5227 = vpop.f32.mrf.mxu0
      %v5228 = vadd.f32 %v5124, %v5227
      %5229 = vmatmul.bf16.gmra.mxu0 %v3411
      %v5230 = vpop.f32.mrf.mxu0
      %v5231 = vadd.f32 %v5124, %v5230
      %v5232 = vpop.f32.mrf.mxu0
      %v5233 = vadd.f32 %v5124, %v5232
      %5234 = vmatmul.bf16.gmra.mxu0 %v3414
      %v5235 = vpop.f32.mrf.mxu0
      %v5236 = vadd.f32 %v5124, %v5235
      %v5237 = vpop.f32.mrf.mxu0
      %v5238 = vadd.f32 %v5124, %v5237
      %5239 = vmatmul.bf16.gmra.mxu0 %v3417
      %v5240 = vpop.f32.mrf.mxu0
      %v5241 = vadd.f32 %v5124, %v5240
      %v5242 = vpop.f32.mrf.mxu0
      %v5243 = vadd.f32 %v5124, %v5242
      %5244 = vmatmul.bf16.gmra.mxu0 %v3420
      %v5245 = vpop.f32.mrf.mxu0
      %v5246 = vadd.f32 %v5124, %v5245
      %v5247 = vpop.f32.mrf.mxu0
      %v5248 = vadd.f32 %v5124, %v5247
      %5249 = vmatmul.bf16.gmra.mxu0 %v3423
      %v5250 = vpop.f32.mrf.mxu0
      %v5251 = vadd.f32 %v5124, %v5250
      %v5252 = vpop.f32.mrf.mxu0
      %v5253 = vadd.f32 %v5124, %v5252
      %5254 = vmatmul.bf16.gmra.mxu0 %v3426
      %v5255 = vpop.f32.mrf.mxu0
      %v5256 = vadd.f32 %v5124, %v5255
      %v5257 = vpop.f32.mrf.mxu0
      %v5258 = vadd.f32 %v5124, %v5257
      %5259 = vmatmul.bf16.gmra.mxu0 %v3429
      %v5260 = vpop.f32.mrf.mxu0
      %v5261 = vadd.f32 %v5124, %v5260
      %v5262 = vpop.f32.mrf.mxu0
      %v5263 = vadd.f32 %v5124, %v5262
      %5264 = vdwg.mxu0
      %v5265 = vmax.f32 %v5177, 0.0
      %v5266 = vmax.f32 %v5226, 0.0
      %v5267 = vmax.f32 %v5179, 0.0
      %v5268 = vmax.f32 %v5228, 0.0
      %v5269 = vmax.f32 %v5182, 0.0
      %v5270 = vmax.f32 %v5231, 0.0
      %v5271 = vmax.f32 %v5184, 0.0
      %v5272 = vmax.f32 %v5233, 0.0
      %v5273 = vmax.f32 %v5187, 0.0
      %v5274 = vmax.f32 %v5236, 0.0
      %v5275 = vmax.f32 %v5189, 0.0
      %v5276 = vmax.f32 %v5238, 0.0
      %v5277 = vmax.f32 %v5192, 0.0
      %v5278 = vmax.f32 %v5241, 0.0
      %v5279 = vmax.f32 %v5194, 0.0
      %v5280 = vmax.f32 %v5243, 0.0
      %v5281 = vmax.f32 %v5197, 0.0
      %v5282 = vmax.f32 %v5246, 0.0
      %v5283 = vmax.f32 %v5199, 0.0
      %v5284 = vmax.f32 %v5248, 0.0
      %v5285 = vmax.f32 %v5202, 0.0
      %v5286 = vmax.f32 %v5251, 0.0
      %v5287 = vmax.f32 %v5204, 0.0
      %v5288 = vmax.f32 %v5253, 0.0
      %v5289 = vmax.f32 %v5207, 0.0
      %v5290 = vmax.f32 %v5256, 0.0
      %v5291 = vmax.f32 %v5209, 0.0
      %v5292 = vmax.f32 %v5258, 0.0
      %v5293 = vmax.f32 %v5212, 0.0
      %v5294 = vmax.f32 %v5261, 0.0
      %v5295 = vmax.f32 %v5214, 0.0
      %v5296 = vmax.f32 %v5263, 0.0
      %v5297 = vpack.c.bf16 %v5267, %v5265
      %v5298 = vpack.c.bf16 %v5268, %v5266
      %v5299 = vpack.c.bf16 %v5271, %v5269
      %v5300 = vpack.c.bf16 %v5272, %v5270
      %v5301 = vpack.c.bf16 %v5275, %v5273
      %v5302 = vpack.c.bf16 %v5276, %v5274
      %v5303 = vpack.c.bf16 %v5279, %v5277
      %v5304 = vpack.c.bf16 %v5280, %v5278
      %v5305 = vpack.c.bf16 %v5283, %v5281
      %v5306 = vpack.c.bf16 %v5284, %v5282
      %v5307 = vpack.c.bf16 %v5287, %v5285
      %v5308 = vpack.c.bf16 %v5288, %v5286
      %v5309 = vpack.c.bf16 %v5291, %v5289
      %v5310 = vpack.c.bf16 %v5292, %v5290
      %v5311 = vpack.c.bf16 %v5295, %v5293
      %v5312 = vpack.c.bf16 %v5296, %v5294
      %v5313 = vld [vmem:[%s13 + $0x200] sm:$0xf]
      %v5314 = vld [vmem:[%s13 + $0x204] sm:$0xf]
      %v5315 = vld [vmem:[%s13 + $0x208] sm:$0xf]
      %v5316 = vld [vmem:[%s13 + $0x20c] sm:$0xf]
      %v5317 = vld [vmem:[%s13 + $0x210] sm:$0xf]
      %v5318 = vld [vmem:[%s13 + $0x214] sm:$0xf]
      %v5319 = vld [vmem:[%s13 + $0x218] sm:$0xf]
      %v5320 = vld [vmem:[%s13 + $0x21c] sm:$0xf]
      %v5321 = vld [vmem:[%s13 + $0x220] sm:$0xf]
      %v5322 = vld [vmem:[%s13 + $0x224] sm:$0xf]
      %v5323 = vld [vmem:[%s13 + $0x228] sm:$0xf]
      %v5324 = vld [vmem:[%s13 + $0x22c] sm:$0xf]
      %v5325 = vld [vmem:[%s13 + $0x230] sm:$0xf]
      %v5326 = vld [vmem:[%s13 + $0x234] sm:$0xf]
      %v5327 = vld [vmem:[%s13 + $0x238] sm:$0xf]
      %v5328 = vld [vmem:[%s13 + $0x23c] sm:$0xf]
      %v5329 = vld [vmem:[%s13 + $0x240] sm:$0xf]
      %v5330 = vld [vmem:[%s13 + $0x244] sm:$0xf]
      %v5331 = vld [vmem:[%s13 + $0x248] sm:$0xf]
      %v5332 = vld [vmem:[%s13 + $0x24c] sm:$0xf]
      %v5333 = vld [vmem:[%s13 + $0x250] sm:$0xf]
      %v5334 = vld [vmem:[%s13 + $0x254] sm:$0xf]
      %v5335 = vld [vmem:[%s13 + $0x258] sm:$0xf]
      %v5336 = vld [vmem:[%s13 + $0x25c] sm:$0xf]
      %v5337 = vld [vmem:[%s13 + $0x260] sm:$0xf]
      %v5338 = vld [vmem:[%s13 + $0x264] sm:$0xf]
      %v5339 = vld [vmem:[%s13 + $0x268] sm:$0xf]
      %v5340 = vld [vmem:[%s13 + $0x26c] sm:$0xf]
      %v5341 = vld [vmem:[%s13 + $0x270] sm:$0xf]
      %v5342 = vld [vmem:[%s13 + $0x274] sm:$0xf]
      %v5343 = vld [vmem:[%s13 + $0x278] sm:$0xf]
      %v5344 = vld [vmem:[%s13 + $0x27c] sm:$0xf]
      %v5377 = vunpack.c.l.b16 %v5313
      %v5378 = vunpack.c.l.b16 %v5314
      %v5379 = vunpack.c.l.b16 %v5315
      %v5380 = vunpack.c.l.b16 %v5316
      %v5381 = vunpack.c.l.b16 %v5317
      %v5382 = vunpack.c.l.b16 %v5318
      %v5383 = vunpack.c.l.b16 %v5319
      %v5384 = vunpack.c.l.b16 %v5320
      %v5385 = vunpack.c.l.b16 %v5321
      %v5386 = vunpack.c.l.b16 %v5322
      %v5387 = vunpack.c.l.b16 %v5323
      %v5388 = vunpack.c.l.b16 %v5324
      %v5389 = vunpack.c.l.b16 %v5325
      %v5390 = vunpack.c.l.b16 %v5326
      %v5391 = vunpack.c.l.b16 %v5327
      %v5392 = vunpack.c.l.b16 %v5328
      %v5393 = vunpack.c.l.b16 %v5329
      %v5394 = vunpack.c.l.b16 %v5330
      %v5395 = vunpack.c.l.b16 %v5331
      %v5396 = vunpack.c.l.b16 %v5332
      %v5397 = vunpack.c.l.b16 %v5333
      %v5398 = vunpack.c.l.b16 %v5334
      %v5399 = vunpack.c.l.b16 %v5335
      %v5400 = vunpack.c.l.b16 %v5336
      %v5401 = vunpack.c.l.b16 %v5337
      %v5402 = vunpack.c.l.b16 %v5338
      %v5403 = vunpack.c.l.b16 %v5339
      %v5404 = vunpack.c.l.b16 %v5340
      %v5405 = vunpack.c.l.b16 %v5341
      %v5406 = vunpack.c.l.b16 %v5342
      %v5407 = vunpack.c.l.b16 %v5343
      %v5408 = vunpack.c.l.b16 %v5344
      %v5409 = vpack.c.b16 %v5378, %v5377
      %v5410 = vpack.c.b16 %v5380, %v5379
      %v5411 = vpack.c.b16 %v5382, %v5381
      %v5412 = vpack.c.b16 %v5384, %v5383
      %v5413 = vpack.c.b16 %v5386, %v5385
      %v5414 = vpack.c.b16 %v5388, %v5387
      %v5415 = vpack.c.b16 %v5390, %v5389
      %v5416 = vpack.c.b16 %v5392, %v5391
      %v5417 = vpack.c.b16 %v5394, %v5393
      %v5418 = vpack.c.b16 %v5396, %v5395
      %v5419 = vpack.c.b16 %v5398, %v5397
      %v5420 = vpack.c.b16 %v5400, %v5399
      %v5421 = vpack.c.b16 %v5402, %v5401
      %v5422 = vpack.c.b16 %v5404, %v5403
      %v5423 = vpack.c.b16 %v5406, %v5405
      %v5424 = vpack.c.b16 %v5408, %v5407
      %5441 = vmatpush.bf16.msra.mxu0 %v5416
      %5442 = vmatpush.bf16.msra.mxu0 %v5415
      %5443 = vmatpush.bf16.msra.mxu0 %v5414
      %5444 = vmatpush.bf16.msra.mxu0 %v5413
      %5445 = vmatpush.bf16.msra.mxu0 %v5412
      %5446 = vmatpush.bf16.msra.mxu0 %v5411
      %5447 = vmatpush.bf16.msra.mxu0 %v5410
      %5448 = vmatpush.bf16.msra.mxu0 %v5409
      %5449 = vmatmul.bf16.gmra.mxu0 %v5297
      %v5450 = vpop.f32.mrf.mxu0
      %v5451 = vadd.f32 0.0, %v5450
      %v5452 = vpop.f32.mrf.mxu0
      %v5453 = vadd.f32 0.0, %v5452
      %5454 = vmatmul.bf16.gmra.mxu0 %v5299
      %v5455 = vpop.f32.mrf.mxu0
      %v5456 = vadd.f32 0.0, %v5455
      %v5457 = vpop.f32.mrf.mxu0
      %v5458 = vadd.f32 0.0, %v5457
      %5459 = vmatmul.bf16.gmra.mxu0 %v5301
      %v5460 = vpop.f32.mrf.mxu0
      %v5461 = vadd.f32 0.0, %v5460
      %v5462 = vpop.f32.mrf.mxu0
      %v5463 = vadd.f32 0.0, %v5462
      %5464 = vmatmul.bf16.gmra.mxu0 %v5303
      %v5465 = vpop.f32.mrf.mxu0
      %v5466 = vadd.f32 0.0, %v5465
      %v5467 = vpop.f32.mrf.mxu0
      %v5468 = vadd.f32 0.0, %v5467
      %5469 = vmatmul.bf16.gmra.mxu0 %v5305
      %v5470 = vpop.f32.mrf.mxu0
      %v5471 = vadd.f32 0.0, %v5470
      %v5472 = vpop.f32.mrf.mxu0
      %v5473 = vadd.f32 0.0, %v5472
      %5474 = vmatmul.bf16.gmra.mxu0 %v5307
      %v5475 = vpop.f32.mrf.mxu0
      %v5476 = vadd.f32 0.0, %v5475
      %v5477 = vpop.f32.mrf.mxu0
      %v5478 = vadd.f32 0.0, %v5477
      %5479 = vmatmul.bf16.gmra.mxu0 %v5309
      %v5480 = vpop.f32.mrf.mxu0
      %v5481 = vadd.f32 0.0, %v5480
      %v5482 = vpop.f32.mrf.mxu0
      %v5483 = vadd.f32 0.0, %v5482
      %5484 = vmatmul.bf16.gmra.mxu0 %v5311
      %v5485 = vpop.f32.mrf.mxu0
      %v5486 = vadd.f32 0.0, %v5485
      %v5487 = vpop.f32.mrf.mxu0
      %v5488 = vadd.f32 0.0, %v5487
      %5489 = vdwg.mxu0
      %5490 = vmatpush.bf16.msra.mxu0 %v5424
      %5491 = vmatpush.bf16.msra.mxu0 %v5423
      %5492 = vmatpush.bf16.msra.mxu0 %v5422
      %5493 = vmatpush.bf16.msra.mxu0 %v5421
      %5494 = vmatpush.bf16.msra.mxu0 %v5420
      %5495 = vmatpush.bf16.msra.mxu0 %v5419
      %5496 = vmatpush.bf16.msra.mxu0 %v5418
      %5497 = vmatpush.bf16.msra.mxu0 %v5417
      %5498 = vmatmul.bf16.gmra.mxu0 %v5298
      %v5499 = vpop.f32.mrf.mxu0
      %v5500 = vadd.f32 %v5451, %v5499
      %v5501 = vpop.f32.mrf.mxu0
      %v5502 = vadd.f32 %v5453, %v5501
      %5503 = vmatmul.bf16.gmra.mxu0 %v5300
      %v5504 = vpop.f32.mrf.mxu0
      %v5505 = vadd.f32 %v5456, %v5504
      %v5506 = vpop.f32.mrf.mxu0
      %v5507 = vadd.f32 %v5458, %v5506
      %5508 = vmatmul.bf16.gmra.mxu0 %v5302
      %v5509 = vpop.f32.mrf.mxu0
      %v5510 = vadd.f32 %v5461, %v5509
      %v5511 = vpop.f32.mrf.mxu0
      %v5512 = vadd.f32 %v5463, %v5511
      %5513 = vmatmul.bf16.gmra.mxu0 %v5304
      %v5514 = vpop.f32.mrf.mxu0
      %v5515 = vadd.f32 %v5466, %v5514
      %v5516 = vpop.f32.mrf.mxu0
      %v5517 = vadd.f32 %v5468, %v5516
      %5518 = vmatmul.bf16.gmra.mxu0 %v5306
      %v5519 = vpop.f32.mrf.mxu0
      %v5520 = vadd.f32 %v5471, %v5519
      %v5521 = vpop.f32.mrf.mxu0
      %v5522 = vadd.f32 %v5473, %v5521
      %5523 = vmatmul.bf16.gmra.mxu0 %v5308
      %v5524 = vpop.f32.mrf.mxu0
      %v5525 = vadd.f32 %v5476, %v5524
      %v5526 = vpop.f32.mrf.mxu0
      %v5527 = vadd.f32 %v5478, %v5526
      %5528 = vmatmul.bf16.gmra.mxu0 %v5310
      %v5529 = vpop.f32.mrf.mxu0
      %v5530 = vadd.f32 %v5481, %v5529
      %v5531 = vpop.f32.mrf.mxu0
      %v5532 = vadd.f32 %v5483, %v5531
      %5533 = vmatmul.bf16.gmra.mxu0 %v5312
      %v5534 = vpop.f32.mrf.mxu0
      %v5535 = vadd.f32 %v5486, %v5534
      %v5536 = vpop.f32.mrf.mxu0
      %v5537 = vadd.f32 %v5488, %v5536
      %5538 = vdwg.mxu0
      %v5539 = vadd.f32 %v5097, %v5500
      %v5540 = vadd.f32 %v5098, %v5502
      %v5541 = vadd.f32 %v5099, %v5505
      %v5542 = vadd.f32 %v5100, %v5507
      %v5543 = vadd.f32 %v5101, %v5510
      %v5544 = vadd.f32 %v5102, %v5512
      %v5545 = vadd.f32 %v5103, %v5515
      %v5546 = vadd.f32 %v5104, %v5517
      %v5547 = vadd.f32 %v5105, %v5520
      %v5548 = vadd.f32 %v5106, %v5522
      %v5549 = vadd.f32 %v5107, %v5525
      %v5550 = vadd.f32 %v5108, %v5527
      %v5551 = vadd.f32 %v5109, %v5530
      %v5552 = vadd.f32 %v5110, %v5532
      %v5553 = vadd.f32 %v5111, %v5535
      %v5554 = vadd.f32 %v5112, %v5537
      %v5555 = vld [vmem:[%s11 + $0x28] sm:$0xff]
      %v5556 = vld [vmem:[%s11 + $0x68] sm:$0xff]
      %v5557 = vld [vmem:[%s11 + $0xa8] sm:$0xff]
      %v5558 = vld [vmem:[%s11 + $0xe8] sm:$0xff]
      %v5559 = vld [vmem:[%s11 + $0x128] sm:$0xff]
      %v5560 = vld [vmem:[%s11 + $0x168] sm:$0xff]
      %v5561 = vld [vmem:[%s11 + $0x1a8] sm:$0xff]
      %v5562 = vld [vmem:[%s11 + $0x1e8] sm:$0xff]
      %v5563 = vld [vmem:[%s12 + $0xa] sm:$0x3]
      %v5565 = vperm.slane %v5563, 0
      %v5566 = vperm.slane %v5563, 1
      %v5577 = vunpack.c.l.b16 %v5555
      %v5578 = vunpack.c.h.b16 %v5555
      %v5579 = vunpack.c.l.b16 %v5556
      %v5580 = vunpack.c.h.b16 %v5556
      %v5581 = vunpack.c.l.b16 %v5557
      %v5582 = vunpack.c.h.b16 %v5557
      %v5583 = vunpack.c.l.b16 %v5558
      %v5584 = vunpack.c.h.b16 %v5558
      %v5585 = vunpack.c.l.b16 %v5559
      %v5586 = vunpack.c.h.b16 %v5559
      %v5587 = vunpack.c.l.b16 %v5560
      %v5588 = vunpack.c.h.b16 %v5560
      %v5589 = vunpack.c.l.b16 %v5561
      %v5590 = vunpack.c.h.b16 %v5561
      %v5591 = vunpack.c.l.b16 %v5562
      %v5592 = vunpack.c.h.b16 %v5562
      %v5593 = vpack.c.b16 %v5579, %v5577
      %v5594 = vpack.c.b16 %v5580, %v5578
      %v5595 = vpack.c.b16 %v5583, %v5581
      %v5596 = vpack.c.b16 %v5584, %v5582
      %v5597 = vpack.c.b16 %v5587, %v5585
      %v5598 = vpack.c.b16 %v5588, %v5586
      %v5599 = vpack.c.b16 %v5591, %v5589
      %v5600 = vpack.c.b16 %v5592, %v5590
      %5609 = vmatpush.bf16.msra.mxu0 0
      %5610 = vmatpush.bf16.msra.mxu0 0
      %5611 = vmatpush.bf16.msra.mxu0 0
      %5612 = vmatpush.bf16.msra.mxu0 0
      %5613 = vmatpush.bf16.msra.mxu0 %v5599
      %5614 = vmatpush.bf16.msra.mxu0 %v5597
      %5615 = vmatpush.bf16.msra.mxu0 %v5595
      %5616 = vmatpush.bf16.msra.mxu0 %v5593
      %5617 = vmatmul.bf16.gmra.mxu0 %v3408
      %v5618 = vpop.f32.mrf.mxu0
      %v5619 = vadd.f32 %v5565, %v5618
      %v5620 = vpop.f32.mrf.mxu0
      %v5621 = vadd.f32 %v5565, %v5620
      %5622 = vmatmul.bf16.gmra.mxu0 %v3411
      %v5623 = vpop.f32.mrf.mxu0
      %v5624 = vadd.f32 %v5565, %v5623
      %v5625 = vpop.f32.mrf.mxu0
      %v5626 = vadd.f32 %v5565, %v5625
      %5627 = vmatmul.bf16.gmra.mxu0 %v3414
      %v5628 = vpop.f32.mrf.mxu0
      %v5629 = vadd.f32 %v5565, %v5628
      %v5630 = vpop.f32.mrf.mxu0
      %v5631 = vadd.f32 %v5565, %v5630
      %5632 = vmatmul.bf16.gmra.mxu0 %v3417
      %v5633 = vpop.f32.mrf.mxu0
      %v5634 = vadd.f32 %v5565, %v5633
      %v5635 = vpop.f32.mrf.mxu0
      %v5636 = vadd.f32 %v5565, %v5635
      %5637 = vmatmul.bf16.gmra.mxu0 %v3420
      %v5638 = vpop.f32.mrf.mxu0
      %v5639 = vadd.f32 %v5565, %v5638
      %v5640 = vpop.f32.mrf.mxu0
      %v5641 = vadd.f32 %v5565, %v5640
      %5642 = vmatmul.bf16.gmra.mxu0 %v3423
      %v5643 = vpop.f32.mrf.mxu0
      %v5644 = vadd.f32 %v5565, %v5643
      %v5645 = vpop.f32.mrf.mxu0
      %v5646 = vadd.f32 %v5565, %v5645
      %5647 = vmatmul.bf16.gmra.mxu0 %v3426
      %v5648 = vpop.f32.mrf.mxu0
      %v5649 = vadd.f32 %v5565, %v5648
      %v5650 = vpop.f32.mrf.mxu0
      %v5651 = vadd.f32 %v5565, %v5650
      %5652 = vmatmul.bf16.gmra.mxu0 %v3429
      %v5653 = vpop.f32.mrf.mxu0
      %v5654 = vadd.f32 %v5565, %v5653
      %v5655 = vpop.f32.mrf.mxu0
      %v5656 = vadd.f32 %v5565, %v5655
      %5657 = vdwg.mxu0
      %5658 = vmatpush.bf16.msra.mxu0 0
      %5659 = vmatpush.bf16.msra.mxu0 0
      %5660 = vmatpush.bf16.msra.mxu0 0
      %5661 = vmatpush.bf16.msra.mxu0 0
      %5662 = vmatpush.bf16.msra.mxu0 %v5600
      %5663 = vmatpush.bf16.msra.mxu0 %v5598
      %5664 = vmatpush.bf16.msra.mxu0 %v5596
      %5665 = vmatpush.bf16.msra.mxu0 %v5594
      %5666 = vmatmul.bf16.gmra.mxu0 %v3408
      %v5667 = vpop.f32.mrf.mxu0
      %v5668 = vadd.f32 %v5566, %v5667
      %v5669 = vpop.f32.mrf.mxu0
      %v5670 = vadd.f32 %v5566, %v5669
      %5671 = vmatmul.bf16.gmra.mxu0 %v3411
      %v5672 = vpop.f32.mrf.mxu0
      %v5673 = vadd.f32 %v5566, %v5672
      %v5674 = vpop.f32.mrf.mxu0
      %v5675 = vadd.f32 %v5566, %v5674
      %5676 = vmatmul.bf16.gmra.mxu0 %v3414
      %v5677 = vpop.f32.mrf.mxu0
      %v5678 = vadd.f32 %v5566, %v5677
      %v5679 = vpop.f32.mrf.mxu0
      %v5680 = vadd.f32 %v5566, %v5679
      %5681 = vmatmul.bf16.gmra.mxu0 %v3417
      %v5682 = vpop.f32.mrf.mxu0
      %v5683 = vadd.f32 %v5566, %v5682
      %v5684 = vpop.f32.mrf.mxu0
      %v5685 = vadd.f32 %v5566, %v5684
      %5686 = vmatmul.bf16.gmra.mxu0 %v3420
      %v5687 = vpop.f32.mrf.mxu0
      %v5688 = vadd.f32 %v5566, %v5687
      %v5689 = vpop.f32.mrf.mxu0
      %v5690 = vadd.f32 %v5566, %v5689
      %5691 = vmatmul.bf16.gmra.mxu0 %v3423
      %v5692 = vpop.f32.mrf.mxu0
      %v5693 = vadd.f32 %v5566, %v5692
      %v5694 = vpop.f32.mrf.mxu0
      %v5695 = vadd.f32 %v5566, %v5694
      %5696 = vmatmul.bf16.gmra.mxu0 %v3426
      %v5697 = vpop.f32.mrf.mxu0
      %v5698 = vadd.f32 %v5566, %v5697
      %v5699 = vpop.f32.mrf.mxu0
      %v5700 = vadd.f32 %v5566, %v5699
      %5701 = vmatmul.bf16.gmra.mxu0 %v3429
      %v5702 = vpop.f32.mrf.mxu0
      %v5703 = vadd.f32 %v5566, %v5702
      %v5704 = vpop.f32.mrf.mxu0
      %v5705 = vadd.f32 %v5566, %v5704
      %5706 = vdwg.mxu0
      %v5707 = vmax.f32 %v5619, 0.0
      %v5708 = vmax.f32 %v5668, 0.0
      %v5709 = vmax.f32 %v5621, 0.0
      %v5710 = vmax.f32 %v5670, 0.0
      %v5711 = vmax.f32 %v5624, 0.0
      %v5712 = vmax.f32 %v5673, 0.0
      %v5713 = vmax.f32 %v5626, 0.0
      %v5714 = vmax.f32 %v5675, 0.0
      %v5715 = vmax.f32 %v5629, 0.0
      %v5716 = vmax.f32 %v5678, 0.0
      %v5717 = vmax.f32 %v5631, 0.0
      %v5718 = vmax.f32 %v5680, 0.0
      %v5719 = vmax.f32 %v5634, 0.0
      %v5720 = vmax.f32 %v5683, 0.0
      %v5721 = vmax.f32 %v5636, 0.0
      %v5722 = vmax.f32 %v5685, 0.0
      %v5723 = vmax.f32 %v5639, 0.0
      %v5724 = vmax.f32 %v5688, 0.0
      %v5725 = vmax.f32 %v5641, 0.0
      %v5726 = vmax.f32 %v5690, 0.0
      %v5727 = vmax.f32 %v5644, 0.0
      %v5728 = vmax.f32 %v5693, 0.0
      %v5729 = vmax.f32 %v5646, 0.0
      %v5730 = vmax.f32 %v5695, 0.0
      %v5731 = vmax.f32 %v5649, 0.0
      %v5732 = vmax.f32 %v5698, 0.0
      %v5733 = vmax.f32 %v5651, 0.0
      %v5734 = vmax.f32 %v5700, 0.0
      %v5735 = vmax.f32 %v5654, 0.0
      %v5736 = vmax.f32 %v5703, 0.0
      %v5737 = vmax.f32 %v5656, 0.0
      %v5738 = vmax.f32 %v5705, 0.0
      %v5739 = vpack.c.bf16 %v5709, %v5707
      %v5740 = vpack.c.bf16 %v5710, %v5708
      %v5741 = vpack.c.bf16 %v5713, %v5711
      %v5742 = vpack.c.bf16 %v5714, %v5712
      %v5743 = vpack.c.bf16 %v5717, %v5715
      %v5744 = vpack.c.bf16 %v5718, %v5716
      %v5745 = vpack.c.bf16 %v5721, %v5719
      %v5746 = vpack.c.bf16 %v5722, %v5720
      %v5747 = vpack.c.bf16 %v5725, %v5723
      %v5748 = vpack.c.bf16 %v5726, %v5724
      %v5749 = vpack.c.bf16 %v5729, %v5727
      %v5750 = vpack.c.bf16 %v5730, %v5728
      %v5751 = vpack.c.bf16 %v5733, %v5731
      %v5752 = vpack.c.bf16 %v5734, %v5732
      %v5753 = vpack.c.bf16 %v5737, %v5735
      %v5754 = vpack.c.bf16 %v5738, %v5736
      %v5755 = vld [vmem:[%s13 + $0x280] sm:$0xf]
      %v5756 = vld [vmem:[%s13 + $0x284] sm:$0xf]
      %v5757 = vld [vmem:[%s13 + $0x288] sm:$0xf]
      %v5758 = vld [vmem:[%s13 + $0x28c] sm:$0xf]
      %v5759 = vld [vmem:[%s13 + $0x290] sm:$0xf]
      %v5760 = vld [vmem:[%s13 + $0x294] sm:$0xf]
      %v5761 = vld [vmem:[%s13 + $0x298] sm:$0xf]
      %v5762 = vld [vmem:[%s13 + $0x29c] sm:$0xf]
      %v5763 = vld [vmem:[%s13 + $0x2a0] sm:$0xf]
      %v5764 = vld [vmem:[%s13 + $0x2a4] sm:$0xf]
      %v5765 = vld [vmem:[%s13 + $0x2a8] sm:$0xf]
      %v5766 = vld [vmem:[%s13 + $0x2ac] sm:$0xf]
      %v5767 = vld [vmem:[%s13 + $0x2b0] sm:$0xf]
      %v5768 = vld [vmem:[%s13 + $0x2b4] sm:$0xf]
      %v5769 = vld [vmem:[%s13 + $0x2b8] sm:$0xf]
      %v5770 = vld [vmem:[%s13 + $0x2bc] sm:$0xf]
      %v5771 = vld [vmem:[%s13 + $0x2c0] sm:$0xf]
      %v5772 = vld [vmem:[%s13 + $0x2c4] sm:$0xf]
      %v5773 = vld [vmem:[%s13 + $0x2c8] sm:$0xf]
      %v5774 = vld [vmem:[%s13 + $0x2cc] sm:$0xf]
      %v5775 = vld [vmem:[%s13 + $0x2d0] sm:$0xf]
      %v5776 = vld [vmem:[%s13 + $0x2d4] sm:$0xf]
      %v5777 = vld [vmem:[%s13 + $0x2d8] sm:$0xf]
      %v5778 = vld [vmem:[%s13 + $0x2dc] sm:$0xf]
      %v5779 = vld [vmem:[%s13 + $0x2e0] sm:$0xf]
      %v5780 = vld [vmem:[%s13 + $0x2e4] sm:$0xf]
      %v5781 = vld [vmem:[%s13 + $0x2e8] sm:$0xf]
      %v5782 = vld [vmem:[%s13 + $0x2ec] sm:$0xf]
      %v5783 = vld [vmem:[%s13 + $0x2f0] sm:$0xf]
      %v5784 = vld [vmem:[%s13 + $0x2f4] sm:$0xf]
      %v5785 = vld [vmem:[%s13 + $0x2f8] sm:$0xf]
      %v5786 = vld [vmem:[%s13 + $0x2fc] sm:$0xf]
      %v5819 = vunpack.c.l.b16 %v5755
      %v5820 = vunpack.c.l.b16 %v5756
      %v5821 = vunpack.c.l.b16 %v5757
      %v5822 = vunpack.c.l.b16 %v5758
      %v5823 = vunpack.c.l.b16 %v5759
      %v5824 = vunpack.c.l.b16 %v5760
      %v5825 = vunpack.c.l.b16 %v5761
      %v5826 = vunpack.c.l.b16 %v5762
      %v5827 = vunpack.c.l.b16 %v5763
      %v5828 = vunpack.c.l.b16 %v5764
      %v5829 = vunpack.c.l.b16 %v5765
      %v5830 = vunpack.c.l.b16 %v5766
      %v5831 = vunpack.c.l.b16 %v5767
      %v5832 = vunpack.c.l.b16 %v5768
      %v5833 = vunpack.c.l.b16 %v5769
      %v5834 = vunpack.c.l.b16 %v5770
      %v5835 = vunpack.c.l.b16 %v5771
      %v5836 = vunpack.c.l.b16 %v5772
      %v5837 = vunpack.c.l.b16 %v5773
      %v5838 = vunpack.c.l.b16 %v5774
      %v5839 = vunpack.c.l.b16 %v5775
      %v5840 = vunpack.c.l.b16 %v5776
      %v5841 = vunpack.c.l.b16 %v5777
      %v5842 = vunpack.c.l.b16 %v5778
      %v5843 = vunpack.c.l.b16 %v5779
      %v5844 = vunpack.c.l.b16 %v5780
      %v5845 = vunpack.c.l.b16 %v5781
      %v5846 = vunpack.c.l.b16 %v5782
      %v5847 = vunpack.c.l.b16 %v5783
      %v5848 = vunpack.c.l.b16 %v5784
      %v5849 = vunpack.c.l.b16 %v5785
      %v5850 = vunpack.c.l.b16 %v5786
      %v5851 = vpack.c.b16 %v5820, %v5819
      %v5852 = vpack.c.b16 %v5822, %v5821
      %v5853 = vpack.c.b16 %v5824, %v5823
      %v5854 = vpack.c.b16 %v5826, %v5825
      %v5855 = vpack.c.b16 %v5828, %v5827
      %v5856 = vpack.c.b16 %v5830, %v5829
      %v5857 = vpack.c.b16 %v5832, %v5831
      %v5858 = vpack.c.b16 %v5834, %v5833
      %v5859 = vpack.c.b16 %v5836, %v5835
      %v5860 = vpack.c.b16 %v5838, %v5837
      %v5861 = vpack.c.b16 %v5840, %v5839
      %v5862 = vpack.c.b16 %v5842, %v5841
      %v5863 = vpack.c.b16 %v5844, %v5843
      %v5864 = vpack.c.b16 %v5846, %v5845
      %v5865 = vpack.c.b16 %v5848, %v5847
      %v5866 = vpack.c.b16 %v5850, %v5849
      %5883 = vmatpush.bf16.msra.mxu0 %v5858
      %5884 = vmatpush.bf16.msra.mxu0 %v5857
      %5885 = vmatpush.bf16.msra.mxu0 %v5856
      %5886 = vmatpush.bf16.msra.mxu0 %v5855
      %5887 = vmatpush.bf16.msra.mxu0 %v5854
      %5888 = vmatpush.bf16.msra.mxu0 %v5853
      %5889 = vmatpush.bf16.msra.mxu0 %v5852
      %5890 = vmatpush.bf16.msra.mxu0 %v5851
      %5891 = vmatmul.bf16.gmra.mxu0 %v5739
      %v5892 = vpop.f32.mrf.mxu0
      %v5893 = vadd.f32 0.0, %v5892
      %v5894 = vpop.f32.mrf.mxu0
      %v5895 = vadd.f32 0.0, %v5894
      %5896 = vmatmul.bf16.gmra.mxu0 %v5741
      %v5897 = vpop.f32.mrf.mxu0
      %v5898 = vadd.f32 0.0, %v5897
      %v5899 = vpop.f32.mrf.mxu0
      %v5900 = vadd.f32 0.0, %v5899
      %5901 = vmatmul.bf16.gmra.mxu0 %v5743
      %v5902 = vpop.f32.mrf.mxu0
      %v5903 = vadd.f32 0.0, %v5902
      %v5904 = vpop.f32.mrf.mxu0
      %v5905 = vadd.f32 0.0, %v5904
      %5906 = vmatmul.bf16.gmra.mxu0 %v5745
      %v5907 = vpop.f32.mrf.mxu0
      %v5908 = vadd.f32 0.0, %v5907
      %v5909 = vpop.f32.mrf.mxu0
      %v5910 = vadd.f32 0.0, %v5909
      %5911 = vmatmul.bf16.gmra.mxu0 %v5747
      %v5912 = vpop.f32.mrf.mxu0
      %v5913 = vadd.f32 0.0, %v5912
      %v5914 = vpop.f32.mrf.mxu0
      %v5915 = vadd.f32 0.0, %v5914
      %5916 = vmatmul.bf16.gmra.mxu0 %v5749
      %v5917 = vpop.f32.mrf.mxu0
      %v5918 = vadd.f32 0.0, %v5917
      %v5919 = vpop.f32.mrf.mxu0
      %v5920 = vadd.f32 0.0, %v5919
      %5921 = vmatmul.bf16.gmra.mxu0 %v5751
      %v5922 = vpop.f32.mrf.mxu0
      %v5923 = vadd.f32 0.0, %v5922
      %v5924 = vpop.f32.mrf.mxu0
      %v5925 = vadd.f32 0.0, %v5924
      %5926 = vmatmul.bf16.gmra.mxu0 %v5753
      %v5927 = vpop.f32.mrf.mxu0
      %v5928 = vadd.f32 0.0, %v5927
      %v5929 = vpop.f32.mrf.mxu0
      %v5930 = vadd.f32 0.0, %v5929
      %5931 = vdwg.mxu0
      %5932 = vmatpush.bf16.msra.mxu0 %v5866
      %5933 = vmatpush.bf16.msra.mxu0 %v5865
      %5934 = vmatpush.bf16.msra.mxu0 %v5864
      %5935 = vmatpush.bf16.msra.mxu0 %v5863
      %5936 = vmatpush.bf16.msra.mxu0 %v5862
      %5937 = vmatpush.bf16.msra.mxu0 %v5861
      %5938 = vmatpush.bf16.msra.mxu0 %v5860
      %5939 = vmatpush.bf16.msra.mxu0 %v5859
      %5940 = vmatmul.bf16.gmra.mxu0 %v5740
      %v5941 = vpop.f32.mrf.mxu0
      %v5942 = vadd.f32 %v5893, %v5941
      %v5943 = vpop.f32.mrf.mxu0
      %v5944 = vadd.f32 %v5895, %v5943
      %5945 = vmatmul.bf16.gmra.mxu0 %v5742
      %v5946 = vpop.f32.mrf.mxu0
      %v5947 = vadd.f32 %v5898, %v5946
      %v5948 = vpop.f32.mrf.mxu0
      %v5949 = vadd.f32 %v5900, %v5948
      %5950 = vmatmul.bf16.gmra.mxu0 %v5744
      %v5951 = vpop.f32.mrf.mxu0
      %v5952 = vadd.f32 %v5903, %v5951
      %v5953 = vpop.f32.mrf.mxu0
      %v5954 = vadd.f32 %v5905, %v5953
      %5955 = vmatmul.bf16.gmra.mxu0 %v5746
      %v5956 = vpop.f32.mrf.mxu0
      %v5957 = vadd.f32 %v5908, %v5956
      %v5958 = vpop.f32.mrf.mxu0
      %v5959 = vadd.f32 %v5910, %v5958
      %5960 = vmatmul.bf16.gmra.mxu0 %v5748
      %v5961 = vpop.f32.mrf.mxu0
      %v5962 = vadd.f32 %v5913, %v5961
      %v5963 = vpop.f32.mrf.mxu0
      %v5964 = vadd.f32 %v5915, %v5963
      %5965 = vmatmul.bf16.gmra.mxu0 %v5750
      %v5966 = vpop.f32.mrf.mxu0
      %v5967 = vadd.f32 %v5918, %v5966
      %v5968 = vpop.f32.mrf.mxu0
      %v5969 = vadd.f32 %v5920, %v5968
      %5970 = vmatmul.bf16.gmra.mxu0 %v5752
      %v5971 = vpop.f32.mrf.mxu0
      %v5972 = vadd.f32 %v5923, %v5971
      %v5973 = vpop.f32.mrf.mxu0
      %v5974 = vadd.f32 %v5925, %v5973
      %5975 = vmatmul.bf16.gmra.mxu0 %v5754
      %v5976 = vpop.f32.mrf.mxu0
      %v5977 = vadd.f32 %v5928, %v5976
      %v5978 = vpop.f32.mrf.mxu0
      %v5979 = vadd.f32 %v5930, %v5978
      %5980 = vdwg.mxu0
      %v5981 = vadd.f32 %v5539, %v5942
      %v5982 = vadd.f32 %v5540, %v5944
      %v5983 = vadd.f32 %v5541, %v5947
      %v5984 = vadd.f32 %v5542, %v5949
      %v5985 = vadd.f32 %v5543, %v5952
      %v5986 = vadd.f32 %v5544, %v5954
      %v5987 = vadd.f32 %v5545, %v5957
      %v5988 = vadd.f32 %v5546, %v5959
      %v5989 = vadd.f32 %v5547, %v5962
      %v5990 = vadd.f32 %v5548, %v5964
      %v5991 = vadd.f32 %v5549, %v5967
      %v5992 = vadd.f32 %v5550, %v5969
      %v5993 = vadd.f32 %v5551, %v5972
      %v5994 = vadd.f32 %v5552, %v5974
      %v5995 = vadd.f32 %v5553, %v5977
      %v5996 = vadd.f32 %v5554, %v5979
      %v5997 = vld [vmem:[%s11 + $0x30] sm:$0xff]
      %v5998 = vld [vmem:[%s11 + $0x70] sm:$0xff]
      %v5999 = vld [vmem:[%s11 + $0xb0] sm:$0xff]
      %v6000 = vld [vmem:[%s11 + $0xf0] sm:$0xff]
      %v6001 = vld [vmem:[%s11 + $0x130] sm:$0xff]
      %v6002 = vld [vmem:[%s11 + $0x170] sm:$0xff]
      %v6003 = vld [vmem:[%s11 + $0x1b0] sm:$0xff]
      %v6004 = vld [vmem:[%s11 + $0x1f0] sm:$0xff]
      %v6005 = vld [vmem:[%s12 + $0xc] sm:$0x3]
      %v6007 = vperm.slane %v6005, 0
      %v6008 = vperm.slane %v6005, 1
      %v6019 = vunpack.c.l.b16 %v5997
      %v6020 = vunpack.c.h.b16 %v5997
      %v6021 = vunpack.c.l.b16 %v5998
      %v6022 = vunpack.c.h.b16 %v5998
      %v6023 = vunpack.c.l.b16 %v5999
      %v6024 = vunpack.c.h.b16 %v5999
      %v6025 = vunpack.c.l.b16 %v6000
      %v6026 = vunpack.c.h.b16 %v6000
      %v6027 = vunpack.c.l.b16 %v6001
      %v6028 = vunpack.c.h.b16 %v6001
      %v6029 = vunpack.c.l.b16 %v6002
      %v6030 = vunpack.c.h.b16 %v6002
      %v6031 = vunpack.c.l.b16 %v6003
      %v6032 = vunpack.c.h.b16 %v6003
      %v6033 = vunpack.c.l.b16 %v6004
      %v6034 = vunpack.c.h.b16 %v6004
      %v6035 = vpack.c.b16 %v6021, %v6019
      %v6036 = vpack.c.b16 %v6022, %v6020
      %v6037 = vpack.c.b16 %v6025, %v6023
      %v6038 = vpack.c.b16 %v6026, %v6024
      %v6039 = vpack.c.b16 %v6029, %v6027
      %v6040 = vpack.c.b16 %v6030, %v6028
      %v6041 = vpack.c.b16 %v6033, %v6031
      %v6042 = vpack.c.b16 %v6034, %v6032
      %6051 = vmatpush.bf16.msra.mxu0 0
      %6052 = vmatpush.bf16.msra.mxu0 0
      %6053 = vmatpush.bf16.msra.mxu0 0
      %6054 = vmatpush.bf16.msra.mxu0 0
      %6055 = vmatpush.bf16.msra.mxu0 %v6041
      %6056 = vmatpush.bf16.msra.mxu0 %v6039
      %6057 = vmatpush.bf16.msra.mxu0 %v6037
      %6058 = vmatpush.bf16.msra.mxu0 %v6035
      %6059 = vmatmul.bf16.gmra.mxu0 %v3408
      %v6060 = vpop.f32.mrf.mxu0
      %v6061 = vadd.f32 %v6007, %v6060
      %v6062 = vpop.f32.mrf.mxu0
      %v6063 = vadd.f32 %v6007, %v6062
      %6064 = vmatmul.bf16.gmra.mxu0 %v3411
      %v6065 = vpop.f32.mrf.mxu0
      %v6066 = vadd.f32 %v6007, %v6065
      %v6067 = vpop.f32.mrf.mxu0
      %v6068 = vadd.f32 %v6007, %v6067
      %6069 = vmatmul.bf16.gmra.mxu0 %v3414
      %v6070 = vpop.f32.mrf.mxu0
      %v6071 = vadd.f32 %v6007, %v6070
      %v6072 = vpop.f32.mrf.mxu0
      %v6073 = vadd.f32 %v6007, %v6072
      %6074 = vmatmul.bf16.gmra.mxu0 %v3417
      %v6075 = vpop.f32.mrf.mxu0
      %v6076 = vadd.f32 %v6007, %v6075
      %v6077 = vpop.f32.mrf.mxu0
      %v6078 = vadd.f32 %v6007, %v6077
      %6079 = vmatmul.bf16.gmra.mxu0 %v3420
      %v6080 = vpop.f32.mrf.mxu0
      %v6081 = vadd.f32 %v6007, %v6080
      %v6082 = vpop.f32.mrf.mxu0
      %v6083 = vadd.f32 %v6007, %v6082
      %6084 = vmatmul.bf16.gmra.mxu0 %v3423
      %v6085 = vpop.f32.mrf.mxu0
      %v6086 = vadd.f32 %v6007, %v6085
      %v6087 = vpop.f32.mrf.mxu0
      %v6088 = vadd.f32 %v6007, %v6087
      %6089 = vmatmul.bf16.gmra.mxu0 %v3426
      %v6090 = vpop.f32.mrf.mxu0
      %v6091 = vadd.f32 %v6007, %v6090
      %v6092 = vpop.f32.mrf.mxu0
      %v6093 = vadd.f32 %v6007, %v6092
      %6094 = vmatmul.bf16.gmra.mxu0 %v3429
      %v6095 = vpop.f32.mrf.mxu0
      %v6096 = vadd.f32 %v6007, %v6095
      %v6097 = vpop.f32.mrf.mxu0
      %v6098 = vadd.f32 %v6007, %v6097
      %6099 = vdwg.mxu0
      %6100 = vmatpush.bf16.msra.mxu0 0
      %6101 = vmatpush.bf16.msra.mxu0 0
      %6102 = vmatpush.bf16.msra.mxu0 0
      %6103 = vmatpush.bf16.msra.mxu0 0
      %6104 = vmatpush.bf16.msra.mxu0 %v6042
      %6105 = vmatpush.bf16.msra.mxu0 %v6040
      %6106 = vmatpush.bf16.msra.mxu0 %v6038
      %6107 = vmatpush.bf16.msra.mxu0 %v6036
      %6108 = vmatmul.bf16.gmra.mxu0 %v3408
      %v6109 = vpop.f32.mrf.mxu0
      %v6110 = vadd.f32 %v6008, %v6109
      %v6111 = vpop.f32.mrf.mxu0
      %v6112 = vadd.f32 %v6008, %v6111
      %6113 = vmatmul.bf16.gmra.mxu0 %v3411
      %v6114 = vpop.f32.mrf.mxu0
      %v6115 = vadd.f32 %v6008, %v6114
      %v6116 = vpop.f32.mrf.mxu0
      %v6117 = vadd.f32 %v6008, %v6116
      %6118 = vmatmul.bf16.gmra.mxu0 %v3414
      %v6119 = vpop.f32.mrf.mxu0
      %v6120 = vadd.f32 %v6008, %v6119
      %v6121 = vpop.f32.mrf.mxu0
      %v6122 = vadd.f32 %v6008, %v6121
      %6123 = vmatmul.bf16.gmra.mxu0 %v3417
      %v6124 = vpop.f32.mrf.mxu0
      %v6125 = vadd.f32 %v6008, %v6124
      %v6126 = vpop.f32.mrf.mxu0
      %v6127 = vadd.f32 %v6008, %v6126
      %6128 = vmatmul.bf16.gmra.mxu0 %v3420
      %v6129 = vpop.f32.mrf.mxu0
      %v6130 = vadd.f32 %v6008, %v6129
      %v6131 = vpop.f32.mrf.mxu0
      %v6132 = vadd.f32 %v6008, %v6131
      %6133 = vmatmul.bf16.gmra.mxu0 %v3423
      %v6134 = vpop.f32.mrf.mxu0
      %v6135 = vadd.f32 %v6008, %v6134
      %v6136 = vpop.f32.mrf.mxu0
      %v6137 = vadd.f32 %v6008, %v6136
      %6138 = vmatmul.bf16.gmra.mxu0 %v3426
      %v6139 = vpop.f32.mrf.mxu0
      %v6140 = vadd.f32 %v6008, %v6139
      %v6141 = vpop.f32.mrf.mxu0
      %v6142 = vadd.f32 %v6008, %v6141
      %6143 = vmatmul.bf16.gmra.mxu0 %v3429
      %v6144 = vpop.f32.mrf.mxu0
      %v6145 = vadd.f32 %v6008, %v6144
      %v6146 = vpop.f32.mrf.mxu0
      %v6147 = vadd.f32 %v6008, %v6146
      %6148 = vdwg.mxu0
      %v6149 = vmax.f32 %v6061, 0.0
      %v6150 = vmax.f32 %v6110, 0.0
      %v6151 = vmax.f32 %v6063, 0.0
      %v6152 = vmax.f32 %v6112, 0.0
      %v6153 = vmax.f32 %v6066, 0.0
      %v6154 = vmax.f32 %v6115, 0.0
      %v6155 = vmax.f32 %v6068, 0.0
      %v6156 = vmax.f32 %v6117, 0.0
      %v6157 = vmax.f32 %v6071, 0.0
      %v6158 = vmax.f32 %v6120, 0.0
      %v6159 = vmax.f32 %v6073, 0.0
      %v6160 = vmax.f32 %v6122, 0.0
      %v6161 = vmax.f32 %v6076, 0.0
      %v6162 = vmax.f32 %v6125, 0.0
      %v6163 = vmax.f32 %v6078, 0.0
      %v6164 = vmax.f32 %v6127, 0.0
      %v6165 = vmax.f32 %v6081, 0.0
      %v6166 = vmax.f32 %v6130, 0.0
      %v6167 = vmax.f32 %v6083, 0.0
      %v6168 = vmax.f32 %v6132, 0.0
      %v6169 = vmax.f32 %v6086, 0.0
      %v6170 = vmax.f32 %v6135, 0.0
      %v6171 = vmax.f32 %v6088, 0.0
      %v6172 = vmax.f32 %v6137, 0.0
      %v6173 = vmax.f32 %v6091, 0.0
      %v6174 = vmax.f32 %v6140, 0.0
      %v6175 = vmax.f32 %v6093, 0.0
      %v6176 = vmax.f32 %v6142, 0.0
      %v6177 = vmax.f32 %v6096, 0.0
      %v6178 = vmax.f32 %v6145, 0.0
      %v6179 = vmax.f32 %v6098, 0.0
      %v6180 = vmax.f32 %v6147, 0.0
      %v6181 = vpack.c.bf16 %v6151, %v6149
      %v6182 = vpack.c.bf16 %v6152, %v6150
      %v6183 = vpack.c.bf16 %v6155, %v6153
      %v6184 = vpack.c.bf16 %v6156, %v6154
      %v6185 = vpack.c.bf16 %v6159, %v6157
      %v6186 = vpack.c.bf16 %v6160, %v6158
      %v6187 = vpack.c.bf16 %v6163, %v6161
      %v6188 = vpack.c.bf16 %v6164, %v6162
      %v6189 = vpack.c.bf16 %v6167, %v6165
      %v6190 = vpack.c.bf16 %v6168, %v6166
      %v6191 = vpack.c.bf16 %v6171, %v6169
      %v6192 = vpack.c.bf16 %v6172, %v6170
      %v6193 = vpack.c.bf16 %v6175, %v6173
      %v6194 = vpack.c.bf16 %v6176, %v6174
      %v6195 = vpack.c.bf16 %v6179, %v6177
      %v6196 = vpack.c.bf16 %v6180, %v6178
      %v6197 = vld [vmem:[%s13 + $0x300] sm:$0xf]
      %v6198 = vld [vmem:[%s13 + $0x304] sm:$0xf]
      %v6199 = vld [vmem:[%s13 + $0x308] sm:$0xf]
      %v6200 = vld [vmem:[%s13 + $0x30c] sm:$0xf]
      %v6201 = vld [vmem:[%s13 + $0x310] sm:$0xf]
      %v6202 = vld [vmem:[%s13 + $0x314] sm:$0xf]
      %v6203 = vld [vmem:[%s13 + $0x318] sm:$0xf]
      %v6204 = vld [vmem:[%s13 + $0x31c] sm:$0xf]
      %v6205 = vld [vmem:[%s13 + $0x320] sm:$0xf]
      %v6206 = vld [vmem:[%s13 + $0x324] sm:$0xf]
      %v6207 = vld [vmem:[%s13 + $0x328] sm:$0xf]
      %v6208 = vld [vmem:[%s13 + $0x32c] sm:$0xf]
      %v6209 = vld [vmem:[%s13 + $0x330] sm:$0xf]
      %v6210 = vld [vmem:[%s13 + $0x334] sm:$0xf]
      %v6211 = vld [vmem:[%s13 + $0x338] sm:$0xf]
      %v6212 = vld [vmem:[%s13 + $0x33c] sm:$0xf]
      %v6213 = vld [vmem:[%s13 + $0x340] sm:$0xf]
      %v6214 = vld [vmem:[%s13 + $0x344] sm:$0xf]
      %v6215 = vld [vmem:[%s13 + $0x348] sm:$0xf]
      %v6216 = vld [vmem:[%s13 + $0x34c] sm:$0xf]
      %v6217 = vld [vmem:[%s13 + $0x350] sm:$0xf]
      %v6218 = vld [vmem:[%s13 + $0x354] sm:$0xf]
      %v6219 = vld [vmem:[%s13 + $0x358] sm:$0xf]
      %v6220 = vld [vmem:[%s13 + $0x35c] sm:$0xf]
      %v6221 = vld [vmem:[%s13 + $0x360] sm:$0xf]
      %v6222 = vld [vmem:[%s13 + $0x364] sm:$0xf]
      %v6223 = vld [vmem:[%s13 + $0x368] sm:$0xf]
      %v6224 = vld [vmem:[%s13 + $0x36c] sm:$0xf]
      %v6225 = vld [vmem:[%s13 + $0x370] sm:$0xf]
      %v6226 = vld [vmem:[%s13 + $0x374] sm:$0xf]
      %v6227 = vld [vmem:[%s13 + $0x378] sm:$0xf]
      %v6228 = vld [vmem:[%s13 + $0x37c] sm:$0xf]
      %v6261 = vunpack.c.l.b16 %v6197
      %v6262 = vunpack.c.l.b16 %v6198
      %v6263 = vunpack.c.l.b16 %v6199
      %v6264 = vunpack.c.l.b16 %v6200
      %v6265 = vunpack.c.l.b16 %v6201
      %v6266 = vunpack.c.l.b16 %v6202
      %v6267 = vunpack.c.l.b16 %v6203
      %v6268 = vunpack.c.l.b16 %v6204
      %v6269 = vunpack.c.l.b16 %v6205
      %v6270 = vunpack.c.l.b16 %v6206
      %v6271 = vunpack.c.l.b16 %v6207
      %v6272 = vunpack.c.l.b16 %v6208
      %v6273 = vunpack.c.l.b16 %v6209
      %v6274 = vunpack.c.l.b16 %v6210
      %v6275 = vunpack.c.l.b16 %v6211
      %v6276 = vunpack.c.l.b16 %v6212
      %v6277 = vunpack.c.l.b16 %v6213
      %v6278 = vunpack.c.l.b16 %v6214
      %v6279 = vunpack.c.l.b16 %v6215
      %v6280 = vunpack.c.l.b16 %v6216
      %v6281 = vunpack.c.l.b16 %v6217
      %v6282 = vunpack.c.l.b16 %v6218
      %v6283 = vunpack.c.l.b16 %v6219
      %v6284 = vunpack.c.l.b16 %v6220
      %v6285 = vunpack.c.l.b16 %v6221
      %v6286 = vunpack.c.l.b16 %v6222
      %v6287 = vunpack.c.l.b16 %v6223
      %v6288 = vunpack.c.l.b16 %v6224
      %v6289 = vunpack.c.l.b16 %v6225
      %v6290 = vunpack.c.l.b16 %v6226
      %v6291 = vunpack.c.l.b16 %v6227
      %v6292 = vunpack.c.l.b16 %v6228
      %v6293 = vpack.c.b16 %v6262, %v6261
      %v6294 = vpack.c.b16 %v6264, %v6263
      %v6295 = vpack.c.b16 %v6266, %v6265
      %v6296 = vpack.c.b16 %v6268, %v6267
      %v6297 = vpack.c.b16 %v6270, %v6269
      %v6298 = vpack.c.b16 %v6272, %v6271
      %v6299 = vpack.c.b16 %v6274, %v6273
      %v6300 = vpack.c.b16 %v6276, %v6275
      %v6301 = vpack.c.b16 %v6278, %v6277
      %v6302 = vpack.c.b16 %v6280, %v6279
      %v6303 = vpack.c.b16 %v6282, %v6281
      %v6304 = vpack.c.b16 %v6284, %v6283
      %v6305 = vpack.c.b16 %v6286, %v6285
      %v6306 = vpack.c.b16 %v6288, %v6287
      %v6307 = vpack.c.b16 %v6290, %v6289
      %v6308 = vpack.c.b16 %v6292, %v6291
      %6325 = vmatpush.bf16.msra.mxu0 %v6300
      %6326 = vmatpush.bf16.msra.mxu0 %v6299
      %6327 = vmatpush.bf16.msra.mxu0 %v6298
      %6328 = vmatpush.bf16.msra.mxu0 %v6297
      %6329 = vmatpush.bf16.msra.mxu0 %v6296
      %6330 = vmatpush.bf16.msra.mxu0 %v6295
      %6331 = vmatpush.bf16.msra.mxu0 %v6294
      %6332 = vmatpush.bf16.msra.mxu0 %v6293
      %6333 = vmatmul.bf16.gmra.mxu0 %v6181
      %v6334 = vpop.f32.mrf.mxu0
      %v6335 = vadd.f32 0.0, %v6334
      %v6336 = vpop.f32.mrf.mxu0
      %v6337 = vadd.f32 0.0, %v6336
      %6338 = vmatmul.bf16.gmra.mxu0 %v6183
      %v6339 = vpop.f32.mrf.mxu0
      %v6340 = vadd.f32 0.0, %v6339
      %v6341 = vpop.f32.mrf.mxu0
      %v6342 = vadd.f32 0.0, %v6341
      %6343 = vmatmul.bf16.gmra.mxu0 %v6185
      %v6344 = vpop.f32.mrf.mxu0
      %v6345 = vadd.f32 0.0, %v6344
      %v6346 = vpop.f32.mrf.mxu0
      %v6347 = vadd.f32 0.0, %v6346
      %6348 = vmatmul.bf16.gmra.mxu0 %v6187
      %v6349 = vpop.f32.mrf.mxu0
      %v6350 = vadd.f32 0.0, %v6349
      %v6351 = vpop.f32.mrf.mxu0
      %v6352 = vadd.f32 0.0, %v6351
      %6353 = vmatmul.bf16.gmra.mxu0 %v6189
      %v6354 = vpop.f32.mrf.mxu0
      %v6355 = vadd.f32 0.0, %v6354
      %v6356 = vpop.f32.mrf.mxu0
      %v6357 = vadd.f32 0.0, %v6356
      %6358 = vmatmul.bf16.gmra.mxu0 %v6191
      %v6359 = vpop.f32.mrf.mxu0
      %v6360 = vadd.f32 0.0, %v6359
      %v6361 = vpop.f32.mrf.mxu0
      %v6362 = vadd.f32 0.0, %v6361
      %6363 = vmatmul.bf16.gmra.mxu0 %v6193
      %v6364 = vpop.f32.mrf.mxu0
      %v6365 = vadd.f32 0.0, %v6364
      %v6366 = vpop.f32.mrf.mxu0
      %v6367 = vadd.f32 0.0, %v6366
      %6368 = vmatmul.bf16.gmra.mxu0 %v6195
      %v6369 = vpop.f32.mrf.mxu0
      %v6370 = vadd.f32 0.0, %v6369
      %v6371 = vpop.f32.mrf.mxu0
      %v6372 = vadd.f32 0.0, %v6371
      %6373 = vdwg.mxu0
      %6374 = vmatpush.bf16.msra.mxu0 %v6308
      %6375 = vmatpush.bf16.msra.mxu0 %v6307
      %6376 = vmatpush.bf16.msra.mxu0 %v6306
      %6377 = vmatpush.bf16.msra.mxu0 %v6305
      %6378 = vmatpush.bf16.msra.mxu0 %v6304
      %6379 = vmatpush.bf16.msra.mxu0 %v6303
      %6380 = vmatpush.bf16.msra.mxu0 %v6302
      %6381 = vmatpush.bf16.msra.mxu0 %v6301
      %6382 = vmatmul.bf16.gmra.mxu0 %v6182
      %v6383 = vpop.f32.mrf.mxu0
      %v6384 = vadd.f32 %v6335, %v6383
      %v6385 = vpop.f32.mrf.mxu0
      %v6386 = vadd.f32 %v6337, %v6385
      %6387 = vmatmul.bf16.gmra.mxu0 %v6184
      %v6388 = vpop.f32.mrf.mxu0
      %v6389 = vadd.f32 %v6340, %v6388
      %v6390 = vpop.f32.mrf.mxu0
      %v6391 = vadd.f32 %v6342, %v6390
      %6392 = vmatmul.bf16.gmra.mxu0 %v6186
      %v6393 = vpop.f32.mrf.mxu0
      %v6394 = vadd.f32 %v6345, %v6393
      %v6395 = vpop.f32.mrf.mxu0
      %v6396 = vadd.f32 %v6347, %v6395
      %6397 = vmatmul.bf16.gmra.mxu0 %v6188
      %v6398 = vpop.f32.mrf.mxu0
      %v6399 = vadd.f32 %v6350, %v6398
      %v6400 = vpop.f32.mrf.mxu0
      %v6401 = vadd.f32 %v6352, %v6400
      %6402 = vmatmul.bf16.gmra.mxu0 %v6190
      %v6403 = vpop.f32.mrf.mxu0
      %v6404 = vadd.f32 %v6355, %v6403
      %v6405 = vpop.f32.mrf.mxu0
      %v6406 = vadd.f32 %v6357, %v6405
      %6407 = vmatmul.bf16.gmra.mxu0 %v6192
      %v6408 = vpop.f32.mrf.mxu0
      %v6409 = vadd.f32 %v6360, %v6408
      %v6410 = vpop.f32.mrf.mxu0
      %v6411 = vadd.f32 %v6362, %v6410
      %6412 = vmatmul.bf16.gmra.mxu0 %v6194
      %v6413 = vpop.f32.mrf.mxu0
      %v6414 = vadd.f32 %v6365, %v6413
      %v6415 = vpop.f32.mrf.mxu0
      %v6416 = vadd.f32 %v6367, %v6415
      %6417 = vmatmul.bf16.gmra.mxu0 %v6196
      %v6418 = vpop.f32.mrf.mxu0
      %v6419 = vadd.f32 %v6370, %v6418
      %v6420 = vpop.f32.mrf.mxu0
      %v6421 = vadd.f32 %v6372, %v6420
      %6422 = vdwg.mxu0
      %v6423 = vadd.f32 %v5981, %v6384
      %v6424 = vadd.f32 %v5982, %v6386
      %v6425 = vadd.f32 %v5983, %v6389
      %v6426 = vadd.f32 %v5984, %v6391
      %v6427 = vadd.f32 %v5985, %v6394
      %v6428 = vadd.f32 %v5986, %v6396
      %v6429 = vadd.f32 %v5987, %v6399
      %v6430 = vadd.f32 %v5988, %v6401
      %v6431 = vadd.f32 %v5989, %v6404
      %v6432 = vadd.f32 %v5990, %v6406
      %v6433 = vadd.f32 %v5991, %v6409
      %v6434 = vadd.f32 %v5992, %v6411
      %v6435 = vadd.f32 %v5993, %v6414
      %v6436 = vadd.f32 %v5994, %v6416
      %v6437 = vadd.f32 %v5995, %v6419
      %v6438 = vadd.f32 %v5996, %v6421
      %v6439 = vld [vmem:[%s11 + $0x38] sm:$0xff]
      %v6440 = vld [vmem:[%s11 + $0x78] sm:$0xff]
      %v6441 = vld [vmem:[%s11 + $0xb8] sm:$0xff]
      %v6442 = vld [vmem:[%s11 + $0xf8] sm:$0xff]
      %v6443 = vld [vmem:[%s11 + $0x138] sm:$0xff]
      %v6444 = vld [vmem:[%s11 + $0x178] sm:$0xff]
      %v6445 = vld [vmem:[%s11 + $0x1b8] sm:$0xff]
      %v6446 = vld [vmem:[%s11 + $0x1f8] sm:$0xff]
      %v6447 = vld [vmem:[%s12 + $0xe] sm:$0x3]
      %v6449 = vperm.slane %v6447, 0
      %v6450 = vperm.slane %v6447, 1
      %v6461 = vunpack.c.l.b16 %v6439
      %v6462 = vunpack.c.h.b16 %v6439
      %v6463 = vunpack.c.l.b16 %v6440
      %v6464 = vunpack.c.h.b16 %v6440
      %v6465 = vunpack.c.l.b16 %v6441
      %v6466 = vunpack.c.h.b16 %v6441
      %v6467 = vunpack.c.l.b16 %v6442
      %v6468 = vunpack.c.h.b16 %v6442
      %v6469 = vunpack.c.l.b16 %v6443
      %v6470 = vunpack.c.h.b16 %v6443
      %v6471 = vunpack.c.l.b16 %v6444
      %v6472 = vunpack.c.h.b16 %v6444
      %v6473 = vunpack.c.l.b16 %v6445
      %v6474 = vunpack.c.h.b16 %v6445
      %v6475 = vunpack.c.l.b16 %v6446
      %v6476 = vunpack.c.h.b16 %v6446
      %v6477 = vpack.c.b16 %v6463, %v6461
      %v6478 = vpack.c.b16 %v6464, %v6462
      %v6479 = vpack.c.b16 %v6467, %v6465
      %v6480 = vpack.c.b16 %v6468, %v6466
      %v6481 = vpack.c.b16 %v6471, %v6469
      %v6482 = vpack.c.b16 %v6472, %v6470
      %v6483 = vpack.c.b16 %v6475, %v6473
      %v6484 = vpack.c.b16 %v6476, %v6474
      %6493 = vmatpush.bf16.msra.mxu0 0
      %6494 = vmatpush.bf16.msra.mxu0 0
      %6495 = vmatpush.bf16.msra.mxu0 0
      %6496 = vmatpush.bf16.msra.mxu0 0
      %6497 = vmatpush.bf16.msra.mxu0 %v6483
      %6498 = vmatpush.bf16.msra.mxu0 %v6481
      %6499 = vmatpush.bf16.msra.mxu0 %v6479
      %6500 = vmatpush.bf16.msra.mxu0 %v6477
      %6501 = vmatmul.bf16.gmra.mxu0 %v3408
      %v6502 = vpop.f32.mrf.mxu0
      %v6503 = vadd.f32 %v6449, %v6502
      %v6504 = vpop.f32.mrf.mxu0
      %v6505 = vadd.f32 %v6449, %v6504
      %6506 = vmatmul.bf16.gmra.mxu0 %v3411
      %v6507 = vpop.f32.mrf.mxu0
      %v6508 = vadd.f32 %v6449, %v6507
      %v6509 = vpop.f32.mrf.mxu0
      %v6510 = vadd.f32 %v6449, %v6509
      %6511 = vmatmul.bf16.gmra.mxu0 %v3414
      %v6512 = vpop.f32.mrf.mxu0
      %v6513 = vadd.f32 %v6449, %v6512
      %v6514 = vpop.f32.mrf.mxu0
      %v6515 = vadd.f32 %v6449, %v6514
      %6516 = vmatmul.bf16.gmra.mxu0 %v3417
      %v6517 = vpop.f32.mrf.mxu0
      %v6518 = vadd.f32 %v6449, %v6517
      %v6519 = vpop.f32.mrf.mxu0
      %v6520 = vadd.f32 %v6449, %v6519
      %6521 = vmatmul.bf16.gmra.mxu0 %v3420
      %v6522 = vpop.f32.mrf.mxu0
      %v6523 = vadd.f32 %v6449, %v6522
      %v6524 = vpop.f32.mrf.mxu0
      %v6525 = vadd.f32 %v6449, %v6524
      %6526 = vmatmul.bf16.gmra.mxu0 %v3423
      %v6527 = vpop.f32.mrf.mxu0
      %v6528 = vadd.f32 %v6449, %v6527
      %v6529 = vpop.f32.mrf.mxu0
      %v6530 = vadd.f32 %v6449, %v6529
      %6531 = vmatmul.bf16.gmra.mxu0 %v3426
      %v6532 = vpop.f32.mrf.mxu0
      %v6533 = vadd.f32 %v6449, %v6532
      %v6534 = vpop.f32.mrf.mxu0
      %v6535 = vadd.f32 %v6449, %v6534
      %6536 = vmatmul.bf16.gmra.mxu0 %v3429
      %v6537 = vpop.f32.mrf.mxu0
      %v6538 = vadd.f32 %v6449, %v6537
      %v6539 = vpop.f32.mrf.mxu0
      %v6540 = vadd.f32 %v6449, %v6539
      %6541 = vdwg.mxu0
      %6542 = vmatpush.bf16.msra.mxu0 0
      %6543 = vmatpush.bf16.msra.mxu0 0
      %6544 = vmatpush.bf16.msra.mxu0 0
      %6545 = vmatpush.bf16.msra.mxu0 0
      %6546 = vmatpush.bf16.msra.mxu0 %v6484
      %6547 = vmatpush.bf16.msra.mxu0 %v6482
      %6548 = vmatpush.bf16.msra.mxu0 %v6480
      %6549 = vmatpush.bf16.msra.mxu0 %v6478
      %6550 = vmatmul.bf16.gmra.mxu0 %v3408
      %v6551 = vpop.f32.mrf.mxu0
      %v6552 = vadd.f32 %v6450, %v6551
      %v6553 = vpop.f32.mrf.mxu0
      %v6554 = vadd.f32 %v6450, %v6553
      %6555 = vmatmul.bf16.gmra.mxu0 %v3411
      %v6556 = vpop.f32.mrf.mxu0
      %v6557 = vadd.f32 %v6450, %v6556
      %v6558 = vpop.f32.mrf.mxu0
      %v6559 = vadd.f32 %v6450, %v6558
      %6560 = vmatmul.bf16.gmra.mxu0 %v3414
      %v6561 = vpop.f32.mrf.mxu0
      %v6562 = vadd.f32 %v6450, %v6561
      %v6563 = vpop.f32.mrf.mxu0
      %v6564 = vadd.f32 %v6450, %v6563
      %6565 = vmatmul.bf16.gmra.mxu0 %v3417
      %v6566 = vpop.f32.mrf.mxu0
      %v6567 = vadd.f32 %v6450, %v6566
      %v6568 = vpop.f32.mrf.mxu0
      %v6569 = vadd.f32 %v6450, %v6568
      %6570 = vmatmul.bf16.gmra.mxu0 %v3420
      %v6571 = vpop.f32.mrf.mxu0
      %v6572 = vadd.f32 %v6450, %v6571
      %v6573 = vpop.f32.mrf.mxu0
      %v6574 = vadd.f32 %v6450, %v6573
      %6575 = vmatmul.bf16.gmra.mxu0 %v3423
      %v6576 = vpop.f32.mrf.mxu0
      %v6577 = vadd.f32 %v6450, %v6576
      %v6578 = vpop.f32.mrf.mxu0
      %v6579 = vadd.f32 %v6450, %v6578
      %6580 = vmatmul.bf16.gmra.mxu0 %v3426
      %v6581 = vpop.f32.mrf.mxu0
      %v6582 = vadd.f32 %v6450, %v6581
      %v6583 = vpop.f32.mrf.mxu0
      %v6584 = vadd.f32 %v6450, %v6583
      %6585 = vmatmul.bf16.gmra.mxu0 %v3429
      %v6586 = vpop.f32.mrf.mxu0
      %v6587 = vadd.f32 %v6450, %v6586
      %v6588 = vpop.f32.mrf.mxu0
      %v6589 = vadd.f32 %v6450, %v6588
      %6590 = vdwg.mxu0
      %v6591 = vmax.f32 %v6503, 0.0
      %v6592 = vmax.f32 %v6552, 0.0
      %v6593 = vmax.f32 %v6505, 0.0
      %v6594 = vmax.f32 %v6554, 0.0
      %v6595 = vmax.f32 %v6508, 0.0
      %v6596 = vmax.f32 %v6557, 0.0
      %v6597 = vmax.f32 %v6510, 0.0
      %v6598 = vmax.f32 %v6559, 0.0
      %v6599 = vmax.f32 %v6513, 0.0
      %v6600 = vmax.f32 %v6562, 0.0
      %v6601 = vmax.f32 %v6515, 0.0
      %v6602 = vmax.f32 %v6564, 0.0
      %v6603 = vmax.f32 %v6518, 0.0
      %v6604 = vmax.f32 %v6567, 0.0
      %v6605 = vmax.f32 %v6520, 0.0
      %v6606 = vmax.f32 %v6569, 0.0
      %v6607 = vmax.f32 %v6523, 0.0
      %v6608 = vmax.f32 %v6572, 0.0
      %v6609 = vmax.f32 %v6525, 0.0
      %v6610 = vmax.f32 %v6574, 0.0
      %v6611 = vmax.f32 %v6528, 0.0
      %v6612 = vmax.f32 %v6577, 0.0
      %v6613 = vmax.f32 %v6530, 0.0
      %v6614 = vmax.f32 %v6579, 0.0
      %v6615 = vmax.f32 %v6533, 0.0
      %v6616 = vmax.f32 %v6582, 0.0
      %v6617 = vmax.f32 %v6535, 0.0
      %v6618 = vmax.f32 %v6584, 0.0
      %v6619 = vmax.f32 %v6538, 0.0
      %v6620 = vmax.f32 %v6587, 0.0
      %v6621 = vmax.f32 %v6540, 0.0
      %v6622 = vmax.f32 %v6589, 0.0
      %v6623 = vpack.c.bf16 %v6593, %v6591
      %v6624 = vpack.c.bf16 %v6594, %v6592
      %v6625 = vpack.c.bf16 %v6597, %v6595
      %v6626 = vpack.c.bf16 %v6598, %v6596
      %v6627 = vpack.c.bf16 %v6601, %v6599
      %v6628 = vpack.c.bf16 %v6602, %v6600
      %v6629 = vpack.c.bf16 %v6605, %v6603
      %v6630 = vpack.c.bf16 %v6606, %v6604
      %v6631 = vpack.c.bf16 %v6609, %v6607
      %v6632 = vpack.c.bf16 %v6610, %v6608
      %v6633 = vpack.c.bf16 %v6613, %v6611
      %v6634 = vpack.c.bf16 %v6614, %v6612
      %v6635 = vpack.c.bf16 %v6617, %v6615
      %v6636 = vpack.c.bf16 %v6618, %v6616
      %v6637 = vpack.c.bf16 %v6621, %v6619
      %v6638 = vpack.c.bf16 %v6622, %v6620
      %v6639 = vld [vmem:[%s13 + $0x380] sm:$0xf]
      %v6640 = vld [vmem:[%s13 + $0x384] sm:$0xf]
      %v6641 = vld [vmem:[%s13 + $0x388] sm:$0xf]
      %v6642 = vld [vmem:[%s13 + $0x38c] sm:$0xf]
      %v6643 = vld [vmem:[%s13 + $0x390] sm:$0xf]
      %v6644 = vld [vmem:[%s13 + $0x394] sm:$0xf]
      %v6645 = vld [vmem:[%s13 + $0x398] sm:$0xf]
      %v6646 = vld [vmem:[%s13 + $0x39c] sm:$0xf]
      %v6647 = vld [vmem:[%s13 + $0x3a0] sm:$0xf]
      %v6648 = vld [vmem:[%s13 + $0x3a4] sm:$0xf]
      %v6649 = vld [vmem:[%s13 + $0x3a8] sm:$0xf]
      %v6650 = vld [vmem:[%s13 + $0x3ac] sm:$0xf]
      %v6651 = vld [vmem:[%s13 + $0x3b0] sm:$0xf]
      %v6652 = vld [vmem:[%s13 + $0x3b4] sm:$0xf]
      %v6653 = vld [vmem:[%s13 + $0x3b8] sm:$0xf]
      %v6654 = vld [vmem:[%s13 + $0x3bc] sm:$0xf]
      %v6655 = vld [vmem:[%s13 + $0x3c0] sm:$0xf]
      %v6656 = vld [vmem:[%s13 + $0x3c4] sm:$0xf]
      %v6657 = vld [vmem:[%s13 + $0x3c8] sm:$0xf]
      %v6658 = vld [vmem:[%s13 + $0x3cc] sm:$0xf]
      %v6659 = vld [vmem:[%s13 + $0x3d0] sm:$0xf]
      %v6660 = vld [vmem:[%s13 + $0x3d4] sm:$0xf]
      %v6661 = vld [vmem:[%s13 + $0x3d8] sm:$0xf]
      %v6662 = vld [vmem:[%s13 + $0x3dc] sm:$0xf]
      %v6663 = vld [vmem:[%s13 + $0x3e0] sm:$0xf]
      %v6664 = vld [vmem:[%s13 + $0x3e4] sm:$0xf]
      %v6665 = vld [vmem:[%s13 + $0x3e8] sm:$0xf]
      %v6666 = vld [vmem:[%s13 + $0x3ec] sm:$0xf]
      %v6667 = vld [vmem:[%s13 + $0x3f0] sm:$0xf]
      %v6668 = vld [vmem:[%s13 + $0x3f4] sm:$0xf]
      %v6669 = vld [vmem:[%s13 + $0x3f8] sm:$0xf]
      %v6670 = vld [vmem:[%s13 + $0x3fc] sm:$0xf]
      %v6703 = vunpack.c.l.b16 %v6639
      %v6704 = vunpack.c.l.b16 %v6640
      %v6705 = vunpack.c.l.b16 %v6641
      %v6706 = vunpack.c.l.b16 %v6642
      %v6707 = vunpack.c.l.b16 %v6643
      %v6708 = vunpack.c.l.b16 %v6644
      %v6709 = vunpack.c.l.b16 %v6645
      %v6710 = vunpack.c.l.b16 %v6646
      %v6711 = vunpack.c.l.b16 %v6647
      %v6712 = vunpack.c.l.b16 %v6648
      %v6713 = vunpack.c.l.b16 %v6649
      %v6714 = vunpack.c.l.b16 %v6650
      %v6715 = vunpack.c.l.b16 %v6651
      %v6716 = vunpack.c.l.b16 %v6652
      %v6717 = vunpack.c.l.b16 %v6653
      %v6718 = vunpack.c.l.b16 %v6654
      %v6719 = vunpack.c.l.b16 %v6655
      %v6720 = vunpack.c.l.b16 %v6656
      %v6721 = vunpack.c.l.b16 %v6657
      %v6722 = vunpack.c.l.b16 %v6658
      %v6723 = vunpack.c.l.b16 %v6659
      %v6724 = vunpack.c.l.b16 %v6660
      %v6725 = vunpack.c.l.b16 %v6661
      %v6726 = vunpack.c.l.b16 %v6662
      %v6727 = vunpack.c.l.b16 %v6663
      %v6728 = vunpack.c.l.b16 %v6664
      %v6729 = vunpack.c.l.b16 %v6665
      %v6730 = vunpack.c.l.b16 %v6666
      %v6731 = vunpack.c.l.b16 %v6667
      %v6732 = vunpack.c.l.b16 %v6668
      %v6733 = vunpack.c.l.b16 %v6669
      %v6734 = vunpack.c.l.b16 %v6670
      %v6735 = vpack.c.b16 %v6704, %v6703
      %v6736 = vpack.c.b16 %v6706, %v6705
      %v6737 = vpack.c.b16 %v6708, %v6707
      %v6738 = vpack.c.b16 %v6710, %v6709
      %v6739 = vpack.c.b16 %v6712, %v6711
      %v6740 = vpack.c.b16 %v6714, %v6713
      %v6741 = vpack.c.b16 %v6716, %v6715
      %v6742 = vpack.c.b16 %v6718, %v6717
      %v6743 = vpack.c.b16 %v6720, %v6719
      %v6744 = vpack.c.b16 %v6722, %v6721
      %v6745 = vpack.c.b16 %v6724, %v6723
      %v6746 = vpack.c.b16 %v6726, %v6725
      %v6747 = vpack.c.b16 %v6728, %v6727
      %v6748 = vpack.c.b16 %v6730, %v6729
      %v6749 = vpack.c.b16 %v6732, %v6731
      %v6750 = vpack.c.b16 %v6734, %v6733
      %6767 = vmatpush.bf16.msra.mxu0 %v6742
      %6768 = vmatpush.bf16.msra.mxu0 %v6741
      %6769 = vmatpush.bf16.msra.mxu0 %v6740
      %6770 = vmatpush.bf16.msra.mxu0 %v6739
      %6771 = vmatpush.bf16.msra.mxu0 %v6738
      %6772 = vmatpush.bf16.msra.mxu0 %v6737
      %6773 = vmatpush.bf16.msra.mxu0 %v6736
      %6774 = vmatpush.bf16.msra.mxu0 %v6735
      %6775 = vmatmul.bf16.gmra.mxu0 %v6623
      %v6776 = vpop.f32.mrf.mxu0
      %v6777 = vadd.f32 0.0, %v6776
      %v6778 = vpop.f32.mrf.mxu0
      %v6779 = vadd.f32 0.0, %v6778
      %6780 = vmatmul.bf16.gmra.mxu0 %v6625
      %v6781 = vpop.f32.mrf.mxu0
      %v6782 = vadd.f32 0.0, %v6781
      %v6783 = vpop.f32.mrf.mxu0
      %v6784 = vadd.f32 0.0, %v6783
      %6785 = vmatmul.bf16.gmra.mxu0 %v6627
      %v6786 = vpop.f32.mrf.mxu0
      %v6787 = vadd.f32 0.0, %v6786
      %v6788 = vpop.f32.mrf.mxu0
      %v6789 = vadd.f32 0.0, %v6788
      %6790 = vmatmul.bf16.gmra.mxu0 %v6629
      %v6791 = vpop.f32.mrf.mxu0
      %v6792 = vadd.f32 0.0, %v6791
      %v6793 = vpop.f32.mrf.mxu0
      %v6794 = vadd.f32 0.0, %v6793
      %6795 = vmatmul.bf16.gmra.mxu0 %v6631
      %v6796 = vpop.f32.mrf.mxu0
      %v6797 = vadd.f32 0.0, %v6796
      %v6798 = vpop.f32.mrf.mxu0
      %v6799 = vadd.f32 0.0, %v6798
      %6800 = vmatmul.bf16.gmra.mxu0 %v6633
      %v6801 = vpop.f32.mrf.mxu0
      %v6802 = vadd.f32 0.0, %v6801
      %v6803 = vpop.f32.mrf.mxu0
      %v6804 = vadd.f32 0.0, %v6803
      %6805 = vmatmul.bf16.gmra.mxu0 %v6635
      %v6806 = vpop.f32.mrf.mxu0
      %v6807 = vadd.f32 0.0, %v6806
      %v6808 = vpop.f32.mrf.mxu0
      %v6809 = vadd.f32 0.0, %v6808
      %6810 = vmatmul.bf16.gmra.mxu0 %v6637
      %v6811 = vpop.f32.mrf.mxu0
      %v6812 = vadd.f32 0.0, %v6811
      %v6813 = vpop.f32.mrf.mxu0
      %v6814 = vadd.f32 0.0, %v6813
      %6815 = vdwg.mxu0
      %6816 = vmatpush.bf16.msra.mxu0 %v6750
      %6817 = vmatpush.bf16.msra.mxu0 %v6749
      %6818 = vmatpush.bf16.msra.mxu0 %v6748
      %6819 = vmatpush.bf16.msra.mxu0 %v6747
      %6820 = vmatpush.bf16.msra.mxu0 %v6746
      %6821 = vmatpush.bf16.msra.mxu0 %v6745
      %6822 = vmatpush.bf16.msra.mxu0 %v6744
      %6823 = vmatpush.bf16.msra.mxu0 %v6743
      %6824 = vmatmul.bf16.gmra.mxu0 %v6624
      %v6825 = vpop.f32.mrf.mxu0
      %v6826 = vadd.f32 %v6777, %v6825
      %v6827 = vpop.f32.mrf.mxu0
      %v6828 = vadd.f32 %v6779, %v6827
      %6829 = vmatmul.bf16.gmra.mxu0 %v6626
      %v6830 = vpop.f32.mrf.mxu0
      %v6831 = vadd.f32 %v6782, %v6830
      %v6832 = vpop.f32.mrf.mxu0
      %v6833 = vadd.f32 %v6784, %v6832
      %6834 = vmatmul.bf16.gmra.mxu0 %v6628
      %v6835 = vpop.f32.mrf.mxu0
      %v6836 = vadd.f32 %v6787, %v6835
      %v6837 = vpop.f32.mrf.mxu0
      %v6838 = vadd.f32 %v6789, %v6837
      %6839 = vmatmul.bf16.gmra.mxu0 %v6630
      %v6840 = vpop.f32.mrf.mxu0
      %v6841 = vadd.f32 %v6792, %v6840
      %v6842 = vpop.f32.mrf.mxu0
      %v6843 = vadd.f32 %v6794, %v6842
      %6844 = vmatmul.bf16.gmra.mxu0 %v6632
      %v6845 = vpop.f32.mrf.mxu0
      %v6846 = vadd.f32 %v6797, %v6845
      %v6847 = vpop.f32.mrf.mxu0
      %v6848 = vadd.f32 %v6799, %v6847
      %6849 = vmatmul.bf16.gmra.mxu0 %v6634
      %v6850 = vpop.f32.mrf.mxu0
      %v6851 = vadd.f32 %v6802, %v6850
      %v6852 = vpop.f32.mrf.mxu0
      %v6853 = vadd.f32 %v6804, %v6852
      %6854 = vmatmul.bf16.gmra.mxu0 %v6636
      %v6855 = vpop.f32.mrf.mxu0
      %v6856 = vadd.f32 %v6807, %v6855
      %v6857 = vpop.f32.mrf.mxu0
      %v6858 = vadd.f32 %v6809, %v6857
      %6859 = vmatmul.bf16.gmra.mxu0 %v6638
      %v6860 = vpop.f32.mrf.mxu0
      %v6861 = vadd.f32 %v6812, %v6860
      %v6862 = vpop.f32.mrf.mxu0
      %v6863 = vadd.f32 %v6814, %v6862
      %6864 = vdwg.mxu0
      %v6865 = vadd.f32 %v6423, %v6826
      %v6866 = vadd.f32 %v6424, %v6828
      %v6867 = vadd.f32 %v6425, %v6831
      %v6868 = vadd.f32 %v6426, %v6833
      %v6869 = vadd.f32 %v6427, %v6836
      %v6870 = vadd.f32 %v6428, %v6838
      %v6871 = vadd.f32 %v6429, %v6841
      %v6872 = vadd.f32 %v6430, %v6843
      %v6873 = vadd.f32 %v6431, %v6846
      %v6874 = vadd.f32 %v6432, %v6848
      %v6875 = vadd.f32 %v6433, %v6851
      %v6876 = vadd.f32 %v6434, %v6853
      %v6877 = vadd.f32 %v6435, %v6856
      %v6878 = vadd.f32 %v6436, %v6858
      %v6879 = vadd.f32 %v6437, %v6861
      %v6880 = vadd.f32 %v6438, %v6863
      %v6881 = vadd.f32 %v3329, %v6865
      %v6882 = vadd.f32 %v3330, %v6866
      %v6883 = vadd.f32 %v3331, %v6867
      %v6884 = vadd.f32 %v3332, %v6868
      %v6885 = vadd.f32 %v3333, %v6869
      %v6886 = vadd.f32 %v3334, %v6870
      %v6887 = vadd.f32 %v3335, %v6871
      %v6888 = vadd.f32 %v3336, %v6872
      %v6889 = vadd.f32 %v3337, %v6873
      %v6890 = vadd.f32 %v3338, %v6874
      %v6891 = vadd.f32 %v3339, %v6875
      %v6892 = vadd.f32 %v3340, %v6876
      %v6893 = vadd.f32 %v3341, %v6877
      %v6894 = vadd.f32 %v3342, %v6878
      %v6895 = vadd.f32 %v3343, %v6879
      %v6896 = vadd.f32 %v3344, %v6880
      %v6897 = vld [vmem:[%s14] sm:$0x1]
      %v6899 = vperm.slane %v6897, 0
      %v6901 = vadd.f32 %v6881, %v6899
      %v6902 = vadd.f32 %v6882, %v6899
      %v6903 = vadd.f32 %v6883, %v6899
      %v6904 = vadd.f32 %v6884, %v6899
      %v6905 = vadd.f32 %v6885, %v6899
      %v6906 = vadd.f32 %v6886, %v6899
      %v6907 = vadd.f32 %v6887, %v6899
      %v6908 = vadd.f32 %v6888, %v6899
      %v6909 = vadd.f32 %v6889, %v6899
      %v6910 = vadd.f32 %v6890, %v6899
      %v6911 = vadd.f32 %v6891, %v6899
      %v6912 = vadd.f32 %v6892, %v6899
      %v6913 = vadd.f32 %v6893, %v6899
      %v6914 = vadd.f32 %v6894, %v6899
      %v6915 = vadd.f32 %v6895, %v6899
      %v6916 = vadd.f32 %v6896, %v6899
      %v6917 = vld [vmem:[%s15] sm:$0x1]
      %v6918 = vld [vmem:[%s16] sm:$0x1]
      %v6919 = vsel %vm593, %v6901, 0.0
      %6920 = vadd.xlane.f32.xlu0 %v6919
      %v6921 = vpop.xlane.xlu0 %6920
      %v6922 = vsel %vm593, %v6902, 0.0
      %6923 = vadd.xlane.f32.xlu0 %v6922
      %v6924 = vpop.xlane.xlu0 %6923
      %v6925 = vsel %vm593, %v6903, 0.0
      %6926 = vadd.xlane.f32.xlu0 %v6925
      %v6927 = vpop.xlane.xlu0 %6926
      %v6928 = vsel %vm593, %v6904, 0.0
      %6929 = vadd.xlane.f32.xlu0 %v6928
      %v6930 = vpop.xlane.xlu0 %6929
      %v6931 = vsel %vm593, %v6905, 0.0
      %6932 = vadd.xlane.f32.xlu0 %v6931
      %v6933 = vpop.xlane.xlu0 %6932
      %v6934 = vsel %vm593, %v6906, 0.0
      %6935 = vadd.xlane.f32.xlu0 %v6934
      %v6936 = vpop.xlane.xlu0 %6935
      %v6937 = vsel %vm593, %v6907, 0.0
      %6938 = vadd.xlane.f32.xlu0 %v6937
      %v6939 = vpop.xlane.xlu0 %6938
      %v6940 = vsel %vm593, %v6908, 0.0
      %6941 = vadd.xlane.f32.xlu0 %v6940
      %v6942 = vpop.xlane.xlu0 %6941
      %v6943 = vsel %vm593, %v6909, 0.0
      %6944 = vadd.xlane.f32.xlu0 %v6943
      %v6945 = vpop.xlane.xlu0 %6944
      %v6946 = vsel %vm593, %v6910, 0.0
      %6947 = vadd.xlane.f32.xlu0 %v6946
      %v6948 = vpop.xlane.xlu0 %6947
      %v6949 = vsel %vm593, %v6911, 0.0
      %6950 = vadd.xlane.f32.xlu0 %v6949
      %v6951 = vpop.xlane.xlu0 %6950
      %v6952 = vsel %vm593, %v6912, 0.0
      %6953 = vadd.xlane.f32.xlu0 %v6952
      %v6954 = vpop.xlane.xlu0 %6953
      %v6955 = vsel %vm593, %v6913, 0.0
      %6956 = vadd.xlane.f32.xlu0 %v6955
      %v6957 = vpop.xlane.xlu0 %6956
      %v6958 = vsel %vm593, %v6914, 0.0
      %6959 = vadd.xlane.f32.xlu0 %v6958
      %v6960 = vpop.xlane.xlu0 %6959
      %v6961 = vsel %vm593, %v6915, 0.0
      %6962 = vadd.xlane.f32.xlu0 %v6961
      %v6963 = vpop.xlane.xlu0 %6962
      %v6964 = vsel %vm593, %v6916, 0.0
      %6965 = vadd.xlane.f32.xlu0 %v6964
      %v6966 = vpop.xlane.xlu0 %6965
      %v6967 = vmul.f32 %v6921, %v3002
      %v6968 = vmul.f32 %v6924, %v3002
      %v6969 = vmul.f32 %v6927, %v3002
      %v6970 = vmul.f32 %v6930, %v3002
      %v6971 = vmul.f32 %v6933, %v3002
      %v6972 = vmul.f32 %v6936, %v3002
      %v6973 = vmul.f32 %v6939, %v3002
      %v6974 = vmul.f32 %v6942, %v3002
      %v6975 = vmul.f32 %v6945, %v3002
      %v6976 = vmul.f32 %v6948, %v3002
      %v6977 = vmul.f32 %v6951, %v3002
      %v6978 = vmul.f32 %v6954, %v3002
      %v6979 = vmul.f32 %v6957, %v3002
      %v6980 = vmul.f32 %v6960, %v3002
      %v6981 = vmul.f32 %v6963, %v3002
      %v6982 = vmul.f32 %v6966, %v3002
      %v6983 = vsub.f32 %v6901, %v6967
      %v6984 = vsub.f32 %v6902, %v6968
      %v6985 = vsub.f32 %v6903, %v6969
      %v6986 = vsub.f32 %v6904, %v6970
      %v6987 = vsub.f32 %v6905, %v6971
      %v6988 = vsub.f32 %v6906, %v6972
      %v6989 = vsub.f32 %v6907, %v6973
      %v6990 = vsub.f32 %v6908, %v6974
      %v6991 = vsub.f32 %v6909, %v6975
      %v6992 = vsub.f32 %v6910, %v6976
      %v6993 = vsub.f32 %v6911, %v6977
      %v6994 = vsub.f32 %v6912, %v6978
      %v6995 = vsub.f32 %v6913, %v6979
      %v6996 = vsub.f32 %v6914, %v6980
      %v6997 = vsub.f32 %v6915, %v6981
      %v6998 = vsub.f32 %v6916, %v6982
      %v6999 = vmul.f32 %v6983, %v6983
      %v7000 = vmul.f32 %v6984, %v6984
      %v7001 = vmul.f32 %v6985, %v6985
      %v7002 = vmul.f32 %v6986, %v6986
      %v7003 = vmul.f32 %v6987, %v6987
      %v7004 = vmul.f32 %v6988, %v6988
      %v7005 = vmul.f32 %v6989, %v6989
      %v7006 = vmul.f32 %v6990, %v6990
      %v7007 = vmul.f32 %v6991, %v6991
      %v7008 = vmul.f32 %v6992, %v6992
      %v7009 = vmul.f32 %v6993, %v6993
      %v7010 = vmul.f32 %v6994, %v6994
      %v7011 = vmul.f32 %v6995, %v6995
      %v7012 = vmul.f32 %v6996, %v6996
      %v7013 = vmul.f32 %v6997, %v6997
      %v7014 = vmul.f32 %v6998, %v6998
      %v7015 = vsel %vm593, %v6999, 0.0
      %7016 = vadd.xlane.f32.xlu0 %v7015
      %v7017 = vpop.xlane.xlu0 %7016
      %v7018 = vsel %vm593, %v7000, 0.0
      %7019 = vadd.xlane.f32.xlu0 %v7018
      %v7020 = vpop.xlane.xlu0 %7019
      %v7021 = vsel %vm593, %v7001, 0.0
      %7022 = vadd.xlane.f32.xlu0 %v7021
      %v7023 = vpop.xlane.xlu0 %7022
      %v7024 = vsel %vm593, %v7002, 0.0
      %7025 = vadd.xlane.f32.xlu0 %v7024
      %v7026 = vpop.xlane.xlu0 %7025
      %v7027 = vsel %vm593, %v7003, 0.0
      %7028 = vadd.xlane.f32.xlu0 %v7027
      %v7029 = vpop.xlane.xlu0 %7028
      %v7030 = vsel %vm593, %v7004, 0.0
      %7031 = vadd.xlane.f32.xlu0 %v7030
      %v7032 = vpop.xlane.xlu0 %7031
      %v7033 = vsel %vm593, %v7005, 0.0
      %7034 = vadd.xlane.f32.xlu0 %v7033
      %v7035 = vpop.xlane.xlu0 %7034
      %v7036 = vsel %vm593, %v7006, 0.0
      %7037 = vadd.xlane.f32.xlu0 %v7036
      %v7038 = vpop.xlane.xlu0 %7037
      %v7039 = vsel %vm593, %v7007, 0.0
      %7040 = vadd.xlane.f32.xlu0 %v7039
      %v7041 = vpop.xlane.xlu0 %7040
      %v7042 = vsel %vm593, %v7008, 0.0
      %7043 = vadd.xlane.f32.xlu0 %v7042
      %v7044 = vpop.xlane.xlu0 %7043
      %v7045 = vsel %vm593, %v7009, 0.0
      %7046 = vadd.xlane.f32.xlu0 %v7045
      %v7047 = vpop.xlane.xlu0 %7046
      %v7048 = vsel %vm593, %v7010, 0.0
      %7049 = vadd.xlane.f32.xlu0 %v7048
      %v7050 = vpop.xlane.xlu0 %7049
      %v7051 = vsel %vm593, %v7011, 0.0
      %7052 = vadd.xlane.f32.xlu0 %v7051
      %v7053 = vpop.xlane.xlu0 %7052
      %v7054 = vsel %vm593, %v7012, 0.0
      %7055 = vadd.xlane.f32.xlu0 %v7054
      %v7056 = vpop.xlane.xlu0 %7055
      %v7057 = vsel %vm593, %v7013, 0.0
      %7058 = vadd.xlane.f32.xlu0 %v7057
      %v7059 = vpop.xlane.xlu0 %7058
      %v7060 = vsel %vm593, %v7014, 0.0
      %7061 = vadd.xlane.f32.xlu0 %v7060
      %v7062 = vpop.xlane.xlu0 %7061
      %v7063 = vmul.f32 %v7017, %v3002
      %v7064 = vmul.f32 %v7020, %v3002
      %v7065 = vmul.f32 %v7023, %v3002
      %v7066 = vmul.f32 %v7026, %v3002
      %v7067 = vmul.f32 %v7029, %v3002
      %v7068 = vmul.f32 %v7032, %v3002
      %v7069 = vmul.f32 %v7035, %v3002
      %v7070 = vmul.f32 %v7038, %v3002
      %v7071 = vmul.f32 %v7041, %v3002
      %v7072 = vmul.f32 %v7044, %v3002
      %v7073 = vmul.f32 %v7047, %v3002
      %v7074 = vmul.f32 %v7050, %v3002
      %v7075 = vmul.f32 %v7053, %v3002
      %v7076 = vmul.f32 %v7056, %v3002
      %v7077 = vmul.f32 %v7059, %v3002
      %v7078 = vmul.f32 %v7062, %v3002
      %v7079 = vadd.f32 %v7063, 1e-05
      %v7080 = vadd.f32 %v7064, 1e-05
      %v7081 = vadd.f32 %v7065, 1e-05
      %v7082 = vadd.f32 %v7066, 1e-05
      %v7083 = vadd.f32 %v7067, 1e-05
      %v7084 = vadd.f32 %v7068, 1e-05
      %v7085 = vadd.f32 %v7069, 1e-05
      %v7086 = vadd.f32 %v7070, 1e-05
      %v7087 = vadd.f32 %v7071, 1e-05
      %v7088 = vadd.f32 %v7072, 1e-05
      %v7089 = vadd.f32 %v7073, 1e-05
      %v7090 = vadd.f32 %v7074, 1e-05
      %v7091 = vadd.f32 %v7075, 1e-05
      %v7092 = vadd.f32 %v7076, 1e-05
      %v7093 = vadd.f32 %v7077, 1e-05
      %v7094 = vadd.f32 %v7078, 1e-05
      %v7095 = vrsqrt.pop %v7079
      %v7096 = vmul.f32 %v7095, %v7079
      %v7097 = vmul.f32 %v7096, %v7095
      %v7098 = vmul.f32 0.5, %v7097
      %v7099 = vsub.f32 1.5, %v7098
      %v7100 = vmul.f32 %v7095, %v7099
      %vm7101 = vweird.f32 %v7079
      %vm7102 = vweird.f32 %v7095
      %vm7103 = vmor %vm7101, %vm7102
      %v7104 = vsel %vm7103, %v7095, %v7100
      %v7105 = vrsqrt.pop %v7080
      %v7106 = vmul.f32 %v7105, %v7080
      %v7107 = vmul.f32 %v7106, %v7105
      %v7108 = vmul.f32 0.5, %v7107
      %v7109 = vsub.f32 1.5, %v7108
      %v7110 = vmul.f32 %v7105, %v7109
      %vm7111 = vweird.f32 %v7080
      %vm7112 = vweird.f32 %v7105
      %vm7113 = vmor %vm7111, %vm7112
      %v7114 = vsel %vm7113, %v7105, %v7110
      %v7115 = vrsqrt.pop %v7081
      %v7116 = vmul.f32 %v7115, %v7081
      %v7117 = vmul.f32 %v7116, %v7115
      %v7118 = vmul.f32 0.5, %v7117
      %v7119 = vsub.f32 1.5, %v7118
      %v7120 = vmul.f32 %v7115, %v7119
      %vm7121 = vweird.f32 %v7081
      %vm7122 = vweird.f32 %v7115
      %vm7123 = vmor %vm7121, %vm7122
      %v7124 = vsel %vm7123, %v7115, %v7120
      %v7125 = vrsqrt.pop %v7082
      %v7126 = vmul.f32 %v7125, %v7082
      %v7127 = vmul.f32 %v7126, %v7125
      %v7128 = vmul.f32 0.5, %v7127
      %v7129 = vsub.f32 1.5, %v7128
      %v7130 = vmul.f32 %v7125, %v7129
      %vm7131 = vweird.f32 %v7082
      %vm7132 = vweird.f32 %v7125
      %vm7133 = vmor %vm7131, %vm7132
      %v7134 = vsel %vm7133, %v7125, %v7130
      %v7135 = vrsqrt.pop %v7083
      %v7136 = vmul.f32 %v7135, %v7083
      %v7137 = vmul.f32 %v7136, %v7135
      %v7138 = vmul.f32 0.5, %v7137
      %v7139 = vsub.f32 1.5, %v7138
      %v7140 = vmul.f32 %v7135, %v7139
      %vm7141 = vweird.f32 %v7083
      %vm7142 = vweird.f32 %v7135
      %vm7143 = vmor %vm7141, %vm7142
      %v7144 = vsel %vm7143, %v7135, %v7140
      %v7145 = vrsqrt.pop %v7084
      %v7146 = vmul.f32 %v7145, %v7084
      %v7147 = vmul.f32 %v7146, %v7145
      %v7148 = vmul.f32 0.5, %v7147
      %v7149 = vsub.f32 1.5, %v7148
      %v7150 = vmul.f32 %v7145, %v7149
      %vm7151 = vweird.f32 %v7084
      %vm7152 = vweird.f32 %v7145
      %vm7153 = vmor %vm7151, %vm7152
      %v7154 = vsel %vm7153, %v7145, %v7150
      %v7155 = vrsqrt.pop %v7085
      %v7156 = vmul.f32 %v7155, %v7085
      %v7157 = vmul.f32 %v7156, %v7155
      %v7158 = vmul.f32 0.5, %v7157
      %v7159 = vsub.f32 1.5, %v7158
      %v7160 = vmul.f32 %v7155, %v7159
      %vm7161 = vweird.f32 %v7085
      %vm7162 = vweird.f32 %v7155
      %vm7163 = vmor %vm7161, %vm7162
      %v7164 = vsel %vm7163, %v7155, %v7160
      %v7165 = vrsqrt.pop %v7086
      %v7166 = vmul.f32 %v7165, %v7086
      %v7167 = vmul.f32 %v7166, %v7165
      %v7168 = vmul.f32 0.5, %v7167
      %v7169 = vsub.f32 1.5, %v7168
      %v7170 = vmul.f32 %v7165, %v7169
      %vm7171 = vweird.f32 %v7086
      %vm7172 = vweird.f32 %v7165
      %vm7173 = vmor %vm7171, %vm7172
      %v7174 = vsel %vm7173, %v7165, %v7170
      %v7175 = vrsqrt.pop %v7087
      %v7176 = vmul.f32 %v7175, %v7087
      %v7177 = vmul.f32 %v7176, %v7175
      %v7178 = vmul.f32 0.5, %v7177
      %v7179 = vsub.f32 1.5, %v7178
      %v7180 = vmul.f32 %v7175, %v7179
      %vm7181 = vweird.f32 %v7087
      %vm7182 = vweird.f32 %v7175
      %vm7183 = vmor %vm7181, %vm7182
      %v7184 = vsel %vm7183, %v7175, %v7180
      %v7185 = vrsqrt.pop %v7088
      %v7186 = vmul.f32 %v7185, %v7088
      %v7187 = vmul.f32 %v7186, %v7185
      %v7188 = vmul.f32 0.5, %v7187
      %v7189 = vsub.f32 1.5, %v7188
      %v7190 = vmul.f32 %v7185, %v7189
      %vm7191 = vweird.f32 %v7088
      %vm7192 = vweird.f32 %v7185
      %vm7193 = vmor %vm7191, %vm7192
      %v7194 = vsel %vm7193, %v7185, %v7190
      %v7195 = vrsqrt.pop %v7089
      %v7196 = vmul.f32 %v7195, %v7089
      %v7197 = vmul.f32 %v7196, %v7195
      %v7198 = vmul.f32 0.5, %v7197
      %v7199 = vsub.f32 1.5, %v7198
      %v7200 = vmul.f32 %v7195, %v7199
      %vm7201 = vweird.f32 %v7089
      %vm7202 = vweird.f32 %v7195
      %vm7203 = vmor %vm7201, %vm7202
      %v7204 = vsel %vm7203, %v7195, %v7200
      %v7205 = vrsqrt.pop %v7090
      %v7206 = vmul.f32 %v7205, %v7090
      %v7207 = vmul.f32 %v7206, %v7205
      %v7208 = vmul.f32 0.5, %v7207
      %v7209 = vsub.f32 1.5, %v7208
      %v7210 = vmul.f32 %v7205, %v7209
      %vm7211 = vweird.f32 %v7090
      %vm7212 = vweird.f32 %v7205
      %vm7213 = vmor %vm7211, %vm7212
      %v7214 = vsel %vm7213, %v7205, %v7210
      %v7215 = vrsqrt.pop %v7091
      %v7216 = vmul.f32 %v7215, %v7091
      %v7217 = vmul.f32 %v7216, %v7215
      %v7218 = vmul.f32 0.5, %v7217
      %v7219 = vsub.f32 1.5, %v7218
      %v7220 = vmul.f32 %v7215, %v7219
      %vm7221 = vweird.f32 %v7091
      %vm7222 = vweird.f32 %v7215
      %vm7223 = vmor %vm7221, %vm7222
      %v7224 = vsel %vm7223, %v7215, %v7220
      %v7225 = vrsqrt.pop %v7092
      %v7226 = vmul.f32 %v7225, %v7092
      %v7227 = vmul.f32 %v7226, %v7225
      %v7228 = vmul.f32 0.5, %v7227
      %v7229 = vsub.f32 1.5, %v7228
      %v7230 = vmul.f32 %v7225, %v7229
      %vm7231 = vweird.f32 %v7092
      %vm7232 = vweird.f32 %v7225
      %vm7233 = vmor %vm7231, %vm7232
      %v7234 = vsel %vm7233, %v7225, %v7230
      %v7235 = vrsqrt.pop %v7093
      %v7236 = vmul.f32 %v7235, %v7093
      %v7237 = vmul.f32 %v7236, %v7235
      %v7238 = vmul.f32 0.5, %v7237
      %v7239 = vsub.f32 1.5, %v7238
      %v7240 = vmul.f32 %v7235, %v7239
      %vm7241 = vweird.f32 %v7093
      %vm7242 = vweird.f32 %v7235
      %vm7243 = vmor %vm7241, %vm7242
      %v7244 = vsel %vm7243, %v7235, %v7240
      %v7245 = vrsqrt.pop %v7094
      %v7246 = vmul.f32 %v7245, %v7094
      %v7247 = vmul.f32 %v7246, %v7245
      %v7248 = vmul.f32 0.5, %v7247
      %v7249 = vsub.f32 1.5, %v7248
      %v7250 = vmul.f32 %v7245, %v7249
      %vm7251 = vweird.f32 %v7094
      %vm7252 = vweird.f32 %v7245
      %vm7253 = vmor %vm7251, %vm7252
      %v7254 = vsel %vm7253, %v7245, %v7250
      %v7255 = vmul.f32 %v6983, %v7104
      %v7256 = vmul.f32 %v6984, %v7114
      %v7257 = vmul.f32 %v6985, %v7124
      %v7258 = vmul.f32 %v6986, %v7134
      %v7259 = vmul.f32 %v6987, %v7144
      %v7260 = vmul.f32 %v6988, %v7154
      %v7261 = vmul.f32 %v6989, %v7164
      %v7262 = vmul.f32 %v6990, %v7174
      %v7263 = vmul.f32 %v6991, %v7184
      %v7264 = vmul.f32 %v6992, %v7194
      %v7265 = vmul.f32 %v6993, %v7204
      %v7266 = vmul.f32 %v6994, %v7214
      %v7267 = vmul.f32 %v6995, %v7224
      %v7268 = vmul.f32 %v6996, %v7234
      %v7269 = vmul.f32 %v6997, %v7244
      %v7270 = vmul.f32 %v6998, %v7254
      %v7272 = vperm.slane %v6917, 0
      %v7274 = vmul.f32 %v7255, %v7272
      %v7275 = vmul.f32 %v7256, %v7272
      %v7276 = vmul.f32 %v7257, %v7272
      %v7277 = vmul.f32 %v7258, %v7272
      %v7278 = vmul.f32 %v7259, %v7272
      %v7279 = vmul.f32 %v7260, %v7272
      %v7280 = vmul.f32 %v7261, %v7272
      %v7281 = vmul.f32 %v7262, %v7272
      %v7282 = vmul.f32 %v7263, %v7272
      %v7283 = vmul.f32 %v7264, %v7272
      %v7284 = vmul.f32 %v7265, %v7272
      %v7285 = vmul.f32 %v7266, %v7272
      %v7286 = vmul.f32 %v7267, %v7272
      %v7287 = vmul.f32 %v7268, %v7272
      %v7288 = vmul.f32 %v7269, %v7272
      %v7289 = vmul.f32 %v7270, %v7272
      %v7291 = vperm.slane %v6918, 0
      %v7293 = vadd.f32 %v7274, %v7291
      %v7294 = vadd.f32 %v7275, %v7291
      %v7295 = vadd.f32 %v7276, %v7291
      %v7296 = vadd.f32 %v7277, %v7291
      %v7297 = vadd.f32 %v7278, %v7291
      %v7298 = vadd.f32 %v7279, %v7291
      %v7299 = vadd.f32 %v7280, %v7291
      %v7300 = vadd.f32 %v7281, %v7291
      %v7301 = vadd.f32 %v7282, %v7291
      %v7302 = vadd.f32 %v7283, %v7291
      %v7303 = vadd.f32 %v7284, %v7291
      %v7304 = vadd.f32 %v7285, %v7291
      %v7305 = vadd.f32 %v7286, %v7291
      %v7306 = vadd.f32 %v7287, %v7291
      %v7307 = vadd.f32 %v7288, %v7291
      %v7308 = vadd.f32 %v7289, %v7291
      %7309 = vst.msk [vmem:[%s528] sm:$0xff] %vm593, %v7293
      %7310 = vst.msk [vmem:[%s528 + $0x8] sm:$0xff] %vm593, %v7294
      %7311 = vst.msk [vmem:[%s528 + $0x10] sm:$0xff] %vm593, %v7295
      %7312 = vst.msk [vmem:[%s528 + $0x18] sm:$0xff] %vm593, %v7296
      %7313 = vst.msk [vmem:[%s528 + $0x20] sm:$0xff] %vm593, %v7297
      %7314 = vst.msk [vmem:[%s528 + $0x28] sm:$0xff] %vm593, %v7298
      %7315 = vst.msk [vmem:[%s528 + $0x30] sm:$0xff] %vm593, %v7299
      %7316 = vst.msk [vmem:[%s528 + $0x38] sm:$0xff] %vm593, %v7300
      %7317 = vst.msk [vmem:[%s528 + $0x40] sm:$0xff] %vm593, %v7301
      %7318 = vst.msk [vmem:[%s528 + $0x48] sm:$0xff] %vm593, %v7302
      %7319 = vst.msk [vmem:[%s528 + $0x50] sm:$0xff] %vm593, %v7303
      %7320 = vst.msk [vmem:[%s528 + $0x58] sm:$0xff] %vm593, %v7304
      %7321 = vst.msk [vmem:[%s528 + $0x60] sm:$0xff] %vm593, %v7305
      %7322 = vst.msk [vmem:[%s528 + $0x68] sm:$0xff] %vm593, %v7306
      %7323 = vst.msk [vmem:[%s528 + $0x70] sm:$0xff] %vm593, %v7307
      %7324 = vst.msk [vmem:[%s528 + $0x78] sm:$0xff] %vm593, %v7308
      %s7325 = smul.u32 16, %s28
      %p7326 = scmp.lt.s32.totalorder %s7325, 31
      %s7327 = scalar_select %p7326, %s7325, 31
      %s7328 = smul.addr %s7327, 8
      %s7329 = scalar_lea.vmem %s17, %s7328
      // Predicated region
      $region89: #{tpu_custom_call.1} parent=87 // pred_check
        %p7330 = pneg %p403
      $region90: #{tpu_custom_call.1} parent=87 // pred_check_branch
        %7332 = sbr.rel (%p7330) target = $region92
      $region91: #{tpu_custom_call.1} parent=87 // pred_region
        %s7333 = smul.u32 16, %s28
      $region92: #{tpu_custom_call.1} parent=87 // pred_fallthru
        _
    $region88: #{tpu_custom_call.1} parent=5 // pred_fallthru
      _
    %p7334 = scmp.le.s32.totalorder 2, %s23
    // Predicated region
    $region93: #{tpu_custom_call.1} parent=5 // pred_check
      %p7335 = pneg %p7334
    $region94: #{tpu_custom_call.1} parent=5 // pred_check_branch
      %7337 = sbr.rel (%p7335) target = $region96
    $region95: #{tpu_custom_call.1} parent=5 // pred_region
      %s7338 = ssub.s32 %s23, 2
      // Predicated region
      $region97: #{tpu_custom_call.1} parent=95 // pred_check
        %p7339 = pneg %p409
      $region98: #{tpu_custom_call.1} parent=95 // pred_check_branch
        %7341 = sbr.rel (%p7339) target = $region100
      $region99: #{tpu_custom_call.1} parent=95 // pred_region
        %s7342 = smul.u32 16, %s29
        %p7343 = scmp.lt.s32.totalorder %s7342, 31
        %s7344 = scalar_select %p7343, %s7342, 31
        %s7345 = smul.addr %s7344, 8
        %s7346 = scalar_lea.vmem %s17, %s7345
      $region100: #{tpu_custom_call.1} parent=95 // pred_fallthru
        _
    $region96: #{tpu_custom_call.1} parent=5 // pred_fallthru
      _
  $region6: #{tpu_custom_call.1} parent=0 // loop_footer
    %s27 = sadd.s32 1, %s23
  $region7: #{tpu_custom_call.1} parent=0 // loop_footer_branch
    %22 = sbr.rel target = $region3
  $region8: #{tpu_custom_call.1} parent=0 // loop_exit
    _

</llo_original>
